<compile_context>
chip_gen: v5e
topology: v5e:2x2
jax: 0.10.0
libtpu: 0.0.40
codegen_flags: <defaults>
</compile_context>

<pallas_src>
import functools
import math

import jax
import jax.numpy as jnp
from jax import lax
from jax.experimental import pallas as pl
from jax.experimental.pallas import tpu as pltpu

LN_EPS = 1e-5
KIM_HEIGHTS = (2, 3, 4, 5)


# ------------------- fused transformer encoder layer kernel -------------------

def _encoder_layer_kernel(x_ref, wqkv_ref, bqkv_ref, wo_ref, bo_ref,
                          n1w_ref, n1b_ref, w1_ref, b1_ref, w2_ref, b2_ref,
                          n2w_ref, n2b_ref, o_ref, *, num_heads):
    x = x_ref[0]                                     # (S, E) f32 for one batch element
    S, E = x.shape
    dh = E // num_heads
    scale = 1.0 / math.sqrt(dh)

    # --- packed QKV projection (bf16 MXU inputs, f32 accumulation) ---
    xb = x.astype(jnp.bfloat16)
    qkv = jnp.dot(xb, wqkv_ref[...], preferred_element_type=jnp.float32) + bqkv_ref[...]
    q = qkv[:, :E]
    k = qkv[:, E:2 * E]
    v = qkv[:, 2 * E:]

    # --- per-head attention; heads concatenated into a lane-dense (S, E) slab ---
    heads = []
    for h in range(num_heads):
        sl = slice(h * dh, (h + 1) * dh)
        qh = (q[:, sl] * scale).astype(jnp.bfloat16)
        kh = k[:, sl].astype(jnp.bfloat16)
        vh = v[:, sl].astype(jnp.bfloat16)
        s = jnp.dot(qh, kh.T, preferred_element_type=jnp.float32)        # (S, S)
        m = jnp.max(s, axis=-1, keepdims=True)
        p = jnp.exp(s - m)
        p = p * pl.reciprocal(jnp.sum(p, axis=-1, keepdims=True), approx=True)
        heads.append(jnp.dot(p.astype(jnp.bfloat16), vh,
                             preferred_element_type=jnp.float32))         # (S, dh)
    attn = jnp.concatenate(heads, axis=-1)                                # (S, E)

    attn = jnp.dot(attn.astype(jnp.bfloat16), wo_ref[...],
                   preferred_element_type=jnp.float32) + bo_ref[...]

    # --- residual + LayerNorm 1 (post-norm) ---
    h1 = x + attn
    mu = jnp.mean(h1, axis=-1, keepdims=True)
    var = jnp.mean(jnp.square(h1 - mu), axis=-1, keepdims=True)
    x1 = (h1 - mu) * lax.rsqrt(var + LN_EPS) * n1w_ref[...] + n1b_ref[...]

    # --- FFN (ReLU) ---
    ff = jnp.dot(x1.astype(jnp.bfloat16), w1_ref[...],
                 preferred_element_type=jnp.float32) + b1_ref[...]
    ff = jnp.maximum(ff, 0.0)
    ff = jnp.dot(ff.astype(jnp.bfloat16), w2_ref[...],
                 preferred_element_type=jnp.float32) + b2_ref[...]

    # --- residual + LayerNorm 2 ---
    h2 = x1 + ff
    mu2 = jnp.mean(h2, axis=-1, keepdims=True)
    var2 = jnp.mean(jnp.square(h2 - mu2), axis=-1, keepdims=True)
    o_ref[0] = (h2 - mu2) * lax.rsqrt(var2 + LN_EPS) * n2w_ref[...] + n2b_ref[...]


def encoder_layer(x, p, *, num_heads):
    B, S, E = x.shape
    FF = p['w1'].shape[1]

    def rep2d(shape):
        return pl.BlockSpec(shape, lambda b: (0, 0))     # weights replicated per batch step

    return pl.pallas_call(
        functools.partial(_encoder_layer_kernel, num_heads=num_heads),
        out_shape=jax.ShapeDtypeStruct((B, S, E), jnp.float32),
        grid=(B,),
        in_specs=[
            pl.BlockSpec((1, S, E), lambda b: (b, 0, 0)),
            rep2d((E, 3 * E)), rep2d((1, 3 * E)),
            rep2d((E, E)), rep2d((1, E)),
            rep2d((1, E)), rep2d((1, E)),
            rep2d((E, FF)), rep2d((1, FF)),
            rep2d((FF, E)), rep2d((1, E)),
            rep2d((1, E)), rep2d((1, E)),
        ],
        out_specs=pl.BlockSpec((1, S, E), lambda b: (b, 0, 0)),
        compiler_params=pltpu.CompilerParams(
            dimension_semantics=("parallel",)),   # batch axis across TensorCores (v7x)
    )(x, p['wqkv'], p['bqkv'], p['wo'], p['bo'], p['n1w'], p['n1b'],
      p['w1'], p['b1'], p['w2'], p['b2'], p['n2w'], p['n2b'])


# ---------------- fused KimCNN (4 branches) + max-pool + concat + FC ----------------

def _kimcnn_fc_kernel(x_ref, w2_ref, b2_ref, w3_ref, b3_ref, w4_ref, b4_ref,
                      w5_ref, b5_ref, fcw_ref, fcb_ref, o_ref, *, heights):
    conv_refs = ((w2_ref, b2_ref), (w3_ref, b3_ref), (w4_ref, b4_ref), (w5_ref, b5_ref))

    x = x_ref[...]                                   # (B, S, E) f32
    B, S, E = x.shape
    x2 = x.reshape(B * S, E).astype(jnp.bfloat16)    # row-aligned lane-dense operand

    pooled = []
    for (h, (w_ref, b_ref)) in zip(heights, conv_refs):
        C = w_ref.shape[1]                           # padded channel count (128)
        L = S - h + 1
        acc = jnp.zeros((B, L, C), jnp.float32)
        # conv(kernel (h, E)) == sum over h row-shifts of a plain (E -> C) matmul;
        # no sliding-window tensor is ever materialized.
        for r in range(h):
            wr = w_ref[r * E:(r + 1) * E, :]                                  # (E, C) bf16
            y = jnp.dot(x2, wr, preferred_element_type=jnp.float32)          # (B*S, C)
            y = y.reshape(B, S, C)
            acc = acc + y[:, r:r + L, :]
        y = jnp.maximum(acc + b_ref[...][None], 0.0)                          # bias + ReLU
        pooled.append(jnp.max(y, axis=1))                                     # max over time

    kim = jnp.concatenate(pooled, axis=-1)                                    # (B, 4*Cpad)
    # dropout(p=0.5) identity in eval
    out = jnp.dot(kim.astype(jnp.bfloat16), fcw_ref[...],
                  preferred_element_type=jnp.float32) + fcb_ref[...]
    o_ref[...] = out                                                          # (B, Npad=128)


def kimcnn_fc(x, params):
    B, S, E = x.shape
    n_pad = params['fc_w'].shape[1]
    args = [x]
    for w, b in params['conv']:
        args += [w, b]
    args += [params['fc_w'], params['fc_b']]
    vmem = pl.BlockSpec(memory_space=pltpu.MemorySpace.VMEM)
    return pl.pallas_call(
        functools.partial(_kimcnn_fc_kernel, heights=KIM_HEIGHTS),
        out_shape=jax.ShapeDtypeStruct((B, n_pad), jnp.float32),
        in_specs=[vmem] * len(args),
        out_specs=vmem,
    )(*args)


# ------------------------------ forward ------------------------------

def encoder_kimcnn_forward(bert_output, params, *, num_heads, num_classes):
    """bert_output: (B, S, E) — stands in for bert(...).last_hidden_state."""
    x = bert_output
    for lp in params['layers']:
        x = encoder_layer(x, lp, num_heads=num_heads)
    logits_padded = kimcnn_fc(x, params)         # (B, 128) lane-dense
    return logits_padded[:, :num_classes]        # (B, numClasses)


# ------------------------------ params ------------------------------

def init_params(key, *, emb_dim, ff_dim, num_layers, conv_channels, num_classes):
    """Deterministic params in PyTorch layout."""
    def nrm(k, shape, scale=0.02):
        return (scale * jax.random.normal(k, shape)).astype(jnp.float32)

    params = {'encoder_layers': [], 'conv_w': [], 'conv_b': []}
    for _ in range(num_layers):
        key, *ks = jax.random.split(key, 9)
        params['encoder_layers'].append({
            'in_proj_w': nrm(ks[0], (3 * emb_dim, emb_dim)),
            'in_proj_b': nrm(ks[1], (3 * emb_dim,)),
            'out_proj_w': nrm(ks[2], (emb_dim, emb_dim)),
            'out_proj_b': nrm(ks[3], (emb_dim,)),
            'lin1_w': nrm(ks[4], (ff_dim, emb_dim)),
            'lin1_b': nrm(ks[5], (ff_dim,)),
            'lin2_w': nrm(ks[6], (emb_dim, ff_dim)),
            'lin2_b': nrm(ks[7], (emb_dim,)),
            'norm1_w': jnp.ones((emb_dim,), jnp.float32),
            'norm1_b': jnp.zeros((emb_dim,), jnp.float32),
            'norm2_w': jnp.ones((emb_dim,), jnp.float32),
            'norm2_b': jnp.zeros((emb_dim,), jnp.float32),
        })

    for h in KIM_HEIGHTS:
        key, k1, k2 = jax.random.split(key, 3)
        # PyTorch Conv2d weight (C, 1, h, E) flattened row-major -> (C, h*E)
        params['conv_w'].append(nrm(k1, (conv_channels, h * emb_dim)))
        params['conv_b'].append(nrm(k2, (conv_channels,)))

    key, k1, k2 = jax.random.split(key, 3)
    params['fc_w'] = nrm(k1, (num_classes, len(KIM_HEIGHTS) * conv_channels))
    params['fc_b'] = nrm(k2, (num_classes,))
    return params


def pack_params(raw, *, emb_dim, conv_channels, num_classes, c_pad=128, n_pad=128):
    """One-time (outside jit) transpose/pad/bf16-cast to kernel-friendly layout."""
    E = emb_dim
    packed = {'layers': [], 'conv': []}
    for lp in raw['encoder_layers']:
        packed['layers'].append({
            'wqkv': lp['in_proj_w'].T.astype(jnp.bfloat16),       # (E, 3E)
            'bqkv': lp['in_proj_b'].reshape(1, -1),
            'wo':   lp['out_proj_w'].T.astype(jnp.bfloat16),      # (E, E)
            'bo':   lp['out_proj_b'].reshape(1, -1),
            'w1':   lp['lin1_w'].T.astype(jnp.bfloat16),          # (E, FF)
            'b1':   lp['lin1_b'].reshape(1, -1),
            'w2':   lp['lin2_w'].T.astype(jnp.bfloat16),          # (FF, E)
            'b2':   lp['lin2_b'].reshape(1, -1),
            'n1w':  lp['norm1_w'].reshape(1, -1),
            'n1b':  lp['norm1_b'].reshape(1, -1),
            'n2w':  lp['norm2_w'].reshape(1, -1),
            'n2b':  lp['norm2_b'].reshape(1, -1),
        })

    C = conv_channels
    for h, cw, cb in zip(KIM_HEIGHTS, raw['conv_w'], raw['conv_b']):
        w = jnp.zeros((h * E, c_pad), jnp.float32).at[:, :C].set(cw.T)
        b = jnp.zeros((1, c_pad), jnp.float32).at[:, :C].set(cb)
        packed['conv'].append((w.astype(jnp.bfloat16), b))

    # fc weight rearranged to the padded/concatenated (4*c_pad, n_pad) layout
    fcw = jnp.zeros((len(KIM_HEIGHTS) * c_pad, n_pad), jnp.float32)
    for i in range(len(KIM_HEIGHTS)):
        blk = raw['fc_w'][:, i * C:(i + 1) * C].T                 # (C, num_classes)
        fcw = fcw.at[i * c_pad:i * c_pad + C, :num_classes].set(blk)
    packed['fc_w'] = fcw.astype(jnp.bfloat16)
    packed['fc_b'] = jnp.zeros((1, n_pad), jnp.float32).at[:, :num_classes].set(raw['fc_b'])
    return packed


# ------------------------------ main ------------------------------

if __name__ == "__main__":
    # Small, forward-consistent shapes: batch=2, seq=16, emb=128, heads=8, ffn=256,
    # 100 filters per KimCNN branch, 27 classes.
    B, S, E = 2, 16, 128
    NUM_HEADS = 8
    FF_DIM = 256
    NUM_LAYERS = 3
    CONV_CH = 100
    NUM_CLASSES = 27

    key = jax.random.PRNGKey(0)
    key, pkey, xkey = jax.random.split(key, 3)

    raw_params = init_params(pkey, emb_dim=E, ff_dim=FF_DIM, num_layers=NUM_LAYERS,
                             conv_channels=CONV_CH, num_classes=NUM_CLASSES)
    params = pack_params(raw_params, emb_dim=E, conv_channels=CONV_CH,
                         num_classes=NUM_CLASSES)

    # synthetic stand-in for bert(...).last_hidden_state
    bert_output = jax.random.normal(xkey, (B, S, E), dtype=jnp.float32)

    fwd = jax.jit(functools.partial(encoder_kimcnn_forward,
                                    num_heads=NUM_HEADS, num_classes=NUM_CLASSES))
    out = jax.block_until_ready(fwd(bert_output, params))
    assert out.shape == (B, NUM_CLASSES) and out.dtype == jnp.float32
    print("KERNEL_OK")
</pallas_src>

<mosaic_0001>
module attributes {stable_mosaic.version = 11 : i64} {
  func.func @_encoder_layer_kernel(%arg0: i32, %arg1: memref<1x16x128xf32, #tpu.memory_space<vmem>>, %arg2: memref<128x384xbf16, #tpu.memory_space<vmem>>, %arg3: memref<1x384xf32, #tpu.memory_space<vmem>>, %arg4: memref<128x128xbf16, #tpu.memory_space<vmem>>, %arg5: memref<1x128xf32, #tpu.memory_space<vmem>>, %arg6: memref<1x128xf32, #tpu.memory_space<vmem>>, %arg7: memref<1x128xf32, #tpu.memory_space<vmem>>, %arg8: memref<128x256xbf16, #tpu.memory_space<vmem>>, %arg9: memref<1x256xf32, #tpu.memory_space<vmem>>, %arg10: memref<256x128xbf16, #tpu.memory_space<vmem>>, %arg11: memref<1x128xf32, #tpu.memory_space<vmem>>, %arg12: memref<1x128xf32, #tpu.memory_space<vmem>>, %arg13: memref<1x128xf32, #tpu.memory_space<vmem>>, %arg14: memref<1x16x128xf32, #tpu.memory_space<vmem>>) attributes {dimension_semantics = [#tpu.dimension_semantics<parallel>], iteration_bounds = array<i64: 2>, scalar_prefetch = 0 : i64, scratch_operands = 0 : i64, tpu.core_type = #tpu.core_type<tc>, window_params = [{transform_indices = @transform_0, window_bounds = array<i64: 1, 16, 128>}, {pipeline_mode = #tpu.pipeline_mode<synchronous>, transform_indices = @transform_1, window_bounds = array<i64: 128, 384>}, {pipeline_mode = #tpu.pipeline_mode<synchronous>, transform_indices = @transform_2, window_bounds = array<i64: 1, 384>}, {pipeline_mode = #tpu.pipeline_mode<synchronous>, transform_indices = @transform_3, window_bounds = array<i64: 128, 128>}, {pipeline_mode = #tpu.pipeline_mode<synchronous>, transform_indices = @transform_4, window_bounds = array<i64: 1, 128>}, {pipeline_mode = #tpu.pipeline_mode<synchronous>, transform_indices = @transform_5, window_bounds = array<i64: 1, 128>}, {pipeline_mode = #tpu.pipeline_mode<synchronous>, transform_indices = @transform_6, window_bounds = array<i64: 1, 128>}, {pipeline_mode = #tpu.pipeline_mode<synchronous>, transform_indices = @transform_7, window_bounds = array<i64: 128, 256>}, {pipeline_mode = #tpu.pipeline_mode<synchronous>, transform_indices = @transform_8, window_bounds = array<i64: 1, 256>}, {pipeline_mode = #tpu.pipeline_mode<synchronous>, transform_indices = @transform_9, window_bounds = array<i64: 256, 128>}, {pipeline_mode = #tpu.pipeline_mode<synchronous>, transform_indices = @transform_10, window_bounds = array<i64: 1, 128>}, {pipeline_mode = #tpu.pipeline_mode<synchronous>, transform_indices = @transform_11, window_bounds = array<i64: 1, 128>}, {pipeline_mode = #tpu.pipeline_mode<synchronous>, transform_indices = @transform_12, window_bounds = array<i64: 1, 128>}, {transform_indices = @transform_13, window_bounds = array<i64: 1, 16, 128>}]} {
    %c0 = arith.constant 0 : index
    %c0_0 = arith.constant 0 : index
    %c0_1 = arith.constant 0 : index
    %0 = vector.load %arg1[%c0, %c0_0, %c0_1] : memref<1x16x128xf32, #tpu.memory_space<vmem>>, vector<1x16x128xf32>
    %1 = vector.shape_cast %0 : vector<1x16x128xf32> to vector<16x128xf32>
    %2 = arith.truncf %1 : vector<16x128xf32> to vector<16x128xbf16>
    %c0_2 = arith.constant 0 : index
    %c0_3 = arith.constant 0 : index
    %3 = vector.load %arg2[%c0_2, %c0_3] : memref<128x384xbf16, #tpu.memory_space<vmem>>, vector<128x384xbf16>
    %cst = arith.constant dense<0.000000e+00> : vector<16x384xf32>
    %4 = tpu.matmul %2, %3, %cst {dimension_numbers = #tpu.dot_dimension_numbers<[1], [0], [0], [1], [0, 0, 1, 1], [], []>} : vector<16x128xbf16>, vector<128x384xbf16>, vector<16x384xf32> -> vector<16x384xf32>
    %c0_4 = arith.constant 0 : index
    %c0_5 = arith.constant 0 : index
    %5 = vector.load %arg3[%c0_4, %c0_5] : memref<1x384xf32, #tpu.memory_space<vmem>>, vector<1x384xf32>
    %6 = vector.broadcast %5 : vector<1x384xf32> to vector<16x384xf32>
    %7 = arith.addf %4, %6 : vector<16x384xf32>
    %8 = vector.extract_strided_slice %7 {offsets = [0, 0], sizes = [16, 128], strides = [1, 1]} : vector<16x384xf32> to vector<16x128xf32>
    %9 = vector.extract_strided_slice %7 {offsets = [0, 128], sizes = [16, 128], strides = [1, 1]} : vector<16x384xf32> to vector<16x128xf32>
    %10 = vector.extract_strided_slice %7 {offsets = [0, 256], sizes = [16, 128], strides = [1, 1]} : vector<16x384xf32> to vector<16x128xf32>
    %11 = vector.extract_strided_slice %8 {offsets = [0, 0], sizes = [16, 16], strides = [1, 1]} : vector<16x128xf32> to vector<16x16xf32>
    %cst_6 = arith.constant 2.500000e-01 : f32
    %12 = vector.broadcast %cst_6 : f32 to vector<16x16xf32>
    %13 = arith.mulf %11, %12 : vector<16x16xf32>
    %14 = arith.truncf %13 : vector<16x16xf32> to vector<16x16xbf16>
    %15 = vector.extract_strided_slice %9 {offsets = [0, 0], sizes = [16, 16], strides = [1, 1]} : vector<16x128xf32> to vector<16x16xf32>
    %16 = arith.truncf %15 : vector<16x16xf32> to vector<16x16xbf16>
    %17 = vector.extract_strided_slice %10 {offsets = [0, 0], sizes = [16, 16], strides = [1, 1]} : vector<16x128xf32> to vector<16x16xf32>
    %18 = arith.truncf %17 : vector<16x16xf32> to vector<16x16xbf16>
    %19 = tpu.transpose %16, [1, 0] : vector<16x16xbf16> -> vector<16x16xbf16>
    %cst_7 = arith.constant dense<0.000000e+00> : vector<16x16xf32>
    %20 = tpu.matmul %14, %19, %cst_7 {dimension_numbers = #tpu.dot_dimension_numbers<[1], [0], [0], [1], [0, 0, 1, 1], [], []>} : vector<16x16xbf16>, vector<16x16xbf16>, vector<16x16xf32> -> vector<16x16xf32>
    %cst_8 = arith.constant dense<0xFF800000> : vector<16xf32>
    %21 = vector.multi_reduction <maximumf>, %20, %cst_8 [1] : vector<16x16xf32> to vector<16xf32>
    %22 = vector.shape_cast %21 : vector<16xf32> to vector<16x1xf32>
    %23 = vector.broadcast %22 : vector<16x1xf32> to vector<16x16xf32>
    %24 = arith.subf %20, %23 : vector<16x16xf32>
    %25 = math.exp %24 : vector<16x16xf32>
    %cst_9 = arith.constant dense<0.000000e+00> : vector<16xf32>
    %26 = vector.multi_reduction <add>, %25, %cst_9 [1] : vector<16x16xf32> to vector<16xf32>
    %27 = vector.shape_cast %26 : vector<16xf32> to vector<16x1xf32>
    %28 = tpu.reciprocal %27 {approx = true} : vector<16x1xf32> -> vector<16x1xf32>
    %29 = vector.broadcast %28 : vector<16x1xf32> to vector<16x16xf32>
    %30 = arith.mulf %25, %29 : vector<16x16xf32>
    %31 = arith.truncf %30 : vector<16x16xf32> to vector<16x16xbf16>
    %cst_10 = arith.constant dense<0.000000e+00> : vector<16x16xf32>
    %32 = tpu.matmul %31, %18, %cst_10 {dimension_numbers = #tpu.dot_dimension_numbers<[1], [0], [0], [1], [0, 0, 1, 1], [], []>} : vector<16x16xbf16>, vector<16x16xbf16>, vector<16x16xf32> -> vector<16x16xf32>
    %33 = vector.extract_strided_slice %8 {offsets = [0, 16], sizes = [16, 16], strides = [1, 1]} : vector<16x128xf32> to vector<16x16xf32>
    %cst_11 = arith.constant 2.500000e-01 : f32
    %34 = vector.broadcast %cst_11 : f32 to vector<16x16xf32>
    %35 = arith.mulf %33, %34 : vector<16x16xf32>
    %36 = arith.truncf %35 : vector<16x16xf32> to vector<16x16xbf16>
    %37 = vector.extract_strided_slice %9 {offsets = [0, 16], sizes = [16, 16], strides = [1, 1]} : vector<16x128xf32> to vector<16x16xf32>
    %38 = arith.truncf %37 : vector<16x16xf32> to vector<16x16xbf16>
    %39 = vector.extract_strided_slice %10 {offsets = [0, 16], sizes = [16, 16], strides = [1, 1]} : vector<16x128xf32> to vector<16x16xf32>
    %40 = arith.truncf %39 : vector<16x16xf32> to vector<16x16xbf16>
    %41 = tpu.transpose %38, [1, 0] : vector<16x16xbf16> -> vector<16x16xbf16>
    %cst_12 = arith.constant dense<0.000000e+00> : vector<16x16xf32>
    %42 = tpu.matmul %36, %41, %cst_12 {dimension_numbers = #tpu.dot_dimension_numbers<[1], [0], [0], [1], [0, 0, 1, 1], [], []>} : vector<16x16xbf16>, vector<16x16xbf16>, vector<16x16xf32> -> vector<16x16xf32>
    %cst_13 = arith.constant dense<0xFF800000> : vector<16xf32>
    %43 = vector.multi_reduction <maximumf>, %42, %cst_13 [1] : vector<16x16xf32> to vector<16xf32>
    %44 = vector.shape_cast %43 : vector<16xf32> to vector<16x1xf32>
    %45 = vector.broadcast %44 : vector<16x1xf32> to vector<16x16xf32>
    %46 = arith.subf %42, %45 : vector<16x16xf32>
    %47 = math.exp %46 : vector<16x16xf32>
    %cst_14 = arith.constant dense<0.000000e+00> : vector<16xf32>
    %48 = vector.multi_reduction <add>, %47, %cst_14 [1] : vector<16x16xf32> to vector<16xf32>
    %49 = vector.shape_cast %48 : vector<16xf32> to vector<16x1xf32>
    %50 = tpu.reciprocal %49 {approx = true} : vector<16x1xf32> -> vector<16x1xf32>
    %51 = vector.broadcast %50 : vector<16x1xf32> to vector<16x16xf32>
    %52 = arith.mulf %47, %51 : vector<16x16xf32>
    %53 = arith.truncf %52 : vector<16x16xf32> to vector<16x16xbf16>
    %cst_15 = arith.constant dense<0.000000e+00> : vector<16x16xf32>
    %54 = tpu.matmul %53, %40, %cst_15 {dimension_numbers = #tpu.dot_dimension_numbers<[1], [0], [0], [1], [0, 0, 1, 1], [], []>} : vector<16x16xbf16>, vector<16x16xbf16>, vector<16x16xf32> -> vector<16x16xf32>
    %55 = vector.extract_strided_slice %8 {offsets = [0, 32], sizes = [16, 16], strides = [1, 1]} : vector<16x128xf32> to vector<16x16xf32>
    %cst_16 = arith.constant 2.500000e-01 : f32
    %56 = vector.broadcast %cst_16 : f32 to vector<16x16xf32>
    %57 = arith.mulf %55, %56 : vector<16x16xf32>
    %58 = arith.truncf %57 : vector<16x16xf32> to vector<16x16xbf16>
    %59 = vector.extract_strided_slice %9 {offsets = [0, 32], sizes = [16, 16], strides = [1, 1]} : vector<16x128xf32> to vector<16x16xf32>
    %60 = arith.truncf %59 : vector<16x16xf32> to vector<16x16xbf16>
    %61 = vector.extract_strided_slice %10 {offsets = [0, 32], sizes = [16, 16], strides = [1, 1]} : vector<16x128xf32> to vector<16x16xf32>
    %62 = arith.truncf %61 : vector<16x16xf32> to vector<16x16xbf16>
    %63 = tpu.transpose %60, [1, 0] : vector<16x16xbf16> -> vector<16x16xbf16>
    %cst_17 = arith.constant dense<0.000000e+00> : vector<16x16xf32>
    %64 = tpu.matmul %58, %63, %cst_17 {dimension_numbers = #tpu.dot_dimension_numbers<[1], [0], [0], [1], [0, 0, 1, 1], [], []>} : vector<16x16xbf16>, vector<16x16xbf16>, vector<16x16xf32> -> vector<16x16xf32>
    %cst_18 = arith.constant dense<0xFF800000> : vector<16xf32>
    %65 = vector.multi_reduction <maximumf>, %64, %cst_18 [1] : vector<16x16xf32> to vector<16xf32>
    %66 = vector.shape_cast %65 : vector<16xf32> to vector<16x1xf32>
    %67 = vector.broadcast %66 : vector<16x1xf32> to vector<16x16xf32>
    %68 = arith.subf %64, %67 : vector<16x16xf32>
    %69 = math.exp %68 : vector<16x16xf32>
    %cst_19 = arith.constant dense<0.000000e+00> : vector<16xf32>
    %70 = vector.multi_reduction <add>, %69, %cst_19 [1] : vector<16x16xf32> to vector<16xf32>
    %71 = vector.shape_cast %70 : vector<16xf32> to vector<16x1xf32>
    %72 = tpu.reciprocal %71 {approx = true} : vector<16x1xf32> -> vector<16x1xf32>
    %73 = vector.broadcast %72 : vector<16x1xf32> to vector<16x16xf32>
    %74 = arith.mulf %69, %73 : vector<16x16xf32>
    %75 = arith.truncf %74 : vector<16x16xf32> to vector<16x16xbf16>
    %cst_20 = arith.constant dense<0.000000e+00> : vector<16x16xf32>
    %76 = tpu.matmul %75, %62, %cst_20 {dimension_numbers = #tpu.dot_dimension_numbers<[1], [0], [0], [1], [0, 0, 1, 1], [], []>} : vector<16x16xbf16>, vector<16x16xbf16>, vector<16x16xf32> -> vector<16x16xf32>
    %77 = vector.extract_strided_slice %8 {offsets = [0, 48], sizes = [16, 16], strides = [1, 1]} : vector<16x128xf32> to vector<16x16xf32>
    %cst_21 = arith.constant 2.500000e-01 : f32
    %78 = vector.broadcast %cst_21 : f32 to vector<16x16xf32>
    %79 = arith.mulf %77, %78 : vector<16x16xf32>
    %80 = arith.truncf %79 : vector<16x16xf32> to vector<16x16xbf16>
    %81 = vector.extract_strided_slice %9 {offsets = [0, 48], sizes = [16, 16], strides = [1, 1]} : vector<16x128xf32> to vector<16x16xf32>
    %82 = arith.truncf %81 : vector<16x16xf32> to vector<16x16xbf16>
    %83 = vector.extract_strided_slice %10 {offsets = [0, 48], sizes = [16, 16], strides = [1, 1]} : vector<16x128xf32> to vector<16x16xf32>
    %84 = arith.truncf %83 : vector<16x16xf32> to vector<16x16xbf16>
    %85 = tpu.transpose %82, [1, 0] : vector<16x16xbf16> -> vector<16x16xbf16>
    %cst_22 = arith.constant dense<0.000000e+00> : vector<16x16xf32>
    %86 = tpu.matmul %80, %85, %cst_22 {dimension_numbers = #tpu.dot_dimension_numbers<[1], [0], [0], [1], [0, 0, 1, 1], [], []>} : vector<16x16xbf16>, vector<16x16xbf16>, vector<16x16xf32> -> vector<16x16xf32>
    %cst_23 = arith.constant dense<0xFF800000> : vector<16xf32>
    %87 = vector.multi_reduction <maximumf>, %86, %cst_23 [1] : vector<16x16xf32> to vector<16xf32>
    %88 = vector.shape_cast %87 : vector<16xf32> to vector<16x1xf32>
    %89 = vector.broadcast %88 : vector<16x1xf32> to vector<16x16xf32>
    %90 = arith.subf %86, %89 : vector<16x16xf32>
    %91 = math.exp %90 : vector<16x16xf32>
    %cst_24 = arith.constant dense<0.000000e+00> : vector<16xf32>
    %92 = vector.multi_reduction <add>, %91, %cst_24 [1] : vector<16x16xf32> to vector<16xf32>
    %93 = vector.shape_cast %92 : vector<16xf32> to vector<16x1xf32>
    %94 = tpu.reciprocal %93 {approx = true} : vector<16x1xf32> -> vector<16x1xf32>
    %95 = vector.broadcast %94 : vector<16x1xf32> to vector<16x16xf32>
    %96 = arith.mulf %91, %95 : vector<16x16xf32>
    %97 = arith.truncf %96 : vector<16x16xf32> to vector<16x16xbf16>
    %cst_25 = arith.constant dense<0.000000e+00> : vector<16x16xf32>
    %98 = tpu.matmul %97, %84, %cst_25 {dimension_numbers = #tpu.dot_dimension_numbers<[1], [0], [0], [1], [0, 0, 1, 1], [], []>} : vector<16x16xbf16>, vector<16x16xbf16>, vector<16x16xf32> -> vector<16x16xf32>
    %99 = vector.extract_strided_slice %8 {offsets = [0, 64], sizes = [16, 16], strides = [1, 1]} : vector<16x128xf32> to vector<16x16xf32>
    %cst_26 = arith.constant 2.500000e-01 : f32
    %100 = vector.broadcast %cst_26 : f32 to vector<16x16xf32>
    %101 = arith.mulf %99, %100 : vector<16x16xf32>
    %102 = arith.truncf %101 : vector<16x16xf32> to vector<16x16xbf16>
    %103 = vector.extract_strided_slice %9 {offsets = [0, 64], sizes = [16, 16], strides = [1, 1]} : vector<16x128xf32> to vector<16x16xf32>
    %104 = arith.truncf %103 : vector<16x16xf32> to vector<16x16xbf16>
    %105 = vector.extract_strided_slice %10 {offsets = [0, 64], sizes = [16, 16], strides = [1, 1]} : vector<16x128xf32> to vector<16x16xf32>
    %106 = arith.truncf %105 : vector<16x16xf32> to vector<16x16xbf16>
    %107 = tpu.transpose %104, [1, 0] : vector<16x16xbf16> -> vector<16x16xbf16>
    %cst_27 = arith.constant dense<0.000000e+00> : vector<16x16xf32>
    %108 = tpu.matmul %102, %107, %cst_27 {dimension_numbers = #tpu.dot_dimension_numbers<[1], [0], [0], [1], [0, 0, 1, 1], [], []>} : vector<16x16xbf16>, vector<16x16xbf16>, vector<16x16xf32> -> vector<16x16xf32>
    %cst_28 = arith.constant dense<0xFF800000> : vector<16xf32>
    %109 = vector.multi_reduction <maximumf>, %108, %cst_28 [1] : vector<16x16xf32> to vector<16xf32>
    %110 = vector.shape_cast %109 : vector<16xf32> to vector<16x1xf32>
    %111 = vector.broadcast %110 : vector<16x1xf32> to vector<16x16xf32>
    %112 = arith.subf %108, %111 : vector<16x16xf32>
    %113 = math.exp %112 : vector<16x16xf32>
    %cst_29 = arith.constant dense<0.000000e+00> : vector<16xf32>
    %114 = vector.multi_reduction <add>, %113, %cst_29 [1] : vector<16x16xf32> to vector<16xf32>
    %115 = vector.shape_cast %114 : vector<16xf32> to vector<16x1xf32>
    %116 = tpu.reciprocal %115 {approx = true} : vector<16x1xf32> -> vector<16x1xf32>
    %117 = vector.broadcast %116 : vector<16x1xf32> to vector<16x16xf32>
    %118 = arith.mulf %113, %117 : vector<16x16xf32>
    %119 = arith.truncf %118 : vector<16x16xf32> to vector<16x16xbf16>
    %cst_30 = arith.constant dense<0.000000e+00> : vector<16x16xf32>
    %120 = tpu.matmul %119, %106, %cst_30 {dimension_numbers = #tpu.dot_dimension_numbers<[1], [0], [0], [1], [0, 0, 1, 1], [], []>} : vector<16x16xbf16>, vector<16x16xbf16>, vector<16x16xf32> -> vector<16x16xf32>
    %121 = vector.extract_strided_slice %8 {offsets = [0, 80], sizes = [16, 16], strides = [1, 1]} : vector<16x128xf32> to vector<16x16xf32>
    %cst_31 = arith.constant 2.500000e-01 : f32
    %122 = vector.broadcast %cst_31 : f32 to vector<16x16xf32>
    %123 = arith.mulf %121, %122 : vector<16x16xf32>
    %124 = arith.truncf %123 : vector<16x16xf32> to vector<16x16xbf16>
    %125 = vector.extract_strided_slice %9 {offsets = [0, 80], sizes = [16, 16], strides = [1, 1]} : vector<16x128xf32> to vector<16x16xf32>
    %126 = arith.truncf %125 : vector<16x16xf32> to vector<16x16xbf16>
    %127 = vector.extract_strided_slice %10 {offsets = [0, 80], sizes = [16, 16], strides = [1, 1]} : vector<16x128xf32> to vector<16x16xf32>
    %128 = arith.truncf %127 : vector<16x16xf32> to vector<16x16xbf16>
    %129 = tpu.transpose %126, [1, 0] : vector<16x16xbf16> -> vector<16x16xbf16>
    %cst_32 = arith.constant dense<0.000000e+00> : vector<16x16xf32>
    %130 = tpu.matmul %124, %129, %cst_32 {dimension_numbers = #tpu.dot_dimension_numbers<[1], [0], [0], [1], [0, 0, 1, 1], [], []>} : vector<16x16xbf16>, vector<16x16xbf16>, vector<16x16xf32> -> vector<16x16xf32>
    %cst_33 = arith.constant dense<0xFF800000> : vector<16xf32>
    %131 = vector.multi_reduction <maximumf>, %130, %cst_33 [1] : vector<16x16xf32> to vector<16xf32>
    %132 = vector.shape_cast %131 : vector<16xf32> to vector<16x1xf32>
    %133 = vector.broadcast %132 : vector<16x1xf32> to vector<16x16xf32>
    %134 = arith.subf %130, %133 : vector<16x16xf32>
    %135 = math.exp %134 : vector<16x16xf32>
    %cst_34 = arith.constant dense<0.000000e+00> : vector<16xf32>
    %136 = vector.multi_reduction <add>, %135, %cst_34 [1] : vector<16x16xf32> to vector<16xf32>
    %137 = vector.shape_cast %136 : vector<16xf32> to vector<16x1xf32>
    %138 = tpu.reciprocal %137 {approx = true} : vector<16x1xf32> -> vector<16x1xf32>
    %139 = vector.broadcast %138 : vector<16x1xf32> to vector<16x16xf32>
    %140 = arith.mulf %135, %139 : vector<16x16xf32>
    %141 = arith.truncf %140 : vector<16x16xf32> to vector<16x16xbf16>
    %cst_35 = arith.constant dense<0.000000e+00> : vector<16x16xf32>
    %142 = tpu.matmul %141, %128, %cst_35 {dimension_numbers = #tpu.dot_dimension_numbers<[1], [0], [0], [1], [0, 0, 1, 1], [], []>} : vector<16x16xbf16>, vector<16x16xbf16>, vector<16x16xf32> -> vector<16x16xf32>
    %143 = vector.extract_strided_slice %8 {offsets = [0, 96], sizes = [16, 16], strides = [1, 1]} : vector<16x128xf32> to vector<16x16xf32>
    %cst_36 = arith.constant 2.500000e-01 : f32
    %144 = vector.broadcast %cst_36 : f32 to vector<16x16xf32>
    %145 = arith.mulf %143, %144 : vector<16x16xf32>
    %146 = arith.truncf %145 : vector<16x16xf32> to vector<16x16xbf16>
    %147 = vector.extract_strided_slice %9 {offsets = [0, 96], sizes = [16, 16], strides = [1, 1]} : vector<16x128xf32> to vector<16x16xf32>
    %148 = arith.truncf %147 : vector<16x16xf32> to vector<16x16xbf16>
    %149 = vector.extract_strided_slice %10 {offsets = [0, 96], sizes = [16, 16], strides = [1, 1]} : vector<16x128xf32> to vector<16x16xf32>
    %150 = arith.truncf %149 : vector<16x16xf32> to vector<16x16xbf16>
    %151 = tpu.transpose %148, [1, 0] : vector<16x16xbf16> -> vector<16x16xbf16>
    %cst_37 = arith.constant dense<0.000000e+00> : vector<16x16xf32>
    %152 = tpu.matmul %146, %151, %cst_37 {dimension_numbers = #tpu.dot_dimension_numbers<[1], [0], [0], [1], [0, 0, 1, 1], [], []>} : vector<16x16xbf16>, vector<16x16xbf16>, vector<16x16xf32> -> vector<16x16xf32>
    %cst_38 = arith.constant dense<0xFF800000> : vector<16xf32>
    %153 = vector.multi_reduction <maximumf>, %152, %cst_38 [1] : vector<16x16xf32> to vector<16xf32>
    %154 = vector.shape_cast %153 : vector<16xf32> to vector<16x1xf32>
    %155 = vector.broadcast %154 : vector<16x1xf32> to vector<16x16xf32>
    %156 = arith.subf %152, %155 : vector<16x16xf32>
    %157 = math.exp %156 : vector<16x16xf32>
    %cst_39 = arith.constant dense<0.000000e+00> : vector<16xf32>
    %158 = vector.multi_reduction <add>, %157, %cst_39 [1] : vector<16x16xf32> to vector<16xf32>
    %159 = vector.shape_cast %158 : vector<16xf32> to vector<16x1xf32>
    %160 = tpu.reciprocal %159 {approx = true} : vector<16x1xf32> -> vector<16x1xf32>
    %161 = vector.broadcast %160 : vector<16x1xf32> to vector<16x16xf32>
    %162 = arith.mulf %157, %161 : vector<16x16xf32>
    %163 = arith.truncf %162 : vector<16x16xf32> to vector<16x16xbf16>
    %cst_40 = arith.constant dense<0.000000e+00> : vector<16x16xf32>
    %164 = tpu.matmul %163, %150, %cst_40 {dimension_numbers = #tpu.dot_dimension_numbers<[1], [0], [0], [1], [0, 0, 1, 1], [], []>} : vector<16x16xbf16>, vector<16x16xbf16>, vector<16x16xf32> -> vector<16x16xf32>
    %165 = vector.extract_strided_slice %8 {offsets = [0, 112], sizes = [16, 16], strides = [1, 1]} : vector<16x128xf32> to vector<16x16xf32>
    %cst_41 = arith.constant 2.500000e-01 : f32
    %166 = vector.broadcast %cst_41 : f32 to vector<16x16xf32>
    %167 = arith.mulf %165, %166 : vector<16x16xf32>
    %168 = arith.truncf %167 : vector<16x16xf32> to vector<16x16xbf16>
    %169 = vector.extract_strided_slice %9 {offsets = [0, 112], sizes = [16, 16], strides = [1, 1]} : vector<16x128xf32> to vector<16x16xf32>
    %170 = arith.truncf %169 : vector<16x16xf32> to vector<16x16xbf16>
    %171 = vector.extract_strided_slice %10 {offsets = [0, 112], sizes = [16, 16], strides = [1, 1]} : vector<16x128xf32> to vector<16x16xf32>
    %172 = arith.truncf %171 : vector<16x16xf32> to vector<16x16xbf16>
    %173 = tpu.transpose %170, [1, 0] : vector<16x16xbf16> -> vector<16x16xbf16>
    %cst_42 = arith.constant dense<0.000000e+00> : vector<16x16xf32>
    %174 = tpu.matmul %168, %173, %cst_42 {dimension_numbers = #tpu.dot_dimension_numbers<[1], [0], [0], [1], [0, 0, 1, 1], [], []>} : vector<16x16xbf16>, vector<16x16xbf16>, vector<16x16xf32> -> vector<16x16xf32>
    %cst_43 = arith.constant dense<0xFF800000> : vector<16xf32>
    %175 = vector.multi_reduction <maximumf>, %174, %cst_43 [1] : vector<16x16xf32> to vector<16xf32>
    %176 = vector.shape_cast %175 : vector<16xf32> to vector<16x1xf32>
    %177 = vector.broadcast %176 : vector<16x1xf32> to vector<16x16xf32>
    %178 = arith.subf %174, %177 : vector<16x16xf32>
    %179 = math.exp %178 : vector<16x16xf32>
    %cst_44 = arith.constant dense<0.000000e+00> : vector<16xf32>
    %180 = vector.multi_reduction <add>, %179, %cst_44 [1] : vector<16x16xf32> to vector<16xf32>
    %181 = vector.shape_cast %180 : vector<16xf32> to vector<16x1xf32>
    %182 = tpu.reciprocal %181 {approx = true} : vector<16x1xf32> -> vector<16x1xf32>
    %183 = vector.broadcast %182 : vector<16x1xf32> to vector<16x16xf32>
    %184 = arith.mulf %179, %183 : vector<16x16xf32>
    %185 = arith.truncf %184 : vector<16x16xf32> to vector<16x16xbf16>
    %cst_45 = arith.constant dense<0.000000e+00> : vector<16x16xf32>
    %186 = tpu.matmul %185, %172, %cst_45 {dimension_numbers = #tpu.dot_dimension_numbers<[1], [0], [0], [1], [0, 0, 1, 1], [], []>} : vector<16x16xbf16>, vector<16x16xbf16>, vector<16x16xf32> -> vector<16x16xf32>
    %187 = tpu.concatenate %32, %54, %76, %98, %120, %142, %164, %186 in 1 : vector<16x16xf32>, vector<16x16xf32>, vector<16x16xf32>, vector<16x16xf32>, vector<16x16xf32>, vector<16x16xf32>, vector<16x16xf32>, vector<16x16xf32> -> vector<16x128xf32>
    %188 = arith.truncf %187 : vector<16x128xf32> to vector<16x128xbf16>
    %c0_46 = arith.constant 0 : index
    %c0_47 = arith.constant 0 : index
    %189 = vector.load %arg4[%c0_46, %c0_47] : memref<128x128xbf16, #tpu.memory_space<vmem>>, vector<128x128xbf16>
    %cst_48 = arith.constant dense<0.000000e+00> : vector<16x128xf32>
    %190 = tpu.matmul %188, %189, %cst_48 {dimension_numbers = #tpu.dot_dimension_numbers<[1], [0], [0], [1], [0, 0, 1, 1], [], []>} : vector<16x128xbf16>, vector<128x128xbf16>, vector<16x128xf32> -> vector<16x128xf32>
    %c0_49 = arith.constant 0 : index
    %c0_50 = arith.constant 0 : index
    %191 = vector.load %arg5[%c0_49, %c0_50] : memref<1x128xf32, #tpu.memory_space<vmem>>, vector<1x128xf32>
    %192 = vector.broadcast %191 : vector<1x128xf32> to vector<16x128xf32>
    %193 = arith.addf %190, %192 : vector<16x128xf32>
    %194 = arith.addf %1, %193 : vector<16x128xf32>
    %cst_51 = arith.constant dense<0.000000e+00> : vector<16xf32>
    %195 = vector.multi_reduction <add>, %194, %cst_51 [1] : vector<16x128xf32> to vector<16xf32>
    %196 = vector.shape_cast %195 : vector<16xf32> to vector<16x1xf32>
    %cst_52 = arith.constant 1.280000e+02 : f32
    %197 = vector.broadcast %cst_52 : f32 to vector<16x1xf32>
    %198 = arith.divf %196, %197 : vector<16x1xf32>
    %199 = vector.broadcast %198 : vector<16x1xf32> to vector<16x128xf32>
    %200 = arith.subf %194, %199 : vector<16x128xf32>
    %201 = arith.mulf %200, %200 : vector<16x128xf32>
    %cst_53 = arith.constant dense<0.000000e+00> : vector<16xf32>
    %202 = vector.multi_reduction <add>, %201, %cst_53 [1] : vector<16x128xf32> to vector<16xf32>
    %203 = vector.shape_cast %202 : vector<16xf32> to vector<16x1xf32>
    %cst_54 = arith.constant 1.280000e+02 : f32
    %204 = vector.broadcast %cst_54 : f32 to vector<16x1xf32>
    %205 = arith.divf %203, %204 : vector<16x1xf32>
    %206 = vector.broadcast %198 : vector<16x1xf32> to vector<16x128xf32>
    %207 = arith.subf %194, %206 : vector<16x128xf32>
    %cst_55 = arith.constant 9.99999974E-6 : f32
    %208 = vector.broadcast %cst_55 : f32 to vector<16x1xf32>
    %209 = arith.addf %205, %208 : vector<16x1xf32>
    %210 = math.rsqrt %209 : vector<16x1xf32>
    %211 = vector.broadcast %210 : vector<16x1xf32> to vector<16x128xf32>
    %212 = arith.mulf %207, %211 : vector<16x128xf32>
    %c0_56 = arith.constant 0 : index
    %c0_57 = arith.constant 0 : index
    %213 = vector.load %arg6[%c0_56, %c0_57] : memref<1x128xf32, #tpu.memory_space<vmem>>, vector<1x128xf32>
    %214 = vector.broadcast %213 : vector<1x128xf32> to vector<16x128xf32>
    %215 = arith.mulf %212, %214 : vector<16x128xf32>
    %c0_58 = arith.constant 0 : index
    %c0_59 = arith.constant 0 : index
    %216 = vector.load %arg7[%c0_58, %c0_59] : memref<1x128xf32, #tpu.memory_space<vmem>>, vector<1x128xf32>
    %217 = vector.broadcast %216 : vector<1x128xf32> to vector<16x128xf32>
    %218 = arith.addf %215, %217 : vector<16x128xf32>
    %219 = arith.truncf %218 : vector<16x128xf32> to vector<16x128xbf16>
    %c0_60 = arith.constant 0 : index
    %c0_61 = arith.constant 0 : index
    %220 = vector.load %arg8[%c0_60, %c0_61] : memref<128x256xbf16, #tpu.memory_space<vmem>>, vector<128x256xbf16>
    %cst_62 = arith.constant dense<0.000000e+00> : vector<16x256xf32>
    %221 = tpu.matmul %219, %220, %cst_62 {dimension_numbers = #tpu.dot_dimension_numbers<[1], [0], [0], [1], [0, 0, 1, 1], [], []>} : vector<16x128xbf16>, vector<128x256xbf16>, vector<16x256xf32> -> vector<16x256xf32>
    %c0_63 = arith.constant 0 : index
    %c0_64 = arith.constant 0 : index
    %222 = vector.load %arg9[%c0_63, %c0_64] : memref<1x256xf32, #tpu.memory_space<vmem>>, vector<1x256xf32>
    %223 = vector.broadcast %222 : vector<1x256xf32> to vector<16x256xf32>
    %224 = arith.addf %221, %223 : vector<16x256xf32>
    %cst_65 = arith.constant 0.000000e+00 : f32
    %225 = vector.broadcast %cst_65 : f32 to vector<16x256xf32>
    %226 = arith.maximumf %224, %225 : vector<16x256xf32>
    %227 = arith.truncf %226 : vector<16x256xf32> to vector<16x256xbf16>
    %c0_66 = arith.constant 0 : index
    %c0_67 = arith.constant 0 : index
    %228 = vector.load %arg10[%c0_66, %c0_67] : memref<256x128xbf16, #tpu.memory_space<vmem>>, vector<256x128xbf16>
    %cst_68 = arith.constant dense<0.000000e+00> : vector<16x128xf32>
    %229 = tpu.matmul %227, %228, %cst_68 {dimension_numbers = #tpu.dot_dimension_numbers<[1], [0], [0], [1], [0, 0, 1, 1], [], []>} : vector<16x256xbf16>, vector<256x128xbf16>, vector<16x128xf32> -> vector<16x128xf32>
    %c0_69 = arith.constant 0 : index
    %c0_70 = arith.constant 0 : index
    %230 = vector.load %arg11[%c0_69, %c0_70] : memref<1x128xf32, #tpu.memory_space<vmem>>, vector<1x128xf32>
    %231 = vector.broadcast %230 : vector<1x128xf32> to vector<16x128xf32>
    %232 = arith.addf %229, %231 : vector<16x128xf32>
    %233 = arith.addf %218, %232 : vector<16x128xf32>
    %cst_71 = arith.constant dense<0.000000e+00> : vector<16xf32>
    %234 = vector.multi_reduction <add>, %233, %cst_71 [1] : vector<16x128xf32> to vector<16xf32>
    %235 = vector.shape_cast %234 : vector<16xf32> to vector<16x1xf32>
    %cst_72 = arith.constant 1.280000e+02 : f32
    %236 = vector.broadcast %cst_72 : f32 to vector<16x1xf32>
    %237 = arith.divf %235, %236 : vector<16x1xf32>
    %238 = vector.broadcast %237 : vector<16x1xf32> to vector<16x128xf32>
    %239 = arith.subf %233, %238 : vector<16x128xf32>
    %240 = arith.mulf %239, %239 : vector<16x128xf32>
    %cst_73 = arith.constant dense<0.000000e+00> : vector<16xf32>
    %241 = vector.multi_reduction <add>, %240, %cst_73 [1] : vector<16x128xf32> to vector<16xf32>
    %242 = vector.shape_cast %241 : vector<16xf32> to vector<16x1xf32>
    %cst_74 = arith.constant 1.280000e+02 : f32
    %243 = vector.broadcast %cst_74 : f32 to vector<16x1xf32>
    %244 = arith.divf %242, %243 : vector<16x1xf32>
    %245 = vector.broadcast %237 : vector<16x1xf32> to vector<16x128xf32>
    %246 = arith.subf %233, %245 : vector<16x128xf32>
    %cst_75 = arith.constant 9.99999974E-6 : f32
    %247 = vector.broadcast %cst_75 : f32 to vector<16x1xf32>
    %248 = arith.addf %244, %247 : vector<16x1xf32>
    %249 = math.rsqrt %248 : vector<16x1xf32>
    %250 = vector.broadcast %249 : vector<16x1xf32> to vector<16x128xf32>
    %251 = arith.mulf %246, %250 : vector<16x128xf32>
    %c0_76 = arith.constant 0 : index
    %c0_77 = arith.constant 0 : index
    %252 = vector.load %arg12[%c0_76, %c0_77] : memref<1x128xf32, #tpu.memory_space<vmem>>, vector<1x128xf32>
    %253 = vector.broadcast %252 : vector<1x128xf32> to vector<16x128xf32>
    %254 = arith.mulf %251, %253 : vector<16x128xf32>
    %c0_78 = arith.constant 0 : index
    %c0_79 = arith.constant 0 : index
    %255 = vector.load %arg13[%c0_78, %c0_79] : memref<1x128xf32, #tpu.memory_space<vmem>>, vector<1x128xf32>
    %256 = vector.broadcast %255 : vector<1x128xf32> to vector<16x128xf32>
    %257 = arith.addf %254, %256 : vector<16x128xf32>
    %c0_80 = arith.constant 0 : index
    %c0_81 = arith.constant 0 : index
    %c0_82 = arith.constant 0 : index
    %258 = vector.load %arg14[%c0_80, %c0_81, %c0_82] : memref<1x16x128xf32, #tpu.memory_space<vmem>>, vector<1x16x128xf32>
    %259 = vector.shape_cast %258 : vector<1x16x128xf32> to vector<16x128xf32>
    %260 = vector.shape_cast %257 : vector<16x128xf32> to vector<1x16x128xf32>
    tpu.vector_store %arg14[%c0_80, %c0_81, %c0_82], %260 {strides = array<i32>} : memref<1x16x128xf32, #tpu.memory_space<vmem>>, vector<1x16x128xf32>,
    return
  }
  func.func @transform_0(%arg0: i32) -> (i32, i32, i32) {
    %c0_i32 = arith.constant 0 : i32
    %c0_i32_0 = arith.constant 0 : i32
    %c0_i32_1 = arith.constant 0 : i32
    return %arg0, %c0_i32, %c0_i32_0 : i32, i32, i32
  }
  func.func @transform_1(%arg0: i32) -> (i32, i32) {
    %c0_i32 = arith.constant 0 : i32
    %c0_i32_0 = arith.constant 0 : i32
    %c0_i32_1 = arith.constant 0 : i32
    return %c0_i32, %c0_i32_0 : i32, i32
  }
  func.func @transform_2(%arg0: i32) -> (i32, i32) {
    %c0_i32 = arith.constant 0 : i32
    %c0_i32_0 = arith.constant 0 : i32
    %c0_i32_1 = arith.constant 0 : i32
    return %c0_i32, %c0_i32_0 : i32, i32
  }
  func.func @transform_3(%arg0: i32) -> (i32, i32) {
    %c0_i32 = arith.constant 0 : i32
    %c0_i32_0 = arith.constant 0 : i32
    %c0_i32_1 = arith.constant 0 : i32
    return %c0_i32, %c0_i32_0 : i32, i32
  }
  func.func @transform_4(%arg0: i32) -> (i32, i32) {
    %c0_i32 = arith.constant 0 : i32
    %c0_i32_0 = arith.constant 0 : i32
    %c0_i32_1 = arith.constant 0 : i32
    return %c0_i32, %c0_i32_0 : i32, i32
  }
  func.func @transform_5(%arg0: i32) -> (i32, i32) {
    %c0_i32 = arith.constant 0 : i32
    %c0_i32_0 = arith.constant 0 : i32
    %c0_i32_1 = arith.constant 0 : i32
    return %c0_i32, %c0_i32_0 : i32, i32
  }
  func.func @transform_6(%arg0: i32) -> (i32, i32) {
    %c0_i32 = arith.constant 0 : i32
    %c0_i32_0 = arith.constant 0 : i32
    %c0_i32_1 = arith.constant 0 : i32
    return %c0_i32, %c0_i32_0 : i32, i32
  }
  func.func @transform_7(%arg0: i32) -> (i32, i32) {
    %c0_i32 = arith.constant 0 : i32
    %c0_i32_0 = arith.constant 0 : i32
    %c0_i32_1 = arith.constant 0 : i32
    return %c0_i32, %c0_i32_0 : i32, i32
  }
  func.func @transform_8(%arg0: i32) -> (i32, i32) {
    %c0_i32 = arith.constant 0 : i32
    %c0_i32_0 = arith.constant 0 : i32
    %c0_i32_1 = arith.constant 0 : i32
    return %c0_i32, %c0_i32_0 : i32, i32
  }
  func.func @transform_9(%arg0: i32) -> (i32, i32) {
    %c0_i32 = arith.constant 0 : i32
    %c0_i32_0 = arith.constant 0 : i32
    %c0_i32_1 = arith.constant 0 : i32
    return %c0_i32, %c0_i32_0 : i32, i32
  }
  func.func @transform_10(%arg0: i32) -> (i32, i32) {
    %c0_i32 = arith.constant 0 : i32
    %c0_i32_0 = arith.constant 0 : i32
    %c0_i32_1 = arith.constant 0 : i32
    return %c0_i32, %c0_i32_0 : i32, i32
  }
  func.func @transform_11(%arg0: i32) -> (i32, i32) {
    %c0_i32 = arith.constant 0 : i32
    %c0_i32_0 = arith.constant 0 : i32
    %c0_i32_1 = arith.constant 0 : i32
    return %c0_i32, %c0_i32_0 : i32, i32
  }
  func.func @transform_12(%arg0: i32) -> (i32, i32) {
    %c0_i32 = arith.constant 0 : i32
    %c0_i32_0 = arith.constant 0 : i32
    %c0_i32_1 = arith.constant 0 : i32
    return %c0_i32, %c0_i32_0 : i32, i32
  }
  func.func @transform_13(%arg0: i32) -> (i32, i32, i32) {
    %c0_i32 = arith.constant 0 : i32
    %c0_i32_0 = arith.constant 0 : i32
    %c0_i32_1 = arith.constant 0 : i32
    return %arg0, %c0_i32, %c0_i32_0 : i32, i32, i32
  }
}

module attributes {stable_mosaic.version = 11 : i64} {
  func.func @_encoder_layer_kernel(%arg0: i32, %arg1: memref<1x16x128xf32, #tpu.memory_space<vmem>>, %arg2: memref<128x384xbf16, #tpu.memory_space<vmem>>, %arg3: memref<1x384xf32, #tpu.memory_space<vmem>>, %arg4: memref<128x128xbf16, #tpu.memory_space<vmem>>, %arg5: memref<1x128xf32, #tpu.memory_space<vmem>>, %arg6: memref<1x128xf32, #tpu.memory_space<vmem>>, %arg7: memref<1x128xf32, #tpu.memory_space<vmem>>, %arg8: memref<128x256xbf16, #tpu.memory_space<vmem>>, %arg9: memref<1x256xf32, #tpu.memory_space<vmem>>, %arg10: memref<256x128xbf16, #tpu.memory_space<vmem>>, %arg11: memref<1x128xf32, #tpu.memory_space<vmem>>, %arg12: memref<1x128xf32, #tpu.memory_space<vmem>>, %arg13: memref<1x128xf32, #tpu.memory_space<vmem>>, %arg14: memref<1x16x128xf32, #tpu.memory_space<vmem>>) attributes {dimension_semantics = [#tpu.dimension_semantics<parallel>], iteration_bounds = array<i64: 2>, scalar_prefetch = 0 : i64, scratch_operands = 0 : i64, tpu.core_type = #tpu.core_type<tc>, window_params = [{transform_indices = @transform_0, window_bounds = array<i64: 1, 16, 128>}, {pipeline_mode = #tpu.pipeline_mode<synchronous>, transform_indices = @transform_1, window_bounds = array<i64: 128, 384>}, {pipeline_mode = #tpu.pipeline_mode<synchronous>, transform_indices = @transform_2, window_bounds = array<i64: 1, 384>}, {pipeline_mode = #tpu.pipeline_mode<synchronous>, transform_indices = @transform_3, window_bounds = array<i64: 128, 128>}, {pipeline_mode = #tpu.pipeline_mode<synchronous>, transform_indices = @transform_4, window_bounds = array<i64: 1, 128>}, {pipeline_mode = #tpu.pipeline_mode<synchronous>, transform_indices = @transform_5, window_bounds = array<i64: 1, 128>}, {pipeline_mode = #tpu.pipeline_mode<synchronous>, transform_indices = @transform_6, window_bounds = array<i64: 1, 128>}, {pipeline_mode = #tpu.pipeline_mode<synchronous>, transform_indices = @transform_7, window_bounds = array<i64: 128, 256>}, {pipeline_mode = #tpu.pipeline_mode<synchronous>, transform_indices = @transform_8, window_bounds = array<i64: 1, 256>}, {pipeline_mode = #tpu.pipeline_mode<synchronous>, transform_indices = @transform_9, window_bounds = array<i64: 256, 128>}, {pipeline_mode = #tpu.pipeline_mode<synchronous>, transform_indices = @transform_10, window_bounds = array<i64: 1, 128>}, {pipeline_mode = #tpu.pipeline_mode<synchronous>, transform_indices = @transform_11, window_bounds = array<i64: 1, 128>}, {pipeline_mode = #tpu.pipeline_mode<synchronous>, transform_indices = @transform_12, window_bounds = array<i64: 1, 128>}, {transform_indices = @transform_13, window_bounds = array<i64: 1, 16, 128>}]} {
    %c0 = arith.constant 0 : index
    %c0_0 = arith.constant 0 : index
    %c0_1 = arith.constant 0 : index
    %0 = vector.load %arg1[%c0, %c0_0, %c0_1] : memref<1x16x128xf32, #tpu.memory_space<vmem>>, vector<1x16x128xf32>
    %1 = vector.shape_cast %0 : vector<1x16x128xf32> to vector<16x128xf32>
    %2 = arith.truncf %1 : vector<16x128xf32> to vector<16x128xbf16>
    %c0_2 = arith.constant 0 : index
    %c0_3 = arith.constant 0 : index
    %3 = vector.load %arg2[%c0_2, %c0_3] : memref<128x384xbf16, #tpu.memory_space<vmem>>, vector<128x384xbf16>
    %cst = arith.constant dense<0.000000e+00> : vector<16x384xf32>
    %4 = tpu.matmul %2, %3, %cst {dimension_numbers = #tpu.dot_dimension_numbers<[1], [0], [0], [1], [0, 0, 1, 1], [], []>} : vector<16x128xbf16>, vector<128x384xbf16>, vector<16x384xf32> -> vector<16x384xf32>
    %c0_4 = arith.constant 0 : index
    %c0_5 = arith.constant 0 : index
    %5 = vector.load %arg3[%c0_4, %c0_5] : memref<1x384xf32, #tpu.memory_space<vmem>>, vector<1x384xf32>
    %6 = vector.broadcast %5 : vector<1x384xf32> to vector<16x384xf32>
    %7 = arith.addf %4, %6 : vector<16x384xf32>
    %8 = vector.extract_strided_slice %7 {offsets = [0, 0], sizes = [16, 128], strides = [1, 1]} : vector<16x384xf32> to vector<16x128xf32>
    %9 = vector.extract_strided_slice %7 {offsets = [0, 128], sizes = [16, 128], strides = [1, 1]} : vector<16x384xf32> to vector<16x128xf32>
    %10 = vector.extract_strided_slice %7 {offsets = [0, 256], sizes = [16, 128], strides = [1, 1]} : vector<16x384xf32> to vector<16x128xf32>
    %11 = vector.extract_strided_slice %8 {offsets = [0, 0], sizes = [16, 16], strides = [1, 1]} : vector<16x128xf32> to vector<16x16xf32>
    %cst_6 = arith.constant 2.500000e-01 : f32
    %12 = vector.broadcast %cst_6 : f32 to vector<16x16xf32>
    %13 = arith.mulf %11, %12 : vector<16x16xf32>
    %14 = arith.truncf %13 : vector<16x16xf32> to vector<16x16xbf16>
    %15 = vector.extract_strided_slice %9 {offsets = [0, 0], sizes = [16, 16], strides = [1, 1]} : vector<16x128xf32> to vector<16x16xf32>
    %16 = arith.truncf %15 : vector<16x16xf32> to vector<16x16xbf16>
    %17 = vector.extract_strided_slice %10 {offsets = [0, 0], sizes = [16, 16], strides = [1, 1]} : vector<16x128xf32> to vector<16x16xf32>
    %18 = arith.truncf %17 : vector<16x16xf32> to vector<16x16xbf16>
    %19 = tpu.transpose %16, [1, 0] : vector<16x16xbf16> -> vector<16x16xbf16>
    %cst_7 = arith.constant dense<0.000000e+00> : vector<16x16xf32>
    %20 = tpu.matmul %14, %19, %cst_7 {dimension_numbers = #tpu.dot_dimension_numbers<[1], [0], [0], [1], [0, 0, 1, 1], [], []>} : vector<16x16xbf16>, vector<16x16xbf16>, vector<16x16xf32> -> vector<16x16xf32>
    %cst_8 = arith.constant dense<0xFF800000> : vector<16xf32>
    %21 = vector.multi_reduction <maximumf>, %20, %cst_8 [1] : vector<16x16xf32> to vector<16xf32>
    %22 = vector.shape_cast %21 : vector<16xf32> to vector<16x1xf32>
    %23 = vector.broadcast %22 : vector<16x1xf32> to vector<16x16xf32>
    %24 = arith.subf %20, %23 : vector<16x16xf32>
    %25 = math.exp %24 : vector<16x16xf32>
    %cst_9 = arith.constant dense<0.000000e+00> : vector<16xf32>
    %26 = vector.multi_reduction <add>, %25, %cst_9 [1] : vector<16x16xf32> to vector<16xf32>
    %27 = vector.shape_cast %26 : vector<16xf32> to vector<16x1xf32>
    %28 = tpu.reciprocal %27 {approx = true} : vector<16x1xf32> -> vector<16x1xf32>
    %29 = vector.broadcast %28 : vector<16x1xf32> to vector<16x16xf32>
    %30 = arith.mulf %25, %29 : vector<16x16xf32>
    %31 = arith.truncf %30 : vector<16x16xf32> to vector<16x16xbf16>
    %cst_10 = arith.constant dense<0.000000e+00> : vector<16x16xf32>
    %32 = tpu.matmul %31, %18, %cst_10 {dimension_numbers = #tpu.dot_dimension_numbers<[1], [0], [0], [1], [0, 0, 1, 1], [], []>} : vector<16x16xbf16>, vector<16x16xbf16>, vector<16x16xf32> -> vector<16x16xf32>
    %33 = vector.extract_strided_slice %8 {offsets = [0, 16], sizes = [16, 16], strides = [1, 1]} : vector<16x128xf32> to vector<16x16xf32>
    %cst_11 = arith.constant 2.500000e-01 : f32
    %34 = vector.broadcast %cst_11 : f32 to vector<16x16xf32>
    %35 = arith.mulf %33, %34 : vector<16x16xf32>
    %36 = arith.truncf %35 : vector<16x16xf32> to vector<16x16xbf16>
    %37 = vector.extract_strided_slice %9 {offsets = [0, 16], sizes = [16, 16], strides = [1, 1]} : vector<16x128xf32> to vector<16x16xf32>
    %38 = arith.truncf %37 : vector<16x16xf32> to vector<16x16xbf16>
    %39 = vector.extract_strided_slice %10 {offsets = [0, 16], sizes = [16, 16], strides = [1, 1]} : vector<16x128xf32> to vector<16x16xf32>
    %40 = arith.truncf %39 : vector<16x16xf32> to vector<16x16xbf16>
    %41 = tpu.transpose %38, [1, 0] : vector<16x16xbf16> -> vector<16x16xbf16>
    %cst_12 = arith.constant dense<0.000000e+00> : vector<16x16xf32>
    %42 = tpu.matmul %36, %41, %cst_12 {dimension_numbers = #tpu.dot_dimension_numbers<[1], [0], [0], [1], [0, 0, 1, 1], [], []>} : vector<16x16xbf16>, vector<16x16xbf16>, vector<16x16xf32> -> vector<16x16xf32>
    %cst_13 = arith.constant dense<0xFF800000> : vector<16xf32>
    %43 = vector.multi_reduction <maximumf>, %42, %cst_13 [1] : vector<16x16xf32> to vector<16xf32>
    %44 = vector.shape_cast %43 : vector<16xf32> to vector<16x1xf32>
    %45 = vector.broadcast %44 : vector<16x1xf32> to vector<16x16xf32>
    %46 = arith.subf %42, %45 : vector<16x16xf32>
    %47 = math.exp %46 : vector<16x16xf32>
    %cst_14 = arith.constant dense<0.000000e+00> : vector<16xf32>
    %48 = vector.multi_reduction <add>, %47, %cst_14 [1] : vector<16x16xf32> to vector<16xf32>
    %49 = vector.shape_cast %48 : vector<16xf32> to vector<16x1xf32>
    %50 = tpu.reciprocal %49 {approx = true} : vector<16x1xf32> -> vector<16x1xf32>
    %51 = vector.broadcast %50 : vector<16x1xf32> to vector<16x16xf32>
    %52 = arith.mulf %47, %51 : vector<16x16xf32>
    %53 = arith.truncf %52 : vector<16x16xf32> to vector<16x16xbf16>
    %cst_15 = arith.constant dense<0.000000e+00> : vector<16x16xf32>
    %54 = tpu.matmul %53, %40, %cst_15 {dimension_numbers = #tpu.dot_dimension_numbers<[1], [0], [0], [1], [0, 0, 1, 1], [], []>} : vector<16x16xbf16>, vector<16x16xbf16>, vector<16x16xf32> -> vector<16x16xf32>
    %55 = vector.extract_strided_slice %8 {offsets = [0, 32], sizes = [16, 16], strides = [1, 1]} : vector<16x128xf32> to vector<16x16xf32>
    %cst_16 = arith.constant 2.500000e-01 : f32
    %56 = vector.broadcast %cst_16 : f32 to vector<16x16xf32>
    %57 = arith.mulf %55, %56 : vector<16x16xf32>
    %58 = arith.truncf %57 : vector<16x16xf32> to vector<16x16xbf16>
    %59 = vector.extract_strided_slice %9 {offsets = [0, 32], sizes = [16, 16], strides = [1, 1]} : vector<16x128xf32> to vector<16x16xf32>
    %60 = arith.truncf %59 : vector<16x16xf32> to vector<16x16xbf16>
    %61 = vector.extract_strided_slice %10 {offsets = [0, 32], sizes = [16, 16], strides = [1, 1]} : vector<16x128xf32> to vector<16x16xf32>
    %62 = arith.truncf %61 : vector<16x16xf32> to vector<16x16xbf16>
    %63 = tpu.transpose %60, [1, 0] : vector<16x16xbf16> -> vector<16x16xbf16>
    %cst_17 = arith.constant dense<0.000000e+00> : vector<16x16xf32>
    %64 = tpu.matmul %58, %63, %cst_17 {dimension_numbers = #tpu.dot_dimension_numbers<[1], [0], [0], [1], [0, 0, 1, 1], [], []>} : vector<16x16xbf16>, vector<16x16xbf16>, vector<16x16xf32> -> vector<16x16xf32>
    %cst_18 = arith.constant dense<0xFF800000> : vector<16xf32>
    %65 = vector.multi_reduction <maximumf>, %64, %cst_18 [1] : vector<16x16xf32> to vector<16xf32>
    %66 = vector.shape_cast %65 : vector<16xf32> to vector<16x1xf32>
    %67 = vector.broadcast %66 : vector<16x1xf32> to vector<16x16xf32>
    %68 = arith.subf %64, %67 : vector<16x16xf32>
    %69 = math.exp %68 : vector<16x16xf32>
    %cst_19 = arith.constant dense<0.000000e+00> : vector<16xf32>
    %70 = vector.multi_reduction <add>, %69, %cst_19 [1] : vector<16x16xf32> to vector<16xf32>
    %71 = vector.shape_cast %70 : vector<16xf32> to vector<16x1xf32>
    %72 = tpu.reciprocal %71 {approx = true} : vector<16x1xf32> -> vector<16x1xf32>
    %73 = vector.broadcast %72 : vector<16x1xf32> to vector<16x16xf32>
    %74 = arith.mulf %69, %73 : vector<16x16xf32>
    %75 = arith.truncf %74 : vector<16x16xf32> to vector<16x16xbf16>
    %cst_20 = arith.constant dense<0.000000e+00> : vector<16x16xf32>
    %76 = tpu.matmul %75, %62, %cst_20 {dimension_numbers = #tpu.dot_dimension_numbers<[1], [0], [0], [1], [0, 0, 1, 1], [], []>} : vector<16x16xbf16>, vector<16x16xbf16>, vector<16x16xf32> -> vector<16x16xf32>
    %77 = vector.extract_strided_slice %8 {offsets = [0, 48], sizes = [16, 16], strides = [1, 1]} : vector<16x128xf32> to vector<16x16xf32>
    %cst_21 = arith.constant 2.500000e-01 : f32
    %78 = vector.broadcast %cst_21 : f32 to vector<16x16xf32>
    %79 = arith.mulf %77, %78 : vector<16x16xf32>
    %80 = arith.truncf %79 : vector<16x16xf32> to vector<16x16xbf16>
    %81 = vector.extract_strided_slice %9 {offsets = [0, 48], sizes = [16, 16], strides = [1, 1]} : vector<16x128xf32> to vector<16x16xf32>
    %82 = arith.truncf %81 : vector<16x16xf32> to vector<16x16xbf16>
    %83 = vector.extract_strided_slice %10 {offsets = [0, 48], sizes = [16, 16], strides = [1, 1]} : vector<16x128xf32> to vector<16x16xf32>
    %84 = arith.truncf %83 : vector<16x16xf32> to vector<16x16xbf16>
    %85 = tpu.transpose %82, [1, 0] : vector<16x16xbf16> -> vector<16x16xbf16>
    %cst_22 = arith.constant dense<0.000000e+00> : vector<16x16xf32>
    %86 = tpu.matmul %80, %85, %cst_22 {dimension_numbers = #tpu.dot_dimension_numbers<[1], [0], [0], [1], [0, 0, 1, 1], [], []>} : vector<16x16xbf16>, vector<16x16xbf16>, vector<16x16xf32> -> vector<16x16xf32>
    %cst_23 = arith.constant dense<0xFF800000> : vector<16xf32>
    %87 = vector.multi_reduction <maximumf>, %86, %cst_23 [1] : vector<16x16xf32> to vector<16xf32>
    %88 = vector.shape_cast %87 : vector<16xf32> to vector<16x1xf32>
    %89 = vector.broadcast %88 : vector<16x1xf32> to vector<16x16xf32>
    %90 = arith.subf %86, %89 : vector<16x16xf32>
    %91 = math.exp %90 : vector<16x16xf32>
    %cst_24 = arith.constant dense<0.000000e+00> : vector<16xf32>
    %92 = vector.multi_reduction <add>, %91, %cst_24 [1] : vector<16x16xf32> to vector<16xf32>
    %93 = vector.shape_cast %92 : vector<16xf32> to vector<16x1xf32>
    %94 = tpu.reciprocal %93 {approx = true} : vector<16x1xf32> -> vector<16x1xf32>
    %95 = vector.broadcast %94 : vector<16x1xf32> to vector<16x16xf32>
    %96 = arith.mulf %91, %95 : vector<16x16xf32>
    %97 = arith.truncf %96 : vector<16x16xf32> to vector<16x16xbf16>
    %cst_25 = arith.constant dense<0.000000e+00> : vector<16x16xf32>
    %98 = tpu.matmul %97, %84, %cst_25 {dimension_numbers = #tpu.dot_dimension_numbers<[1], [0], [0], [1], [0, 0, 1, 1], [], []>} : vector<16x16xbf16>, vector<16x16xbf16>, vector<16x16xf32> -> vector<16x16xf32>
    %99 = vector.extract_strided_slice %8 {offsets = [0, 64], sizes = [16, 16], strides = [1, 1]} : vector<16x128xf32> to vector<16x16xf32>
    %cst_26 = arith.constant 2.500000e-01 : f32
    %100 = vector.broadcast %cst_26 : f32 to vector<16x16xf32>
    %101 = arith.mulf %99, %100 : vector<16x16xf32>
    %102 = arith.truncf %101 : vector<16x16xf32> to vector<16x16xbf16>
    %103 = vector.extract_strided_slice %9 {offsets = [0, 64], sizes = [16, 16], strides = [1, 1]} : vector<16x128xf32> to vector<16x16xf32>
    %104 = arith.truncf %103 : vector<16x16xf32> to vector<16x16xbf16>
    %105 = vector.extract_strided_slice %10 {offsets = [0, 64], sizes = [16, 16], strides = [1, 1]} : vector<16x128xf32> to vector<16x16xf32>
    %106 = arith.truncf %105 : vector<16x16xf32> to vector<16x16xbf16>
    %107 = tpu.transpose %104, [1, 0] : vector<16x16xbf16> -> vector<16x16xbf16>
    %cst_27 = arith.constant dense<0.000000e+00> : vector<16x16xf32>
    %108 = tpu.matmul %102, %107, %cst_27 {dimension_numbers = #tpu.dot_dimension_numbers<[1], [0], [0], [1], [0, 0, 1, 1], [], []>} : vector<16x16xbf16>, vector<16x16xbf16>, vector<16x16xf32> -> vector<16x16xf32>
    %cst_28 = arith.constant dense<0xFF800000> : vector<16xf32>
    %109 = vector.multi_reduction <maximumf>, %108, %cst_28 [1] : vector<16x16xf32> to vector<16xf32>
    %110 = vector.shape_cast %109 : vector<16xf32> to vector<16x1xf32>
    %111 = vector.broadcast %110 : vector<16x1xf32> to vector<16x16xf32>
    %112 = arith.subf %108, %111 : vector<16x16xf32>
    %113 = math.exp %112 : vector<16x16xf32>
    %cst_29 = arith.constant dense<0.000000e+00> : vector<16xf32>
    %114 = vector.multi_reduction <add>, %113, %cst_29 [1] : vector<16x16xf32> to vector<16xf32>
    %115 = vector.shape_cast %114 : vector<16xf32> to vector<16x1xf32>
    %116 = tpu.reciprocal %115 {approx = true} : vector<16x1xf32> -> vector<16x1xf32>
    %117 = vector.broadcast %116 : vector<16x1xf32> to vector<16x16xf32>
    %118 = arith.mulf %113, %117 : vector<16x16xf32>
    %119 = arith.truncf %118 : vector<16x16xf32> to vector<16x16xbf16>
    %cst_30 = arith.constant dense<0.000000e+00> : vector<16x16xf32>
    %120 = tpu.matmul %119, %106, %cst_30 {dimension_numbers = #tpu.dot_dimension_numbers<[1], [0], [0], [1], [0, 0, 1, 1], [], []>} : vector<16x16xbf16>, vector<16x16xbf16>, vector<16x16xf32> -> vector<16x16xf32>
    %121 = vector.extract_strided_slice %8 {offsets = [0, 80], sizes = [16, 16], strides = [1, 1]} : vector<16x128xf32> to vector<16x16xf32>
    %cst_31 = arith.constant 2.500000e-01 : f32
    %122 = vector.broadcast %cst_31 : f32 to vector<16x16xf32>
    %123 = arith.mulf %121, %122 : vector<16x16xf32>
    %124 = arith.truncf %123 : vector<16x16xf32> to vector<16x16xbf16>
    %125 = vector.extract_strided_slice %9 {offsets = [0, 80], sizes = [16, 16], strides = [1, 1]} : vector<16x128xf32> to vector<16x16xf32>
    %126 = arith.truncf %125 : vector<16x16xf32> to vector<16x16xbf16>
    %127 = vector.extract_strided_slice %10 {offsets = [0, 80], sizes = [16, 16], strides = [1, 1]} : vector<16x128xf32> to vector<16x16xf32>
    %128 = arith.truncf %127 : vector<16x16xf32> to vector<16x16xbf16>
    %129 = tpu.transpose %126, [1, 0] : vector<16x16xbf16> -> vector<16x16xbf16>
    %cst_32 = arith.constant dense<0.000000e+00> : vector<16x16xf32>
    %130 = tpu.matmul %124, %129, %cst_32 {dimension_numbers = #tpu.dot_dimension_numbers<[1], [0], [0], [1], [0, 0, 1, 1], [], []>} : vector<16x16xbf16>, vector<16x16xbf16>, vector<16x16xf32> -> vector<16x16xf32>
    %cst_33 = arith.constant dense<0xFF800000> : vector<16xf32>
    %131 = vector.multi_reduction <maximumf>, %130, %cst_33 [1] : vector<16x16xf32> to vector<16xf32>
    %132 = vector.shape_cast %131 : vector<16xf32> to vector<16x1xf32>
    %133 = vector.broadcast %132 : vector<16x1xf32> to vector<16x16xf32>
    %134 = arith.subf %130, %133 : vector<16x16xf32>
    %135 = math.exp %134 : vector<16x16xf32>
    %cst_34 = arith.constant dense<0.000000e+00> : vector<16xf32>
    %136 = vector.multi_reduction <add>, %135, %cst_34 [1] : vector<16x16xf32> to vector<16xf32>
    %137 = vector.shape_cast %136 : vector<16xf32> to vector<16x1xf32>
    %138 = tpu.reciprocal %137 {approx = true} : vector<16x1xf32> -> vector<16x1xf32>
    %139 = vector.broadcast %138 : vector<16x1xf32> to vector<16x16xf32>
    %140 = arith.mulf %135, %139 : vector<16x16xf32>
    %141 = arith.truncf %140 : vector<16x16xf32> to vector<16x16xbf16>
    %cst_35 = arith.constant dense<0.000000e+00> : vector<16x16xf32>
    %142 = tpu.matmul %141, %128, %cst_35 {dimension_numbers = #tpu.dot_dimension_numbers<[1], [0], [0], [1], [0, 0, 1, 1], [], []>} : vector<16x16xbf16>, vector<16x16xbf16>, vector<16x16xf32> -> vector<16x16xf32>
    %143 = vector.extract_strided_slice %8 {offsets = [0, 96], sizes = [16, 16], strides = [1, 1]} : vector<16x128xf32> to vector<16x16xf32>
    %cst_36 = arith.constant 2.500000e-01 : f32
    %144 = vector.broadcast %cst_36 : f32 to vector<16x16xf32>
    %145 = arith.mulf %143, %144 : vector<16x16xf32>
    %146 = arith.truncf %145 : vector<16x16xf32> to vector<16x16xbf16>
    %147 = vector.extract_strided_slice %9 {offsets = [0, 96], sizes = [16, 16], strides = [1, 1]} : vector<16x128xf32> to vector<16x16xf32>
    %148 = arith.truncf %147 : vector<16x16xf32> to vector<16x16xbf16>
    %149 = vector.extract_strided_slice %10 {offsets = [0, 96], sizes = [16, 16], strides = [1, 1]} : vector<16x128xf32> to vector<16x16xf32>
    %150 = arith.truncf %149 : vector<16x16xf32> to vector<16x16xbf16>
    %151 = tpu.transpose %148, [1, 0] : vector<16x16xbf16> -> vector<16x16xbf16>
    %cst_37 = arith.constant dense<0.000000e+00> : vector<16x16xf32>
    %152 = tpu.matmul %146, %151, %cst_37 {dimension_numbers = #tpu.dot_dimension_numbers<[1], [0], [0], [1], [0, 0, 1, 1], [], []>} : vector<16x16xbf16>, vector<16x16xbf16>, vector<16x16xf32> -> vector<16x16xf32>
    %cst_38 = arith.constant dense<0xFF800000> : vector<16xf32>
    %153 = vector.multi_reduction <maximumf>, %152, %cst_38 [1] : vector<16x16xf32> to vector<16xf32>
    %154 = vector.shape_cast %153 : vector<16xf32> to vector<16x1xf32>
    %155 = vector.broadcast %154 : vector<16x1xf32> to vector<16x16xf32>
    %156 = arith.subf %152, %155 : vector<16x16xf32>
    %157 = math.exp %156 : vector<16x16xf32>
    %cst_39 = arith.constant dense<0.000000e+00> : vector<16xf32>
    %158 = vector.multi_reduction <add>, %157, %cst_39 [1] : vector<16x16xf32> to vector<16xf32>
    %159 = vector.shape_cast %158 : vector<16xf32> to vector<16x1xf32>
    %160 = tpu.reciprocal %159 {approx = true} : vector<16x1xf32> -> vector<16x1xf32>
    %161 = vector.broadcast %160 : vector<16x1xf32> to vector<16x16xf32>
    %162 = arith.mulf %157, %161 : vector<16x16xf32>
    %163 = arith.truncf %162 : vector<16x16xf32> to vector<16x16xbf16>
    %cst_40 = arith.constant dense<0.000000e+00> : vector<16x16xf32>
    %164 = tpu.matmul %163, %150, %cst_40 {dimension_numbers = #tpu.dot_dimension_numbers<[1], [0], [0], [1], [0, 0, 1, 1], [], []>} : vector<16x16xbf16>, vector<16x16xbf16>, vector<16x16xf32> -> vector<16x16xf32>
    %165 = vector.extract_strided_slice %8 {offsets = [0, 112], sizes = [16, 16], strides = [1, 1]} : vector<16x128xf32> to vector<16x16xf32>
    %cst_41 = arith.constant 2.500000e-01 : f32
    %166 = vector.broadcast %cst_41 : f32 to vector<16x16xf32>
    %167 = arith.mulf %165, %166 : vector<16x16xf32>
    %168 = arith.truncf %167 : vector<16x16xf32> to vector<16x16xbf16>
    %169 = vector.extract_strided_slice %9 {offsets = [0, 112], sizes = [16, 16], strides = [1, 1]} : vector<16x128xf32> to vector<16x16xf32>
    %170 = arith.truncf %169 : vector<16x16xf32> to vector<16x16xbf16>
    %171 = vector.extract_strided_slice %10 {offsets = [0, 112], sizes = [16, 16], strides = [1, 1]} : vector<16x128xf32> to vector<16x16xf32>
    %172 = arith.truncf %171 : vector<16x16xf32> to vector<16x16xbf16>
    %173 = tpu.transpose %170, [1, 0] : vector<16x16xbf16> -> vector<16x16xbf16>
    %cst_42 = arith.constant dense<0.000000e+00> : vector<16x16xf32>
    %174 = tpu.matmul %168, %173, %cst_42 {dimension_numbers = #tpu.dot_dimension_numbers<[1], [0], [0], [1], [0, 0, 1, 1], [], []>} : vector<16x16xbf16>, vector<16x16xbf16>, vector<16x16xf32> -> vector<16x16xf32>
    %cst_43 = arith.constant dense<0xFF800000> : vector<16xf32>
    %175 = vector.multi_reduction <maximumf>, %174, %cst_43 [1] : vector<16x16xf32> to vector<16xf32>
    %176 = vector.shape_cast %175 : vector<16xf32> to vector<16x1xf32>
    %177 = vector.broadcast %176 : vector<16x1xf32> to vector<16x16xf32>
    %178 = arith.subf %174, %177 : vector<16x16xf32>
    %179 = math.exp %178 : vector<16x16xf32>
    %cst_44 = arith.constant dense<0.000000e+00> : vector<16xf32>
    %180 = vector.multi_reduction <add>, %179, %cst_44 [1] : vector<16x16xf32> to vector<16xf32>
    %181 = vector.shape_cast %180 : vector<16xf32> to vector<16x1xf32>
    %182 = tpu.reciprocal %181 {approx = true} : vector<16x1xf32> -> vector<16x1xf32>
    %183 = vector.broadcast %182 : vector<16x1xf32> to vector<16x16xf32>
    %184 = arith.mulf %179, %183 : vector<16x16xf32>
    %185 = arith.truncf %184 : vector<16x16xf32> to vector<16x16xbf16>
    %cst_45 = arith.constant dense<0.000000e+00> : vector<16x16xf32>
    %186 = tpu.matmul %185, %172, %cst_45 {dimension_numbers = #tpu.dot_dimension_numbers<[1], [0], [0], [1], [0, 0, 1, 1], [], []>} : vector<16x16xbf16>, vector<16x16xbf16>, vector<16x16xf32> -> vector<16x16xf32>
    %187 = tpu.concatenate %32, %54, %76, %98, %120, %142, %164, %186 in 1 : vector<16x16xf32>, vector<16x16xf32>, vector<16x16xf32>, vector<16x16xf32>, vector<16x16xf32>, vector<16x16xf32>, vector<16x16xf32>, vector<16x16xf32> -> vector<16x128xf32>
    %188 = arith.truncf %187 : vector<16x128xf32> to vector<16x128xbf16>
    %c0_46 = arith.constant 0 : index
    %c0_47 = arith.constant 0 : index
    %189 = vector.load %arg4[%c0_46, %c0_47] : memref<128x128xbf16, #tpu.memory_space<vmem>>, vector<128x128xbf16>
    %cst_48 = arith.constant dense<0.000000e+00> : vector<16x128xf32>
    %190 = tpu.matmul %188, %189, %cst_48 {dimension_numbers = #tpu.dot_dimension_numbers<[1], [0], [0], [1], [0, 0, 1, 1], [], []>} : vector<16x128xbf16>, vector<128x128xbf16>, vector<16x128xf32> -> vector<16x128xf32>
    %c0_49 = arith.constant 0 : index
    %c0_50 = arith.constant 0 : index
    %191 = vector.load %arg5[%c0_49, %c0_50] : memref<1x128xf32, #tpu.memory_space<vmem>>, vector<1x128xf32>
    %192 = vector.broadcast %191 : vector<1x128xf32> to vector<16x128xf32>
    %193 = arith.addf %190, %192 : vector<16x128xf32>
    %194 = arith.addf %1, %193 : vector<16x128xf32>
    %cst_51 = arith.constant dense<0.000000e+00> : vector<16xf32>
    %195 = vector.multi_reduction <add>, %194, %cst_51 [1] : vector<16x128xf32> to vector<16xf32>
    %196 = vector.shape_cast %195 : vector<16xf32> to vector<16x1xf32>
    %cst_52 = arith.constant 1.280000e+02 : f32
    %197 = vector.broadcast %cst_52 : f32 to vector<16x1xf32>
    %198 = arith.divf %196, %197 : vector<16x1xf32>
    %199 = vector.broadcast %198 : vector<16x1xf32> to vector<16x128xf32>
    %200 = arith.subf %194, %199 : vector<16x128xf32>
    %201 = arith.mulf %200, %200 : vector<16x128xf32>
    %cst_53 = arith.constant dense<0.000000e+00> : vector<16xf32>
    %202 = vector.multi_reduction <add>, %201, %cst_53 [1] : vector<16x128xf32> to vector<16xf32>
    %203 = vector.shape_cast %202 : vector<16xf32> to vector<16x1xf32>
    %cst_54 = arith.constant 1.280000e+02 : f32
    %204 = vector.broadcast %cst_54 : f32 to vector<16x1xf32>
    %205 = arith.divf %203, %204 : vector<16x1xf32>
    %206 = vector.broadcast %198 : vector<16x1xf32> to vector<16x128xf32>
    %207 = arith.subf %194, %206 : vector<16x128xf32>
    %cst_55 = arith.constant 9.99999974E-6 : f32
    %208 = vector.broadcast %cst_55 : f32 to vector<16x1xf32>
    %209 = arith.addf %205, %208 : vector<16x1xf32>
    %210 = math.rsqrt %209 : vector<16x1xf32>
    %211 = vector.broadcast %210 : vector<16x1xf32> to vector<16x128xf32>
    %212 = arith.mulf %207, %211 : vector<16x128xf32>
    %c0_56 = arith.constant 0 : index
    %c0_57 = arith.constant 0 : index
    %213 = vector.load %arg6[%c0_56, %c0_57] : memref<1x128xf32, #tpu.memory_space<vmem>>, vector<1x128xf32>
    %214 = vector.broadcast %213 : vector<1x128xf32> to vector<16x128xf32>
    %215 = arith.mulf %212, %214 : vector<16x128xf32>
    %c0_58 = arith.constant 0 : index
    %c0_59 = arith.constant 0 : index
    %216 = vector.load %arg7[%c0_58, %c0_59] : memref<1x128xf32, #tpu.memory_space<vmem>>, vector<1x128xf32>
    %217 = vector.broadcast %216 : vector<1x128xf32> to vector<16x128xf32>
    %218 = arith.addf %215, %217 : vector<16x128xf32>
    %219 = arith.truncf %218 : vector<16x128xf32> to vector<16x128xbf16>
    %c0_60 = arith.constant 0 : index
    %c0_61 = arith.constant 0 : index
    %220 = vector.load %arg8[%c0_60, %c0_61] : memref<128x256xbf16, #tpu.memory_space<vmem>>, vector<128x256xbf16>
    %cst_62 = arith.constant dense<0.000000e+00> : vector<16x256xf32>
    %221 = tpu.matmul %219, %220, %cst_62 {dimension_numbers = #tpu.dot_dimension_numbers<[1], [0], [0], [1], [0, 0, 1, 1], [], []>} : vector<16x128xbf16>, vector<128x256xbf16>, vector<16x256xf32> -> vector<16x256xf32>
    %c0_63 = arith.constant 0 : index
    %c0_64 = arith.constant 0 : index
    %222 = vector.load %arg9[%c0_63, %c0_64] : memref<1x256xf32, #tpu.memory_space<vmem>>, vector<1x256xf32>
    %223 = vector.broadcast %222 : vector<1x256xf32> to vector<16x256xf32>
    %224 = arith.addf %221, %223 : vector<16x256xf32>
    %cst_65 = arith.constant 0.000000e+00 : f32
    %225 = vector.broadcast %cst_65 : f32 to vector<16x256xf32>
    %226 = arith.maximumf %224, %225 : vector<16x256xf32>
    %227 = arith.truncf %226 : vector<16x256xf32> to vector<16x256xbf16>
    %c0_66 = arith.constant 0 : index
    %c0_67 = arith.constant 0 : index
    %228 = vector.load %arg10[%c0_66, %c0_67] : memref<256x128xbf16, #tpu.memory_space<vmem>>, vector<256x128xbf16>
    %cst_68 = arith.constant dense<0.000000e+00> : vector<16x128xf32>
    %229 = tpu.matmul %227, %228, %cst_68 {dimension_numbers = #tpu.dot_dimension_numbers<[1], [0], [0], [1], [0, 0, 1, 1], [], []>} : vector<16x256xbf16>, vector<256x128xbf16>, vector<16x128xf32> -> vector<16x128xf32>
    %c0_69 = arith.constant 0 : index
    %c0_70 = arith.constant 0 : index
    %230 = vector.load %arg11[%c0_69, %c0_70] : memref<1x128xf32, #tpu.memory_space<vmem>>, vector<1x128xf32>
    %231 = vector.broadcast %230 : vector<1x128xf32> to vector<16x128xf32>
    %232 = arith.addf %229, %231 : vector<16x128xf32>
    %233 = arith.addf %218, %232 : vector<16x128xf32>
    %cst_71 = arith.constant dense<0.000000e+00> : vector<16xf32>
    %234 = vector.multi_reduction <add>, %233, %cst_71 [1] : vector<16x128xf32> to vector<16xf32>
    %235 = vector.shape_cast %234 : vector<16xf32> to vector<16x1xf32>
    %cst_72 = arith.constant 1.280000e+02 : f32
    %236 = vector.broadcast %cst_72 : f32 to vector<16x1xf32>
    %237 = arith.divf %235, %236 : vector<16x1xf32>
    %238 = vector.broadcast %237 : vector<16x1xf32> to vector<16x128xf32>
    %239 = arith.subf %233, %238 : vector<16x128xf32>
    %240 = arith.mulf %239, %239 : vector<16x128xf32>
    %cst_73 = arith.constant dense<0.000000e+00> : vector<16xf32>
    %241 = vector.multi_reduction <add>, %240, %cst_73 [1] : vector<16x128xf32> to vector<16xf32>
    %242 = vector.shape_cast %241 : vector<16xf32> to vector<16x1xf32>
    %cst_74 = arith.constant 1.280000e+02 : f32
    %243 = vector.broadcast %cst_74 : f32 to vector<16x1xf32>
    %244 = arith.divf %242, %243 : vector<16x1xf32>
    %245 = vector.broadcast %237 : vector<16x1xf32> to vector<16x128xf32>
    %246 = arith.subf %233, %245 : vector<16x128xf32>
    %cst_75 = arith.constant 9.99999974E-6 : f32
    %247 = vector.broadcast %cst_75 : f32 to vector<16x1xf32>
    %248 = arith.addf %244, %247 : vector<16x1xf32>
    %249 = math.rsqrt %248 : vector<16x1xf32>
    %250 = vector.broadcast %249 : vector<16x1xf32> to vector<16x128xf32>
    %251 = arith.mulf %246, %250 : vector<16x128xf32>
    %c0_76 = arith.constant 0 : index
    %c0_77 = arith.constant 0 : index
    %252 = vector.load %arg12[%c0_76, %c0_77] : memref<1x128xf32, #tpu.memory_space<vmem>>, vector<1x128xf32>
    %253 = vector.broadcast %252 : vector<1x128xf32> to vector<16x128xf32>
    %254 = arith.mulf %251, %253 : vector<16x128xf32>
    %c0_78 = arith.constant 0 : index
    %c0_79 = arith.constant 0 : index
    %255 = vector.load %arg13[%c0_78, %c0_79] : memref<1x128xf32, #tpu.memory_space<vmem>>, vector<1x128xf32>
    %256 = vector.broadcast %255 : vector<1x128xf32> to vector<16x128xf32>
    %257 = arith.addf %254, %256 : vector<16x128xf32>
    %c0_80 = arith.constant 0 : index
    %c0_81 = arith.constant 0 : index
    %c0_82 = arith.constant 0 : index
    %258 = vector.load %arg14[%c0_80, %c0_81, %c0_82] : memref<1x16x128xf32, #tpu.memory_space<vmem>>, vector<1x16x128xf32>
    %259 = vector.shape_cast %258 : vector<1x16x128xf32> to vector<16x128xf32>
    %260 = vector.shape_cast %257 : vector<16x128xf32> to vector<1x16x128xf32>
    tpu.vector_store %arg14[%c0_80, %c0_81, %c0_82], %260 {strides = array<i32>} : memref<1x16x128xf32, #tpu.memory_space<vmem>>, vector<1x16x128xf32>,
    return
  }
  func.func @transform_0(%arg0: i32) -> (i32, i32, i32) {
    %c0_i32 = arith.constant 0 : i32
    %c0_i32_0 = arith.constant 0 : i32
    %c0_i32_1 = arith.constant 0 : i32
    return %arg0, %c0_i32, %c0_i32_0 : i32, i32, i32
  }
  func.func @transform_1(%arg0: i32) -> (i32, i32) {
    %c0_i32 = arith.constant 0 : i32
    %c0_i32_0 = arith.constant 0 : i32
    %c0_i32_1 = arith.constant 0 : i32
    return %c0_i32, %c0_i32_0 : i32, i32
  }
  func.func @transform_2(%arg0: i32) -> (i32, i32) {
    %c0_i32 = arith.constant 0 : i32
    %c0_i32_0 = arith.constant 0 : i32
    %c0_i32_1 = arith.constant 0 : i32
    return %c0_i32, %c0_i32_0 : i32, i32
  }
  func.func @transform_3(%arg0: i32) -> (i32, i32) {
    %c0_i32 = arith.constant 0 : i32
    %c0_i32_0 = arith.constant 0 : i32
    %c0_i32_1 = arith.constant 0 : i32
    return %c0_i32, %c0_i32_0 : i32, i32
  }
  func.func @transform_4(%arg0: i32) -> (i32, i32) {
    %c0_i32 = arith.constant 0 : i32
    %c0_i32_0 = arith.constant 0 : i32
    %c0_i32_1 = arith.constant 0 : i32
    return %c0_i32, %c0_i32_0 : i32, i32
  }
  func.func @transform_5(%arg0: i32) -> (i32, i32) {
    %c0_i32 = arith.constant 0 : i32
    %c0_i32_0 = arith.constant 0 : i32
    %c0_i32_1 = arith.constant 0 : i32
    return %c0_i32, %c0_i32_0 : i32, i32
  }
  func.func @transform_6(%arg0: i32) -> (i32, i32) {
    %c0_i32 = arith.constant 0 : i32
    %c0_i32_0 = arith.constant 0 : i32
    %c0_i32_1 = arith.constant 0 : i32
    return %c0_i32, %c0_i32_0 : i32, i32
  }
  func.func @transform_7(%arg0: i32) -> (i32, i32) {
    %c0_i32 = arith.constant 0 : i32
    %c0_i32_0 = arith.constant 0 : i32
    %c0_i32_1 = arith.constant 0 : i32
    return %c0_i32, %c0_i32_0 : i32, i32
  }
  func.func @transform_8(%arg0: i32) -> (i32, i32) {
    %c0_i32 = arith.constant 0 : i32
    %c0_i32_0 = arith.constant 0 : i32
    %c0_i32_1 = arith.constant 0 : i32
    return %c0_i32, %c0_i32_0 : i32, i32
  }
  func.func @transform_9(%arg0: i32) -> (i32, i32) {
    %c0_i32 = arith.constant 0 : i32
    %c0_i32_0 = arith.constant 0 : i32
    %c0_i32_1 = arith.constant 0 : i32
    return %c0_i32, %c0_i32_0 : i32, i32
  }
  func.func @transform_10(%arg0: i32) -> (i32, i32) {
    %c0_i32 = arith.constant 0 : i32
    %c0_i32_0 = arith.constant 0 : i32
    %c0_i32_1 = arith.constant 0 : i32
    return %c0_i32, %c0_i32_0 : i32, i32
  }
  func.func @transform_11(%arg0: i32) -> (i32, i32) {
    %c0_i32 = arith.constant 0 : i32
    %c0_i32_0 = arith.constant 0 : i32
    %c0_i32_1 = arith.constant 0 : i32
    return %c0_i32, %c0_i32_0 : i32, i32
  }
  func.func @transform_12(%arg0: i32) -> (i32, i32) {
    %c0_i32 = arith.constant 0 : i32
    %c0_i32_0 = arith.constant 0 : i32
    %c0_i32_1 = arith.constant 0 : i32
    return %c0_i32, %c0_i32_0 : i32, i32
  }
  func.func @transform_13(%arg0: i32) -> (i32, i32, i32) {
    %c0_i32 = arith.constant 0 : i32
    %c0_i32_0 = arith.constant 0 : i32
    %c0_i32_1 = arith.constant 0 : i32
    return %arg0, %c0_i32, %c0_i32_0 : i32, i32, i32
  }
}

module attributes {stable_mosaic.version = 11 : i64} {
  func.func @_kimcnn_fc_kernel(%arg0: memref<2x16x128xf32, #tpu.memory_space<vmem>>, %arg1: memref<256x128xbf16, #tpu.memory_space<vmem>>, %arg2: memref<1x128xf32, #tpu.memory_space<vmem>>, %arg3: memref<384x128xbf16, #tpu.memory_space<vmem>>, %arg4: memref<1x128xf32, #tpu.memory_space<vmem>>, %arg5: memref<512x128xbf16, #tpu.memory_space<vmem>>, %arg6: memref<1x128xf32, #tpu.memory_space<vmem>>, %arg7: memref<640x128xbf16, #tpu.memory_space<vmem>>, %arg8: memref<1x128xf32, #tpu.memory_space<vmem>>, %arg9: memref<512x128xbf16, #tpu.memory_space<vmem>>, %arg10: memref<1x128xf32, #tpu.memory_space<vmem>>, %arg11: memref<2x128xf32, #tpu.memory_space<vmem>>) attributes {dimension_semantics = [], scalar_prefetch = 0 : i64, scratch_operands = 0 : i64, tpu.core_type = #tpu.core_type<tc>} {
    %c0 = arith.constant 0 : index
    %c0_0 = arith.constant 0 : index
    %c0_1 = arith.constant 0 : index
    %0 = vector.load %arg0[%c0, %c0_0, %c0_1] : memref<2x16x128xf32, #tpu.memory_space<vmem>>, vector<2x16x128xf32>
    %1 = vector.shape_cast %0 : vector<2x16x128xf32> to vector<32x128xf32>
    %2 = arith.truncf %1 : vector<32x128xf32> to vector<32x128xbf16>
    %cst = arith.constant 0.000000e+00 : f32
    %3 = vector.broadcast %cst : f32 to vector<2x15x128xf32>
    %c0_2 = arith.constant 0 : index
    %c0_3 = arith.constant 0 : index
    %4 = vector.load %arg1[%c0_2, %c0_3] : memref<256x128xbf16, #tpu.memory_space<vmem>>, vector<128x128xbf16>
    %cst_4 = arith.constant dense<0.000000e+00> : vector<32x128xf32>
    %5 = tpu.matmul %2, %4, %cst_4 {dimension_numbers = #tpu.dot_dimension_numbers<[1], [0], [0], [1], [0, 0, 1, 1], [], []>} : vector<32x128xbf16>, vector<128x128xbf16>, vector<32x128xf32> -> vector<32x128xf32>
    %6 = vector.shape_cast %5 : vector<32x128xf32> to vector<2x16x128xf32>
    %7 = vector.extract_strided_slice %6 {offsets = [0, 0, 0], sizes = [2, 15, 128], strides = [1, 1, 1]} : vector<2x16x128xf32> to vector<2x15x128xf32>
    %8 = arith.addf %3, %7 : vector<2x15x128xf32>
    %c128 = arith.constant 128 : index
    %c0_5 = arith.constant 0 : index
    %9 = vector.load %arg1[%c128, %c0_5] : memref<256x128xbf16, #tpu.memory_space<vmem>>, vector<128x128xbf16>
    %cst_6 = arith.constant dense<0.000000e+00> : vector<32x128xf32>
    %10 = tpu.matmul %2, %9, %cst_6 {dimension_numbers = #tpu.dot_dimension_numbers<[1], [0], [0], [1], [0, 0, 1, 1], [], []>} : vector<32x128xbf16>, vector<128x128xbf16>, vector<32x128xf32> -> vector<32x128xf32>
    %11 = vector.shape_cast %10 : vector<32x128xf32> to vector<2x16x128xf32>
    %12 = vector.extract_strided_slice %11 {offsets = [0, 1, 0], sizes = [2, 15, 128], strides = [1, 1, 1]} : vector<2x16x128xf32> to vector<2x15x128xf32>
    %13 = arith.addf %8, %12 : vector<2x15x128xf32>
    %c0_7 = arith.constant 0 : index
    %c0_8 = arith.constant 0 : index
    %14 = vector.load %arg2[%c0_7, %c0_8] : memref<1x128xf32, #tpu.memory_space<vmem>>, vector<1x128xf32>
    %15 = vector.shape_cast %14 : vector<1x128xf32> to vector<1x1x128xf32>
    %16 = vector.broadcast %15 : vector<1x1x128xf32> to vector<2x15x128xf32>
    %17 = arith.addf %13, %16 : vector<2x15x128xf32>
    %cst_9 = arith.constant 0.000000e+00 : f32
    %18 = vector.broadcast %cst_9 : f32 to vector<2x15x128xf32>
    %19 = arith.maximumf %17, %18 : vector<2x15x128xf32>
    %cst_10 = arith.constant dense<0xFF800000> : vector<2x128xf32>
    %20 = vector.multi_reduction <maximumf>, %19, %cst_10 [1] : vector<2x15x128xf32> to vector<2x128xf32>
    %cst_11 = arith.constant 0.000000e+00 : f32
    %21 = vector.broadcast %cst_11 : f32 to vector<2x14x128xf32>
    %c0_12 = arith.constant 0 : index
    %c0_13 = arith.constant 0 : index
    %22 = vector.load %arg3[%c0_12, %c0_13] : memref<384x128xbf16, #tpu.memory_space<vmem>>, vector<128x128xbf16>
    %cst_14 = arith.constant dense<0.000000e+00> : vector<32x128xf32>
    %23 = tpu.matmul %2, %22, %cst_14 {dimension_numbers = #tpu.dot_dimension_numbers<[1], [0], [0], [1], [0, 0, 1, 1], [], []>} : vector<32x128xbf16>, vector<128x128xbf16>, vector<32x128xf32> -> vector<32x128xf32>
    %24 = vector.shape_cast %23 : vector<32x128xf32> to vector<2x16x128xf32>
    %25 = vector.extract_strided_slice %24 {offsets = [0, 0, 0], sizes = [2, 14, 128], strides = [1, 1, 1]} : vector<2x16x128xf32> to vector<2x14x128xf32>
    %26 = arith.addf %21, %25 : vector<2x14x128xf32>
    %c128_15 = arith.constant 128 : index
    %c0_16 = arith.constant 0 : index
    %27 = vector.load %arg3[%c128_15, %c0_16] : memref<384x128xbf16, #tpu.memory_space<vmem>>, vector<128x128xbf16>
    %cst_17 = arith.constant dense<0.000000e+00> : vector<32x128xf32>
    %28 = tpu.matmul %2, %27, %cst_17 {dimension_numbers = #tpu.dot_dimension_numbers<[1], [0], [0], [1], [0, 0, 1, 1], [], []>} : vector<32x128xbf16>, vector<128x128xbf16>, vector<32x128xf32> -> vector<32x128xf32>
    %29 = vector.shape_cast %28 : vector<32x128xf32> to vector<2x16x128xf32>
    %30 = vector.extract_strided_slice %29 {offsets = [0, 1, 0], sizes = [2, 14, 128], strides = [1, 1, 1]} : vector<2x16x128xf32> to vector<2x14x128xf32>
    %31 = arith.addf %26, %30 : vector<2x14x128xf32>
    %c256 = arith.constant 256 : index
    %c0_18 = arith.constant 0 : index
    %32 = vector.load %arg3[%c256, %c0_18] : memref<384x128xbf16, #tpu.memory_space<vmem>>, vector<128x128xbf16>
    %cst_19 = arith.constant dense<0.000000e+00> : vector<32x128xf32>
    %33 = tpu.matmul %2, %32, %cst_19 {dimension_numbers = #tpu.dot_dimension_numbers<[1], [0], [0], [1], [0, 0, 1, 1], [], []>} : vector<32x128xbf16>, vector<128x128xbf16>, vector<32x128xf32> -> vector<32x128xf32>
    %34 = vector.shape_cast %33 : vector<32x128xf32> to vector<2x16x128xf32>
    %35 = vector.extract_strided_slice %34 {offsets = [0, 2, 0], sizes = [2, 14, 128], strides = [1, 1, 1]} : vector<2x16x128xf32> to vector<2x14x128xf32>
    %36 = arith.addf %31, %35 : vector<2x14x128xf32>
    %c0_20 = arith.constant 0 : index
    %c0_21 = arith.constant 0 : index
    %37 = vector.load %arg4[%c0_20, %c0_21] : memref<1x128xf32, #tpu.memory_space<vmem>>, vector<1x128xf32>
    %38 = vector.shape_cast %37 : vector<1x128xf32> to vector<1x1x128xf32>
    %39 = vector.broadcast %38 : vector<1x1x128xf32> to vector<2x14x128xf32>
    %40 = arith.addf %36, %39 : vector<2x14x128xf32>
    %cst_22 = arith.constant 0.000000e+00 : f32
    %41 = vector.broadcast %cst_22 : f32 to vector<2x14x128xf32>
    %42 = arith.maximumf %40, %41 : vector<2x14x128xf32>
    %cst_23 = arith.constant dense<0xFF800000> : vector<2x128xf32>
    %43 = vector.multi_reduction <maximumf>, %42, %cst_23 [1] : vector<2x14x128xf32> to vector<2x128xf32>
    %cst_24 = arith.constant 0.000000e+00 : f32
    %44 = vector.broadcast %cst_24 : f32 to vector<2x13x128xf32>
    %c0_25 = arith.constant 0 : index
    %c0_26 = arith.constant 0 : index
    %45 = vector.load %arg5[%c0_25, %c0_26] : memref<512x128xbf16, #tpu.memory_space<vmem>>, vector<128x128xbf16>
    %cst_27 = arith.constant dense<0.000000e+00> : vector<32x128xf32>
    %46 = tpu.matmul %2, %45, %cst_27 {dimension_numbers = #tpu.dot_dimension_numbers<[1], [0], [0], [1], [0, 0, 1, 1], [], []>} : vector<32x128xbf16>, vector<128x128xbf16>, vector<32x128xf32> -> vector<32x128xf32>
    %47 = vector.shape_cast %46 : vector<32x128xf32> to vector<2x16x128xf32>
    %48 = vector.extract_strided_slice %47 {offsets = [0, 0, 0], sizes = [2, 13, 128], strides = [1, 1, 1]} : vector<2x16x128xf32> to vector<2x13x128xf32>
    %49 = arith.addf %44, %48 : vector<2x13x128xf32>
    %c128_28 = arith.constant 128 : index
    %c0_29 = arith.constant 0 : index
    %50 = vector.load %arg5[%c128_28, %c0_29] : memref<512x128xbf16, #tpu.memory_space<vmem>>, vector<128x128xbf16>
    %cst_30 = arith.constant dense<0.000000e+00> : vector<32x128xf32>
    %51 = tpu.matmul %2, %50, %cst_30 {dimension_numbers = #tpu.dot_dimension_numbers<[1], [0], [0], [1], [0, 0, 1, 1], [], []>} : vector<32x128xbf16>, vector<128x128xbf16>, vector<32x128xf32> -> vector<32x128xf32>
    %52 = vector.shape_cast %51 : vector<32x128xf32> to vector<2x16x128xf32>
    %53 = vector.extract_strided_slice %52 {offsets = [0, 1, 0], sizes = [2, 13, 128], strides = [1, 1, 1]} : vector<2x16x128xf32> to vector<2x13x128xf32>
    %54 = arith.addf %49, %53 : vector<2x13x128xf32>
    %c256_31 = arith.constant 256 : index
    %c0_32 = arith.constant 0 : index
    %55 = vector.load %arg5[%c256_31, %c0_32] : memref<512x128xbf16, #tpu.memory_space<vmem>>, vector<128x128xbf16>
    %cst_33 = arith.constant dense<0.000000e+00> : vector<32x128xf32>
    %56 = tpu.matmul %2, %55, %cst_33 {dimension_numbers = #tpu.dot_dimension_numbers<[1], [0], [0], [1], [0, 0, 1, 1], [], []>} : vector<32x128xbf16>, vector<128x128xbf16>, vector<32x128xf32> -> vector<32x128xf32>
    %57 = vector.shape_cast %56 : vector<32x128xf32> to vector<2x16x128xf32>
    %58 = vector.extract_strided_slice %57 {offsets = [0, 2, 0], sizes = [2, 13, 128], strides = [1, 1, 1]} : vector<2x16x128xf32> to vector<2x13x128xf32>
    %59 = arith.addf %54, %58 : vector<2x13x128xf32>
    %c384 = arith.constant 384 : index
    %c0_34 = arith.constant 0 : index
    %60 = vector.load %arg5[%c384, %c0_34] : memref<512x128xbf16, #tpu.memory_space<vmem>>, vector<128x128xbf16>
    %cst_35 = arith.constant dense<0.000000e+00> : vector<32x128xf32>
    %61 = tpu.matmul %2, %60, %cst_35 {dimension_numbers = #tpu.dot_dimension_numbers<[1], [0], [0], [1], [0, 0, 1, 1], [], []>} : vector<32x128xbf16>, vector<128x128xbf16>, vector<32x128xf32> -> vector<32x128xf32>
    %62 = vector.shape_cast %61 : vector<32x128xf32> to vector<2x16x128xf32>
    %63 = vector.extract_strided_slice %62 {offsets = [0, 3, 0], sizes = [2, 13, 128], strides = [1, 1, 1]} : vector<2x16x128xf32> to vector<2x13x128xf32>
    %64 = arith.addf %59, %63 : vector<2x13x128xf32>
    %c0_36 = arith.constant 0 : index
    %c0_37 = arith.constant 0 : index
    %65 = vector.load %arg6[%c0_36, %c0_37] : memref<1x128xf32, #tpu.memory_space<vmem>>, vector<1x128xf32>
    %66 = vector.shape_cast %65 : vector<1x128xf32> to vector<1x1x128xf32>
    %67 = vector.broadcast %66 : vector<1x1x128xf32> to vector<2x13x128xf32>
    %68 = arith.addf %64, %67 : vector<2x13x128xf32>
    %cst_38 = arith.constant 0.000000e+00 : f32
    %69 = vector.broadcast %cst_38 : f32 to vector<2x13x128xf32>
    %70 = arith.maximumf %68, %69 : vector<2x13x128xf32>
    %cst_39 = arith.constant dense<0xFF800000> : vector<2x128xf32>
    %71 = vector.multi_reduction <maximumf>, %70, %cst_39 [1] : vector<2x13x128xf32> to vector<2x128xf32>
    %cst_40 = arith.constant 0.000000e+00 : f32
    %72 = vector.broadcast %cst_40 : f32 to vector<2x12x128xf32>
    %c0_41 = arith.constant 0 : index
    %c0_42 = arith.constant 0 : index
    %73 = vector.load %arg7[%c0_41, %c0_42] : memref<640x128xbf16, #tpu.memory_space<vmem>>, vector<128x128xbf16>
    %cst_43 = arith.constant dense<0.000000e+00> : vector<32x128xf32>
    %74 = tpu.matmul %2, %73, %cst_43 {dimension_numbers = #tpu.dot_dimension_numbers<[1], [0], [0], [1], [0, 0, 1, 1], [], []>} : vector<32x128xbf16>, vector<128x128xbf16>, vector<32x128xf32> -> vector<32x128xf32>
    %75 = vector.shape_cast %74 : vector<32x128xf32> to vector<2x16x128xf32>
    %76 = vector.extract_strided_slice %75 {offsets = [0, 0, 0], sizes = [2, 12, 128], strides = [1, 1, 1]} : vector<2x16x128xf32> to vector<2x12x128xf32>
    %77 = arith.addf %72, %76 : vector<2x12x128xf32>
    %c128_44 = arith.constant 128 : index
    %c0_45 = arith.constant 0 : index
    %78 = vector.load %arg7[%c128_44, %c0_45] : memref<640x128xbf16, #tpu.memory_space<vmem>>, vector<128x128xbf16>
    %cst_46 = arith.constant dense<0.000000e+00> : vector<32x128xf32>
    %79 = tpu.matmul %2, %78, %cst_46 {dimension_numbers = #tpu.dot_dimension_numbers<[1], [0], [0], [1], [0, 0, 1, 1], [], []>} : vector<32x128xbf16>, vector<128x128xbf16>, vector<32x128xf32> -> vector<32x128xf32>
    %80 = vector.shape_cast %79 : vector<32x128xf32> to vector<2x16x128xf32>
    %81 = vector.extract_strided_slice %80 {offsets = [0, 1, 0], sizes = [2, 12, 128], strides = [1, 1, 1]} : vector<2x16x128xf32> to vector<2x12x128xf32>
    %82 = arith.addf %77, %81 : vector<2x12x128xf32>
    %c256_47 = arith.constant 256 : index
    %c0_48 = arith.constant 0 : index
    %83 = vector.load %arg7[%c256_47, %c0_48] : memref<640x128xbf16, #tpu.memory_space<vmem>>, vector<128x128xbf16>
    %cst_49 = arith.constant dense<0.000000e+00> : vector<32x128xf32>
    %84 = tpu.matmul %2, %83, %cst_49 {dimension_numbers = #tpu.dot_dimension_numbers<[1], [0], [0], [1], [0, 0, 1, 1], [], []>} : vector<32x128xbf16>, vector<128x128xbf16>, vector<32x128xf32> -> vector<32x128xf32>
    %85 = vector.shape_cast %84 : vector<32x128xf32> to vector<2x16x128xf32>
    %86 = vector.extract_strided_slice %85 {offsets = [0, 2, 0], sizes = [2, 12, 128], strides = [1, 1, 1]} : vector<2x16x128xf32> to vector<2x12x128xf32>
    %87 = arith.addf %82, %86 : vector<2x12x128xf32>
    %c384_50 = arith.constant 384 : index
    %c0_51 = arith.constant 0 : index
    %88 = vector.load %arg7[%c384_50, %c0_51] : memref<640x128xbf16, #tpu.memory_space<vmem>>, vector<128x128xbf16>
    %cst_52 = arith.constant dense<0.000000e+00> : vector<32x128xf32>
    %89 = tpu.matmul %2, %88, %cst_52 {dimension_numbers = #tpu.dot_dimension_numbers<[1], [0], [0], [1], [0, 0, 1, 1], [], []>} : vector<32x128xbf16>, vector<128x128xbf16>, vector<32x128xf32> -> vector<32x128xf32>
    %90 = vector.shape_cast %89 : vector<32x128xf32> to vector<2x16x128xf32>
    %91 = vector.extract_strided_slice %90 {offsets = [0, 3, 0], sizes = [2, 12, 128], strides = [1, 1, 1]} : vector<2x16x128xf32> to vector<2x12x128xf32>
    %92 = arith.addf %87, %91 : vector<2x12x128xf32>
    %c512 = arith.constant 512 : index
    %c0_53 = arith.constant 0 : index
    %93 = vector.load %arg7[%c512, %c0_53] : memref<640x128xbf16, #tpu.memory_space<vmem>>, vector<128x128xbf16>
    %cst_54 = arith.constant dense<0.000000e+00> : vector<32x128xf32>
    %94 = tpu.matmul %2, %93, %cst_54 {dimension_numbers = #tpu.dot_dimension_numbers<[1], [0], [0], [1], [0, 0, 1, 1], [], []>} : vector<32x128xbf16>, vector<128x128xbf16>, vector<32x128xf32> -> vector<32x128xf32>
    %95 = vector.shape_cast %94 : vector<32x128xf32> to vector<2x16x128xf32>
    %96 = vector.extract_strided_slice %95 {offsets = [0, 4, 0], sizes = [2, 12, 128], strides = [1, 1, 1]} : vector<2x16x128xf32> to vector<2x12x128xf32>
    %97 = arith.addf %92, %96 : vector<2x12x128xf32>
    %c0_55 = arith.constant 0 : index
    %c0_56 = arith.constant 0 : index
    %98 = vector.load %arg8[%c0_55, %c0_56] : memref<1x128xf32, #tpu.memory_space<vmem>>, vector<1x128xf32>
    %99 = vector.shape_cast %98 : vector<1x128xf32> to vector<1x1x128xf32>
    %100 = vector.broadcast %99 : vector<1x1x128xf32> to vector<2x12x128xf32>
    %101 = arith.addf %97, %100 : vector<2x12x128xf32>
    %cst_57 = arith.constant 0.000000e+00 : f32
    %102 = vector.broadcast %cst_57 : f32 to vector<2x12x128xf32>
    %103 = arith.maximumf %101, %102 : vector<2x12x128xf32>
    %cst_58 = arith.constant dense<0xFF800000> : vector<2x128xf32>
    %104 = vector.multi_reduction <maximumf>, %103, %cst_58 [1] : vector<2x12x128xf32> to vector<2x128xf32>
    %105 = tpu.concatenate %20, %43, %71, %104 in 1 : vector<2x128xf32>, vector<2x128xf32>, vector<2x128xf32>, vector<2x128xf32> -> vector<2x512xf32>
    %106 = arith.truncf %105 : vector<2x512xf32> to vector<2x512xbf16>
    %c0_59 = arith.constant 0 : index
    %c0_60 = arith.constant 0 : index
    %107 = vector.load %arg9[%c0_59, %c0_60] : memref<512x128xbf16, #tpu.memory_space<vmem>>, vector<512x128xbf16>
    %cst_61 = arith.constant dense<0.000000e+00> : vector<2x128xf32>
    %108 = tpu.matmul %106, %107, %cst_61 {dimension_numbers = #tpu.dot_dimension_numbers<[1], [0], [0], [1], [0, 0, 1, 1], [], []>} : vector<2x512xbf16>, vector<512x128xbf16>, vector<2x128xf32> -> vector<2x128xf32>
    %c0_62 = arith.constant 0 : index
    %c0_63 = arith.constant 0 : index
    %109 = vector.load %arg10[%c0_62, %c0_63] : memref<1x128xf32, #tpu.memory_space<vmem>>, vector<1x128xf32>
    %110 = vector.broadcast %109 : vector<1x128xf32> to vector<2x128xf32>
    %111 = arith.addf %108, %110 : vector<2x128xf32>
    %c0_64 = arith.constant 0 : index
    %c0_65 = arith.constant 0 : index
    %112 = vector.load %arg11[%c0_64, %c0_65] : memref<2x128xf32, #tpu.memory_space<vmem>>, vector<2x128xf32>
    tpu.vector_store %arg11[%c0_64, %c0_65], %111 {strides = array<i32>} : memref<2x128xf32, #tpu.memory_space<vmem>>, vector<2x128xf32>,
    return
  }
}

</mosaic_0001>

<llo_original>
// kernel: encoder_kimcnn_forward.4
$region0: #{encoder_kimcnn_forward.4}
  #allocation0 [shape = 'u32[]', space=smem, size = 0x4, offset = 0x4, fixed_abs, tag = 'smem constant byte address 0x4 - core index']
  #allocation1 [shape = 'u32[72,128]{1,0:T(1,128)}', space=vmem, size = 0x9000, scoped, tag = 'internal scratch']
  %s0 = inlined_call_operand.hbm [shape: f32[2,16,128], index: 0, kind: input, shape index: {}]
  %s1 = inlined_call_operand.hbm [shape: bf16[128,384], index: 1, kind: input, shape index: {}]
  %s2 = inlined_call_operand.vmem [shape: f32[1,384], index: 2, kind: input, shape index: {}]
  %s3 = inlined_call_operand.hbm [shape: bf16[128,128], index: 3, kind: input, shape index: {}]
  %s4 = inlined_call_operand.hbm [shape: f32[1,128], index: 4, kind: input, shape index: {}]
  %s5 = inlined_call_operand.vmem [shape: f32[1,128], index: 5, kind: input, shape index: {}]
  %s6 = inlined_call_operand.hbm [shape: f32[1,128], index: 6, kind: input, shape index: {}]
  %s7 = inlined_call_operand.hbm [shape: bf16[128,256], index: 7, kind: input, shape index: {}]
  %s8 = inlined_call_operand.vmem [shape: f32[1,256], index: 8, kind: input, shape index: {}]
  %s9 = inlined_call_operand.hbm [shape: bf16[256,128], index: 9, kind: input, shape index: {}]
  %s10 = inlined_call_operand.hbm [shape: f32[1,128], index: 10, kind: input, shape index: {}]
  %s11 = inlined_call_operand.vmem [shape: f32[1,128], index: 11, kind: input, shape index: {}]
  %s12 = inlined_call_operand.hbm [shape: f32[1,128], index: 12, kind: input, shape index: {}]
  %s13 = inlined_call_operand.vmem [shape: f32[2,16,128], index: 13, kind: output, shape index: {}]
  %s14 = sld [smem:[#allocation0]]
  $region121: #{encoder_kimcnn_forward.4} parent=0
    _
  %s16 = ssub.s32 1, %s14
  %s17 = scalar_select 0, %s16, %s14
  $region1: #{encoder_kimcnn_forward.4} parent=0
    #allocation2 [shape = 'u8[16384]{0}', space=vmem, size = 0x4000, scoped, tag = 'input window, operand 0']
    #allocation3 [shape = 's32[2]{0}', space=sflag, size = 0x8, scoped, tag = 'scoped memory for encoder_kimcnn_forward.4']
    #allocation4 [shape = 'u8[98304]{0}', space=vmem, size = 0x18000, scoped, tag = 'input window, operand 1, single buffered']
    #allocation5 [shape = 's32[1]{0}', space=sflag, size = 0x4, scoped, tag = 'scoped memory for encoder_kimcnn_forward.4']
    #allocation6 [shape = 'u8[32768]{0}', space=vmem, size = 0x8000, scoped, tag = 'input window, operand 3, single buffered']
    #allocation7 [shape = 'u8[512]{0}', space=vmem, size = 0x400, scoped, tag = 'input window, operand 4, single buffered']
    #allocation8 [shape = 's32[1]{0}', space=sflag, size = 0x4, scoped, tag = 'scoped memory for encoder_kimcnn_forward.4']
    #allocation9 [shape = 'u8[512]{0}', space=vmem, size = 0x400, scoped, tag = 'input window, operand 6, single buffered']
    #allocation10 [shape = 'u8[65536]{0}', space=vmem, size = 0x10000, scoped, tag = 'input window, operand 7, single buffered']
    #allocation11 [shape = 's32[1]{0}', space=sflag, size = 0x4, scoped, tag = 'scoped memory for encoder_kimcnn_forward.4']
    #allocation12 [shape = 'u8[65536]{0}', space=vmem, size = 0x10000, scoped, tag = 'input window, operand 9, single buffered']
    #allocation13 [shape = 'u8[512]{0}', space=vmem, size = 0x400, scoped, tag = 'input window, operand 10, single buffered']
    #allocation14 [shape = 's32[1]{0}', space=sflag, size = 0x4, scoped, tag = 'scoped memory for encoder_kimcnn_forward.4']
    #allocation15 [shape = 'u8[512]{0}', space=vmem, size = 0x400, scoped, tag = 'input window, operand 12, single buffered']
    %18 = vsyncpa [#allocation3], 0
    %s19 = scalar_lea.sflag [#allocation3], 1
    %20 = vsyncpa %s19, 0
    %21 = vsyncpa [#allocation5], 0
    %22 = vsyncpa [#allocation8], 0
    %23 = vsyncpa [#allocation11], 0
    %24 = vsyncpa [#allocation14], 0
    loop: start=0, step=1, limit=4
    $region2: #{encoder_kimcnn_forward.4} parent=1 // loop_pre_header
      _
    $region3: #{encoder_kimcnn_forward.4} parent=1 // loop_header
      %s26 = sphi 0, %s30
      %p27 = scmp.ge.s32.totalorder %s26, 4
      %s36 = sphi 0, %s38
      %s39 = sphi 0, %s36
      %s40 = sphi 0, %s39
      %s56 = sphi 0, %s40
      %s60 = sphi 0, %s60
      %s62 = sphi 0, %s60
      %s63 = sphi 0, %s62
      %s77 = sphi 0, %s63
      %s81 = sphi 0, %s81
      %s83 = sphi 0, %s81
      %s84 = sphi 0, %s83
      %s98 = sphi 0, %s84
      %s102 = sphi 0, %s102
      %s104 = sphi 0, %s102
      %s105 = sphi 0, %s104
      %s119 = sphi 0, %s105
      %s123 = sphi 0, %s123
      %s125 = sphi 0, %s123
      %s126 = sphi 0, %s125
      %s140 = sphi 0, %s126
      %s144 = sphi 0, %s144
      %s146 = sphi 0, %s144
      %s147 = sphi 0, %s146
      %s161 = sphi 0, %s147
      %s165 = sphi 0, %s165
      %s167 = sphi 0, %s165
      %s168 = sphi 0, %s167
      %s182 = sphi 0, %s168
      %s186 = sphi 0, %s186
      %s188 = sphi 0, %s186
      %s189 = sphi 0, %s188
      %s203 = sphi 0, %s189
      %s207 = sphi 0, %s207
      %s209 = sphi 0, %s207
      %s210 = sphi 0, %s209
      %s224 = sphi 0, %s210
      %s228 = sphi 0, %s228
      %s230 = sphi 0, %s228
      %s231 = sphi 0, %s230
      %s245 = sphi 0, %s231
      %s249 = sphi 0, %s249
      %s251 = sphi 0, %s249
      %s252 = sphi 0, %s251
      %s266 = sphi 0, %s252
      %s270 = sphi 0, %s270
      %s272 = sphi 0, %s270
      %s273 = sphi 0, %s272
      %s287 = sphi 0, %s273
      %s291 = sphi 0, %s291
      %s293 = sphi 0, %s291
      %s294 = sphi 0, %s293
      %s308 = sphi 0, %s294
      %s314 = sphi 0, %s316
      %s317 = sphi 0, %s314
      %s318 = sphi 0, %s317
      %s334 = sphi 0, %s318
    $region4: #{encoder_kimcnn_forward.4} parent=1 // loop_header_branch
      %29 = sbr.rel (%p27) target = $region8
    $region5: #{encoder_kimcnn_forward.4} parent=1 // loop_body
      %s31 = ssub.s32 %s26, 1
      %s32 = ssub.s32 %s26, 2
      %s33 = sadd.s32 %s26, 1
      %s34 = ssub.s32 %s26, %s33
      %p35 = scmp.eq.s32.totalorder %s34, 0
      %s37 = sadd.s32 %s36, 1
      %s38 = scalar_select %p35, %s36, %s37
      %p41 = pneg %p35
      %p42 = scmp.eq.s32.totalorder %s26, 1
      %p43 = por %p41, %p42
      %p44 = scmp.ne.s32.totalorder %s36, %s39
      %p45 = scmp.eq.s32.totalorder %s26, 0
      %p46 = por %p44, %p45
      %p47 = scmp.ne.s32.totalorder %s36, %s39
      %p48 = scmp.eq.s32.totalorder %s31, 1
      %p49 = por %p47, %p48
      %p50 = scmp.ne.s32.totalorder %s39, %s40
      %p51 = scmp.eq.s32.totalorder %s31, 0
      %p52 = por %p50, %p51
      %p53 = scmp.ne.s32.totalorder %s39, %s40
      %p54 = scmp.eq.s32.totalorder %s32, 1
      %p55 = por %p53, %p54
      %p57 = scmp.ne.s32.totalorder %s40, %s56
      %p58 = scmp.eq.s32.totalorder %s32, 0
      %p59 = por %p57, %p58
      %s61 = sadd.s32 %s60, 1
      %p64 = scmp.eq.s32.totalorder %s26, 1
      %p65 = scmp.ne.s32.totalorder %s60, %s62
      %p66 = scmp.eq.s32.totalorder %s26, 0
      %p67 = por %p65, %p66
      %p68 = scmp.ne.s32.totalorder %s60, %s62
      %p69 = scmp.eq.s32.totalorder %s31, 1
      %p70 = por %p68, %p69
      %p71 = scmp.ne.s32.totalorder %s62, %s63
      %p72 = scmp.eq.s32.totalorder %s31, 0
      %p73 = por %p71, %p72
      %p74 = scmp.ne.s32.totalorder %s62, %s63
      %p75 = scmp.eq.s32.totalorder %s32, 1
      %p76 = por %p74, %p75
      %p78 = scmp.ne.s32.totalorder %s63, %s77
      %p79 = scmp.eq.s32.totalorder %s32, 0
      %p80 = por %p78, %p79
      %s82 = sadd.s32 %s81, 1
      %p85 = scmp.eq.s32.totalorder %s26, 1
      %p86 = scmp.ne.s32.totalorder %s81, %s83
      %p87 = scmp.eq.s32.totalorder %s26, 0
      %p88 = por %p86, %p87
      %p89 = scmp.ne.s32.totalorder %s81, %s83
      %p90 = scmp.eq.s32.totalorder %s31, 1
      %p91 = por %p89, %p90
      %p92 = scmp.ne.s32.totalorder %s83, %s84
      %p93 = scmp.eq.s32.totalorder %s31, 0
      %p94 = por %p92, %p93
      %p95 = scmp.ne.s32.totalorder %s83, %s84
      %p96 = scmp.eq.s32.totalorder %s32, 1
      %p97 = por %p95, %p96
      %p99 = scmp.ne.s32.totalorder %s84, %s98
      %p100 = scmp.eq.s32.totalorder %s32, 0
      %p101 = por %p99, %p100
      %s103 = sadd.s32 %s102, 1
      %p106 = scmp.eq.s32.totalorder %s26, 1
      %p107 = scmp.ne.s32.totalorder %s102, %s104
      %p108 = scmp.eq.s32.totalorder %s26, 0
      %p109 = por %p107, %p108
      %p110 = scmp.ne.s32.totalorder %s102, %s104
      %p111 = scmp.eq.s32.totalorder %s31, 1
      %p112 = por %p110, %p111
      %p113 = scmp.ne.s32.totalorder %s104, %s105
      %p114 = scmp.eq.s32.totalorder %s31, 0
      %p115 = por %p113, %p114
      %p116 = scmp.ne.s32.totalorder %s104, %s105
      %p117 = scmp.eq.s32.totalorder %s32, 1
      %p118 = por %p116, %p117
      %p120 = scmp.ne.s32.totalorder %s105, %s119
      %p121 = scmp.eq.s32.totalorder %s32, 0
      %p122 = por %p120, %p121
      %s124 = sadd.s32 %s123, 1
      %p127 = scmp.eq.s32.totalorder %s26, 1
      %p128 = scmp.ne.s32.totalorder %s123, %s125
      %p129 = scmp.eq.s32.totalorder %s26, 0
      %p130 = por %p128, %p129
      %p131 = scmp.ne.s32.totalorder %s123, %s125
      %p132 = scmp.eq.s32.totalorder %s31, 1
      %p133 = por %p131, %p132
      %p134 = scmp.ne.s32.totalorder %s125, %s126
      %p135 = scmp.eq.s32.totalorder %s31, 0
      %p136 = por %p134, %p135
      %p137 = scmp.ne.s32.totalorder %s125, %s126
      %p138 = scmp.eq.s32.totalorder %s32, 1
      %p139 = por %p137, %p138
      %p141 = scmp.ne.s32.totalorder %s126, %s140
      %p142 = scmp.eq.s32.totalorder %s32, 0
      %p143 = por %p141, %p142
      %s145 = sadd.s32 %s144, 1
      %p148 = scmp.eq.s32.totalorder %s26, 1
      %p149 = scmp.ne.s32.totalorder %s144, %s146
      %p150 = scmp.eq.s32.totalorder %s26, 0
      %p151 = por %p149, %p150
      %p152 = scmp.ne.s32.totalorder %s144, %s146
      %p153 = scmp.eq.s32.totalorder %s31, 1
      %p154 = por %p152, %p153
      %p155 = scmp.ne.s32.totalorder %s146, %s147
      %p156 = scmp.eq.s32.totalorder %s31, 0
      %p157 = por %p155, %p156
      %p158 = scmp.ne.s32.totalorder %s146, %s147
      %p159 = scmp.eq.s32.totalorder %s32, 1
      %p160 = por %p158, %p159
      %p162 = scmp.ne.s32.totalorder %s147, %s161
      %p163 = scmp.eq.s32.totalorder %s32, 0
      %p164 = por %p162, %p163
      %s166 = sadd.s32 %s165, 1
      %p169 = scmp.eq.s32.totalorder %s26, 1
      %p170 = scmp.ne.s32.totalorder %s165, %s167
      %p171 = scmp.eq.s32.totalorder %s26, 0
      %p172 = por %p170, %p171
      %p173 = scmp.ne.s32.totalorder %s165, %s167
      %p174 = scmp.eq.s32.totalorder %s31, 1
      %p175 = por %p173, %p174
      %p176 = scmp.ne.s32.totalorder %s167, %s168
      %p177 = scmp.eq.s32.totalorder %s31, 0
      %p178 = por %p176, %p177
      %p179 = scmp.ne.s32.totalorder %s167, %s168
      %p180 = scmp.eq.s32.totalorder %s32, 1
      %p181 = por %p179, %p180
      %p183 = scmp.ne.s32.totalorder %s168, %s182
      %p184 = scmp.eq.s32.totalorder %s32, 0
      %p185 = por %p183, %p184
      %s187 = sadd.s32 %s186, 1
      %p190 = scmp.eq.s32.totalorder %s26, 1
      %p191 = scmp.ne.s32.totalorder %s186, %s188
      %p192 = scmp.eq.s32.totalorder %s26, 0
      %p193 = por %p191, %p192
      %p194 = scmp.ne.s32.totalorder %s186, %s188
      %p195 = scmp.eq.s32.totalorder %s31, 1
      %p196 = por %p194, %p195
      %p197 = scmp.ne.s32.totalorder %s188, %s189
      %p198 = scmp.eq.s32.totalorder %s31, 0
      %p199 = por %p197, %p198
      %p200 = scmp.ne.s32.totalorder %s188, %s189
      %p201 = scmp.eq.s32.totalorder %s32, 1
      %p202 = por %p200, %p201
      %p204 = scmp.ne.s32.totalorder %s189, %s203
      %p205 = scmp.eq.s32.totalorder %s32, 0
      %p206 = por %p204, %p205
      %s208 = sadd.s32 %s207, 1
      %p211 = scmp.eq.s32.totalorder %s26, 1
      %p212 = scmp.ne.s32.totalorder %s207, %s209
      %p213 = scmp.eq.s32.totalorder %s26, 0
      %p214 = por %p212, %p213
      %p215 = scmp.ne.s32.totalorder %s207, %s209
      %p216 = scmp.eq.s32.totalorder %s31, 1
      %p217 = por %p215, %p216
      %p218 = scmp.ne.s32.totalorder %s209, %s210
      %p219 = scmp.eq.s32.totalorder %s31, 0
      %p220 = por %p218, %p219
      %p221 = scmp.ne.s32.totalorder %s209, %s210
      %p222 = scmp.eq.s32.totalorder %s32, 1
      %p223 = por %p221, %p222
      %p225 = scmp.ne.s32.totalorder %s210, %s224
      %p226 = scmp.eq.s32.totalorder %s32, 0
      %p227 = por %p225, %p226
      %s229 = sadd.s32 %s228, 1
      %p232 = scmp.eq.s32.totalorder %s26, 1
      %p233 = scmp.ne.s32.totalorder %s228, %s230
      %p234 = scmp.eq.s32.totalorder %s26, 0
      %p235 = por %p233, %p234
      %p236 = scmp.ne.s32.totalorder %s228, %s230
      %p237 = scmp.eq.s32.totalorder %s31, 1
      %p238 = por %p236, %p237
      %p239 = scmp.ne.s32.totalorder %s230, %s231
      %p240 = scmp.eq.s32.totalorder %s31, 0
      %p241 = por %p239, %p240
      %p242 = scmp.ne.s32.totalorder %s230, %s231
      %p243 = scmp.eq.s32.totalorder %s32, 1
      %p244 = por %p242, %p243
      %p246 = scmp.ne.s32.totalorder %s231, %s245
      %p247 = scmp.eq.s32.totalorder %s32, 0
      %p248 = por %p246, %p247
      %s250 = sadd.s32 %s249, 1
      %p253 = scmp.eq.s32.totalorder %s26, 1
      %p254 = scmp.ne.s32.totalorder %s249, %s251
      %p255 = scmp.eq.s32.totalorder %s26, 0
      %p256 = por %p254, %p255
      %p257 = scmp.ne.s32.totalorder %s249, %s251
      %p258 = scmp.eq.s32.totalorder %s31, 1
      %p259 = por %p257, %p258
      %p260 = scmp.ne.s32.totalorder %s251, %s252
      %p261 = scmp.eq.s32.totalorder %s31, 0
      %p262 = por %p260, %p261
      %p263 = scmp.ne.s32.totalorder %s251, %s252
      %p264 = scmp.eq.s32.totalorder %s32, 1
      %p265 = por %p263, %p264
      %p267 = scmp.ne.s32.totalorder %s252, %s266
      %p268 = scmp.eq.s32.totalorder %s32, 0
      %p269 = por %p267, %p268
      %s271 = sadd.s32 %s270, 1
      %p274 = scmp.eq.s32.totalorder %s26, 1
      %p275 = scmp.ne.s32.totalorder %s270, %s272
      %p276 = scmp.eq.s32.totalorder %s26, 0
      %p277 = por %p275, %p276
      %p278 = scmp.ne.s32.totalorder %s270, %s272
      %p279 = scmp.eq.s32.totalorder %s31, 1
      %p280 = por %p278, %p279
      %p281 = scmp.ne.s32.totalorder %s272, %s273
      %p282 = scmp.eq.s32.totalorder %s31, 0
      %p283 = por %p281, %p282
      %p284 = scmp.ne.s32.totalorder %s272, %s273
      %p285 = scmp.eq.s32.totalorder %s32, 1
      %p286 = por %p284, %p285
      %p288 = scmp.ne.s32.totalorder %s273, %s287
      %p289 = scmp.eq.s32.totalorder %s32, 0
      %p290 = por %p288, %p289
      %s292 = sadd.s32 %s291, 1
      %p295 = scmp.eq.s32.totalorder %s26, 1
      %p296 = scmp.ne.s32.totalorder %s291, %s293
      %p297 = scmp.eq.s32.totalorder %s26, 0
      %p298 = por %p296, %p297
      %p299 = scmp.ne.s32.totalorder %s291, %s293
      %p300 = scmp.eq.s32.totalorder %s31, 1
      %p301 = por %p299, %p300
      %p302 = scmp.ne.s32.totalorder %s293, %s294
      %p303 = scmp.eq.s32.totalorder %s31, 0
      %p304 = por %p302, %p303
      %p305 = scmp.ne.s32.totalorder %s293, %s294
      %p306 = scmp.eq.s32.totalorder %s32, 1
      %p307 = por %p305, %p306
      %p309 = scmp.ne.s32.totalorder %s294, %s308
      %p310 = scmp.eq.s32.totalorder %s32, 0
      %p311 = por %p309, %p310
      %s312 = ssub.s32 %s26, %s33
      %p313 = scmp.eq.s32.totalorder %s312, 0
      %s315 = sadd.s32 %s314, 1
      %s316 = scalar_select %p313, %s314, %s315
      %p319 = pneg %p313
      %p320 = scmp.eq.s32.totalorder %s26, 1
      %p321 = por %p319, %p320
      %p322 = scmp.ne.s32.totalorder %s314, %s317
      %p323 = scmp.eq.s32.totalorder %s26, 0
      %p324 = por %p322, %p323
      %p325 = scmp.ne.s32.totalorder %s314, %s317
      %p326 = scmp.eq.s32.totalorder %s31, 1
      %p327 = por %p325, %p326
      %p328 = scmp.ne.s32.totalorder %s317, %s318
      %p329 = scmp.eq.s32.totalorder %s31, 0
      %p330 = por %p328, %p329
      %p331 = scmp.ne.s32.totalorder %s317, %s318
      %p332 = scmp.eq.s32.totalorder %s32, 1
      %p333 = por %p331, %p332
      %p335 = scmp.ne.s32.totalorder %s318, %s334
      %p336 = scmp.eq.s32.totalorder %s32, 0
      %p337 = por %p335, %p336
      %p338 = scmp.le.s32.totalorder 1, %s26
      %p339 = scmp.lt.s32.totalorder %s26, 3
      %p340 = pnand %p338, %p339
      %p341 = pneg %p340
      // Predicated region
      $region9: #{encoder_kimcnn_forward.4} parent=5 // pred_check
        _
      $region10: #{encoder_kimcnn_forward.4} parent=5 // pred_check_branch
        %343 = sbr.rel (%p340) target = $region12
      $region11: #{encoder_kimcnn_forward.4} parent=5 // pred_region
        %s344 = ssub.s32 %s26, 1
        // Predicated region
        $region13: #{encoder_kimcnn_forward.4} parent=11 // pred_check
          %p345 = pneg %p73
        $region14: #{encoder_kimcnn_forward.4} parent=11 // pred_check_branch
          %347 = sbr.rel (%p345) target = $region16
        $region15: #{encoder_kimcnn_forward.4} parent=11 // pred_region
          %349 = vsyncadd [#allocation5], 0
          %s350 = sshll.u32 %s1, 4
          %s351 = int_to_ptr.hbm [resolvable:$true] %s350
          %s352 = sshll.u32 [#allocation4], 4
          %s353 = int_to_ptr.vmem [resolvable:$true] %s352
          %358 = dma.hbm_to_vmem [thread:$0]  %s351, 3072, %s353, [#allocation5], 192, 192, 12
        $region16: #{encoder_kimcnn_forward.4} parent=11 // pred_fallthru
          _
        // Predicated region
        $region17: #{encoder_kimcnn_forward.4} parent=11 // pred_check
          %p359 = pneg %p94
        $region18: #{encoder_kimcnn_forward.4} parent=11 // pred_check_branch
          %361 = sbr.rel (%p359) target = $region20
        $region19: #{encoder_kimcnn_forward.4} parent=11 // pred_region
          _
        $region20: #{encoder_kimcnn_forward.4} parent=11 // pred_fallthru
          _
        // Predicated region
        $region21: #{encoder_kimcnn_forward.4} parent=11 // pred_check
          %p362 = pneg %p115
        $region22: #{encoder_kimcnn_forward.4} parent=11 // pred_check_branch
          %364 = sbr.rel (%p362) target = $region24
        $region23: #{encoder_kimcnn_forward.4} parent=11 // pred_region
          %366 = vsyncadd [#allocation5], 0
          %s367 = sshll.u32 %s3, 4
          %s368 = int_to_ptr.hbm [resolvable:$true] %s367
          %s369 = sshll.u32 [#allocation6], 4
          %s370 = int_to_ptr.vmem [resolvable:$true] %s369
          %375 = dma.hbm_to_vmem [thread:$0]  %s368, 1024, %s370, [#allocation5], 64, 64, 4
        $region24: #{encoder_kimcnn_forward.4} parent=11 // pred_fallthru
          _
        // Predicated region
        $region25: #{encoder_kimcnn_forward.4} parent=11 // pred_check
          %p376 = pneg %p136
        $region26: #{encoder_kimcnn_forward.4} parent=11 // pred_check_branch
          %378 = sbr.rel (%p376) target = $region28
        $region27: #{encoder_kimcnn_forward.4} parent=11 // pred_region
          %380 = vsyncadd [#allocation8], 0
          %s382 = sshll.u32 %s4, 4
          %s383 = int_to_ptr.hbm [resolvable:$true] %s382
          %s384 = sshll.u32 [#allocation7], 4
          %s385 = int_to_ptr.vmem [resolvable:$true] %s384
          %387 = dma.hbm_to_vmem [thread:$0]  %s383, 16, %s385, [#allocation8]
        $region28: #{encoder_kimcnn_forward.4} parent=11 // pred_fallthru
          _
        // Predicated region
        $region29: #{encoder_kimcnn_forward.4} parent=11 // pred_check
          %p388 = pneg %p157
        $region30: #{encoder_kimcnn_forward.4} parent=11 // pred_check_branch
          %390 = sbr.rel (%p388) target = $region32
        $region31: #{encoder_kimcnn_forward.4} parent=11 // pred_region
          _
        $region32: #{encoder_kimcnn_forward.4} parent=11 // pred_fallthru
          _
        // Predicated region
        $region33: #{encoder_kimcnn_forward.4} parent=11 // pred_check
          %p391 = pneg %p178
        $region34: #{encoder_kimcnn_forward.4} parent=11 // pred_check_branch
          %393 = sbr.rel (%p391) target = $region36
        $region35: #{encoder_kimcnn_forward.4} parent=11 // pred_region
          %395 = vsyncadd [#allocation8], 0
          %s397 = sshll.u32 %s6, 4
          %s398 = int_to_ptr.hbm [resolvable:$true] %s397
          %s399 = sshll.u32 [#allocation9], 4
          %s400 = int_to_ptr.vmem [resolvable:$true] %s399
          %402 = dma.hbm_to_vmem [thread:$0]  %s398, 16, %s400, [#allocation8]
        $region36: #{encoder_kimcnn_forward.4} parent=11 // pred_fallthru
          _
        // Predicated region
        $region37: #{encoder_kimcnn_forward.4} parent=11 // pred_check
          %p403 = pneg %p199
        $region38: #{encoder_kimcnn_forward.4} parent=11 // pred_check_branch
          %405 = sbr.rel (%p403) target = $region40
        $region39: #{encoder_kimcnn_forward.4} parent=11 // pred_region
          %407 = vsyncadd [#allocation11], 0
          %s408 = sshll.u32 %s7, 4
          %s409 = int_to_ptr.hbm [resolvable:$true] %s408
          %s410 = sshll.u32 [#allocation10], 4
          %s411 = int_to_ptr.vmem [resolvable:$true] %s410
          %416 = dma.hbm_to_vmem [thread:$0]  %s409, 2048, %s411, [#allocation11], 128, 128, 8
        $region40: #{encoder_kimcnn_forward.4} parent=11 // pred_fallthru
          _
        // Predicated region
        $region41: #{encoder_kimcnn_forward.4} parent=11 // pred_check
          %p417 = pneg %p220
        $region42: #{encoder_kimcnn_forward.4} parent=11 // pred_check_branch
          %419 = sbr.rel (%p417) target = $region44
        $region43: #{encoder_kimcnn_forward.4} parent=11 // pred_region
          _
        $region44: #{encoder_kimcnn_forward.4} parent=11 // pred_fallthru
          _
        // Predicated region
        $region45: #{encoder_kimcnn_forward.4} parent=11 // pred_check
          %p420 = pneg %p241
        $region46: #{encoder_kimcnn_forward.4} parent=11 // pred_check_branch
          %422 = sbr.rel (%p420) target = $region48
        $region47: #{encoder_kimcnn_forward.4} parent=11 // pred_region
          %424 = vsyncadd [#allocation11], 0
          %s425 = sshll.u32 %s9, 4
          %s426 = int_to_ptr.hbm [resolvable:$true] %s425
          %s427 = sshll.u32 [#allocation12], 4
          %s428 = int_to_ptr.vmem [resolvable:$true] %s427
          %433 = dma.hbm_to_vmem [thread:$0]  %s426, 2048, %s428, [#allocation11], 64, 64, 4
        $region48: #{encoder_kimcnn_forward.4} parent=11 // pred_fallthru
          _
        // Predicated region
        $region49: #{encoder_kimcnn_forward.4} parent=11 // pred_check
          %p434 = pneg %p262
        $region50: #{encoder_kimcnn_forward.4} parent=11 // pred_check_branch
          %436 = sbr.rel (%p434) target = $region52
        $region51: #{encoder_kimcnn_forward.4} parent=11 // pred_region
          %438 = vsyncadd [#allocation14], 0
          %s440 = sshll.u32 %s10, 4
          %s441 = int_to_ptr.hbm [resolvable:$true] %s440
          %s442 = sshll.u32 [#allocation13], 4
          %s443 = int_to_ptr.vmem [resolvable:$true] %s442
          %445 = dma.hbm_to_vmem [thread:$0]  %s441, 16, %s443, [#allocation14]
        $region52: #{encoder_kimcnn_forward.4} parent=11 // pred_fallthru
          _
        // Predicated region
        $region53: #{encoder_kimcnn_forward.4} parent=11 // pred_check
          %p446 = pneg %p283
        $region54: #{encoder_kimcnn_forward.4} parent=11 // pred_check_branch
          %448 = sbr.rel (%p446) target = $region56
        $region55: #{encoder_kimcnn_forward.4} parent=11 // pred_region
          _
        $region56: #{encoder_kimcnn_forward.4} parent=11 // pred_fallthru
          _
        // Predicated region
        $region57: #{encoder_kimcnn_forward.4} parent=11 // pred_check
          %p449 = pneg %p304
        $region58: #{encoder_kimcnn_forward.4} parent=11 // pred_check_branch
          %451 = sbr.rel (%p449) target = $region60
        $region59: #{encoder_kimcnn_forward.4} parent=11 // pred_region
          %453 = vsyncadd [#allocation14], 0
          %s455 = sshll.u32 %s12, 4
          %s456 = int_to_ptr.hbm [resolvable:$true] %s455
          %s457 = sshll.u32 [#allocation15], 4
          %s458 = int_to_ptr.vmem [resolvable:$true] %s457
          %460 = dma.hbm_to_vmem [thread:$0]  %s456, 16, %s458, [#allocation14]
        $region60: #{encoder_kimcnn_forward.4} parent=11 // pred_fallthru
          _
      $region12: #{encoder_kimcnn_forward.4} parent=5 // pred_fallthru
        _
      %p461 = scmp.lt.s32.totalorder %s26, 2
      // Predicated region
      $region61: #{encoder_kimcnn_forward.4} parent=5 // pred_check
        %p462 = pneg %p461
      $region62: #{encoder_kimcnn_forward.4} parent=5 // pred_check_branch
        %464 = sbr.rel (%p462) target = $region64
      $region63: #{encoder_kimcnn_forward.4} parent=5 // pred_region
        // Predicated region
        $region65: #{encoder_kimcnn_forward.4} parent=63 // pred_check
          %p465 = pneg %p46
        $region66: #{encoder_kimcnn_forward.4} parent=63 // pred_check_branch
          %467 = sbr.rel (%p465) target = $region68
        $region67: #{encoder_kimcnn_forward.4} parent=63 // pred_region
          %s468 = sand.u32 %s36, 1
          %s469 = scalar_lea.sflag [#allocation3], %s468
          %s470 = sand.u32 %s36, 1
          %s471 = smul.addr %s470, 16
          %s472 = scalar_lea.vmem [#allocation2], %s471
          %474 = vsyncadd %s469, 0
          %s475 = smul.addr %s26, 2
          %s476 = smul.addr %s475, 8
          %s477 = scalar_lea.hbm %s0, %s476
          %s478 = sshll.u32 %s477, 4
          %s479 = int_to_ptr.hbm [resolvable:$true] %s478
          %s480 = sshll.u32 %s472, 4
          %s481 = int_to_ptr.vmem [resolvable:$true] %s480
          %486 = dma.hbm_to_vmem [thread:$0]  %s479, 256, %s481, %s469, 128, 128, 8
        $region68: #{encoder_kimcnn_forward.4} parent=63 // pred_fallthru
          _
      $region64: #{encoder_kimcnn_forward.4} parent=5 // pred_fallthru
        _
      %p487 = scmp.le.s32.totalorder 1, %s26
      %p488 = scmp.lt.s32.totalorder %s26, 3
      %p489 = pnand %p487, %p488
      %p490 = pneg %p489
      // Predicated region
      $region69: #{encoder_kimcnn_forward.4} parent=5 // pred_check
        _
      $region70: #{encoder_kimcnn_forward.4} parent=5 // pred_check_branch
        %492 = sbr.rel (%p489) target = $region72
      $region71: #{encoder_kimcnn_forward.4} parent=5 // pred_region
        %s493 = ssub.s32 %s26, 1
        %s494 = sand.u32 %s39, 1
        %s495 = scalar_lea.sflag [#allocation3], %s494
        %s496 = sand.u32 %s39, 1
        %s497 = smul.addr %s496, 16
        %s498 = scalar_lea.vmem [#allocation2], %s497
        // Predicated region
        $region73: #{encoder_kimcnn_forward.4} parent=71 // pred_check
          %p499 = pneg %p52
        $region74: #{encoder_kimcnn_forward.4} parent=71 // pred_check_branch
          %501 = sbr.rel (%p499) target = $region76
        $region75: #{encoder_kimcnn_forward.4} parent=71 // pred_region
          %503 = dma.done %s495, 256
        $region76: #{encoder_kimcnn_forward.4} parent=71 // pred_fallthru
          _
        // Predicated region
        $region77: #{encoder_kimcnn_forward.4} parent=71 // pred_check
          %p504 = pneg %p73
        $region78: #{encoder_kimcnn_forward.4} parent=71 // pred_check_branch
          %506 = sbr.rel (%p504) target = $region80
        $region79: #{encoder_kimcnn_forward.4} parent=71 // pred_region
          %508 = dma.done [#allocation5], 3072
        $region80: #{encoder_kimcnn_forward.4} parent=71 // pred_fallthru
          _
        // Predicated region
        $region81: #{encoder_kimcnn_forward.4} parent=71 // pred_check
          %p509 = pneg %p115
        $region82: #{encoder_kimcnn_forward.4} parent=71 // pred_check_branch
          %511 = sbr.rel (%p509) target = $region84
        $region83: #{encoder_kimcnn_forward.4} parent=71 // pred_region
          %513 = dma.done [#allocation5], 1024
        $region84: #{encoder_kimcnn_forward.4} parent=71 // pred_fallthru
          _
        // Predicated region
        $region85: #{encoder_kimcnn_forward.4} parent=71 // pred_check
          %p514 = pneg %p136
        $region86: #{encoder_kimcnn_forward.4} parent=71 // pred_check_branch
          %516 = sbr.rel (%p514) target = $region88
        $region87: #{encoder_kimcnn_forward.4} parent=71 // pred_region
          %518 = dma.done [#allocation8], 16
        $region88: #{encoder_kimcnn_forward.4} parent=71 // pred_fallthru
          _
        // Predicated region
        $region89: #{encoder_kimcnn_forward.4} parent=71 // pred_check
          %p519 = pneg %p178
        $region90: #{encoder_kimcnn_forward.4} parent=71 // pred_check_branch
          %521 = sbr.rel (%p519) target = $region92
        $region91: #{encoder_kimcnn_forward.4} parent=71 // pred_region
          %523 = dma.done [#allocation8], 16
        $region92: #{encoder_kimcnn_forward.4} parent=71 // pred_fallthru
          _
        // Predicated region
        $region93: #{encoder_kimcnn_forward.4} parent=71 // pred_check
          %p524 = pneg %p199
        $region94: #{encoder_kimcnn_forward.4} parent=71 // pred_check_branch
          %526 = sbr.rel (%p524) target = $region96
        $region95: #{encoder_kimcnn_forward.4} parent=71 // pred_region
          %528 = dma.done [#allocation11], 2048
        $region96: #{encoder_kimcnn_forward.4} parent=71 // pred_fallthru
          _
        // Predicated region
        $region97: #{encoder_kimcnn_forward.4} parent=71 // pred_check
          %p529 = pneg %p241
        $region98: #{encoder_kimcnn_forward.4} parent=71 // pred_check_branch
          %531 = sbr.rel (%p529) target = $region100
        $region99: #{encoder_kimcnn_forward.4} parent=71 // pred_region
          %533 = dma.done [#allocation11], 2048
        $region100: #{encoder_kimcnn_forward.4} parent=71 // pred_fallthru
          _
        // Predicated region
        $region101: #{encoder_kimcnn_forward.4} parent=71 // pred_check
          %p534 = pneg %p262
        $region102: #{encoder_kimcnn_forward.4} parent=71 // pred_check_branch
          %536 = sbr.rel (%p534) target = $region104
        $region103: #{encoder_kimcnn_forward.4} parent=71 // pred_region
          %538 = dma.done [#allocation14], 16
        $region104: #{encoder_kimcnn_forward.4} parent=71 // pred_fallthru
          _
        // Predicated region
        $region105: #{encoder_kimcnn_forward.4} parent=71 // pred_check
          %p539 = pneg %p304
        $region106: #{encoder_kimcnn_forward.4} parent=71 // pred_check_branch
          %541 = sbr.rel (%p539) target = $region108
        $region107: #{encoder_kimcnn_forward.4} parent=71 // pred_region
          %543 = dma.done [#allocation14], 16
        $region108: #{encoder_kimcnn_forward.4} parent=71 // pred_fallthru
          _
        %s544 = sand.u32 %s39, 1
        %s545 = scalar_lea.sflag [#allocation3], %s544
        %s546 = sand.u32 %s39, 1
        %s547 = smul.addr %s546, 16
        %s548 = scalar_lea.vmem [#allocation2], %s547
        %p549 = pneg %p52
        %p550 = pneg %p49
        %p551 = pneg %p73
        %p552 = pneg %p70
        %p553 = pneg %p94
        %p554 = pneg %p91
        %p555 = pneg %p115
        %p556 = pneg %p112
        %p557 = pneg %p136
        %p558 = pneg %p133
        %p559 = pneg %p157
        %p560 = pneg %p154
        %p561 = pneg %p178
        %p562 = pneg %p175
        %p563 = pneg %p199
        %p564 = pneg %p196
        %p565 = pneg %p220
        %p566 = pneg %p217
        %p567 = pneg %p241
        %p568 = pneg %p238
        %p569 = pneg %p262
        %p570 = pneg %p259
        %p571 = pneg %p283
        %p572 = pneg %p280
        %p573 = pneg %p304
        %p574 = pneg %p301
        %p575 = pneg %p330
        %p576 = pneg %p327
        %p577 = scmp.lt.s32.totalorder %s31, 1
        %s578 = scalar_select %p577, %s31, 1
        %s579 = smul.addr %s578, 2
        %s580 = smul.addr %s579, 8
        %s581 = scalar_lea.vmem %s13, %s580
        %p582 = scmp.lt.s32.totalorder %s31, 1
        %s583 = scalar_select %p582, %s31, 1
        %s584 = smul.addr %s583, 2
        %s585 = smul.addr %s584, 8
        %s586 = scalar_lea.vmem %s13, %s585
        %v588 = vld [vmem:[%s498] sm:$0xff]
        %v589 = vld [vmem:[%s498 + $0x8] sm:$0xff]
        %v590 = vpack.c.bf16 %v589, %v588
        %v591 = vld [vmem:[#allocation4] sm:$0xff]
        %v592 = vld [vmem:[#allocation4 + $0x8] sm:$0xf]
        %v593 = vld [vmem:[#allocation4 + $0xc] sm:$0xff]
        %v594 = vld [vmem:[#allocation4 + $0x14] sm:$0xf]
        %v595 = vld [vmem:[#allocation4 + $0x18] sm:$0xff]
        %v596 = vld [vmem:[#allocation4 + $0x20] sm:$0xf]
        %v597 = vld [vmem:[#allocation4 + $0x24] sm:$0xff]
        %v598 = vld [vmem:[#allocation4 + $0x2c] sm:$0xf]
        %v599 = vld [vmem:[#allocation4 + $0x30] sm:$0xff]
        %v600 = vld [vmem:[#allocation4 + $0x38] sm:$0xf]
        %v601 = vld [vmem:[#allocation4 + $0x3c] sm:$0xff]
        %v602 = vld [vmem:[#allocation4 + $0x44] sm:$0xf]
        %v603 = vld [vmem:[#allocation4 + $0x48] sm:$0xff]
        %v604 = vld [vmem:[#allocation4 + $0x50] sm:$0xf]
        %v605 = vld [vmem:[#allocation4 + $0x54] sm:$0xff]
        %v606 = vld [vmem:[#allocation4 + $0x5c] sm:$0xf]
        %v607 = vld [vmem:[#allocation4 + $0x60] sm:$0xff]
        %v608 = vld [vmem:[#allocation4 + $0x68] sm:$0xf]
        %v609 = vld [vmem:[#allocation4 + $0x6c] sm:$0xff]
        %v610 = vld [vmem:[#allocation4 + $0x74] sm:$0xf]
        %v611 = vld [vmem:[#allocation4 + $0x78] sm:$0xff]
        %v612 = vld [vmem:[#allocation4 + $0x80] sm:$0xf]
        %v613 = vld [vmem:[#allocation4 + $0x84] sm:$0xff]
        %v614 = vld [vmem:[#allocation4 + $0x8c] sm:$0xf]
        %v615 = vld [vmem:[#allocation4 + $0x90] sm:$0xff]
        %v616 = vld [vmem:[#allocation4 + $0x98] sm:$0xf]
        %v617 = vld [vmem:[#allocation4 + $0x9c] sm:$0xff]
        %v618 = vld [vmem:[#allocation4 + $0xa4] sm:$0xf]
        %v619 = vld [vmem:[#allocation4 + $0xa8] sm:$0xff]
        %v620 = vld [vmem:[#allocation4 + $0xb0] sm:$0xf]
        %v621 = vld [vmem:[#allocation4 + $0xb4] sm:$0xff]
        %v622 = vld [vmem:[#allocation4 + $0xbc] sm:$0xf]
        %v623 = vld [vmem:[%s2] sm:$0x7]
        %v625 = vperm.slane %v623, 0
        %v626 = vperm.slane %v623, 1
        %v627 = vperm.slane %v623, 2
        %v663 = vunpack.c.l.b16 %v591
        %v664 = vunpack.c.h.b16 %v591
        %v665 = vunpack.c.l.b16 %v592
        %v666 = vunpack.c.l.b16 %v593
        %v667 = vunpack.c.h.b16 %v593
        %v668 = vunpack.c.l.b16 %v594
        %v669 = vunpack.c.l.b16 %v595
        %v670 = vunpack.c.h.b16 %v595
        %v671 = vunpack.c.l.b16 %v596
        %v672 = vunpack.c.l.b16 %v597
        %v673 = vunpack.c.h.b16 %v597
        %v674 = vunpack.c.l.b16 %v598
        %v675 = vunpack.c.l.b16 %v599
        %v676 = vunpack.c.h.b16 %v599
        %v677 = vunpack.c.l.b16 %v600
        %v678 = vunpack.c.l.b16 %v601
        %v679 = vunpack.c.h.b16 %v601
        %v680 = vunpack.c.l.b16 %v602
        %v681 = vunpack.c.l.b16 %v603
        %v682 = vunpack.c.h.b16 %v603
        %v683 = vunpack.c.l.b16 %v604
        %v684 = vunpack.c.l.b16 %v605
        %v685 = vunpack.c.h.b16 %v605
        %v686 = vunpack.c.l.b16 %v606
        %v687 = vunpack.c.l.b16 %v607
        %v688 = vunpack.c.h.b16 %v607
        %v689 = vunpack.c.l.b16 %v608
        %v690 = vunpack.c.l.b16 %v609
        %v691 = vunpack.c.h.b16 %v609
        %v692 = vunpack.c.l.b16 %v610
        %v693 = vunpack.c.l.b16 %v611
        %v694 = vunpack.c.h.b16 %v611
        %v695 = vunpack.c.l.b16 %v612
        %v696 = vunpack.c.l.b16 %v613
        %v697 = vunpack.c.h.b16 %v613
        %v698 = vunpack.c.l.b16 %v614
        %v699 = vunpack.c.l.b16 %v615
        %v700 = vunpack.c.h.b16 %v615
        %v701 = vunpack.c.l.b16 %v616
        %v702 = vunpack.c.l.b16 %v617
        %v703 = vunpack.c.h.b16 %v617
        %v704 = vunpack.c.l.b16 %v618
        %v705 = vunpack.c.l.b16 %v619
        %v706 = vunpack.c.h.b16 %v619
        %v707 = vunpack.c.l.b16 %v620
        %v708 = vunpack.c.l.b16 %v621
        %v709 = vunpack.c.h.b16 %v621
        %v710 = vunpack.c.l.b16 %v622
        %v711 = vpack.c.b16 %v666, %v663
        %v712 = vpack.c.b16 %v667, %v664
        %v713 = vpack.c.b16 %v668, %v665
        %v714 = vpack.c.b16 %v672, %v669
        %v715 = vpack.c.b16 %v673, %v670
        %v716 = vpack.c.b16 %v674, %v671
        %v717 = vpack.c.b16 %v678, %v675
        %v718 = vpack.c.b16 %v679, %v676
        %v719 = vpack.c.b16 %v680, %v677
        %v720 = vpack.c.b16 %v684, %v681
        %v721 = vpack.c.b16 %v685, %v682
        %v722 = vpack.c.b16 %v686, %v683
        %v723 = vpack.c.b16 %v690, %v687
        %v724 = vpack.c.b16 %v691, %v688
        %v725 = vpack.c.b16 %v692, %v689
        %v726 = vpack.c.b16 %v696, %v693
        %v727 = vpack.c.b16 %v697, %v694
        %v728 = vpack.c.b16 %v698, %v695
        %v729 = vpack.c.b16 %v702, %v699
        %v730 = vpack.c.b16 %v703, %v700
        %v731 = vpack.c.b16 %v704, %v701
        %v732 = vpack.c.b16 %v708, %v705
        %v733 = vpack.c.b16 %v709, %v706
        %v734 = vpack.c.b16 %v710, %v707
        %759 = vmatpush.bf16.msra.mxu0 %v732
        %760 = vmatpush.bf16.msra.mxu0 %v729
        %761 = vmatpush.bf16.msra.mxu0 %v726
        %762 = vmatpush.bf16.msra.mxu0 %v723
        %763 = vmatpush.bf16.msra.mxu0 %v720
        %764 = vmatpush.bf16.msra.mxu0 %v717
        %765 = vmatpush.bf16.msra.mxu0 %v714
        %766 = vmatpush.bf16.msra.mxu0 %v711
        %767 = vmatmul.bf16.gmra.mxu0 %v590
        %v768 = vpop.f32.mrf.mxu0
        %v769 = vadd.f32 %v625, %v768
        %v770 = vpop.f32.mrf.mxu0
        %v771 = vadd.f32 %v625, %v770
        %772 = vdwg.mxu0
        %773 = vmatpush.bf16.msra.mxu0 %v733
        %774 = vmatpush.bf16.msra.mxu0 %v730
        %775 = vmatpush.bf16.msra.mxu0 %v727
        %776 = vmatpush.bf16.msra.mxu0 %v724
        %777 = vmatpush.bf16.msra.mxu0 %v721
        %778 = vmatpush.bf16.msra.mxu0 %v718
        %779 = vmatpush.bf16.msra.mxu0 %v715
        %780 = vmatpush.bf16.msra.mxu0 %v712
        %781 = vmatmul.bf16.gmra.mxu0 %v590
        %v782 = vpop.f32.mrf.mxu0
        %v783 = vadd.f32 %v626, %v782
        %v784 = vpop.f32.mrf.mxu0
        %v785 = vadd.f32 %v626, %v784
        %786 = vdwg.mxu0
        %787 = vmatpush.bf16.msra.mxu0 %v734
        %788 = vmatpush.bf16.msra.mxu0 %v731
        %789 = vmatpush.bf16.msra.mxu0 %v728
        %790 = vmatpush.bf16.msra.mxu0 %v725
        %791 = vmatpush.bf16.msra.mxu0 %v722
        %792 = vmatpush.bf16.msra.mxu0 %v719
        %793 = vmatpush.bf16.msra.mxu0 %v716
        %794 = vmatpush.bf16.msra.mxu0 %v713
        %795 = vmatmul.bf16.gmra.mxu0 %v590
        %v796 = vpop.f32.mrf.mxu0
        %v797 = vadd.f32 %v627, %v796
        %v798 = vpop.f32.mrf.mxu0
        %v799 = vadd.f32 %v627, %v798
        %800 = vdwg.mxu0
        %v801 = vmul.f32 %v769, 0.25
        %v802 = vmul.f32 %v771, 0.25
        %v803 = vpack.c.bf16 %v802, %v801
        %v804 = vpack.c.bf16 %v785, %v783
        %v805 = vpack.c.bf16 %v799, %v797
        %vm806 = vcmask 130048
        %v808 = vsel %vm806, %v803, 0
        %v811 = vsel %vm806, %v804, 0
        %813 = vmatpush.bf16.xpose.msra.mxu0 0
        %814 = vmatpush.bf16.xpose.msra.mxu0 0
        %815 = vmatpush.bf16.xpose.msra.mxu0 0
        %816 = vmatpush.bf16.xpose.msra.mxu0 0
        %817 = vmatpush.bf16.xpose.msra.mxu0 0
        %818 = vmatpush.bf16.xpose.msra.mxu0 0
        %819 = vmatpush.bf16.xpose.msra.mxu0 0
        %820 = vmatpush.bf16.xpose.msra.mxu0 %v811
        %821 = vmatmul.bf16.gmra.mxu0 %v808
        %v822 = vpop.f32.mrf.mxu0
        %v823 = vadd.f32 0.0, %v822
        %v824 = vpop.f32.mrf.mxu0
        %v825 = vadd.f32 0.0, %v824
        %826 = vdwg.mxu0
        %v827 = vsel %vm806, %v823, -inf
        %828 = vmax.xlane.f32.xlu0 %v827
        %v829 = vpop.xlane.xlu0 %828
        %v830 = vsel %vm806, %v825, -inf
        %831 = vmax.xlane.f32.xlu0 %v830
        %v832 = vpop.xlane.xlu0 %831
        %v833 = vsub.f32 %v823, %v829
        %v834 = vsub.f32 %v825, %v832
        %v835 = vmul.f32 %v833, 1.442695
        %v836 = vpow.pop %v835
        %v837 = vmul.f32 %v834, 1.442695
        %v838 = vpow.pop %v837
        %v839 = vsel %vm806, %v836, 0.0
        %840 = vadd.xlane.f32.xlu0 %v839
        %v841 = vpop.xlane.xlu0 %840
        %v842 = vsel %vm806, %v838, 0.0
        %843 = vadd.xlane.f32.xlu0 %v842
        %v844 = vpop.xlane.xlu0 %843
        %v845 = vrcp.pop %v841
        %v846 = vrcp.pop %v844
        %v847 = vmul.f32 %v836, %v845
        %v848 = vmul.f32 %v838, %v846
        %v849 = vpack.c.bf16 %v848, %v847
        %v851 = vsel %vm806, %v849, 0
        %853 = vmatpush.bf16.msra.mxu0 0
        %854 = vmatpush.bf16.msra.mxu0 0
        %855 = vmatpush.bf16.msra.mxu0 0
        %856 = vmatpush.bf16.msra.mxu0 0
        %857 = vmatpush.bf16.msra.mxu0 0
        %858 = vmatpush.bf16.msra.mxu0 0
        %859 = vmatpush.bf16.msra.mxu0 0
        %860 = vmatpush.bf16.msra.mxu0 %v805
        %861 = vmatmul.bf16.gmra.mxu0 %v851
        %v862 = vpop.f32.mrf.mxu0
        %v863 = vadd.f32 0.0, %v862
        %v864 = vpop.f32.mrf.mxu0
        %v865 = vadd.f32 0.0, %v864
        %866 = vdwg.mxu0
        %868 = vrot.lane.b32.xlu0 %v803, 112
        %v869 = vpop.permute.xlu0 %868
        %871 = vrot.lane.b32.xlu0 %v804, 112
        %v872 = vpop.permute.xlu0 %871
        %v874 = vsel %vm806, %v869, 0
        %v877 = vsel %vm806, %v872, 0
        %879 = vmatpush.bf16.xpose.msra.mxu0 0
        %880 = vmatpush.bf16.xpose.msra.mxu0 0
        %881 = vmatpush.bf16.xpose.msra.mxu0 0
        %882 = vmatpush.bf16.xpose.msra.mxu0 0
        %883 = vmatpush.bf16.xpose.msra.mxu0 0
        %884 = vmatpush.bf16.xpose.msra.mxu0 0
        %885 = vmatpush.bf16.xpose.msra.mxu0 0
        %886 = vmatpush.bf16.xpose.msra.mxu0 %v877
        %887 = vmatmul.bf16.gmra.mxu0 %v874
        %v888 = vpop.f32.mrf.mxu0
        %v889 = vadd.f32 0.0, %v888
        %v890 = vpop.f32.mrf.mxu0
        %v891 = vadd.f32 0.0, %v890
        %892 = vdwg.mxu0
        %v893 = vsel %vm806, %v889, -inf
        %894 = vmax.xlane.f32.xlu0 %v893
        %v895 = vpop.xlane.xlu0 %894
        %v896 = vsel %vm806, %v891, -inf
        %897 = vmax.xlane.f32.xlu0 %v896
        %v898 = vpop.xlane.xlu0 %897
        %v899 = vsub.f32 %v889, %v895
        %v900 = vsub.f32 %v891, %v898
        %v901 = vmul.f32 %v899, 1.442695
        %v902 = vpow.pop %v901
        %v903 = vmul.f32 %v900, 1.442695
        %v904 = vpow.pop %v903
        %v905 = vsel %vm806, %v902, 0.0
        %906 = vadd.xlane.f32.xlu0 %v905
        %v907 = vpop.xlane.xlu0 %906
        %v908 = vsel %vm806, %v904, 0.0
        %909 = vadd.xlane.f32.xlu0 %v908
        %v910 = vpop.xlane.xlu0 %909
        %v911 = vrcp.pop %v907
        %v912 = vrcp.pop %v910
        %v913 = vmul.f32 %v902, %v911
        %v914 = vmul.f32 %v904, %v912
        %v915 = vpack.c.bf16 %v914, %v913
        %917 = vrot.lane.b32.xlu0 %v805, 112
        %v918 = vpop.permute.xlu0 %917
        %v921 = vsel %vm806, %v915, 0
        %923 = vmatpush.bf16.msra.mxu0 0
        %924 = vmatpush.bf16.msra.mxu0 0
        %925 = vmatpush.bf16.msra.mxu0 0
        %926 = vmatpush.bf16.msra.mxu0 0
        %927 = vmatpush.bf16.msra.mxu0 0
        %928 = vmatpush.bf16.msra.mxu0 0
        %929 = vmatpush.bf16.msra.mxu0 0
        %930 = vmatpush.bf16.msra.mxu0 %v918
        %931 = vmatmul.bf16.gmra.mxu0 %v921
        %v932 = vpop.f32.mrf.mxu0
        %v933 = vadd.f32 0.0, %v932
        %v934 = vpop.f32.mrf.mxu0
        %v935 = vadd.f32 0.0, %v934
        %936 = vdwg.mxu0
        %937 = vrot.lane.b32.xlu0 %v803, 96
        %v938 = vpop.permute.xlu0 %937
        %939 = vrot.lane.b32.xlu0 %v804, 96
        %v940 = vpop.permute.xlu0 %939
        %v942 = vsel %vm806, %v938, 0
        %v945 = vsel %vm806, %v940, 0
        %947 = vmatpush.bf16.xpose.msra.mxu0 0
        %948 = vmatpush.bf16.xpose.msra.mxu0 0
        %949 = vmatpush.bf16.xpose.msra.mxu0 0
        %950 = vmatpush.bf16.xpose.msra.mxu0 0
        %951 = vmatpush.bf16.xpose.msra.mxu0 0
        %952 = vmatpush.bf16.xpose.msra.mxu0 0
        %953 = vmatpush.bf16.xpose.msra.mxu0 0
        %954 = vmatpush.bf16.xpose.msra.mxu0 %v945
        %955 = vmatmul.bf16.gmra.mxu0 %v942
        %v956 = vpop.f32.mrf.mxu0
        %v957 = vadd.f32 0.0, %v956
        %v958 = vpop.f32.mrf.mxu0
        %v959 = vadd.f32 0.0, %v958
        %960 = vdwg.mxu0
        %v961 = vsel %vm806, %v957, -inf
        %962 = vmax.xlane.f32.xlu0 %v961
        %v963 = vpop.xlane.xlu0 %962
        %v964 = vsel %vm806, %v959, -inf
        %965 = vmax.xlane.f32.xlu0 %v964
        %v966 = vpop.xlane.xlu0 %965
        %v967 = vsub.f32 %v957, %v963
        %v968 = vsub.f32 %v959, %v966
        %v969 = vmul.f32 %v967, 1.442695
        %v970 = vpow.pop %v969
        %v971 = vmul.f32 %v968, 1.442695
        %v972 = vpow.pop %v971
        %v973 = vsel %vm806, %v970, 0.0
        %974 = vadd.xlane.f32.xlu0 %v973
        %v975 = vpop.xlane.xlu0 %974
        %v976 = vsel %vm806, %v972, 0.0
        %977 = vadd.xlane.f32.xlu0 %v976
        %v978 = vpop.xlane.xlu0 %977
        %v979 = vrcp.pop %v975
        %v980 = vrcp.pop %v978
        %v981 = vmul.f32 %v970, %v979
        %v982 = vmul.f32 %v972, %v980
        %v983 = vpack.c.bf16 %v982, %v981
        %984 = vrot.lane.b32.xlu0 %v805, 96
        %v985 = vpop.permute.xlu0 %984
        %v988 = vsel %vm806, %v983, 0
        %990 = vmatpush.bf16.msra.mxu0 0
        %991 = vmatpush.bf16.msra.mxu0 0
        %992 = vmatpush.bf16.msra.mxu0 0
        %993 = vmatpush.bf16.msra.mxu0 0
        %994 = vmatpush.bf16.msra.mxu0 0
        %995 = vmatpush.bf16.msra.mxu0 0
        %996 = vmatpush.bf16.msra.mxu0 0
        %997 = vmatpush.bf16.msra.mxu0 %v985
        %998 = vmatmul.bf16.gmra.mxu0 %v988
        %v999 = vpop.f32.mrf.mxu0
        %v1000 = vadd.f32 0.0, %v999
        %v1001 = vpop.f32.mrf.mxu0
        %v1002 = vadd.f32 0.0, %v1001
        %1003 = vdwg.mxu0
        %1004 = vrot.lane.b32.xlu0 %v803, 80
        %v1005 = vpop.permute.xlu0 %1004
        %1006 = vrot.lane.b32.xlu0 %v804, 80
        %v1007 = vpop.permute.xlu0 %1006
        %v1009 = vsel %vm806, %v1005, 0
        %v1012 = vsel %vm806, %v1007, 0
        %1014 = vmatpush.bf16.xpose.msra.mxu0 0
        %1015 = vmatpush.bf16.xpose.msra.mxu0 0
        %1016 = vmatpush.bf16.xpose.msra.mxu0 0
        %1017 = vmatpush.bf16.xpose.msra.mxu0 0
        %1018 = vmatpush.bf16.xpose.msra.mxu0 0
        %1019 = vmatpush.bf16.xpose.msra.mxu0 0
        %1020 = vmatpush.bf16.xpose.msra.mxu0 0
        %1021 = vmatpush.bf16.xpose.msra.mxu0 %v1012
        %1022 = vmatmul.bf16.gmra.mxu0 %v1009
        %v1023 = vpop.f32.mrf.mxu0
        %v1024 = vadd.f32 0.0, %v1023
        %v1025 = vpop.f32.mrf.mxu0
        %v1026 = vadd.f32 0.0, %v1025
        %1027 = vdwg.mxu0
        %v1028 = vsel %vm806, %v1024, -inf
        %1029 = vmax.xlane.f32.xlu0 %v1028
        %v1030 = vpop.xlane.xlu0 %1029
        %v1031 = vsel %vm806, %v1026, -inf
        %1032 = vmax.xlane.f32.xlu0 %v1031
        %v1033 = vpop.xlane.xlu0 %1032
        %v1034 = vsub.f32 %v1024, %v1030
        %v1035 = vsub.f32 %v1026, %v1033
        %v1036 = vmul.f32 %v1034, 1.442695
        %v1037 = vpow.pop %v1036
        %v1038 = vmul.f32 %v1035, 1.442695
        %v1039 = vpow.pop %v1038
        %v1040 = vsel %vm806, %v1037, 0.0
        %1041 = vadd.xlane.f32.xlu0 %v1040
        %v1042 = vpop.xlane.xlu0 %1041
        %v1043 = vsel %vm806, %v1039, 0.0
        %1044 = vadd.xlane.f32.xlu0 %v1043
        %v1045 = vpop.xlane.xlu0 %1044
        %v1046 = vrcp.pop %v1042
        %v1047 = vrcp.pop %v1045
        %v1048 = vmul.f32 %v1037, %v1046
        %v1049 = vmul.f32 %v1039, %v1047
        %v1050 = vpack.c.bf16 %v1049, %v1048
        %1051 = vrot.lane.b32.xlu0 %v805, 80
        %v1052 = vpop.permute.xlu0 %1051
        %v1055 = vsel %vm806, %v1050, 0
        %1057 = vmatpush.bf16.msra.mxu0 0
        %1058 = vmatpush.bf16.msra.mxu0 0
        %1059 = vmatpush.bf16.msra.mxu0 0
        %1060 = vmatpush.bf16.msra.mxu0 0
        %1061 = vmatpush.bf16.msra.mxu0 0
        %1062 = vmatpush.bf16.msra.mxu0 0
        %1063 = vmatpush.bf16.msra.mxu0 0
        %1064 = vmatpush.bf16.msra.mxu0 %v1052
        %1065 = vmatmul.bf16.gmra.mxu0 %v1055
        %v1066 = vpop.f32.mrf.mxu0
        %v1067 = vadd.f32 0.0, %v1066
        %v1068 = vpop.f32.mrf.mxu0
        %v1069 = vadd.f32 0.0, %v1068
        %1070 = vdwg.mxu0
        %1071 = vrot.lane.b32.xlu0 %v803, 64
        %v1072 = vpop.permute.xlu0 %1071
        %1073 = vrot.lane.b32.xlu0 %v804, 64
        %v1074 = vpop.permute.xlu0 %1073
        %v1076 = vsel %vm806, %v1072, 0
        %v1079 = vsel %vm806, %v1074, 0
        %1081 = vmatpush.bf16.xpose.msra.mxu0 0
        %1082 = vmatpush.bf16.xpose.msra.mxu0 0
        %1083 = vmatpush.bf16.xpose.msra.mxu0 0
        %1084 = vmatpush.bf16.xpose.msra.mxu0 0
        %1085 = vmatpush.bf16.xpose.msra.mxu0 0
        %1086 = vmatpush.bf16.xpose.msra.mxu0 0
        %1087 = vmatpush.bf16.xpose.msra.mxu0 0
        %1088 = vmatpush.bf16.xpose.msra.mxu0 %v1079
        %1089 = vmatmul.bf16.gmra.mxu0 %v1076
        %v1090 = vpop.f32.mrf.mxu0
        %v1091 = vadd.f32 0.0, %v1090
        %v1092 = vpop.f32.mrf.mxu0
        %v1093 = vadd.f32 0.0, %v1092
        %1094 = vdwg.mxu0
        %v1095 = vsel %vm806, %v1091, -inf
        %1096 = vmax.xlane.f32.xlu0 %v1095
        %v1097 = vpop.xlane.xlu0 %1096
        %v1098 = vsel %vm806, %v1093, -inf
        %1099 = vmax.xlane.f32.xlu0 %v1098
        %v1100 = vpop.xlane.xlu0 %1099
        %v1101 = vsub.f32 %v1091, %v1097
        %v1102 = vsub.f32 %v1093, %v1100
        %v1103 = vmul.f32 %v1101, 1.442695
        %v1104 = vpow.pop %v1103
        %v1105 = vmul.f32 %v1102, 1.442695
        %v1106 = vpow.pop %v1105
        %v1107 = vsel %vm806, %v1104, 0.0
        %1108 = vadd.xlane.f32.xlu0 %v1107
        %v1109 = vpop.xlane.xlu0 %1108
        %v1110 = vsel %vm806, %v1106, 0.0
        %1111 = vadd.xlane.f32.xlu0 %v1110
        %v1112 = vpop.xlane.xlu0 %1111
        %v1113 = vrcp.pop %v1109
        %v1114 = vrcp.pop %v1112
        %v1115 = vmul.f32 %v1104, %v1113
        %v1116 = vmul.f32 %v1106, %v1114
        %v1117 = vpack.c.bf16 %v1116, %v1115
        %1118 = vrot.lane.b32.xlu0 %v805, 64
        %v1119 = vpop.permute.xlu0 %1118
        %v1122 = vsel %vm806, %v1117, 0
        %1124 = vmatpush.bf16.msra.mxu0 0
        %1125 = vmatpush.bf16.msra.mxu0 0
        %1126 = vmatpush.bf16.msra.mxu0 0
        %1127 = vmatpush.bf16.msra.mxu0 0
        %1128 = vmatpush.bf16.msra.mxu0 0
        %1129 = vmatpush.bf16.msra.mxu0 0
        %1130 = vmatpush.bf16.msra.mxu0 0
        %1131 = vmatpush.bf16.msra.mxu0 %v1119
        %1132 = vmatmul.bf16.gmra.mxu0 %v1122
        %v1133 = vpop.f32.mrf.mxu0
        %v1134 = vadd.f32 0.0, %v1133
        %v1135 = vpop.f32.mrf.mxu0
        %v1136 = vadd.f32 0.0, %v1135
        %1137 = vdwg.mxu0
        %1138 = vrot.lane.b32.xlu0 %v803, 48
        %v1139 = vpop.permute.xlu0 %1138
        %1140 = vrot.lane.b32.xlu0 %v804, 48
        %v1141 = vpop.permute.xlu0 %1140
        %v1143 = vsel %vm806, %v1139, 0
        %v1146 = vsel %vm806, %v1141, 0
        %1148 = vmatpush.bf16.xpose.msra.mxu0 0
        %1149 = vmatpush.bf16.xpose.msra.mxu0 0
        %1150 = vmatpush.bf16.xpose.msra.mxu0 0
        %1151 = vmatpush.bf16.xpose.msra.mxu0 0
        %1152 = vmatpush.bf16.xpose.msra.mxu0 0
        %1153 = vmatpush.bf16.xpose.msra.mxu0 0
        %1154 = vmatpush.bf16.xpose.msra.mxu0 0
        %1155 = vmatpush.bf16.xpose.msra.mxu0 %v1146
        %1156 = vmatmul.bf16.gmra.mxu0 %v1143
        %v1157 = vpop.f32.mrf.mxu0
        %v1158 = vadd.f32 0.0, %v1157
        %v1159 = vpop.f32.mrf.mxu0
        %v1160 = vadd.f32 0.0, %v1159
        %1161 = vdwg.mxu0
        %v1162 = vsel %vm806, %v1158, -inf
        %1163 = vmax.xlane.f32.xlu0 %v1162
        %v1164 = vpop.xlane.xlu0 %1163
        %v1165 = vsel %vm806, %v1160, -inf
        %1166 = vmax.xlane.f32.xlu0 %v1165
        %v1167 = vpop.xlane.xlu0 %1166
        %v1168 = vsub.f32 %v1158, %v1164
        %v1169 = vsub.f32 %v1160, %v1167
        %v1170 = vmul.f32 %v1168, 1.442695
        %v1171 = vpow.pop %v1170
        %v1172 = vmul.f32 %v1169, 1.442695
        %v1173 = vpow.pop %v1172
        %v1174 = vsel %vm806, %v1171, 0.0
        %1175 = vadd.xlane.f32.xlu0 %v1174
        %v1176 = vpop.xlane.xlu0 %1175
        %v1177 = vsel %vm806, %v1173, 0.0
        %1178 = vadd.xlane.f32.xlu0 %v1177
        %v1179 = vpop.xlane.xlu0 %1178
        %v1180 = vrcp.pop %v1176
        %v1181 = vrcp.pop %v1179
        %v1182 = vmul.f32 %v1171, %v1180
        %v1183 = vmul.f32 %v1173, %v1181
        %v1184 = vpack.c.bf16 %v1183, %v1182
        %1185 = vrot.lane.b32.xlu0 %v805, 48
        %v1186 = vpop.permute.xlu0 %1185
        %v1189 = vsel %vm806, %v1184, 0
        %1191 = vmatpush.bf16.msra.mxu0 0
        %1192 = vmatpush.bf16.msra.mxu0 0
        %1193 = vmatpush.bf16.msra.mxu0 0
        %1194 = vmatpush.bf16.msra.mxu0 0
        %1195 = vmatpush.bf16.msra.mxu0 0
        %1196 = vmatpush.bf16.msra.mxu0 0
        %1197 = vmatpush.bf16.msra.mxu0 0
        %1198 = vmatpush.bf16.msra.mxu0 %v1186
        %1199 = vmatmul.bf16.gmra.mxu0 %v1189
        %v1200 = vpop.f32.mrf.mxu0
        %v1201 = vadd.f32 0.0, %v1200
        %v1202 = vpop.f32.mrf.mxu0
        %v1203 = vadd.f32 0.0, %v1202
        %1204 = vdwg.mxu0
        %1205 = vrot.lane.b32.xlu0 %v803, 32
        %v1206 = vpop.permute.xlu0 %1205
        %1207 = vrot.lane.b32.xlu0 %v804, 32
        %v1208 = vpop.permute.xlu0 %1207
        %v1210 = vsel %vm806, %v1206, 0
        %v1213 = vsel %vm806, %v1208, 0
        %1215 = vmatpush.bf16.xpose.msra.mxu0 0
        %1216 = vmatpush.bf16.xpose.msra.mxu0 0
        %1217 = vmatpush.bf16.xpose.msra.mxu0 0
        %1218 = vmatpush.bf16.xpose.msra.mxu0 0
        %1219 = vmatpush.bf16.xpose.msra.mxu0 0
        %1220 = vmatpush.bf16.xpose.msra.mxu0 0
        %1221 = vmatpush.bf16.xpose.msra.mxu0 0
        %1222 = vmatpush.bf16.xpose.msra.mxu0 %v1213
        %1223 = vmatmul.bf16.gmra.mxu0 %v1210
        %v1224 = vpop.f32.mrf.mxu0
        %v1225 = vadd.f32 0.0, %v1224
        %v1226 = vpop.f32.mrf.mxu0
        %v1227 = vadd.f32 0.0, %v1226
        %1228 = vdwg.mxu0
        %v1229 = vsel %vm806, %v1225, -inf
        %1230 = vmax.xlane.f32.xlu0 %v1229
        %v1231 = vpop.xlane.xlu0 %1230
        %v1232 = vsel %vm806, %v1227, -inf
        %1233 = vmax.xlane.f32.xlu0 %v1232
        %v1234 = vpop.xlane.xlu0 %1233
        %v1235 = vsub.f32 %v1225, %v1231
        %v1236 = vsub.f32 %v1227, %v1234
        %v1237 = vmul.f32 %v1235, 1.442695
        %v1238 = vpow.pop %v1237
        %v1239 = vmul.f32 %v1236, 1.442695
        %v1240 = vpow.pop %v1239
        %v1241 = vsel %vm806, %v1238, 0.0
        %1242 = vadd.xlane.f32.xlu0 %v1241
        %v1243 = vpop.xlane.xlu0 %1242
        %v1244 = vsel %vm806, %v1240, 0.0
        %1245 = vadd.xlane.f32.xlu0 %v1244
        %v1246 = vpop.xlane.xlu0 %1245
        %v1247 = vrcp.pop %v1243
        %v1248 = vrcp.pop %v1246
        %v1249 = vmul.f32 %v1238, %v1247
        %v1250 = vmul.f32 %v1240, %v1248
        %v1251 = vpack.c.bf16 %v1250, %v1249
        %1252 = vrot.lane.b32.xlu0 %v805, 32
        %v1253 = vpop.permute.xlu0 %1252
        %v1256 = vsel %vm806, %v1251, 0
        %1258 = vmatpush.bf16.msra.mxu0 0
        %1259 = vmatpush.bf16.msra.mxu0 0
        %1260 = vmatpush.bf16.msra.mxu0 0
        %1261 = vmatpush.bf16.msra.mxu0 0
        %1262 = vmatpush.bf16.msra.mxu0 0
        %1263 = vmatpush.bf16.msra.mxu0 0
        %1264 = vmatpush.bf16.msra.mxu0 0
        %1265 = vmatpush.bf16.msra.mxu0 %v1253
        %1266 = vmatmul.bf16.gmra.mxu0 %v1256
        %v1267 = vpop.f32.mrf.mxu0
        %v1268 = vadd.f32 0.0, %v1267
        %v1269 = vpop.f32.mrf.mxu0
        %v1270 = vadd.f32 0.0, %v1269
        %1271 = vdwg.mxu0
        %1272 = vrot.lane.b32.xlu0 %v803, 16
        %v1273 = vpop.permute.xlu0 %1272
        %1274 = vrot.lane.b32.xlu0 %v804, 16
        %v1275 = vpop.permute.xlu0 %1274
        %v1277 = vsel %vm806, %v1273, 0
        %v1280 = vsel %vm806, %v1275, 0
        %1282 = vmatpush.bf16.xpose.msra.mxu0 0
        %1283 = vmatpush.bf16.xpose.msra.mxu0 0
        %1284 = vmatpush.bf16.xpose.msra.mxu0 0
        %1285 = vmatpush.bf16.xpose.msra.mxu0 0
        %1286 = vmatpush.bf16.xpose.msra.mxu0 0
        %1287 = vmatpush.bf16.xpose.msra.mxu0 0
        %1288 = vmatpush.bf16.xpose.msra.mxu0 0
        %1289 = vmatpush.bf16.xpose.msra.mxu0 %v1280
        %1290 = vmatmul.bf16.gmra.mxu0 %v1277
        %v1291 = vpop.f32.mrf.mxu0
        %v1292 = vadd.f32 0.0, %v1291
        %v1293 = vpop.f32.mrf.mxu0
        %v1294 = vadd.f32 0.0, %v1293
        %1295 = vdwg.mxu0
        %v1296 = vsel %vm806, %v1292, -inf
        %1297 = vmax.xlane.f32.xlu0 %v1296
        %v1298 = vpop.xlane.xlu0 %1297
        %v1299 = vsel %vm806, %v1294, -inf
        %1300 = vmax.xlane.f32.xlu0 %v1299
        %v1301 = vpop.xlane.xlu0 %1300
        %v1302 = vsub.f32 %v1292, %v1298
        %v1303 = vsub.f32 %v1294, %v1301
        %v1304 = vmul.f32 %v1302, 1.442695
        %v1305 = vpow.pop %v1304
        %v1306 = vmul.f32 %v1303, 1.442695
        %v1307 = vpow.pop %v1306
        %v1308 = vsel %vm806, %v1305, 0.0
        %1309 = vadd.xlane.f32.xlu0 %v1308
        %v1310 = vpop.xlane.xlu0 %1309
        %v1311 = vsel %vm806, %v1307, 0.0
        %1312 = vadd.xlane.f32.xlu0 %v1311
        %v1313 = vpop.xlane.xlu0 %1312
        %v1314 = vrcp.pop %v1310
        %v1315 = vrcp.pop %v1313
        %v1316 = vmul.f32 %v1305, %v1314
        %v1317 = vmul.f32 %v1307, %v1315
        %v1318 = vpack.c.bf16 %v1317, %v1316
        %1319 = vrot.lane.b32.xlu0 %v805, 16
        %v1320 = vpop.permute.xlu0 %1319
        %v1323 = vsel %vm806, %v1318, 0
        %1325 = vmatpush.bf16.msra.mxu0 0
        %1326 = vmatpush.bf16.msra.mxu0 0
        %1327 = vmatpush.bf16.msra.mxu0 0
        %1328 = vmatpush.bf16.msra.mxu0 0
        %1329 = vmatpush.bf16.msra.mxu0 0
        %1330 = vmatpush.bf16.msra.mxu0 0
        %1331 = vmatpush.bf16.msra.mxu0 0
        %1332 = vmatpush.bf16.msra.mxu0 %v1320
        %1333 = vmatmul.bf16.gmra.mxu0 %v1323
        %v1334 = vpop.f32.mrf.mxu0
        %v1335 = vadd.f32 0.0, %v1334
        %v1336 = vpop.f32.mrf.mxu0
        %v1337 = vadd.f32 0.0, %v1336
        %1338 = vdwg.mxu0
        %1341 = vrot.lane.b32.xlu0 %v933, 16
        %v1342 = vpop.permute.xlu0 %1341
        %1343 = vrot.lane.b32.xlu0 %v935, 16
        %v1344 = vpop.permute.xlu0 %1343
        %1349 = vrot.lane.b32.xlu0 %v1000, 32
        %v1350 = vpop.permute.xlu0 %1349
        %1351 = vrot.lane.b32.xlu0 %v1002, 32
        %v1352 = vpop.permute.xlu0 %1351
        %1357 = vrot.lane.b32.xlu0 %v1067, 48
        %v1358 = vpop.permute.xlu0 %1357
        %1359 = vrot.lane.b32.xlu0 %v1069, 48
        %v1360 = vpop.permute.xlu0 %1359
        %1365 = vrot.lane.b32.xlu0 %v1134, 64
        %v1366 = vpop.permute.xlu0 %1365
        %1367 = vrot.lane.b32.xlu0 %v1136, 64
        %v1368 = vpop.permute.xlu0 %1367
        %1373 = vrot.lane.b32.xlu0 %v1201, 80
        %v1374 = vpop.permute.xlu0 %1373
        %1375 = vrot.lane.b32.xlu0 %v1203, 80
        %v1376 = vpop.permute.xlu0 %1375
        %1381 = vrot.lane.b32.xlu0 %v1268, 96
        %v1382 = vpop.permute.xlu0 %1381
        %1383 = vrot.lane.b32.xlu0 %v1270, 96
        %v1384 = vpop.permute.xlu0 %1383
        %1389 = vrot.lane.b32.xlu0 %v1335, 112
        %v1390 = vpop.permute.xlu0 %1389
        %1391 = vrot.lane.b32.xlu0 %v1337, 112
        %v1392 = vpop.permute.xlu0 %1391
        %v1395 = vsel %vm806, %v863, %v1342
        %v1396 = vsel %vm806, %v865, %v1344
        %vm1397 = vcmask 261120
        %v1398 = vsel %vm1397, %v1395, %v1350
        %v1399 = vsel %vm1397, %v1396, %v1352
        %vm1400 = vcmask 392192
        %v1401 = vsel %vm1400, %v1398, %v1358
        %v1402 = vsel %vm1400, %v1399, %v1360
        %vm1403 = vcmask 523264
        %v1404 = vsel %vm1403, %v1401, %v1366
        %v1405 = vsel %vm1403, %v1402, %v1368
        %vm1406 = vcmask 654336
        %v1407 = vsel %vm1406, %v1404, %v1374
        %v1408 = vsel %vm1406, %v1405, %v1376
        %vm1409 = vcmask 785408
        %v1410 = vsel %vm1409, %v1407, %v1382
        %v1411 = vsel %vm1409, %v1408, %v1384
        %vm1412 = vcmask 916480
        %v1413 = vsel %vm1412, %v1410, %v1390
        %v1414 = vsel %vm1412, %v1411, %v1392
        %v1415 = vpack.c.bf16 %v1414, %v1413
        %v1416 = vld [vmem:[#allocation6] sm:$0xf]
        %v1417 = vld [vmem:[#allocation6 + $0x4] sm:$0xf]
        %v1418 = vld [vmem:[#allocation6 + $0x8] sm:$0xf]
        %v1419 = vld [vmem:[#allocation6 + $0xc] sm:$0xf]
        %v1420 = vld [vmem:[#allocation6 + $0x10] sm:$0xf]
        %v1421 = vld [vmem:[#allocation6 + $0x14] sm:$0xf]
        %v1422 = vld [vmem:[#allocation6 + $0x18] sm:$0xf]
        %v1423 = vld [vmem:[#allocation6 + $0x1c] sm:$0xf]
        %v1424 = vld [vmem:[#allocation6 + $0x20] sm:$0xf]
        %v1425 = vld [vmem:[#allocation6 + $0x24] sm:$0xf]
        %v1426 = vld [vmem:[#allocation6 + $0x28] sm:$0xf]
        %v1427 = vld [vmem:[#allocation6 + $0x2c] sm:$0xf]
        %v1428 = vld [vmem:[#allocation6 + $0x30] sm:$0xf]
        %v1429 = vld [vmem:[#allocation6 + $0x34] sm:$0xf]
        %v1430 = vld [vmem:[#allocation6 + $0x38] sm:$0xf]
        %v1431 = vld [vmem:[#allocation6 + $0x3c] sm:$0xf]
        %v1432 = vld [vmem:[#allocation7] sm:$0x1]
        %v1434 = vperm.slane %v1432, 0
        %v1452 = vunpack.c.l.b16 %v1416
        %v1453 = vunpack.c.l.b16 %v1417
        %v1454 = vunpack.c.l.b16 %v1418
        %v1455 = vunpack.c.l.b16 %v1419
        %v1456 = vunpack.c.l.b16 %v1420
        %v1457 = vunpack.c.l.b16 %v1421
        %v1458 = vunpack.c.l.b16 %v1422
        %v1459 = vunpack.c.l.b16 %v1423
        %v1460 = vunpack.c.l.b16 %v1424
        %v1461 = vunpack.c.l.b16 %v1425
        %v1462 = vunpack.c.l.b16 %v1426
        %v1463 = vunpack.c.l.b16 %v1427
        %v1464 = vunpack.c.l.b16 %v1428
        %v1465 = vunpack.c.l.b16 %v1429
        %v1466 = vunpack.c.l.b16 %v1430
        %v1467 = vunpack.c.l.b16 %v1431
        %v1468 = vpack.c.b16 %v1453, %v1452
        %v1469 = vpack.c.b16 %v1455, %v1454
        %v1470 = vpack.c.b16 %v1457, %v1456
        %v1471 = vpack.c.b16 %v1459, %v1458
        %v1472 = vpack.c.b16 %v1461, %v1460
        %v1473 = vpack.c.b16 %v1463, %v1462
        %v1474 = vpack.c.b16 %v1465, %v1464
        %v1475 = vpack.c.b16 %v1467, %v1466
        %1484 = vmatpush.bf16.msra.mxu0 %v1475
        %1485 = vmatpush.bf16.msra.mxu0 %v1474
        %1486 = vmatpush.bf16.msra.mxu0 %v1473
        %1487 = vmatpush.bf16.msra.mxu0 %v1472
        %1488 = vmatpush.bf16.msra.mxu0 %v1471
        %1489 = vmatpush.bf16.msra.mxu0 %v1470
        %1490 = vmatpush.bf16.msra.mxu0 %v1469
        %1491 = vmatpush.bf16.msra.mxu0 %v1468
        %1492 = vmatmul.bf16.gmra.mxu0 %v1415
        %v1493 = vpop.f32.mrf.mxu0
        %v1494 = vadd.f32 %v1434, %v1493
        %v1495 = vpop.f32.mrf.mxu0
        %v1496 = vadd.f32 %v1434, %v1495
        %1497 = vdwg.mxu0
        %v1498 = vadd.f32 %v588, %v1494
        %v1499 = vadd.f32 %v589, %v1496
        %1500 = vadd.xlane.f32.xlu0 %v1498
        %v1501 = vpop.xlane.xlu0 %1500
        %1502 = vadd.xlane.f32.xlu0 %v1499
        %v1503 = vpop.xlane.xlu0 %1502
        %v1504 = vrcp.pop 128.0
        %v1505 = vmul.f32 128.0, %v1504
        %v1506 = vsub.f32 1.0, %v1505
        %v1507 = vmul.f32 %v1504, %v1506
        %v1508 = vadd.f32 %v1504, %v1507
        %vm1509 = vweird.f32 %v1504
        %v1510 = vsel %vm1509, %v1504, %v1508
        %v1511 = vmul.f32 %v1501, %v1510
        %v1512 = vmul.f32 %v1503, %v1510
        %v1513 = vsub.f32 %v1498, %v1511
        %v1514 = vsub.f32 %v1499, %v1512
        %v1515 = vmul.f32 %v1513, %v1513
        %v1516 = vmul.f32 %v1514, %v1514
        %1517 = vadd.xlane.f32.xlu0 %v1515
        %v1518 = vpop.xlane.xlu0 %1517
        %1519 = vadd.xlane.f32.xlu0 %v1516
        %v1520 = vpop.xlane.xlu0 %1519
        %v1521 = vmul.f32 %v1518, %v1510
        %v1522 = vmul.f32 %v1520, %v1510
        %v1523 = vadd.f32 %v1521, 1e-05
        %v1524 = vadd.f32 %v1522, 1e-05
        %v1525 = vrsqrt.pop %v1523
        %v1526 = vmul.f32 %v1525, %v1523
        %v1527 = vmul.f32 %v1526, %v1525
        %v1528 = vmul.f32 0.5, %v1527
        %v1529 = vsub.f32 1.5, %v1528
        %v1530 = vmul.f32 %v1525, %v1529
        %vm1531 = vweird.f32 %v1523
        %vm1532 = vweird.f32 %v1525
        %vm1533 = vmor %vm1531, %vm1532
        %v1534 = vsel %vm1533, %v1525, %v1530
        %v1535 = vrsqrt.pop %v1524
        %v1536 = vmul.f32 %v1535, %v1524
        %v1537 = vmul.f32 %v1536, %v1535
        %v1538 = vmul.f32 0.5, %v1537
        %v1539 = vsub.f32 1.5, %v1538
        %v1540 = vmul.f32 %v1535, %v1539
        %vm1541 = vweird.f32 %v1524
        %vm1542 = vweird.f32 %v1535
        %vm1543 = vmor %vm1541, %vm1542
        %v1544 = vsel %vm1543, %v1535, %v1540
        %v1545 = vmul.f32 %v1513, %v1534
        %v1546 = vmul.f32 %v1514, %v1544
        %v1547 = vld [vmem:[%s5] sm:$0x1]
        %v1549 = vperm.slane %v1547, 0
        %v1551 = vmul.f32 %v1545, %v1549
        %v1552 = vmul.f32 %v1546, %v1549
        %v1553 = vld [vmem:[#allocation9] sm:$0x1]
        %v1555 = vperm.slane %v1553, 0
        %v1557 = vadd.f32 %v1551, %v1555
        %v1558 = vadd.f32 %v1552, %v1555
        %v1559 = vpack.c.bf16 %v1558, %v1557
        %v1560 = vld [vmem:[#allocation10] sm:$0xff]
        %v1561 = vld [vmem:[#allocation10 + $0x8] sm:$0xff]
        %v1562 = vld [vmem:[#allocation10 + $0x10] sm:$0xff]
        %v1563 = vld [vmem:[#allocation10 + $0x18] sm:$0xff]
        %v1564 = vld [vmem:[#allocation10 + $0x20] sm:$0xff]
        %v1565 = vld [vmem:[#allocation10 + $0x28] sm:$0xff]
        %v1566 = vld [vmem:[#allocation10 + $0x30] sm:$0xff]
        %v1567 = vld [vmem:[#allocation10 + $0x38] sm:$0xff]
        %v1568 = vld [vmem:[#allocation10 + $0x40] sm:$0xff]
        %v1569 = vld [vmem:[#allocation10 + $0x48] sm:$0xff]
        %v1570 = vld [vmem:[#allocation10 + $0x50] sm:$0xff]
        %v1571 = vld [vmem:[#allocation10 + $0x58] sm:$0xff]
        %v1572 = vld [vmem:[#allocation10 + $0x60] sm:$0xff]
        %v1573 = vld [vmem:[#allocation10 + $0x68] sm:$0xff]
        %v1574 = vld [vmem:[#allocation10 + $0x70] sm:$0xff]
        %v1575 = vld [vmem:[#allocation10 + $0x78] sm:$0xff]
        %v1576 = vld [vmem:[%s8] sm:$0x3]
        %v1578 = vperm.slane %v1576, 0
        %v1579 = vperm.slane %v1576, 1
        %v1598 = vunpack.c.l.b16 %v1560
        %v1599 = vunpack.c.h.b16 %v1560
        %v1600 = vunpack.c.l.b16 %v1561
        %v1601 = vunpack.c.h.b16 %v1561
        %v1602 = vunpack.c.l.b16 %v1562
        %v1603 = vunpack.c.h.b16 %v1562
        %v1604 = vunpack.c.l.b16 %v1563
        %v1605 = vunpack.c.h.b16 %v1563
        %v1606 = vunpack.c.l.b16 %v1564
        %v1607 = vunpack.c.h.b16 %v1564
        %v1608 = vunpack.c.l.b16 %v1565
        %v1609 = vunpack.c.h.b16 %v1565
        %v1610 = vunpack.c.l.b16 %v1566
        %v1611 = vunpack.c.h.b16 %v1566
        %v1612 = vunpack.c.l.b16 %v1567
        %v1613 = vunpack.c.h.b16 %v1567
        %v1614 = vunpack.c.l.b16 %v1568
        %v1615 = vunpack.c.h.b16 %v1568
        %v1616 = vunpack.c.l.b16 %v1569
        %v1617 = vunpack.c.h.b16 %v1569
        %v1618 = vunpack.c.l.b16 %v1570
        %v1619 = vunpack.c.h.b16 %v1570
        %v1620 = vunpack.c.l.b16 %v1571
        %v1621 = vunpack.c.h.b16 %v1571
        %v1622 = vunpack.c.l.b16 %v1572
        %v1623 = vunpack.c.h.b16 %v1572
        %v1624 = vunpack.c.l.b16 %v1573
        %v1625 = vunpack.c.h.b16 %v1573
        %v1626 = vunpack.c.l.b16 %v1574
        %v1627 = vunpack.c.h.b16 %v1574
        %v1628 = vunpack.c.l.b16 %v1575
        %v1629 = vunpack.c.h.b16 %v1575
        %v1630 = vpack.c.b16 %v1600, %v1598
        %v1631 = vpack.c.b16 %v1601, %v1599
        %v1632 = vpack.c.b16 %v1604, %v1602
        %v1633 = vpack.c.b16 %v1605, %v1603
        %v1634 = vpack.c.b16 %v1608, %v1606
        %v1635 = vpack.c.b16 %v1609, %v1607
        %v1636 = vpack.c.b16 %v1612, %v1610
        %v1637 = vpack.c.b16 %v1613, %v1611
        %v1638 = vpack.c.b16 %v1616, %v1614
        %v1639 = vpack.c.b16 %v1617, %v1615
        %v1640 = vpack.c.b16 %v1620, %v1618
        %v1641 = vpack.c.b16 %v1621, %v1619
        %v1642 = vpack.c.b16 %v1624, %v1622
        %v1643 = vpack.c.b16 %v1625, %v1623
        %v1644 = vpack.c.b16 %v1628, %v1626
        %v1645 = vpack.c.b16 %v1629, %v1627
        %1662 = vmatpush.bf16.msra.mxu0 %v1644
        %1663 = vmatpush.bf16.msra.mxu0 %v1642
        %1664 = vmatpush.bf16.msra.mxu0 %v1640
        %1665 = vmatpush.bf16.msra.mxu0 %v1638
        %1666 = vmatpush.bf16.msra.mxu0 %v1636
        %1667 = vmatpush.bf16.msra.mxu0 %v1634
        %1668 = vmatpush.bf16.msra.mxu0 %v1632
        %1669 = vmatpush.bf16.msra.mxu0 %v1630
        %1670 = vmatmul.bf16.gmra.mxu0 %v1559
        %v1671 = vpop.f32.mrf.mxu0
        %v1672 = vadd.f32 %v1578, %v1671
        %v1673 = vpop.f32.mrf.mxu0
        %v1674 = vadd.f32 %v1578, %v1673
        %1675 = vdwg.mxu0
        %1676 = vmatpush.bf16.msra.mxu0 %v1645
        %1677 = vmatpush.bf16.msra.mxu0 %v1643
        %1678 = vmatpush.bf16.msra.mxu0 %v1641
        %1679 = vmatpush.bf16.msra.mxu0 %v1639
        %1680 = vmatpush.bf16.msra.mxu0 %v1637
        %1681 = vmatpush.bf16.msra.mxu0 %v1635
        %1682 = vmatpush.bf16.msra.mxu0 %v1633
        %1683 = vmatpush.bf16.msra.mxu0 %v1631
        %1684 = vmatmul.bf16.gmra.mxu0 %v1559
        %v1685 = vpop.f32.mrf.mxu0
        %v1686 = vadd.f32 %v1579, %v1685
        %v1687 = vpop.f32.mrf.mxu0
        %v1688 = vadd.f32 %v1579, %v1687
        %1689 = vdwg.mxu0
        %v1690 = vmax.f32 %v1672, 0.0
        %v1691 = vmax.f32 %v1686, 0.0
        %v1692 = vmax.f32 %v1674, 0.0
        %v1693 = vmax.f32 %v1688, 0.0
        %v1694 = vpack.c.bf16 %v1692, %v1690
        %v1695 = vpack.c.bf16 %v1693, %v1691
        %v1696 = vld [vmem:[#allocation12] sm:$0xf]
        %v1697 = vld [vmem:[#allocation12 + $0x4] sm:$0xf]
        %v1698 = vld [vmem:[#allocation12 + $0x8] sm:$0xf]
        %v1699 = vld [vmem:[#allocation12 + $0xc] sm:$0xf]
        %v1700 = vld [vmem:[#allocation12 + $0x10] sm:$0xf]
        %v1701 = vld [vmem:[#allocation12 + $0x14] sm:$0xf]
        %v1702 = vld [vmem:[#allocation12 + $0x18] sm:$0xf]
        %v1703 = vld [vmem:[#allocation12 + $0x1c] sm:$0xf]
        %v1704 = vld [vmem:[#allocation12 + $0x20] sm:$0xf]
        %v1705 = vld [vmem:[#allocation12 + $0x24] sm:$0xf]
        %v1706 = vld [vmem:[#allocation12 + $0x28] sm:$0xf]
        %v1707 = vld [vmem:[#allocation12 + $0x2c] sm:$0xf]
        %v1708 = vld [vmem:[#allocation12 + $0x30] sm:$0xf]
        %v1709 = vld [vmem:[#allocation12 + $0x34] sm:$0xf]
        %v1710 = vld [vmem:[#allocation12 + $0x38] sm:$0xf]
        %v1711 = vld [vmem:[#allocation12 + $0x3c] sm:$0xf]
        %v1712 = vld [vmem:[#allocation12 + $0x40] sm:$0xf]
        %v1713 = vld [vmem:[#allocation12 + $0x44] sm:$0xf]
        %v1714 = vld [vmem:[#allocation12 + $0x48] sm:$0xf]
        %v1715 = vld [vmem:[#allocation12 + $0x4c] sm:$0xf]
        %v1716 = vld [vmem:[#allocation12 + $0x50] sm:$0xf]
        %v1717 = vld [vmem:[#allocation12 + $0x54] sm:$0xf]
        %v1718 = vld [vmem:[#allocation12 + $0x58] sm:$0xf]
        %v1719 = vld [vmem:[#allocation12 + $0x5c] sm:$0xf]
        %v1720 = vld [vmem:[#allocation12 + $0x60] sm:$0xf]
        %v1721 = vld [vmem:[#allocation12 + $0x64] sm:$0xf]
        %v1722 = vld [vmem:[#allocation12 + $0x68] sm:$0xf]
        %v1723 = vld [vmem:[#allocation12 + $0x6c] sm:$0xf]
        %v1724 = vld [vmem:[#allocation12 + $0x70] sm:$0xf]
        %v1725 = vld [vmem:[#allocation12 + $0x74] sm:$0xf]
        %v1726 = vld [vmem:[#allocation12 + $0x78] sm:$0xf]
        %v1727 = vld [vmem:[#allocation12 + $0x7c] sm:$0xf]
        %v1728 = vld [vmem:[#allocation13] sm:$0x1]
        %v1730 = vperm.slane %v1728, 0
        %v1764 = vunpack.c.l.b16 %v1696
        %v1765 = vunpack.c.l.b16 %v1697
        %v1766 = vunpack.c.l.b16 %v1698
        %v1767 = vunpack.c.l.b16 %v1699
        %v1768 = vunpack.c.l.b16 %v1700
        %v1769 = vunpack.c.l.b16 %v1701
        %v1770 = vunpack.c.l.b16 %v1702
        %v1771 = vunpack.c.l.b16 %v1703
        %v1772 = vunpack.c.l.b16 %v1704
        %v1773 = vunpack.c.l.b16 %v1705
        %v1774 = vunpack.c.l.b16 %v1706
        %v1775 = vunpack.c.l.b16 %v1707
        %v1776 = vunpack.c.l.b16 %v1708
        %v1777 = vunpack.c.l.b16 %v1709
        %v1778 = vunpack.c.l.b16 %v1710
        %v1779 = vunpack.c.l.b16 %v1711
        %v1780 = vunpack.c.l.b16 %v1712
        %v1781 = vunpack.c.l.b16 %v1713
        %v1782 = vunpack.c.l.b16 %v1714
        %v1783 = vunpack.c.l.b16 %v1715
        %v1784 = vunpack.c.l.b16 %v1716
        %v1785 = vunpack.c.l.b16 %v1717
        %v1786 = vunpack.c.l.b16 %v1718
        %v1787 = vunpack.c.l.b16 %v1719
        %v1788 = vunpack.c.l.b16 %v1720
        %v1789 = vunpack.c.l.b16 %v1721
        %v1790 = vunpack.c.l.b16 %v1722
        %v1791 = vunpack.c.l.b16 %v1723
        %v1792 = vunpack.c.l.b16 %v1724
        %v1793 = vunpack.c.l.b16 %v1725
        %v1794 = vunpack.c.l.b16 %v1726
        %v1795 = vunpack.c.l.b16 %v1727
        %v1796 = vpack.c.b16 %v1765, %v1764
        %v1797 = vpack.c.b16 %v1767, %v1766
        %v1798 = vpack.c.b16 %v1769, %v1768
        %v1799 = vpack.c.b16 %v1771, %v1770
        %v1800 = vpack.c.b16 %v1773, %v1772
        %v1801 = vpack.c.b16 %v1775, %v1774
        %v1802 = vpack.c.b16 %v1777, %v1776
        %v1803 = vpack.c.b16 %v1779, %v1778
        %v1804 = vpack.c.b16 %v1781, %v1780
        %v1805 = vpack.c.b16 %v1783, %v1782
        %v1806 = vpack.c.b16 %v1785, %v1784
        %v1807 = vpack.c.b16 %v1787, %v1786
        %v1808 = vpack.c.b16 %v1789, %v1788
        %v1809 = vpack.c.b16 %v1791, %v1790
        %v1810 = vpack.c.b16 %v1793, %v1792
        %v1811 = vpack.c.b16 %v1795, %v1794
        %1828 = vmatpush.bf16.msra.mxu0 %v1803
        %1829 = vmatpush.bf16.msra.mxu0 %v1802
        %1830 = vmatpush.bf16.msra.mxu0 %v1801
        %1831 = vmatpush.bf16.msra.mxu0 %v1800
        %1832 = vmatpush.bf16.msra.mxu0 %v1799
        %1833 = vmatpush.bf16.msra.mxu0 %v1798
        %1834 = vmatpush.bf16.msra.mxu0 %v1797
        %1835 = vmatpush.bf16.msra.mxu0 %v1796
        %1836 = vmatmul.bf16.gmra.mxu0 %v1694
        %v1837 = vpop.f32.mrf.mxu0
        %v1838 = vadd.f32 %v1730, %v1837
        %v1839 = vpop.f32.mrf.mxu0
        %v1840 = vadd.f32 %v1730, %v1839
        %1841 = vdwg.mxu0
        %1842 = vmatpush.bf16.msra.mxu0 %v1811
        %1843 = vmatpush.bf16.msra.mxu0 %v1810
        %1844 = vmatpush.bf16.msra.mxu0 %v1809
        %1845 = vmatpush.bf16.msra.mxu0 %v1808
        %1846 = vmatpush.bf16.msra.mxu0 %v1807
        %1847 = vmatpush.bf16.msra.mxu0 %v1806
        %1848 = vmatpush.bf16.msra.mxu0 %v1805
        %1849 = vmatpush.bf16.msra.mxu0 %v1804
        %1850 = vmatmul.bf16.gmra.mxu0 %v1695
        %v1851 = vpop.f32.mrf.mxu0
        %v1852 = vadd.f32 %v1838, %v1851
        %v1853 = vpop.f32.mrf.mxu0
        %v1854 = vadd.f32 %v1840, %v1853
        %1855 = vdwg.mxu0
        %v1856 = vadd.f32 %v1557, %v1852
        %v1857 = vadd.f32 %v1558, %v1854
        %1858 = vadd.xlane.f32.xlu0 %v1856
        %v1859 = vpop.xlane.xlu0 %1858
        %1860 = vadd.xlane.f32.xlu0 %v1857
        %v1861 = vpop.xlane.xlu0 %1860
        %v1862 = vmul.f32 %v1859, %v1510
        %v1863 = vmul.f32 %v1861, %v1510
        %v1864 = vsub.f32 %v1856, %v1862
        %v1865 = vsub.f32 %v1857, %v1863
        %v1866 = vmul.f32 %v1864, %v1864
        %v1867 = vmul.f32 %v1865, %v1865
        %1868 = vadd.xlane.f32.xlu0 %v1866
        %v1869 = vpop.xlane.xlu0 %1868
        %1870 = vadd.xlane.f32.xlu0 %v1867
        %v1871 = vpop.xlane.xlu0 %1870
        %v1872 = vmul.f32 %v1869, %v1510
        %v1873 = vmul.f32 %v1871, %v1510
        %v1874 = vadd.f32 %v1872, 1e-05
        %v1875 = vadd.f32 %v1873, 1e-05
        %v1876 = vrsqrt.pop %v1874
        %v1877 = vmul.f32 %v1876, %v1874
        %v1878 = vmul.f32 %v1877, %v1876
        %v1879 = vmul.f32 0.5, %v1878
        %v1880 = vsub.f32 1.5, %v1879
        %v1881 = vmul.f32 %v1876, %v1880
        %vm1882 = vweird.f32 %v1874
        %vm1883 = vweird.f32 %v1876
        %vm1884 = vmor %vm1882, %vm1883
        %v1885 = vsel %vm1884, %v1876, %v1881
        %v1886 = vrsqrt.pop %v1875
        %v1887 = vmul.f32 %v1886, %v1875
        %v1888 = vmul.f32 %v1887, %v1886
        %v1889 = vmul.f32 0.5, %v1888
        %v1890 = vsub.f32 1.5, %v1889
        %v1891 = vmul.f32 %v1886, %v1890
        %vm1892 = vweird.f32 %v1875
        %vm1893 = vweird.f32 %v1886
        %vm1894 = vmor %vm1892, %vm1893
        %v1895 = vsel %vm1894, %v1886, %v1891
        %v1896 = vmul.f32 %v1864, %v1885
        %v1897 = vmul.f32 %v1865, %v1895
        %v1898 = vld [vmem:[%s11] sm:$0x1]
        %v1900 = vperm.slane %v1898, 0
        %v1902 = vmul.f32 %v1896, %v1900
        %v1903 = vmul.f32 %v1897, %v1900
        %v1904 = vld [vmem:[#allocation15] sm:$0x1]
        %v1906 = vperm.slane %v1904, 0
        %v1908 = vadd.f32 %v1902, %v1906
        %v1909 = vadd.f32 %v1903, %v1906
        %1910 = vst [vmem:[%s586] sm:$0xff] %v1908
        %1911 = vst [vmem:[%s586 + $0x8] sm:$0xff] %v1909
        %p1912 = scmp.lt.s32.totalorder %s31, 1
        %s1913 = scalar_select %p1912, %s31, 1
        %s1914 = smul.addr %s1913, 2
        %s1915 = smul.addr %s1914, 8
        %s1916 = scalar_lea.vmem %s13, %s1915
        // Predicated region
        $region109: #{encoder_kimcnn_forward.4} parent=71 // pred_check
          %p1917 = pneg %p327
        $region110: #{encoder_kimcnn_forward.4} parent=71 // pred_check_branch
          %1919 = sbr.rel (%p1917) target = $region112
        $region111: #{encoder_kimcnn_forward.4} parent=71 // pred_region
          _
        $region112: #{encoder_kimcnn_forward.4} parent=71 // pred_fallthru
          _
      $region72: #{encoder_kimcnn_forward.4} parent=5 // pred_fallthru
        _
      %p1920 = scmp.le.s32.totalorder 2, %s26
      // Predicated region
      $region113: #{encoder_kimcnn_forward.4} parent=5 // pred_check
        %p1921 = pneg %p1920
      $region114: #{encoder_kimcnn_forward.4} parent=5 // pred_check_branch
        %1923 = sbr.rel (%p1921) target = $region116
      $region115: #{encoder_kimcnn_forward.4} parent=5 // pred_region
        %s1924 = ssub.s32 %s26, 2
        // Predicated region
        $region117: #{encoder_kimcnn_forward.4} parent=115 // pred_check
          %p1925 = pneg %p333
        $region118: #{encoder_kimcnn_forward.4} parent=115 // pred_check_branch
          %1927 = sbr.rel (%p1925) target = $region120
        $region119: #{encoder_kimcnn_forward.4} parent=115 // pred_region
          %p1928 = scmp.lt.s32.totalorder %s32, 1
          %s1929 = scalar_select %p1928, %s32, 1
          %s1930 = smul.addr %s1929, 2
          %s1931 = smul.addr %s1930, 8
          %s1932 = scalar_lea.vmem %s13, %s1931
        $region120: #{encoder_kimcnn_forward.4} parent=115 // pred_fallthru
          _
      $region116: #{encoder_kimcnn_forward.4} parent=5 // pred_fallthru
        _
    $region6: #{encoder_kimcnn_forward.4} parent=1 // loop_footer
      %s30 = sadd.s32 1, %s26
    $region7: #{encoder_kimcnn_forward.4} parent=1 // loop_footer_branch
      %25 = sbr.rel target = $region3
    $region8: #{encoder_kimcnn_forward.4} parent=1 // loop_exit
      _
    %1933 = vsyncpa [#allocation3], 1
    %s1934 = scalar_lea.sflag [#allocation3], 1
    %1935 = vsyncpa %s1934, 1
    %1936 = vsyncpa [#allocation5], 1
    %1937 = vsyncpa [#allocation8], 1
    %1938 = vsyncpa [#allocation11], 1
    %1939 = vsyncpa [#allocation14], 1

// kernel: encoder_kimcnn_forward.5
$region0: #{encoder_kimcnn_forward.5}
  #allocation0 [shape = 'u32[]', space=smem, size = 0x4, offset = 0x4, fixed_abs, tag = 'smem constant byte address 0x4 - core index']
  #allocation1 [shape = 'u32[72,128]{1,0:T(1,128)}', space=vmem, size = 0x9000, scoped, tag = 'internal scratch']
  %s0 = inlined_call_operand.vmem [shape: f32[2,16,128], index: 0, kind: input, shape index: {}]
  %s1 = inlined_call_operand.hbm [shape: bf16[128,384], index: 1, kind: input, shape index: {}]
  %s2 = inlined_call_operand.vmem [shape: f32[1,384], index: 2, kind: input, shape index: {}]
  %s3 = inlined_call_operand.hbm [shape: bf16[128,128], index: 3, kind: input, shape index: {}]
  %s4 = inlined_call_operand.vmem [shape: f32[1,128], index: 4, kind: input, shape index: {}]
  %s5 = inlined_call_operand.vmem [shape: f32[1,128], index: 5, kind: input, shape index: {}]
  %s6 = inlined_call_operand.vmem [shape: f32[1,128], index: 6, kind: input, shape index: {}]
  %s7 = inlined_call_operand.hbm [shape: bf16[128,256], index: 7, kind: input, shape index: {}]
  %s8 = inlined_call_operand.vmem [shape: f32[1,256], index: 8, kind: input, shape index: {}]
  %s9 = inlined_call_operand.hbm [shape: bf16[256,128], index: 9, kind: input, shape index: {}]
  %s10 = inlined_call_operand.vmem [shape: f32[1,128], index: 10, kind: input, shape index: {}]
  %s11 = inlined_call_operand.vmem [shape: f32[1,128], index: 11, kind: input, shape index: {}]
  %s12 = inlined_call_operand.vmem [shape: f32[1,128], index: 12, kind: input, shape index: {}]
  %s13 = inlined_call_operand.vmem [shape: f32[2,16,128], index: 13, kind: output, shape index: {}]
  %s14 = sld [smem:[#allocation0]]
  $region101: #{encoder_kimcnn_forward.5} parent=0
    _
  %s16 = ssub.s32 1, %s14
  %s17 = scalar_select 0, %s16, %s14
  $region1: #{encoder_kimcnn_forward.5} parent=0
    #allocation2 [shape = 'u8[98304]{0}', space=vmem, size = 0x18000, scoped, tag = 'input window, operand 1, single buffered']
    #allocation3 [shape = 's32[2]{0}', space=sflag, size = 0x8, scoped, tag = 'scoped memory for encoder_kimcnn_forward.5']
    #allocation4 [shape = 'u8[32768]{0}', space=vmem, size = 0x8000, scoped, tag = 'input window, operand 3, single buffered']
    #allocation5 [shape = 's32[1]{0}', space=sflag, size = 0x4, scoped, tag = 'scoped memory for encoder_kimcnn_forward.5']
    #allocation6 [shape = 'u8[65536]{0}', space=vmem, size = 0x10000, scoped, tag = 'input window, operand 7, single buffered']
    #allocation7 [shape = 'u8[65536]{0}', space=vmem, size = 0x10000, scoped, tag = 'input window, operand 9, single buffered']
    #allocation8 [shape = 's32[1]{0}', space=sflag, size = 0x4, scoped, tag = 'scoped memory for encoder_kimcnn_forward.5']
    %18 = vsyncpa [#allocation3], 0
    %19 = vsyncpa [#allocation5], 0
    %20 = vsyncpa [#allocation8], 0
    loop: start=0, step=1, limit=4
    $region2: #{encoder_kimcnn_forward.5} parent=1 // loop_pre_header
      _
    $region3: #{encoder_kimcnn_forward.5} parent=1 // loop_header
      %s22 = sphi 0, %s26
      %p23 = scmp.ge.s32.totalorder %s22, 4
      %s32 = sphi 0, %s34
      %s35 = sphi 0, %s32
      %s36 = sphi 0, %s35
      %s52 = sphi 0, %s36
      %s56 = sphi 0, %s56
      %s58 = sphi 0, %s56
      %s59 = sphi 0, %s58
      %s73 = sphi 0, %s59
      %s77 = sphi 0, %s77
      %s79 = sphi 0, %s77
      %s80 = sphi 0, %s79
      %s94 = sphi 0, %s80
      %s98 = sphi 0, %s98
      %s100 = sphi 0, %s98
      %s101 = sphi 0, %s100
      %s115 = sphi 0, %s101
      %s119 = sphi 0, %s119
      %s121 = sphi 0, %s119
      %s122 = sphi 0, %s121
      %s136 = sphi 0, %s122
      %s140 = sphi 0, %s140
      %s142 = sphi 0, %s140
      %s143 = sphi 0, %s142
      %s157 = sphi 0, %s143
      %s161 = sphi 0, %s161
      %s163 = sphi 0, %s161
      %s164 = sphi 0, %s163
      %s178 = sphi 0, %s164
      %s182 = sphi 0, %s182
      %s184 = sphi 0, %s182
      %s185 = sphi 0, %s184
      %s199 = sphi 0, %s185
      %s203 = sphi 0, %s203
      %s205 = sphi 0, %s203
      %s206 = sphi 0, %s205
      %s220 = sphi 0, %s206
      %s224 = sphi 0, %s224
      %s226 = sphi 0, %s224
      %s227 = sphi 0, %s226
      %s241 = sphi 0, %s227
      %s245 = sphi 0, %s245
      %s247 = sphi 0, %s245
      %s248 = sphi 0, %s247
      %s262 = sphi 0, %s248
      %s266 = sphi 0, %s266
      %s268 = sphi 0, %s266
      %s269 = sphi 0, %s268
      %s283 = sphi 0, %s269
      %s287 = sphi 0, %s287
      %s289 = sphi 0, %s287
      %s290 = sphi 0, %s289
      %s304 = sphi 0, %s290
      %s310 = sphi 0, %s312
      %s313 = sphi 0, %s310
      %s314 = sphi 0, %s313
      %s330 = sphi 0, %s314
    $region4: #{encoder_kimcnn_forward.5} parent=1 // loop_header_branch
      %25 = sbr.rel (%p23) target = $region8
    $region5: #{encoder_kimcnn_forward.5} parent=1 // loop_body
      %s27 = ssub.s32 %s22, 1
      %s28 = ssub.s32 %s22, 2
      %s29 = sadd.s32 %s22, 1
      %s30 = ssub.s32 %s22, %s29
      %p31 = scmp.eq.s32.totalorder %s30, 0
      %s33 = sadd.s32 %s32, 1
      %s34 = scalar_select %p31, %s32, %s33
      %p37 = pneg %p31
      %p38 = scmp.eq.s32.totalorder %s22, 1
      %p39 = por %p37, %p38
      %p40 = scmp.ne.s32.totalorder %s32, %s35
      %p41 = scmp.eq.s32.totalorder %s22, 0
      %p42 = por %p40, %p41
      %p43 = scmp.ne.s32.totalorder %s32, %s35
      %p44 = scmp.eq.s32.totalorder %s27, 1
      %p45 = por %p43, %p44
      %p46 = scmp.ne.s32.totalorder %s35, %s36
      %p47 = scmp.eq.s32.totalorder %s27, 0
      %p48 = por %p46, %p47
      %p49 = scmp.ne.s32.totalorder %s35, %s36
      %p50 = scmp.eq.s32.totalorder %s28, 1
      %p51 = por %p49, %p50
      %p53 = scmp.ne.s32.totalorder %s36, %s52
      %p54 = scmp.eq.s32.totalorder %s28, 0
      %p55 = por %p53, %p54
      %s57 = sadd.s32 %s56, 1
      %p60 = scmp.eq.s32.totalorder %s22, 1
      %p61 = scmp.ne.s32.totalorder %s56, %s58
      %p62 = scmp.eq.s32.totalorder %s22, 0
      %p63 = por %p61, %p62
      %p64 = scmp.ne.s32.totalorder %s56, %s58
      %p65 = scmp.eq.s32.totalorder %s27, 1
      %p66 = por %p64, %p65
      %p67 = scmp.ne.s32.totalorder %s58, %s59
      %p68 = scmp.eq.s32.totalorder %s27, 0
      %p69 = por %p67, %p68
      %p70 = scmp.ne.s32.totalorder %s58, %s59
      %p71 = scmp.eq.s32.totalorder %s28, 1
      %p72 = por %p70, %p71
      %p74 = scmp.ne.s32.totalorder %s59, %s73
      %p75 = scmp.eq.s32.totalorder %s28, 0
      %p76 = por %p74, %p75
      %s78 = sadd.s32 %s77, 1
      %p81 = scmp.eq.s32.totalorder %s22, 1
      %p82 = scmp.ne.s32.totalorder %s77, %s79
      %p83 = scmp.eq.s32.totalorder %s22, 0
      %p84 = por %p82, %p83
      %p85 = scmp.ne.s32.totalorder %s77, %s79
      %p86 = scmp.eq.s32.totalorder %s27, 1
      %p87 = por %p85, %p86
      %p88 = scmp.ne.s32.totalorder %s79, %s80
      %p89 = scmp.eq.s32.totalorder %s27, 0
      %p90 = por %p88, %p89
      %p91 = scmp.ne.s32.totalorder %s79, %s80
      %p92 = scmp.eq.s32.totalorder %s28, 1
      %p93 = por %p91, %p92
      %p95 = scmp.ne.s32.totalorder %s80, %s94
      %p96 = scmp.eq.s32.totalorder %s28, 0
      %p97 = por %p95, %p96
      %s99 = sadd.s32 %s98, 1
      %p102 = scmp.eq.s32.totalorder %s22, 1
      %p103 = scmp.ne.s32.totalorder %s98, %s100
      %p104 = scmp.eq.s32.totalorder %s22, 0
      %p105 = por %p103, %p104
      %p106 = scmp.ne.s32.totalorder %s98, %s100
      %p107 = scmp.eq.s32.totalorder %s27, 1
      %p108 = por %p106, %p107
      %p109 = scmp.ne.s32.totalorder %s100, %s101
      %p110 = scmp.eq.s32.totalorder %s27, 0
      %p111 = por %p109, %p110
      %p112 = scmp.ne.s32.totalorder %s100, %s101
      %p113 = scmp.eq.s32.totalorder %s28, 1
      %p114 = por %p112, %p113
      %p116 = scmp.ne.s32.totalorder %s101, %s115
      %p117 = scmp.eq.s32.totalorder %s28, 0
      %p118 = por %p116, %p117
      %s120 = sadd.s32 %s119, 1
      %p123 = scmp.eq.s32.totalorder %s22, 1
      %p124 = scmp.ne.s32.totalorder %s119, %s121
      %p125 = scmp.eq.s32.totalorder %s22, 0
      %p126 = por %p124, %p125
      %p127 = scmp.ne.s32.totalorder %s119, %s121
      %p128 = scmp.eq.s32.totalorder %s27, 1
      %p129 = por %p127, %p128
      %p130 = scmp.ne.s32.totalorder %s121, %s122
      %p131 = scmp.eq.s32.totalorder %s27, 0
      %p132 = por %p130, %p131
      %p133 = scmp.ne.s32.totalorder %s121, %s122
      %p134 = scmp.eq.s32.totalorder %s28, 1
      %p135 = por %p133, %p134
      %p137 = scmp.ne.s32.totalorder %s122, %s136
      %p138 = scmp.eq.s32.totalorder %s28, 0
      %p139 = por %p137, %p138
      %s141 = sadd.s32 %s140, 1
      %p144 = scmp.eq.s32.totalorder %s22, 1
      %p145 = scmp.ne.s32.totalorder %s140, %s142
      %p146 = scmp.eq.s32.totalorder %s22, 0
      %p147 = por %p145, %p146
      %p148 = scmp.ne.s32.totalorder %s140, %s142
      %p149 = scmp.eq.s32.totalorder %s27, 1
      %p150 = por %p148, %p149
      %p151 = scmp.ne.s32.totalorder %s142, %s143
      %p152 = scmp.eq.s32.totalorder %s27, 0
      %p153 = por %p151, %p152
      %p154 = scmp.ne.s32.totalorder %s142, %s143
      %p155 = scmp.eq.s32.totalorder %s28, 1
      %p156 = por %p154, %p155
      %p158 = scmp.ne.s32.totalorder %s143, %s157
      %p159 = scmp.eq.s32.totalorder %s28, 0
      %p160 = por %p158, %p159
      %s162 = sadd.s32 %s161, 1
      %p165 = scmp.eq.s32.totalorder %s22, 1
      %p166 = scmp.ne.s32.totalorder %s161, %s163
      %p167 = scmp.eq.s32.totalorder %s22, 0
      %p168 = por %p166, %p167
      %p169 = scmp.ne.s32.totalorder %s161, %s163
      %p170 = scmp.eq.s32.totalorder %s27, 1
      %p171 = por %p169, %p170
      %p172 = scmp.ne.s32.totalorder %s163, %s164
      %p173 = scmp.eq.s32.totalorder %s27, 0
      %p174 = por %p172, %p173
      %p175 = scmp.ne.s32.totalorder %s163, %s164
      %p176 = scmp.eq.s32.totalorder %s28, 1
      %p177 = por %p175, %p176
      %p179 = scmp.ne.s32.totalorder %s164, %s178
      %p180 = scmp.eq.s32.totalorder %s28, 0
      %p181 = por %p179, %p180
      %s183 = sadd.s32 %s182, 1
      %p186 = scmp.eq.s32.totalorder %s22, 1
      %p187 = scmp.ne.s32.totalorder %s182, %s184
      %p188 = scmp.eq.s32.totalorder %s22, 0
      %p189 = por %p187, %p188
      %p190 = scmp.ne.s32.totalorder %s182, %s184
      %p191 = scmp.eq.s32.totalorder %s27, 1
      %p192 = por %p190, %p191
      %p193 = scmp.ne.s32.totalorder %s184, %s185
      %p194 = scmp.eq.s32.totalorder %s27, 0
      %p195 = por %p193, %p194
      %p196 = scmp.ne.s32.totalorder %s184, %s185
      %p197 = scmp.eq.s32.totalorder %s28, 1
      %p198 = por %p196, %p197
      %p200 = scmp.ne.s32.totalorder %s185, %s199
      %p201 = scmp.eq.s32.totalorder %s28, 0
      %p202 = por %p200, %p201
      %s204 = sadd.s32 %s203, 1
      %p207 = scmp.eq.s32.totalorder %s22, 1
      %p208 = scmp.ne.s32.totalorder %s203, %s205
      %p209 = scmp.eq.s32.totalorder %s22, 0
      %p210 = por %p208, %p209
      %p211 = scmp.ne.s32.totalorder %s203, %s205
      %p212 = scmp.eq.s32.totalorder %s27, 1
      %p213 = por %p211, %p212
      %p214 = scmp.ne.s32.totalorder %s205, %s206
      %p215 = scmp.eq.s32.totalorder %s27, 0
      %p216 = por %p214, %p215
      %p217 = scmp.ne.s32.totalorder %s205, %s206
      %p218 = scmp.eq.s32.totalorder %s28, 1
      %p219 = por %p217, %p218
      %p221 = scmp.ne.s32.totalorder %s206, %s220
      %p222 = scmp.eq.s32.totalorder %s28, 0
      %p223 = por %p221, %p222
      %s225 = sadd.s32 %s224, 1
      %p228 = scmp.eq.s32.totalorder %s22, 1
      %p229 = scmp.ne.s32.totalorder %s224, %s226
      %p230 = scmp.eq.s32.totalorder %s22, 0
      %p231 = por %p229, %p230
      %p232 = scmp.ne.s32.totalorder %s224, %s226
      %p233 = scmp.eq.s32.totalorder %s27, 1
      %p234 = por %p232, %p233
      %p235 = scmp.ne.s32.totalorder %s226, %s227
      %p236 = scmp.eq.s32.totalorder %s27, 0
      %p237 = por %p235, %p236
      %p238 = scmp.ne.s32.totalorder %s226, %s227
      %p239 = scmp.eq.s32.totalorder %s28, 1
      %p240 = por %p238, %p239
      %p242 = scmp.ne.s32.totalorder %s227, %s241
      %p243 = scmp.eq.s32.totalorder %s28, 0
      %p244 = por %p242, %p243
      %s246 = sadd.s32 %s245, 1
      %p249 = scmp.eq.s32.totalorder %s22, 1
      %p250 = scmp.ne.s32.totalorder %s245, %s247
      %p251 = scmp.eq.s32.totalorder %s22, 0
      %p252 = por %p250, %p251
      %p253 = scmp.ne.s32.totalorder %s245, %s247
      %p254 = scmp.eq.s32.totalorder %s27, 1
      %p255 = por %p253, %p254
      %p256 = scmp.ne.s32.totalorder %s247, %s248
      %p257 = scmp.eq.s32.totalorder %s27, 0
      %p258 = por %p256, %p257
      %p259 = scmp.ne.s32.totalorder %s247, %s248
      %p260 = scmp.eq.s32.totalorder %s28, 1
      %p261 = por %p259, %p260
      %p263 = scmp.ne.s32.totalorder %s248, %s262
      %p264 = scmp.eq.s32.totalorder %s28, 0
      %p265 = por %p263, %p264
      %s267 = sadd.s32 %s266, 1
      %p270 = scmp.eq.s32.totalorder %s22, 1
      %p271 = scmp.ne.s32.totalorder %s266, %s268
      %p272 = scmp.eq.s32.totalorder %s22, 0
      %p273 = por %p271, %p272
      %p274 = scmp.ne.s32.totalorder %s266, %s268
      %p275 = scmp.eq.s32.totalorder %s27, 1
      %p276 = por %p274, %p275
      %p277 = scmp.ne.s32.totalorder %s268, %s269
      %p278 = scmp.eq.s32.totalorder %s27, 0
      %p279 = por %p277, %p278
      %p280 = scmp.ne.s32.totalorder %s268, %s269
      %p281 = scmp.eq.s32.totalorder %s28, 1
      %p282 = por %p280, %p281
      %p284 = scmp.ne.s32.totalorder %s269, %s283
      %p285 = scmp.eq.s32.totalorder %s28, 0
      %p286 = por %p284, %p285
      %s288 = sadd.s32 %s287, 1
      %p291 = scmp.eq.s32.totalorder %s22, 1
      %p292 = scmp.ne.s32.totalorder %s287, %s289
      %p293 = scmp.eq.s32.totalorder %s22, 0
      %p294 = por %p292, %p293
      %p295 = scmp.ne.s32.totalorder %s287, %s289
      %p296 = scmp.eq.s32.totalorder %s27, 1
      %p297 = por %p295, %p296
      %p298 = scmp.ne.s32.totalorder %s289, %s290
      %p299 = scmp.eq.s32.totalorder %s27, 0
      %p300 = por %p298, %p299
      %p301 = scmp.ne.s32.totalorder %s289, %s290
      %p302 = scmp.eq.s32.totalorder %s28, 1
      %p303 = por %p301, %p302
      %p305 = scmp.ne.s32.totalorder %s290, %s304
      %p306 = scmp.eq.s32.totalorder %s28, 0
      %p307 = por %p305, %p306
      %s308 = ssub.s32 %s22, %s29
      %p309 = scmp.eq.s32.totalorder %s308, 0
      %s311 = sadd.s32 %s310, 1
      %s312 = scalar_select %p309, %s310, %s311
      %p315 = pneg %p309
      %p316 = scmp.eq.s32.totalorder %s22, 1
      %p317 = por %p315, %p316
      %p318 = scmp.ne.s32.totalorder %s310, %s313
      %p319 = scmp.eq.s32.totalorder %s22, 0
      %p320 = por %p318, %p319
      %p321 = scmp.ne.s32.totalorder %s310, %s313
      %p322 = scmp.eq.s32.totalorder %s27, 1
      %p323 = por %p321, %p322
      %p324 = scmp.ne.s32.totalorder %s313, %s314
      %p325 = scmp.eq.s32.totalorder %s27, 0
      %p326 = por %p324, %p325
      %p327 = scmp.ne.s32.totalorder %s313, %s314
      %p328 = scmp.eq.s32.totalorder %s28, 1
      %p329 = por %p327, %p328
      %p331 = scmp.ne.s32.totalorder %s314, %s330
      %p332 = scmp.eq.s32.totalorder %s28, 0
      %p333 = por %p331, %p332
      %p334 = scmp.le.s32.totalorder 1, %s22
      %p335 = scmp.lt.s32.totalorder %s22, 3
      %p336 = pnand %p334, %p335
      %p337 = pneg %p336
      // Predicated region
      $region9: #{encoder_kimcnn_forward.5} parent=5 // pred_check
        _
      $region10: #{encoder_kimcnn_forward.5} parent=5 // pred_check_branch
        %339 = sbr.rel (%p336) target = $region12
      $region11: #{encoder_kimcnn_forward.5} parent=5 // pred_region
        %s340 = ssub.s32 %s22, 1
        // Predicated region
        $region13: #{encoder_kimcnn_forward.5} parent=11 // pred_check
          %p341 = pneg %p69
        $region14: #{encoder_kimcnn_forward.5} parent=11 // pred_check_branch
          %343 = sbr.rel (%p341) target = $region16
        $region15: #{encoder_kimcnn_forward.5} parent=11 // pred_region
          %345 = vsyncadd [#allocation3], 0
          %s346 = sshll.u32 %s1, 4
          %s347 = int_to_ptr.hbm [resolvable:$true] %s346
          %s348 = sshll.u32 [#allocation2], 4
          %s349 = int_to_ptr.vmem [resolvable:$true] %s348
          %354 = dma.hbm_to_vmem [thread:$0]  %s347, 3072, %s349, [#allocation3], 192, 192, 12
        $region16: #{encoder_kimcnn_forward.5} parent=11 // pred_fallthru
          _
        // Predicated region
        $region17: #{encoder_kimcnn_forward.5} parent=11 // pred_check
          %p355 = pneg %p90
        $region18: #{encoder_kimcnn_forward.5} parent=11 // pred_check_branch
          %357 = sbr.rel (%p355) target = $region20
        $region19: #{encoder_kimcnn_forward.5} parent=11 // pred_region
          _
        $region20: #{encoder_kimcnn_forward.5} parent=11 // pred_fallthru
          _
        // Predicated region
        $region21: #{encoder_kimcnn_forward.5} parent=11 // pred_check
          %p358 = pneg %p111
        $region22: #{encoder_kimcnn_forward.5} parent=11 // pred_check_branch
          %360 = sbr.rel (%p358) target = $region24
        $region23: #{encoder_kimcnn_forward.5} parent=11 // pred_region
          %362 = vsyncadd [#allocation5], 0
          %s363 = sshll.u32 %s3, 4
          %s364 = int_to_ptr.hbm [resolvable:$true] %s363
          %s365 = sshll.u32 [#allocation4], 4
          %s366 = int_to_ptr.vmem [resolvable:$true] %s365
          %371 = dma.hbm_to_vmem [thread:$0]  %s364, 1024, %s366, [#allocation5], 64, 64, 4
        $region24: #{encoder_kimcnn_forward.5} parent=11 // pred_fallthru
          _
        // Predicated region
        $region25: #{encoder_kimcnn_forward.5} parent=11 // pred_check
          %p372 = pneg %p132
        $region26: #{encoder_kimcnn_forward.5} parent=11 // pred_check_branch
          %374 = sbr.rel (%p372) target = $region28
        $region27: #{encoder_kimcnn_forward.5} parent=11 // pred_region
          _
        $region28: #{encoder_kimcnn_forward.5} parent=11 // pred_fallthru
          _
        // Predicated region
        $region29: #{encoder_kimcnn_forward.5} parent=11 // pred_check
          %p375 = pneg %p153
        $region30: #{encoder_kimcnn_forward.5} parent=11 // pred_check_branch
          %377 = sbr.rel (%p375) target = $region32
        $region31: #{encoder_kimcnn_forward.5} parent=11 // pred_region
          _
        $region32: #{encoder_kimcnn_forward.5} parent=11 // pred_fallthru
          _
        // Predicated region
        $region33: #{encoder_kimcnn_forward.5} parent=11 // pred_check
          %p378 = pneg %p174
        $region34: #{encoder_kimcnn_forward.5} parent=11 // pred_check_branch
          %380 = sbr.rel (%p378) target = $region36
        $region35: #{encoder_kimcnn_forward.5} parent=11 // pred_region
          _
        $region36: #{encoder_kimcnn_forward.5} parent=11 // pred_fallthru
          _
        // Predicated region
        $region37: #{encoder_kimcnn_forward.5} parent=11 // pred_check
          %p381 = pneg %p195
        $region38: #{encoder_kimcnn_forward.5} parent=11 // pred_check_branch
          %383 = sbr.rel (%p381) target = $region40
        $region39: #{encoder_kimcnn_forward.5} parent=11 // pred_region
          %385 = vsyncadd [#allocation5], 0
          %s386 = sshll.u32 %s7, 4
          %s387 = int_to_ptr.hbm [resolvable:$true] %s386
          %s388 = sshll.u32 [#allocation6], 4
          %s389 = int_to_ptr.vmem [resolvable:$true] %s388
          %394 = dma.hbm_to_vmem [thread:$0]  %s387, 2048, %s389, [#allocation5], 128, 128, 8
        $region40: #{encoder_kimcnn_forward.5} parent=11 // pred_fallthru
          _
        // Predicated region
        $region41: #{encoder_kimcnn_forward.5} parent=11 // pred_check
          %p395 = pneg %p216
        $region42: #{encoder_kimcnn_forward.5} parent=11 // pred_check_branch
          %397 = sbr.rel (%p395) target = $region44
        $region43: #{encoder_kimcnn_forward.5} parent=11 // pred_region
          _
        $region44: #{encoder_kimcnn_forward.5} parent=11 // pred_fallthru
          _
        // Predicated region
        $region45: #{encoder_kimcnn_forward.5} parent=11 // pred_check
          %p398 = pneg %p237
        $region46: #{encoder_kimcnn_forward.5} parent=11 // pred_check_branch
          %400 = sbr.rel (%p398) target = $region48
        $region47: #{encoder_kimcnn_forward.5} parent=11 // pred_region
          %402 = vsyncadd [#allocation8], 0
          %s403 = sshll.u32 %s9, 4
          %s404 = int_to_ptr.hbm [resolvable:$true] %s403
          %s405 = sshll.u32 [#allocation7], 4
          %s406 = int_to_ptr.vmem [resolvable:$true] %s405
          %411 = dma.hbm_to_vmem [thread:$0]  %s404, 2048, %s406, [#allocation8], 64, 64, 4
        $region48: #{encoder_kimcnn_forward.5} parent=11 // pred_fallthru
          _
        // Predicated region
        $region49: #{encoder_kimcnn_forward.5} parent=11 // pred_check
          %p412 = pneg %p258
        $region50: #{encoder_kimcnn_forward.5} parent=11 // pred_check_branch
          %414 = sbr.rel (%p412) target = $region52
        $region51: #{encoder_kimcnn_forward.5} parent=11 // pred_region
          _
        $region52: #{encoder_kimcnn_forward.5} parent=11 // pred_fallthru
          _
        // Predicated region
        $region53: #{encoder_kimcnn_forward.5} parent=11 // pred_check
          %p415 = pneg %p279
        $region54: #{encoder_kimcnn_forward.5} parent=11 // pred_check_branch
          %417 = sbr.rel (%p415) target = $region56
        $region55: #{encoder_kimcnn_forward.5} parent=11 // pred_region
          _
        $region56: #{encoder_kimcnn_forward.5} parent=11 // pred_fallthru
          _
        // Predicated region
        $region57: #{encoder_kimcnn_forward.5} parent=11 // pred_check
          %p418 = pneg %p300
        $region58: #{encoder_kimcnn_forward.5} parent=11 // pred_check_branch
          %420 = sbr.rel (%p418) target = $region60
        $region59: #{encoder_kimcnn_forward.5} parent=11 // pred_region
          _
        $region60: #{encoder_kimcnn_forward.5} parent=11 // pred_fallthru
          _
      $region12: #{encoder_kimcnn_forward.5} parent=5 // pred_fallthru
        _
      %p421 = scmp.lt.s32.totalorder %s22, 2
      // Predicated region
      $region61: #{encoder_kimcnn_forward.5} parent=5 // pred_check
        %p422 = pneg %p421
      $region62: #{encoder_kimcnn_forward.5} parent=5 // pred_check_branch
        %424 = sbr.rel (%p422) target = $region64
      $region63: #{encoder_kimcnn_forward.5} parent=5 // pred_region
        // Predicated region
        $region65: #{encoder_kimcnn_forward.5} parent=63 // pred_check
          %p425 = pneg %p42
        $region66: #{encoder_kimcnn_forward.5} parent=63 // pred_check_branch
          %427 = sbr.rel (%p425) target = $region68
        $region67: #{encoder_kimcnn_forward.5} parent=63 // pred_region
          %p428 = scmp.lt.s32.totalorder %s22, 1
          %s429 = scalar_select %p428, %s22, 1
          %s430 = smul.addr %s429, 2
          %s431 = smul.addr %s430, 8
          %s432 = scalar_lea.vmem %s0, %s431
        $region68: #{encoder_kimcnn_forward.5} parent=63 // pred_fallthru
          _
      $region64: #{encoder_kimcnn_forward.5} parent=5 // pred_fallthru
        _
      %p433 = scmp.le.s32.totalorder 1, %s22
      %p434 = scmp.lt.s32.totalorder %s22, 3
      %p435 = pnand %p433, %p434
      %p436 = pneg %p435
      // Predicated region
      $region69: #{encoder_kimcnn_forward.5} parent=5 // pred_check
        _
      $region70: #{encoder_kimcnn_forward.5} parent=5 // pred_check_branch
        %438 = sbr.rel (%p435) target = $region72
      $region71: #{encoder_kimcnn_forward.5} parent=5 // pred_region
        %s439 = ssub.s32 %s22, 1
        // Predicated region
        $region73: #{encoder_kimcnn_forward.5} parent=71 // pred_check
          %p440 = pneg %p69
        $region74: #{encoder_kimcnn_forward.5} parent=71 // pred_check_branch
          %442 = sbr.rel (%p440) target = $region76
        $region75: #{encoder_kimcnn_forward.5} parent=71 // pred_region
          %444 = dma.done [#allocation3], 3072
        $region76: #{encoder_kimcnn_forward.5} parent=71 // pred_fallthru
          _
        // Predicated region
        $region77: #{encoder_kimcnn_forward.5} parent=71 // pred_check
          %p445 = pneg %p111
        $region78: #{encoder_kimcnn_forward.5} parent=71 // pred_check_branch
          %447 = sbr.rel (%p445) target = $region80
        $region79: #{encoder_kimcnn_forward.5} parent=71 // pred_region
          %449 = dma.done [#allocation5], 1024
        $region80: #{encoder_kimcnn_forward.5} parent=71 // pred_fallthru
          _
        // Predicated region
        $region81: #{encoder_kimcnn_forward.5} parent=71 // pred_check
          %p450 = pneg %p195
        $region82: #{encoder_kimcnn_forward.5} parent=71 // pred_check_branch
          %452 = sbr.rel (%p450) target = $region84
        $region83: #{encoder_kimcnn_forward.5} parent=71 // pred_region
          %454 = dma.done [#allocation5], 2048
        $region84: #{encoder_kimcnn_forward.5} parent=71 // pred_fallthru
          _
        // Predicated region
        $region85: #{encoder_kimcnn_forward.5} parent=71 // pred_check
          %p455 = pneg %p237
        $region86: #{encoder_kimcnn_forward.5} parent=71 // pred_check_branch
          %457 = sbr.rel (%p455) target = $region88
        $region87: #{encoder_kimcnn_forward.5} parent=71 // pred_region
          %459 = dma.done [#allocation8], 2048
        $region88: #{encoder_kimcnn_forward.5} parent=71 // pred_fallthru
          _
        %p460 = scmp.lt.s32.totalorder %s27, 1
        %s461 = scalar_select %p460, %s27, 1
        %s462 = smul.addr %s461, 2
        %s463 = smul.addr %s462, 8
        %s464 = scalar_lea.vmem %s0, %s463
        %p465 = pneg %p48
        %p466 = pneg %p45
        %p467 = pneg %p69
        %p468 = pneg %p66
        %p469 = pneg %p90
        %p470 = pneg %p87
        %p471 = pneg %p111
        %p472 = pneg %p108
        %p473 = pneg %p132
        %p474 = pneg %p129
        %p475 = pneg %p153
        %p476 = pneg %p150
        %p477 = pneg %p174
        %p478 = pneg %p171
        %p479 = pneg %p195
        %p480 = pneg %p192
        %p481 = pneg %p216
        %p482 = pneg %p213
        %p483 = pneg %p237
        %p484 = pneg %p234
        %p485 = pneg %p258
        %p486 = pneg %p255
        %p487 = pneg %p279
        %p488 = pneg %p276
        %p489 = pneg %p300
        %p490 = pneg %p297
        %p491 = pneg %p326
        %p492 = pneg %p323
        %p493 = scmp.lt.s32.totalorder %s27, 1
        %s494 = scalar_select %p493, %s27, 1
        %s495 = smul.addr %s494, 2
        %s496 = smul.addr %s495, 8
        %s497 = scalar_lea.vmem %s13, %s496
        %p498 = scmp.lt.s32.totalorder %s27, 1
        %s499 = scalar_select %p498, %s27, 1
        %s500 = smul.addr %s499, 2
        %s501 = smul.addr %s500, 8
        %s502 = scalar_lea.vmem %s0, %s501
        %p503 = scmp.lt.s32.totalorder %s27, 1
        %s504 = scalar_select %p503, %s27, 1
        %s505 = smul.addr %s504, 2
        %s506 = smul.addr %s505, 8
        %s507 = scalar_lea.vmem %s13, %s506
        %v509 = vld [vmem:[%s502] sm:$0xff]
        %v510 = vld [vmem:[%s502 + $0x8] sm:$0xff]
        %v511 = vpack.c.bf16 %v510, %v509
        %v512 = vld [vmem:[#allocation2] sm:$0xff]
        %v513 = vld [vmem:[#allocation2 + $0x8] sm:$0xf]
        %v514 = vld [vmem:[#allocation2 + $0xc] sm:$0xff]
        %v515 = vld [vmem:[#allocation2 + $0x14] sm:$0xf]
        %v516 = vld [vmem:[#allocation2 + $0x18] sm:$0xff]
        %v517 = vld [vmem:[#allocation2 + $0x20] sm:$0xf]
        %v518 = vld [vmem:[#allocation2 + $0x24] sm:$0xff]
        %v519 = vld [vmem:[#allocation2 + $0x2c] sm:$0xf]
        %v520 = vld [vmem:[#allocation2 + $0x30] sm:$0xff]
        %v521 = vld [vmem:[#allocation2 + $0x38] sm:$0xf]
        %v522 = vld [vmem:[#allocation2 + $0x3c] sm:$0xff]
        %v523 = vld [vmem:[#allocation2 + $0x44] sm:$0xf]
        %v524 = vld [vmem:[#allocation2 + $0x48] sm:$0xff]
        %v525 = vld [vmem:[#allocation2 + $0x50] sm:$0xf]
        %v526 = vld [vmem:[#allocation2 + $0x54] sm:$0xff]
        %v527 = vld [vmem:[#allocation2 + $0x5c] sm:$0xf]
        %v528 = vld [vmem:[#allocation2 + $0x60] sm:$0xff]
        %v529 = vld [vmem:[#allocation2 + $0x68] sm:$0xf]
        %v530 = vld [vmem:[#allocation2 + $0x6c] sm:$0xff]
        %v531 = vld [vmem:[#allocation2 + $0x74] sm:$0xf]
        %v532 = vld [vmem:[#allocation2 + $0x78] sm:$0xff]
        %v533 = vld [vmem:[#allocation2 + $0x80] sm:$0xf]
        %v534 = vld [vmem:[#allocation2 + $0x84] sm:$0xff]
        %v535 = vld [vmem:[#allocation2 + $0x8c] sm:$0xf]
        %v536 = vld [vmem:[#allocation2 + $0x90] sm:$0xff]
        %v537 = vld [vmem:[#allocation2 + $0x98] sm:$0xf]
        %v538 = vld [vmem:[#allocation2 + $0x9c] sm:$0xff]
        %v539 = vld [vmem:[#allocation2 + $0xa4] sm:$0xf]
        %v540 = vld [vmem:[#allocation2 + $0xa8] sm:$0xff]
        %v541 = vld [vmem:[#allocation2 + $0xb0] sm:$0xf]
        %v542 = vld [vmem:[#allocation2 + $0xb4] sm:$0xff]
        %v543 = vld [vmem:[#allocation2 + $0xbc] sm:$0xf]
        %v544 = vld [vmem:[%s2] sm:$0x7]
        %v546 = vperm.slane %v544, 0
        %v547 = vperm.slane %v544, 1
        %v548 = vperm.slane %v544, 2
        %v584 = vunpack.c.l.b16 %v512
        %v585 = vunpack.c.h.b16 %v512
        %v586 = vunpack.c.l.b16 %v513
        %v587 = vunpack.c.l.b16 %v514
        %v588 = vunpack.c.h.b16 %v514
        %v589 = vunpack.c.l.b16 %v515
        %v590 = vunpack.c.l.b16 %v516
        %v591 = vunpack.c.h.b16 %v516
        %v592 = vunpack.c.l.b16 %v517
        %v593 = vunpack.c.l.b16 %v518
        %v594 = vunpack.c.h.b16 %v518
        %v595 = vunpack.c.l.b16 %v519
        %v596 = vunpack.c.l.b16 %v520
        %v597 = vunpack.c.h.b16 %v520
        %v598 = vunpack.c.l.b16 %v521
        %v599 = vunpack.c.l.b16 %v522
        %v600 = vunpack.c.h.b16 %v522
        %v601 = vunpack.c.l.b16 %v523
        %v602 = vunpack.c.l.b16 %v524
        %v603 = vunpack.c.h.b16 %v524
        %v604 = vunpack.c.l.b16 %v525
        %v605 = vunpack.c.l.b16 %v526
        %v606 = vunpack.c.h.b16 %v526
        %v607 = vunpack.c.l.b16 %v527
        %v608 = vunpack.c.l.b16 %v528
        %v609 = vunpack.c.h.b16 %v528
        %v610 = vunpack.c.l.b16 %v529
        %v611 = vunpack.c.l.b16 %v530
        %v612 = vunpack.c.h.b16 %v530
        %v613 = vunpack.c.l.b16 %v531
        %v614 = vunpack.c.l.b16 %v532
        %v615 = vunpack.c.h.b16 %v532
        %v616 = vunpack.c.l.b16 %v533
        %v617 = vunpack.c.l.b16 %v534
        %v618 = vunpack.c.h.b16 %v534
        %v619 = vunpack.c.l.b16 %v535
        %v620 = vunpack.c.l.b16 %v536
        %v621 = vunpack.c.h.b16 %v536
        %v622 = vunpack.c.l.b16 %v537
        %v623 = vunpack.c.l.b16 %v538
        %v624 = vunpack.c.h.b16 %v538
        %v625 = vunpack.c.l.b16 %v539
        %v626 = vunpack.c.l.b16 %v540
        %v627 = vunpack.c.h.b16 %v540
        %v628 = vunpack.c.l.b16 %v541
        %v629 = vunpack.c.l.b16 %v542
        %v630 = vunpack.c.h.b16 %v542
        %v631 = vunpack.c.l.b16 %v543
        %v632 = vpack.c.b16 %v587, %v584
        %v633 = vpack.c.b16 %v588, %v585
        %v634 = vpack.c.b16 %v589, %v586
        %v635 = vpack.c.b16 %v593, %v590
        %v636 = vpack.c.b16 %v594, %v591
        %v637 = vpack.c.b16 %v595, %v592
        %v638 = vpack.c.b16 %v599, %v596
        %v639 = vpack.c.b16 %v600, %v597
        %v640 = vpack.c.b16 %v601, %v598
        %v641 = vpack.c.b16 %v605, %v602
        %v642 = vpack.c.b16 %v606, %v603
        %v643 = vpack.c.b16 %v607, %v604
        %v644 = vpack.c.b16 %v611, %v608
        %v645 = vpack.c.b16 %v612, %v609
        %v646 = vpack.c.b16 %v613, %v610
        %v647 = vpack.c.b16 %v617, %v614
        %v648 = vpack.c.b16 %v618, %v615
        %v649 = vpack.c.b16 %v619, %v616
        %v650 = vpack.c.b16 %v623, %v620
        %v651 = vpack.c.b16 %v624, %v621
        %v652 = vpack.c.b16 %v625, %v622
        %v653 = vpack.c.b16 %v629, %v626
        %v654 = vpack.c.b16 %v630, %v627
        %v655 = vpack.c.b16 %v631, %v628
        %680 = vmatpush.bf16.msra.mxu0 %v653
        %681 = vmatpush.bf16.msra.mxu0 %v650
        %682 = vmatpush.bf16.msra.mxu0 %v647
        %683 = vmatpush.bf16.msra.mxu0 %v644
        %684 = vmatpush.bf16.msra.mxu0 %v641
        %685 = vmatpush.bf16.msra.mxu0 %v638
        %686 = vmatpush.bf16.msra.mxu0 %v635
        %687 = vmatpush.bf16.msra.mxu0 %v632
        %688 = vmatmul.bf16.gmra.mxu0 %v511
        %v689 = vpop.f32.mrf.mxu0
        %v690 = vadd.f32 %v546, %v689
        %v691 = vpop.f32.mrf.mxu0
        %v692 = vadd.f32 %v546, %v691
        %693 = vdwg.mxu0
        %694 = vmatpush.bf16.msra.mxu0 %v654
        %695 = vmatpush.bf16.msra.mxu0 %v651
        %696 = vmatpush.bf16.msra.mxu0 %v648
        %697 = vmatpush.bf16.msra.mxu0 %v645
        %698 = vmatpush.bf16.msra.mxu0 %v642
        %699 = vmatpush.bf16.msra.mxu0 %v639
        %700 = vmatpush.bf16.msra.mxu0 %v636
        %701 = vmatpush.bf16.msra.mxu0 %v633
        %702 = vmatmul.bf16.gmra.mxu0 %v511
        %v703 = vpop.f32.mrf.mxu0
        %v704 = vadd.f32 %v547, %v703
        %v705 = vpop.f32.mrf.mxu0
        %v706 = vadd.f32 %v547, %v705
        %707 = vdwg.mxu0
        %708 = vmatpush.bf16.msra.mxu0 %v655
        %709 = vmatpush.bf16.msra.mxu0 %v652
        %710 = vmatpush.bf16.msra.mxu0 %v649
        %711 = vmatpush.bf16.msra.mxu0 %v646
        %712 = vmatpush.bf16.msra.mxu0 %v643
        %713 = vmatpush.bf16.msra.mxu0 %v640
        %714 = vmatpush.bf16.msra.mxu0 %v637
        %715 = vmatpush.bf16.msra.mxu0 %v634
        %716 = vmatmul.bf16.gmra.mxu0 %v511
        %v717 = vpop.f32.mrf.mxu0
        %v718 = vadd.f32 %v548, %v717
        %v719 = vpop.f32.mrf.mxu0
        %v720 = vadd.f32 %v548, %v719
        %721 = vdwg.mxu0
        %v722 = vmul.f32 %v690, 0.25
        %v723 = vmul.f32 %v692, 0.25
        %v724 = vpack.c.bf16 %v723, %v722
        %v725 = vpack.c.bf16 %v706, %v704
        %v726 = vpack.c.bf16 %v720, %v718
        %vm727 = vcmask 130048
        %v729 = vsel %vm727, %v724, 0
        %v732 = vsel %vm727, %v725, 0
        %734 = vmatpush.bf16.xpose.msra.mxu0 0
        %735 = vmatpush.bf16.xpose.msra.mxu0 0
        %736 = vmatpush.bf16.xpose.msra.mxu0 0
        %737 = vmatpush.bf16.xpose.msra.mxu0 0
        %738 = vmatpush.bf16.xpose.msra.mxu0 0
        %739 = vmatpush.bf16.xpose.msra.mxu0 0
        %740 = vmatpush.bf16.xpose.msra.mxu0 0
        %741 = vmatpush.bf16.xpose.msra.mxu0 %v732
        %742 = vmatmul.bf16.gmra.mxu0 %v729
        %v743 = vpop.f32.mrf.mxu0
        %v744 = vadd.f32 0.0, %v743
        %v745 = vpop.f32.mrf.mxu0
        %v746 = vadd.f32 0.0, %v745
        %747 = vdwg.mxu0
        %v748 = vsel %vm727, %v744, -inf
        %749 = vmax.xlane.f32.xlu0 %v748
        %v750 = vpop.xlane.xlu0 %749
        %v751 = vsel %vm727, %v746, -inf
        %752 = vmax.xlane.f32.xlu0 %v751
        %v753 = vpop.xlane.xlu0 %752
        %v754 = vsub.f32 %v744, %v750
        %v755 = vsub.f32 %v746, %v753
        %v756 = vmul.f32 %v754, 1.442695
        %v757 = vpow.pop %v756
        %v758 = vmul.f32 %v755, 1.442695
        %v759 = vpow.pop %v758
        %v760 = vsel %vm727, %v757, 0.0
        %761 = vadd.xlane.f32.xlu0 %v760
        %v762 = vpop.xlane.xlu0 %761
        %v763 = vsel %vm727, %v759, 0.0
        %764 = vadd.xlane.f32.xlu0 %v763
        %v765 = vpop.xlane.xlu0 %764
        %v766 = vrcp.pop %v762
        %v767 = vrcp.pop %v765
        %v768 = vmul.f32 %v757, %v766
        %v769 = vmul.f32 %v759, %v767
        %v770 = vpack.c.bf16 %v769, %v768
        %v772 = vsel %vm727, %v770, 0
        %774 = vmatpush.bf16.msra.mxu0 0
        %775 = vmatpush.bf16.msra.mxu0 0
        %776 = vmatpush.bf16.msra.mxu0 0
        %777 = vmatpush.bf16.msra.mxu0 0
        %778 = vmatpush.bf16.msra.mxu0 0
        %779 = vmatpush.bf16.msra.mxu0 0
        %780 = vmatpush.bf16.msra.mxu0 0
        %781 = vmatpush.bf16.msra.mxu0 %v726
        %782 = vmatmul.bf16.gmra.mxu0 %v772
        %v783 = vpop.f32.mrf.mxu0
        %v784 = vadd.f32 0.0, %v783
        %v785 = vpop.f32.mrf.mxu0
        %v786 = vadd.f32 0.0, %v785
        %787 = vdwg.mxu0
        %789 = vrot.lane.b32.xlu0 %v724, 112
        %v790 = vpop.permute.xlu0 %789
        %792 = vrot.lane.b32.xlu0 %v725, 112
        %v793 = vpop.permute.xlu0 %792
        %v795 = vsel %vm727, %v790, 0
        %v798 = vsel %vm727, %v793, 0
        %800 = vmatpush.bf16.xpose.msra.mxu0 0
        %801 = vmatpush.bf16.xpose.msra.mxu0 0
        %802 = vmatpush.bf16.xpose.msra.mxu0 0
        %803 = vmatpush.bf16.xpose.msra.mxu0 0
        %804 = vmatpush.bf16.xpose.msra.mxu0 0
        %805 = vmatpush.bf16.xpose.msra.mxu0 0
        %806 = vmatpush.bf16.xpose.msra.mxu0 0
        %807 = vmatpush.bf16.xpose.msra.mxu0 %v798
        %808 = vmatmul.bf16.gmra.mxu0 %v795
        %v809 = vpop.f32.mrf.mxu0
        %v810 = vadd.f32 0.0, %v809
        %v811 = vpop.f32.mrf.mxu0
        %v812 = vadd.f32 0.0, %v811
        %813 = vdwg.mxu0
        %v814 = vsel %vm727, %v810, -inf
        %815 = vmax.xlane.f32.xlu0 %v814
        %v816 = vpop.xlane.xlu0 %815
        %v817 = vsel %vm727, %v812, -inf
        %818 = vmax.xlane.f32.xlu0 %v817
        %v819 = vpop.xlane.xlu0 %818
        %v820 = vsub.f32 %v810, %v816
        %v821 = vsub.f32 %v812, %v819
        %v822 = vmul.f32 %v820, 1.442695
        %v823 = vpow.pop %v822
        %v824 = vmul.f32 %v821, 1.442695
        %v825 = vpow.pop %v824
        %v826 = vsel %vm727, %v823, 0.0
        %827 = vadd.xlane.f32.xlu0 %v826
        %v828 = vpop.xlane.xlu0 %827
        %v829 = vsel %vm727, %v825, 0.0
        %830 = vadd.xlane.f32.xlu0 %v829
        %v831 = vpop.xlane.xlu0 %830
        %v832 = vrcp.pop %v828
        %v833 = vrcp.pop %v831
        %v834 = vmul.f32 %v823, %v832
        %v835 = vmul.f32 %v825, %v833
        %v836 = vpack.c.bf16 %v835, %v834
        %838 = vrot.lane.b32.xlu0 %v726, 112
        %v839 = vpop.permute.xlu0 %838
        %v842 = vsel %vm727, %v836, 0
        %844 = vmatpush.bf16.msra.mxu0 0
        %845 = vmatpush.bf16.msra.mxu0 0
        %846 = vmatpush.bf16.msra.mxu0 0
        %847 = vmatpush.bf16.msra.mxu0 0
        %848 = vmatpush.bf16.msra.mxu0 0
        %849 = vmatpush.bf16.msra.mxu0 0
        %850 = vmatpush.bf16.msra.mxu0 0
        %851 = vmatpush.bf16.msra.mxu0 %v839
        %852 = vmatmul.bf16.gmra.mxu0 %v842
        %v853 = vpop.f32.mrf.mxu0
        %v854 = vadd.f32 0.0, %v853
        %v855 = vpop.f32.mrf.mxu0
        %v856 = vadd.f32 0.0, %v855
        %857 = vdwg.mxu0
        %858 = vrot.lane.b32.xlu0 %v724, 96
        %v859 = vpop.permute.xlu0 %858
        %860 = vrot.lane.b32.xlu0 %v725, 96
        %v861 = vpop.permute.xlu0 %860
        %v863 = vsel %vm727, %v859, 0
        %v866 = vsel %vm727, %v861, 0
        %868 = vmatpush.bf16.xpose.msra.mxu0 0
        %869 = vmatpush.bf16.xpose.msra.mxu0 0
        %870 = vmatpush.bf16.xpose.msra.mxu0 0
        %871 = vmatpush.bf16.xpose.msra.mxu0 0
        %872 = vmatpush.bf16.xpose.msra.mxu0 0
        %873 = vmatpush.bf16.xpose.msra.mxu0 0
        %874 = vmatpush.bf16.xpose.msra.mxu0 0
        %875 = vmatpush.bf16.xpose.msra.mxu0 %v866
        %876 = vmatmul.bf16.gmra.mxu0 %v863
        %v877 = vpop.f32.mrf.mxu0
        %v878 = vadd.f32 0.0, %v877
        %v879 = vpop.f32.mrf.mxu0
        %v880 = vadd.f32 0.0, %v879
        %881 = vdwg.mxu0
        %v882 = vsel %vm727, %v878, -inf
        %883 = vmax.xlane.f32.xlu0 %v882
        %v884 = vpop.xlane.xlu0 %883
        %v885 = vsel %vm727, %v880, -inf
        %886 = vmax.xlane.f32.xlu0 %v885
        %v887 = vpop.xlane.xlu0 %886
        %v888 = vsub.f32 %v878, %v884
        %v889 = vsub.f32 %v880, %v887
        %v890 = vmul.f32 %v888, 1.442695
        %v891 = vpow.pop %v890
        %v892 = vmul.f32 %v889, 1.442695
        %v893 = vpow.pop %v892
        %v894 = vsel %vm727, %v891, 0.0
        %895 = vadd.xlane.f32.xlu0 %v894
        %v896 = vpop.xlane.xlu0 %895
        %v897 = vsel %vm727, %v893, 0.0
        %898 = vadd.xlane.f32.xlu0 %v897
        %v899 = vpop.xlane.xlu0 %898
        %v900 = vrcp.pop %v896
        %v901 = vrcp.pop %v899
        %v902 = vmul.f32 %v891, %v900
        %v903 = vmul.f32 %v893, %v901
        %v904 = vpack.c.bf16 %v903, %v902
        %905 = vrot.lane.b32.xlu0 %v726, 96
        %v906 = vpop.permute.xlu0 %905
        %v909 = vsel %vm727, %v904, 0
        %911 = vmatpush.bf16.msra.mxu0 0
        %912 = vmatpush.bf16.msra.mxu0 0
        %913 = vmatpush.bf16.msra.mxu0 0
        %914 = vmatpush.bf16.msra.mxu0 0
        %915 = vmatpush.bf16.msra.mxu0 0
        %916 = vmatpush.bf16.msra.mxu0 0
        %917 = vmatpush.bf16.msra.mxu0 0
        %918 = vmatpush.bf16.msra.mxu0 %v906
        %919 = vmatmul.bf16.gmra.mxu0 %v909
        %v920 = vpop.f32.mrf.mxu0
        %v921 = vadd.f32 0.0, %v920
        %v922 = vpop.f32.mrf.mxu0
        %v923 = vadd.f32 0.0, %v922
        %924 = vdwg.mxu0
        %925 = vrot.lane.b32.xlu0 %v724, 80
        %v926 = vpop.permute.xlu0 %925
        %927 = vrot.lane.b32.xlu0 %v725, 80
        %v928 = vpop.permute.xlu0 %927
        %v930 = vsel %vm727, %v926, 0
        %v933 = vsel %vm727, %v928, 0
        %935 = vmatpush.bf16.xpose.msra.mxu0 0
        %936 = vmatpush.bf16.xpose.msra.mxu0 0
        %937 = vmatpush.bf16.xpose.msra.mxu0 0
        %938 = vmatpush.bf16.xpose.msra.mxu0 0
        %939 = vmatpush.bf16.xpose.msra.mxu0 0
        %940 = vmatpush.bf16.xpose.msra.mxu0 0
        %941 = vmatpush.bf16.xpose.msra.mxu0 0
        %942 = vmatpush.bf16.xpose.msra.mxu0 %v933
        %943 = vmatmul.bf16.gmra.mxu0 %v930
        %v944 = vpop.f32.mrf.mxu0
        %v945 = vadd.f32 0.0, %v944
        %v946 = vpop.f32.mrf.mxu0
        %v947 = vadd.f32 0.0, %v946
        %948 = vdwg.mxu0
        %v949 = vsel %vm727, %v945, -inf
        %950 = vmax.xlane.f32.xlu0 %v949
        %v951 = vpop.xlane.xlu0 %950
        %v952 = vsel %vm727, %v947, -inf
        %953 = vmax.xlane.f32.xlu0 %v952
        %v954 = vpop.xlane.xlu0 %953
        %v955 = vsub.f32 %v945, %v951
        %v956 = vsub.f32 %v947, %v954
        %v957 = vmul.f32 %v955, 1.442695
        %v958 = vpow.pop %v957
        %v959 = vmul.f32 %v956, 1.442695
        %v960 = vpow.pop %v959
        %v961 = vsel %vm727, %v958, 0.0
        %962 = vadd.xlane.f32.xlu0 %v961
        %v963 = vpop.xlane.xlu0 %962
        %v964 = vsel %vm727, %v960, 0.0
        %965 = vadd.xlane.f32.xlu0 %v964
        %v966 = vpop.xlane.xlu0 %965
        %v967 = vrcp.pop %v963
        %v968 = vrcp.pop %v966
        %v969 = vmul.f32 %v958, %v967
        %v970 = vmul.f32 %v960, %v968
        %v971 = vpack.c.bf16 %v970, %v969
        %972 = vrot.lane.b32.xlu0 %v726, 80
        %v973 = vpop.permute.xlu0 %972
        %v976 = vsel %vm727, %v971, 0
        %978 = vmatpush.bf16.msra.mxu0 0
        %979 = vmatpush.bf16.msra.mxu0 0
        %980 = vmatpush.bf16.msra.mxu0 0
        %981 = vmatpush.bf16.msra.mxu0 0
        %982 = vmatpush.bf16.msra.mxu0 0
        %983 = vmatpush.bf16.msra.mxu0 0
        %984 = vmatpush.bf16.msra.mxu0 0
        %985 = vmatpush.bf16.msra.mxu0 %v973
        %986 = vmatmul.bf16.gmra.mxu0 %v976
        %v987 = vpop.f32.mrf.mxu0
        %v988 = vadd.f32 0.0, %v987
        %v989 = vpop.f32.mrf.mxu0
        %v990 = vadd.f32 0.0, %v989
        %991 = vdwg.mxu0
        %992 = vrot.lane.b32.xlu0 %v724, 64
        %v993 = vpop.permute.xlu0 %992
        %994 = vrot.lane.b32.xlu0 %v725, 64
        %v995 = vpop.permute.xlu0 %994
        %v997 = vsel %vm727, %v993, 0
        %v1000 = vsel %vm727, %v995, 0
        %1002 = vmatpush.bf16.xpose.msra.mxu0 0
        %1003 = vmatpush.bf16.xpose.msra.mxu0 0
        %1004 = vmatpush.bf16.xpose.msra.mxu0 0
        %1005 = vmatpush.bf16.xpose.msra.mxu0 0
        %1006 = vmatpush.bf16.xpose.msra.mxu0 0
        %1007 = vmatpush.bf16.xpose.msra.mxu0 0
        %1008 = vmatpush.bf16.xpose.msra.mxu0 0
        %1009 = vmatpush.bf16.xpose.msra.mxu0 %v1000
        %1010 = vmatmul.bf16.gmra.mxu0 %v997
        %v1011 = vpop.f32.mrf.mxu0
        %v1012 = vadd.f32 0.0, %v1011
        %v1013 = vpop.f32.mrf.mxu0
        %v1014 = vadd.f32 0.0, %v1013
        %1015 = vdwg.mxu0
        %v1016 = vsel %vm727, %v1012, -inf
        %1017 = vmax.xlane.f32.xlu0 %v1016
        %v1018 = vpop.xlane.xlu0 %1017
        %v1019 = vsel %vm727, %v1014, -inf
        %1020 = vmax.xlane.f32.xlu0 %v1019
        %v1021 = vpop.xlane.xlu0 %1020
        %v1022 = vsub.f32 %v1012, %v1018
        %v1023 = vsub.f32 %v1014, %v1021
        %v1024 = vmul.f32 %v1022, 1.442695
        %v1025 = vpow.pop %v1024
        %v1026 = vmul.f32 %v1023, 1.442695
        %v1027 = vpow.pop %v1026
        %v1028 = vsel %vm727, %v1025, 0.0
        %1029 = vadd.xlane.f32.xlu0 %v1028
        %v1030 = vpop.xlane.xlu0 %1029
        %v1031 = vsel %vm727, %v1027, 0.0
        %1032 = vadd.xlane.f32.xlu0 %v1031
        %v1033 = vpop.xlane.xlu0 %1032
        %v1034 = vrcp.pop %v1030
        %v1035 = vrcp.pop %v1033
        %v1036 = vmul.f32 %v1025, %v1034
        %v1037 = vmul.f32 %v1027, %v1035
        %v1038 = vpack.c.bf16 %v1037, %v1036
        %1039 = vrot.lane.b32.xlu0 %v726, 64
        %v1040 = vpop.permute.xlu0 %1039
        %v1043 = vsel %vm727, %v1038, 0
        %1045 = vmatpush.bf16.msra.mxu0 0
        %1046 = vmatpush.bf16.msra.mxu0 0
        %1047 = vmatpush.bf16.msra.mxu0 0
        %1048 = vmatpush.bf16.msra.mxu0 0
        %1049 = vmatpush.bf16.msra.mxu0 0
        %1050 = vmatpush.bf16.msra.mxu0 0
        %1051 = vmatpush.bf16.msra.mxu0 0
        %1052 = vmatpush.bf16.msra.mxu0 %v1040
        %1053 = vmatmul.bf16.gmra.mxu0 %v1043
        %v1054 = vpop.f32.mrf.mxu0
        %v1055 = vadd.f32 0.0, %v1054
        %v1056 = vpop.f32.mrf.mxu0
        %v1057 = vadd.f32 0.0, %v1056
        %1058 = vdwg.mxu0
        %1059 = vrot.lane.b32.xlu0 %v724, 48
        %v1060 = vpop.permute.xlu0 %1059
        %1061 = vrot.lane.b32.xlu0 %v725, 48
        %v1062 = vpop.permute.xlu0 %1061
        %v1064 = vsel %vm727, %v1060, 0
        %v1067 = vsel %vm727, %v1062, 0
        %1069 = vmatpush.bf16.xpose.msra.mxu0 0
        %1070 = vmatpush.bf16.xpose.msra.mxu0 0
        %1071 = vmatpush.bf16.xpose.msra.mxu0 0
        %1072 = vmatpush.bf16.xpose.msra.mxu0 0
        %1073 = vmatpush.bf16.xpose.msra.mxu0 0
        %1074 = vmatpush.bf16.xpose.msra.mxu0 0
        %1075 = vmatpush.bf16.xpose.msra.mxu0 0
        %1076 = vmatpush.bf16.xpose.msra.mxu0 %v1067
        %1077 = vmatmul.bf16.gmra.mxu0 %v1064
        %v1078 = vpop.f32.mrf.mxu0
        %v1079 = vadd.f32 0.0, %v1078
        %v1080 = vpop.f32.mrf.mxu0
        %v1081 = vadd.f32 0.0, %v1080
        %1082 = vdwg.mxu0
        %v1083 = vsel %vm727, %v1079, -inf
        %1084 = vmax.xlane.f32.xlu0 %v1083
        %v1085 = vpop.xlane.xlu0 %1084
        %v1086 = vsel %vm727, %v1081, -inf
        %1087 = vmax.xlane.f32.xlu0 %v1086
        %v1088 = vpop.xlane.xlu0 %1087
        %v1089 = vsub.f32 %v1079, %v1085
        %v1090 = vsub.f32 %v1081, %v1088
        %v1091 = vmul.f32 %v1089, 1.442695
        %v1092 = vpow.pop %v1091
        %v1093 = vmul.f32 %v1090, 1.442695
        %v1094 = vpow.pop %v1093
        %v1095 = vsel %vm727, %v1092, 0.0
        %1096 = vadd.xlane.f32.xlu0 %v1095
        %v1097 = vpop.xlane.xlu0 %1096
        %v1098 = vsel %vm727, %v1094, 0.0
        %1099 = vadd.xlane.f32.xlu0 %v1098
        %v1100 = vpop.xlane.xlu0 %1099
        %v1101 = vrcp.pop %v1097
        %v1102 = vrcp.pop %v1100
        %v1103 = vmul.f32 %v1092, %v1101
        %v1104 = vmul.f32 %v1094, %v1102
        %v1105 = vpack.c.bf16 %v1104, %v1103
        %1106 = vrot.lane.b32.xlu0 %v726, 48
        %v1107 = vpop.permute.xlu0 %1106
        %v1110 = vsel %vm727, %v1105, 0
        %1112 = vmatpush.bf16.msra.mxu0 0
        %1113 = vmatpush.bf16.msra.mxu0 0
        %1114 = vmatpush.bf16.msra.mxu0 0
        %1115 = vmatpush.bf16.msra.mxu0 0
        %1116 = vmatpush.bf16.msra.mxu0 0
        %1117 = vmatpush.bf16.msra.mxu0 0
        %1118 = vmatpush.bf16.msra.mxu0 0
        %1119 = vmatpush.bf16.msra.mxu0 %v1107
        %1120 = vmatmul.bf16.gmra.mxu0 %v1110
        %v1121 = vpop.f32.mrf.mxu0
        %v1122 = vadd.f32 0.0, %v1121
        %v1123 = vpop.f32.mrf.mxu0
        %v1124 = vadd.f32 0.0, %v1123
        %1125 = vdwg.mxu0
        %1126 = vrot.lane.b32.xlu0 %v724, 32
        %v1127 = vpop.permute.xlu0 %1126
        %1128 = vrot.lane.b32.xlu0 %v725, 32
        %v1129 = vpop.permute.xlu0 %1128
        %v1131 = vsel %vm727, %v1127, 0
        %v1134 = vsel %vm727, %v1129, 0
        %1136 = vmatpush.bf16.xpose.msra.mxu0 0
        %1137 = vmatpush.bf16.xpose.msra.mxu0 0
        %1138 = vmatpush.bf16.xpose.msra.mxu0 0
        %1139 = vmatpush.bf16.xpose.msra.mxu0 0
        %1140 = vmatpush.bf16.xpose.msra.mxu0 0
        %1141 = vmatpush.bf16.xpose.msra.mxu0 0
        %1142 = vmatpush.bf16.xpose.msra.mxu0 0
        %1143 = vmatpush.bf16.xpose.msra.mxu0 %v1134
        %1144 = vmatmul.bf16.gmra.mxu0 %v1131
        %v1145 = vpop.f32.mrf.mxu0
        %v1146 = vadd.f32 0.0, %v1145
        %v1147 = vpop.f32.mrf.mxu0
        %v1148 = vadd.f32 0.0, %v1147
        %1149 = vdwg.mxu0
        %v1150 = vsel %vm727, %v1146, -inf
        %1151 = vmax.xlane.f32.xlu0 %v1150
        %v1152 = vpop.xlane.xlu0 %1151
        %v1153 = vsel %vm727, %v1148, -inf
        %1154 = vmax.xlane.f32.xlu0 %v1153
        %v1155 = vpop.xlane.xlu0 %1154
        %v1156 = vsub.f32 %v1146, %v1152
        %v1157 = vsub.f32 %v1148, %v1155
        %v1158 = vmul.f32 %v1156, 1.442695
        %v1159 = vpow.pop %v1158
        %v1160 = vmul.f32 %v1157, 1.442695
        %v1161 = vpow.pop %v1160
        %v1162 = vsel %vm727, %v1159, 0.0
        %1163 = vadd.xlane.f32.xlu0 %v1162
        %v1164 = vpop.xlane.xlu0 %1163
        %v1165 = vsel %vm727, %v1161, 0.0
        %1166 = vadd.xlane.f32.xlu0 %v1165
        %v1167 = vpop.xlane.xlu0 %1166
        %v1168 = vrcp.pop %v1164
        %v1169 = vrcp.pop %v1167
        %v1170 = vmul.f32 %v1159, %v1168
        %v1171 = vmul.f32 %v1161, %v1169
        %v1172 = vpack.c.bf16 %v1171, %v1170
        %1173 = vrot.lane.b32.xlu0 %v726, 32
        %v1174 = vpop.permute.xlu0 %1173
        %v1177 = vsel %vm727, %v1172, 0
        %1179 = vmatpush.bf16.msra.mxu0 0
        %1180 = vmatpush.bf16.msra.mxu0 0
        %1181 = vmatpush.bf16.msra.mxu0 0
        %1182 = vmatpush.bf16.msra.mxu0 0
        %1183 = vmatpush.bf16.msra.mxu0 0
        %1184 = vmatpush.bf16.msra.mxu0 0
        %1185 = vmatpush.bf16.msra.mxu0 0
        %1186 = vmatpush.bf16.msra.mxu0 %v1174
        %1187 = vmatmul.bf16.gmra.mxu0 %v1177
        %v1188 = vpop.f32.mrf.mxu0
        %v1189 = vadd.f32 0.0, %v1188
        %v1190 = vpop.f32.mrf.mxu0
        %v1191 = vadd.f32 0.0, %v1190
        %1192 = vdwg.mxu0
        %1193 = vrot.lane.b32.xlu0 %v724, 16
        %v1194 = vpop.permute.xlu0 %1193
        %1195 = vrot.lane.b32.xlu0 %v725, 16
        %v1196 = vpop.permute.xlu0 %1195
        %v1198 = vsel %vm727, %v1194, 0
        %v1201 = vsel %vm727, %v1196, 0
        %1203 = vmatpush.bf16.xpose.msra.mxu0 0
        %1204 = vmatpush.bf16.xpose.msra.mxu0 0
        %1205 = vmatpush.bf16.xpose.msra.mxu0 0
        %1206 = vmatpush.bf16.xpose.msra.mxu0 0
        %1207 = vmatpush.bf16.xpose.msra.mxu0 0
        %1208 = vmatpush.bf16.xpose.msra.mxu0 0
        %1209 = vmatpush.bf16.xpose.msra.mxu0 0
        %1210 = vmatpush.bf16.xpose.msra.mxu0 %v1201
        %1211 = vmatmul.bf16.gmra.mxu0 %v1198
        %v1212 = vpop.f32.mrf.mxu0
        %v1213 = vadd.f32 0.0, %v1212
        %v1214 = vpop.f32.mrf.mxu0
        %v1215 = vadd.f32 0.0, %v1214
        %1216 = vdwg.mxu0
        %v1217 = vsel %vm727, %v1213, -inf
        %1218 = vmax.xlane.f32.xlu0 %v1217
        %v1219 = vpop.xlane.xlu0 %1218
        %v1220 = vsel %vm727, %v1215, -inf
        %1221 = vmax.xlane.f32.xlu0 %v1220
        %v1222 = vpop.xlane.xlu0 %1221
        %v1223 = vsub.f32 %v1213, %v1219
        %v1224 = vsub.f32 %v1215, %v1222
        %v1225 = vmul.f32 %v1223, 1.442695
        %v1226 = vpow.pop %v1225
        %v1227 = vmul.f32 %v1224, 1.442695
        %v1228 = vpow.pop %v1227
        %v1229 = vsel %vm727, %v1226, 0.0
        %1230 = vadd.xlane.f32.xlu0 %v1229
        %v1231 = vpop.xlane.xlu0 %1230
        %v1232 = vsel %vm727, %v1228, 0.0
        %1233 = vadd.xlane.f32.xlu0 %v1232
        %v1234 = vpop.xlane.xlu0 %1233
        %v1235 = vrcp.pop %v1231
        %v1236 = vrcp.pop %v1234
        %v1237 = vmul.f32 %v1226, %v1235
        %v1238 = vmul.f32 %v1228, %v1236
        %v1239 = vpack.c.bf16 %v1238, %v1237
        %1240 = vrot.lane.b32.xlu0 %v726, 16
        %v1241 = vpop.permute.xlu0 %1240
        %v1244 = vsel %vm727, %v1239, 0
        %1246 = vmatpush.bf16.msra.mxu0 0
        %1247 = vmatpush.bf16.msra.mxu0 0
        %1248 = vmatpush.bf16.msra.mxu0 0
        %1249 = vmatpush.bf16.msra.mxu0 0
        %1250 = vmatpush.bf16.msra.mxu0 0
        %1251 = vmatpush.bf16.msra.mxu0 0
        %1252 = vmatpush.bf16.msra.mxu0 0
        %1253 = vmatpush.bf16.msra.mxu0 %v1241
        %1254 = vmatmul.bf16.gmra.mxu0 %v1244
        %v1255 = vpop.f32.mrf.mxu0
        %v1256 = vadd.f32 0.0, %v1255
        %v1257 = vpop.f32.mrf.mxu0
        %v1258 = vadd.f32 0.0, %v1257
        %1259 = vdwg.mxu0
        %1262 = vrot.lane.b32.xlu0 %v854, 16
        %v1263 = vpop.permute.xlu0 %1262
        %1264 = vrot.lane.b32.xlu0 %v856, 16
        %v1265 = vpop.permute.xlu0 %1264
        %1270 = vrot.lane.b32.xlu0 %v921, 32
        %v1271 = vpop.permute.xlu0 %1270
        %1272 = vrot.lane.b32.xlu0 %v923, 32
        %v1273 = vpop.permute.xlu0 %1272
        %1278 = vrot.lane.b32.xlu0 %v988, 48
        %v1279 = vpop.permute.xlu0 %1278
        %1280 = vrot.lane.b32.xlu0 %v990, 48
        %v1281 = vpop.permute.xlu0 %1280
        %1286 = vrot.lane.b32.xlu0 %v1055, 64
        %v1287 = vpop.permute.xlu0 %1286
        %1288 = vrot.lane.b32.xlu0 %v1057, 64
        %v1289 = vpop.permute.xlu0 %1288
        %1294 = vrot.lane.b32.xlu0 %v1122, 80
        %v1295 = vpop.permute.xlu0 %1294
        %1296 = vrot.lane.b32.xlu0 %v1124, 80
        %v1297 = vpop.permute.xlu0 %1296
        %1302 = vrot.lane.b32.xlu0 %v1189, 96
        %v1303 = vpop.permute.xlu0 %1302
        %1304 = vrot.lane.b32.xlu0 %v1191, 96
        %v1305 = vpop.permute.xlu0 %1304
        %1310 = vrot.lane.b32.xlu0 %v1256, 112
        %v1311 = vpop.permute.xlu0 %1310
        %1312 = vrot.lane.b32.xlu0 %v1258, 112
        %v1313 = vpop.permute.xlu0 %1312
        %v1316 = vsel %vm727, %v784, %v1263
        %v1317 = vsel %vm727, %v786, %v1265
        %vm1318 = vcmask 261120
        %v1319 = vsel %vm1318, %v1316, %v1271
        %v1320 = vsel %vm1318, %v1317, %v1273
        %vm1321 = vcmask 392192
        %v1322 = vsel %vm1321, %v1319, %v1279
        %v1323 = vsel %vm1321, %v1320, %v1281
        %vm1324 = vcmask 523264
        %v1325 = vsel %vm1324, %v1322, %v1287
        %v1326 = vsel %vm1324, %v1323, %v1289
        %vm1327 = vcmask 654336
        %v1328 = vsel %vm1327, %v1325, %v1295
        %v1329 = vsel %vm1327, %v1326, %v1297
        %vm1330 = vcmask 785408
        %v1331 = vsel %vm1330, %v1328, %v1303
        %v1332 = vsel %vm1330, %v1329, %v1305
        %vm1333 = vcmask 916480
        %v1334 = vsel %vm1333, %v1331, %v1311
        %v1335 = vsel %vm1333, %v1332, %v1313
        %v1336 = vpack.c.bf16 %v1335, %v1334
        %v1337 = vld [vmem:[#allocation4] sm:$0xf]
        %v1338 = vld [vmem:[#allocation4 + $0x4] sm:$0xf]
        %v1339 = vld [vmem:[#allocation4 + $0x8] sm:$0xf]
        %v1340 = vld [vmem:[#allocation4 + $0xc] sm:$0xf]
        %v1341 = vld [vmem:[#allocation4 + $0x10] sm:$0xf]
        %v1342 = vld [vmem:[#allocation4 + $0x14] sm:$0xf]
        %v1343 = vld [vmem:[#allocation4 + $0x18] sm:$0xf]
        %v1344 = vld [vmem:[#allocation4 + $0x1c] sm:$0xf]
        %v1345 = vld [vmem:[#allocation4 + $0x20] sm:$0xf]
        %v1346 = vld [vmem:[#allocation4 + $0x24] sm:$0xf]
        %v1347 = vld [vmem:[#allocation4 + $0x28] sm:$0xf]
        %v1348 = vld [vmem:[#allocation4 + $0x2c] sm:$0xf]
        %v1349 = vld [vmem:[#allocation4 + $0x30] sm:$0xf]
        %v1350 = vld [vmem:[#allocation4 + $0x34] sm:$0xf]
        %v1351 = vld [vmem:[#allocation4 + $0x38] sm:$0xf]
        %v1352 = vld [vmem:[#allocation4 + $0x3c] sm:$0xf]
        %v1353 = vld [vmem:[%s4] sm:$0x1]
        %v1355 = vperm.slane %v1353, 0
        %v1373 = vunpack.c.l.b16 %v1337
        %v1374 = vunpack.c.l.b16 %v1338
        %v1375 = vunpack.c.l.b16 %v1339
        %v1376 = vunpack.c.l.b16 %v1340
        %v1377 = vunpack.c.l.b16 %v1341
        %v1378 = vunpack.c.l.b16 %v1342
        %v1379 = vunpack.c.l.b16 %v1343
        %v1380 = vunpack.c.l.b16 %v1344
        %v1381 = vunpack.c.l.b16 %v1345
        %v1382 = vunpack.c.l.b16 %v1346
        %v1383 = vunpack.c.l.b16 %v1347
        %v1384 = vunpack.c.l.b16 %v1348
        %v1385 = vunpack.c.l.b16 %v1349
        %v1386 = vunpack.c.l.b16 %v1350
        %v1387 = vunpack.c.l.b16 %v1351
        %v1388 = vunpack.c.l.b16 %v1352
        %v1389 = vpack.c.b16 %v1374, %v1373
        %v1390 = vpack.c.b16 %v1376, %v1375
        %v1391 = vpack.c.b16 %v1378, %v1377
        %v1392 = vpack.c.b16 %v1380, %v1379
        %v1393 = vpack.c.b16 %v1382, %v1381
        %v1394 = vpack.c.b16 %v1384, %v1383
        %v1395 = vpack.c.b16 %v1386, %v1385
        %v1396 = vpack.c.b16 %v1388, %v1387
        %1405 = vmatpush.bf16.msra.mxu0 %v1396
        %1406 = vmatpush.bf16.msra.mxu0 %v1395
        %1407 = vmatpush.bf16.msra.mxu0 %v1394
        %1408 = vmatpush.bf16.msra.mxu0 %v1393
        %1409 = vmatpush.bf16.msra.mxu0 %v1392
        %1410 = vmatpush.bf16.msra.mxu0 %v1391
        %1411 = vmatpush.bf16.msra.mxu0 %v1390
        %1412 = vmatpush.bf16.msra.mxu0 %v1389
        %1413 = vmatmul.bf16.gmra.mxu0 %v1336
        %v1414 = vpop.f32.mrf.mxu0
        %v1415 = vadd.f32 %v1355, %v1414
        %v1416 = vpop.f32.mrf.mxu0
        %v1417 = vadd.f32 %v1355, %v1416
        %1418 = vdwg.mxu0
        %v1419 = vadd.f32 %v509, %v1415
        %v1420 = vadd.f32 %v510, %v1417
        %1421 = vadd.xlane.f32.xlu0 %v1419
        %v1422 = vpop.xlane.xlu0 %1421
        %1423 = vadd.xlane.f32.xlu0 %v1420
        %v1424 = vpop.xlane.xlu0 %1423
        %v1425 = vrcp.pop 128.0
        %v1426 = vmul.f32 128.0, %v1425
        %v1427 = vsub.f32 1.0, %v1426
        %v1428 = vmul.f32 %v1425, %v1427
        %v1429 = vadd.f32 %v1425, %v1428
        %vm1430 = vweird.f32 %v1425
        %v1431 = vsel %vm1430, %v1425, %v1429
        %v1432 = vmul.f32 %v1422, %v1431
        %v1433 = vmul.f32 %v1424, %v1431
        %v1434 = vsub.f32 %v1419, %v1432
        %v1435 = vsub.f32 %v1420, %v1433
        %v1436 = vmul.f32 %v1434, %v1434
        %v1437 = vmul.f32 %v1435, %v1435
        %1438 = vadd.xlane.f32.xlu0 %v1436
        %v1439 = vpop.xlane.xlu0 %1438
        %1440 = vadd.xlane.f32.xlu0 %v1437
        %v1441 = vpop.xlane.xlu0 %1440
        %v1442 = vmul.f32 %v1439, %v1431
        %v1443 = vmul.f32 %v1441, %v1431
        %v1444 = vadd.f32 %v1442, 1e-05
        %v1445 = vadd.f32 %v1443, 1e-05
        %v1446 = vrsqrt.pop %v1444
        %v1447 = vmul.f32 %v1446, %v1444
        %v1448 = vmul.f32 %v1447, %v1446
        %v1449 = vmul.f32 0.5, %v1448
        %v1450 = vsub.f32 1.5, %v1449
        %v1451 = vmul.f32 %v1446, %v1450
        %vm1452 = vweird.f32 %v1444
        %vm1453 = vweird.f32 %v1446
        %vm1454 = vmor %vm1452, %vm1453
        %v1455 = vsel %vm1454, %v1446, %v1451
        %v1456 = vrsqrt.pop %v1445
        %v1457 = vmul.f32 %v1456, %v1445
        %v1458 = vmul.f32 %v1457, %v1456
        %v1459 = vmul.f32 0.5, %v1458
        %v1460 = vsub.f32 1.5, %v1459
        %v1461 = vmul.f32 %v1456, %v1460
        %vm1462 = vweird.f32 %v1445
        %vm1463 = vweird.f32 %v1456
        %vm1464 = vmor %vm1462, %vm1463
        %v1465 = vsel %vm1464, %v1456, %v1461
        %v1466 = vmul.f32 %v1434, %v1455
        %v1467 = vmul.f32 %v1435, %v1465
        %v1468 = vld [vmem:[%s5] sm:$0x1]
        %v1470 = vperm.slane %v1468, 0
        %v1472 = vmul.f32 %v1466, %v1470
        %v1473 = vmul.f32 %v1467, %v1470
        %v1474 = vld [vmem:[%s6] sm:$0x1]
        %v1476 = vperm.slane %v1474, 0
        %v1478 = vadd.f32 %v1472, %v1476
        %v1479 = vadd.f32 %v1473, %v1476
        %v1480 = vpack.c.bf16 %v1479, %v1478
        %v1481 = vld [vmem:[#allocation6] sm:$0xff]
        %v1482 = vld [vmem:[#allocation6 + $0x8] sm:$0xff]
        %v1483 = vld [vmem:[#allocation6 + $0x10] sm:$0xff]
        %v1484 = vld [vmem:[#allocation6 + $0x18] sm:$0xff]
        %v1485 = vld [vmem:[#allocation6 + $0x20] sm:$0xff]
        %v1486 = vld [vmem:[#allocation6 + $0x28] sm:$0xff]
        %v1487 = vld [vmem:[#allocation6 + $0x30] sm:$0xff]
        %v1488 = vld [vmem:[#allocation6 + $0x38] sm:$0xff]
        %v1489 = vld [vmem:[#allocation6 + $0x40] sm:$0xff]
        %v1490 = vld [vmem:[#allocation6 + $0x48] sm:$0xff]
        %v1491 = vld [vmem:[#allocation6 + $0x50] sm:$0xff]
        %v1492 = vld [vmem:[#allocation6 + $0x58] sm:$0xff]
        %v1493 = vld [vmem:[#allocation6 + $0x60] sm:$0xff]
        %v1494 = vld [vmem:[#allocation6 + $0x68] sm:$0xff]
        %v1495 = vld [vmem:[#allocation6 + $0x70] sm:$0xff]
        %v1496 = vld [vmem:[#allocation6 + $0x78] sm:$0xff]
        %v1497 = vld [vmem:[%s8] sm:$0x3]
        %v1499 = vperm.slane %v1497, 0
        %v1500 = vperm.slane %v1497, 1
        %v1519 = vunpack.c.l.b16 %v1481
        %v1520 = vunpack.c.h.b16 %v1481
        %v1521 = vunpack.c.l.b16 %v1482
        %v1522 = vunpack.c.h.b16 %v1482
        %v1523 = vunpack.c.l.b16 %v1483
        %v1524 = vunpack.c.h.b16 %v1483
        %v1525 = vunpack.c.l.b16 %v1484
        %v1526 = vunpack.c.h.b16 %v1484
        %v1527 = vunpack.c.l.b16 %v1485
        %v1528 = vunpack.c.h.b16 %v1485
        %v1529 = vunpack.c.l.b16 %v1486
        %v1530 = vunpack.c.h.b16 %v1486
        %v1531 = vunpack.c.l.b16 %v1487
        %v1532 = vunpack.c.h.b16 %v1487
        %v1533 = vunpack.c.l.b16 %v1488
        %v1534 = vunpack.c.h.b16 %v1488
        %v1535 = vunpack.c.l.b16 %v1489
        %v1536 = vunpack.c.h.b16 %v1489
        %v1537 = vunpack.c.l.b16 %v1490
        %v1538 = vunpack.c.h.b16 %v1490
        %v1539 = vunpack.c.l.b16 %v1491
        %v1540 = vunpack.c.h.b16 %v1491
        %v1541 = vunpack.c.l.b16 %v1492
        %v1542 = vunpack.c.h.b16 %v1492
        %v1543 = vunpack.c.l.b16 %v1493
        %v1544 = vunpack.c.h.b16 %v1493
        %v1545 = vunpack.c.l.b16 %v1494
        %v1546 = vunpack.c.h.b16 %v1494
        %v1547 = vunpack.c.l.b16 %v1495
        %v1548 = vunpack.c.h.b16 %v1495
        %v1549 = vunpack.c.l.b16 %v1496
        %v1550 = vunpack.c.h.b16 %v1496
        %v1551 = vpack.c.b16 %v1521, %v1519
        %v1552 = vpack.c.b16 %v1522, %v1520
        %v1553 = vpack.c.b16 %v1525, %v1523
        %v1554 = vpack.c.b16 %v1526, %v1524
        %v1555 = vpack.c.b16 %v1529, %v1527
        %v1556 = vpack.c.b16 %v1530, %v1528
        %v1557 = vpack.c.b16 %v1533, %v1531
        %v1558 = vpack.c.b16 %v1534, %v1532
        %v1559 = vpack.c.b16 %v1537, %v1535
        %v1560 = vpack.c.b16 %v1538, %v1536
        %v1561 = vpack.c.b16 %v1541, %v1539
        %v1562 = vpack.c.b16 %v1542, %v1540
        %v1563 = vpack.c.b16 %v1545, %v1543
        %v1564 = vpack.c.b16 %v1546, %v1544
        %v1565 = vpack.c.b16 %v1549, %v1547
        %v1566 = vpack.c.b16 %v1550, %v1548
        %1583 = vmatpush.bf16.msra.mxu0 %v1565
        %1584 = vmatpush.bf16.msra.mxu0 %v1563
        %1585 = vmatpush.bf16.msra.mxu0 %v1561
        %1586 = vmatpush.bf16.msra.mxu0 %v1559
        %1587 = vmatpush.bf16.msra.mxu0 %v1557
        %1588 = vmatpush.bf16.msra.mxu0 %v1555
        %1589 = vmatpush.bf16.msra.mxu0 %v1553
        %1590 = vmatpush.bf16.msra.mxu0 %v1551
        %1591 = vmatmul.bf16.gmra.mxu0 %v1480
        %v1592 = vpop.f32.mrf.mxu0
        %v1593 = vadd.f32 %v1499, %v1592
        %v1594 = vpop.f32.mrf.mxu0
        %v1595 = vadd.f32 %v1499, %v1594
        %1596 = vdwg.mxu0
        %1597 = vmatpush.bf16.msra.mxu0 %v1566
        %1598 = vmatpush.bf16.msra.mxu0 %v1564
        %1599 = vmatpush.bf16.msra.mxu0 %v1562
        %1600 = vmatpush.bf16.msra.mxu0 %v1560
        %1601 = vmatpush.bf16.msra.mxu0 %v1558
        %1602 = vmatpush.bf16.msra.mxu0 %v1556
        %1603 = vmatpush.bf16.msra.mxu0 %v1554
        %1604 = vmatpush.bf16.msra.mxu0 %v1552
        %1605 = vmatmul.bf16.gmra.mxu0 %v1480
        %v1606 = vpop.f32.mrf.mxu0
        %v1607 = vadd.f32 %v1500, %v1606
        %v1608 = vpop.f32.mrf.mxu0
        %v1609 = vadd.f32 %v1500, %v1608
        %1610 = vdwg.mxu0
        %v1611 = vmax.f32 %v1593, 0.0
        %v1612 = vmax.f32 %v1607, 0.0
        %v1613 = vmax.f32 %v1595, 0.0
        %v1614 = vmax.f32 %v1609, 0.0
        %v1615 = vpack.c.bf16 %v1613, %v1611
        %v1616 = vpack.c.bf16 %v1614, %v1612
        %v1617 = vld [vmem:[#allocation7] sm:$0xf]
        %v1618 = vld [vmem:[#allocation7 + $0x4] sm:$0xf]
        %v1619 = vld [vmem:[#allocation7 + $0x8] sm:$0xf]
        %v1620 = vld [vmem:[#allocation7 + $0xc] sm:$0xf]
        %v1621 = vld [vmem:[#allocation7 + $0x10] sm:$0xf]
        %v1622 = vld [vmem:[#allocation7 + $0x14] sm:$0xf]
        %v1623 = vld [vmem:[#allocation7 + $0x18] sm:$0xf]
        %v1624 = vld [vmem:[#allocation7 + $0x1c] sm:$0xf]
        %v1625 = vld [vmem:[#allocation7 + $0x20] sm:$0xf]
        %v1626 = vld [vmem:[#allocation7 + $0x24] sm:$0xf]
        %v1627 = vld [vmem:[#allocation7 + $0x28] sm:$0xf]
        %v1628 = vld [vmem:[#allocation7 + $0x2c] sm:$0xf]
        %v1629 = vld [vmem:[#allocation7 + $0x30] sm:$0xf]
        %v1630 = vld [vmem:[#allocation7 + $0x34] sm:$0xf]
        %v1631 = vld [vmem:[#allocation7 + $0x38] sm:$0xf]
        %v1632 = vld [vmem:[#allocation7 + $0x3c] sm:$0xf]
        %v1633 = vld [vmem:[#allocation7 + $0x40] sm:$0xf]
        %v1634 = vld [vmem:[#allocation7 + $0x44] sm:$0xf]
        %v1635 = vld [vmem:[#allocation7 + $0x48] sm:$0xf]
        %v1636 = vld [vmem:[#allocation7 + $0x4c] sm:$0xf]
        %v1637 = vld [vmem:[#allocation7 + $0x50] sm:$0xf]
        %v1638 = vld [vmem:[#allocation7 + $0x54] sm:$0xf]
        %v1639 = vld [vmem:[#allocation7 + $0x58] sm:$0xf]
        %v1640 = vld [vmem:[#allocation7 + $0x5c] sm:$0xf]
        %v1641 = vld [vmem:[#allocation7 + $0x60] sm:$0xf]
        %v1642 = vld [vmem:[#allocation7 + $0x64] sm:$0xf]
        %v1643 = vld [vmem:[#allocation7 + $0x68] sm:$0xf]
        %v1644 = vld [vmem:[#allocation7 + $0x6c] sm:$0xf]
        %v1645 = vld [vmem:[#allocation7 + $0x70] sm:$0xf]
        %v1646 = vld [vmem:[#allocation7 + $0x74] sm:$0xf]
        %v1647 = vld [vmem:[#allocation7 + $0x78] sm:$0xf]
        %v1648 = vld [vmem:[#allocation7 + $0x7c] sm:$0xf]
        %v1649 = vld [vmem:[%s10] sm:$0x1]
        %v1651 = vperm.slane %v1649, 0
        %v1685 = vunpack.c.l.b16 %v1617
        %v1686 = vunpack.c.l.b16 %v1618
        %v1687 = vunpack.c.l.b16 %v1619
        %v1688 = vunpack.c.l.b16 %v1620
        %v1689 = vunpack.c.l.b16 %v1621
        %v1690 = vunpack.c.l.b16 %v1622
        %v1691 = vunpack.c.l.b16 %v1623
        %v1692 = vunpack.c.l.b16 %v1624
        %v1693 = vunpack.c.l.b16 %v1625
        %v1694 = vunpack.c.l.b16 %v1626
        %v1695 = vunpack.c.l.b16 %v1627
        %v1696 = vunpack.c.l.b16 %v1628
        %v1697 = vunpack.c.l.b16 %v1629
        %v1698 = vunpack.c.l.b16 %v1630
        %v1699 = vunpack.c.l.b16 %v1631
        %v1700 = vunpack.c.l.b16 %v1632
        %v1701 = vunpack.c.l.b16 %v1633
        %v1702 = vunpack.c.l.b16 %v1634
        %v1703 = vunpack.c.l.b16 %v1635
        %v1704 = vunpack.c.l.b16 %v1636
        %v1705 = vunpack.c.l.b16 %v1637
        %v1706 = vunpack.c.l.b16 %v1638
        %v1707 = vunpack.c.l.b16 %v1639
        %v1708 = vunpack.c.l.b16 %v1640
        %v1709 = vunpack.c.l.b16 %v1641
        %v1710 = vunpack.c.l.b16 %v1642
        %v1711 = vunpack.c.l.b16 %v1643
        %v1712 = vunpack.c.l.b16 %v1644
        %v1713 = vunpack.c.l.b16 %v1645
        %v1714 = vunpack.c.l.b16 %v1646
        %v1715 = vunpack.c.l.b16 %v1647
        %v1716 = vunpack.c.l.b16 %v1648
        %v1717 = vpack.c.b16 %v1686, %v1685
        %v1718 = vpack.c.b16 %v1688, %v1687
        %v1719 = vpack.c.b16 %v1690, %v1689
        %v1720 = vpack.c.b16 %v1692, %v1691
        %v1721 = vpack.c.b16 %v1694, %v1693
        %v1722 = vpack.c.b16 %v1696, %v1695
        %v1723 = vpack.c.b16 %v1698, %v1697
        %v1724 = vpack.c.b16 %v1700, %v1699
        %v1725 = vpack.c.b16 %v1702, %v1701
        %v1726 = vpack.c.b16 %v1704, %v1703
        %v1727 = vpack.c.b16 %v1706, %v1705
        %v1728 = vpack.c.b16 %v1708, %v1707
        %v1729 = vpack.c.b16 %v1710, %v1709
        %v1730 = vpack.c.b16 %v1712, %v1711
        %v1731 = vpack.c.b16 %v1714, %v1713
        %v1732 = vpack.c.b16 %v1716, %v1715
        %1749 = vmatpush.bf16.msra.mxu0 %v1724
        %1750 = vmatpush.bf16.msra.mxu0 %v1723
        %1751 = vmatpush.bf16.msra.mxu0 %v1722
        %1752 = vmatpush.bf16.msra.mxu0 %v1721
        %1753 = vmatpush.bf16.msra.mxu0 %v1720
        %1754 = vmatpush.bf16.msra.mxu0 %v1719
        %1755 = vmatpush.bf16.msra.mxu0 %v1718
        %1756 = vmatpush.bf16.msra.mxu0 %v1717
        %1757 = vmatmul.bf16.gmra.mxu0 %v1615
        %v1758 = vpop.f32.mrf.mxu0
        %v1759 = vadd.f32 %v1651, %v1758
        %v1760 = vpop.f32.mrf.mxu0
        %v1761 = vadd.f32 %v1651, %v1760
        %1762 = vdwg.mxu0
        %1763 = vmatpush.bf16.msra.mxu0 %v1732
        %1764 = vmatpush.bf16.msra.mxu0 %v1731
        %1765 = vmatpush.bf16.msra.mxu0 %v1730
        %1766 = vmatpush.bf16.msra.mxu0 %v1729
        %1767 = vmatpush.bf16.msra.mxu0 %v1728
        %1768 = vmatpush.bf16.msra.mxu0 %v1727
        %1769 = vmatpush.bf16.msra.mxu0 %v1726
        %1770 = vmatpush.bf16.msra.mxu0 %v1725
        %1771 = vmatmul.bf16.gmra.mxu0 %v1616
        %v1772 = vpop.f32.mrf.mxu0
        %v1773 = vadd.f32 %v1759, %v1772
        %v1774 = vpop.f32.mrf.mxu0
        %v1775 = vadd.f32 %v1761, %v1774
        %1776 = vdwg.mxu0
        %v1777 = vadd.f32 %v1478, %v1773
        %v1778 = vadd.f32 %v1479, %v1775
        %1779 = vadd.xlane.f32.xlu0 %v1777
        %v1780 = vpop.xlane.xlu0 %1779
        %1781 = vadd.xlane.f32.xlu0 %v1778
        %v1782 = vpop.xlane.xlu0 %1781
        %v1783 = vmul.f32 %v1780, %v1431
        %v1784 = vmul.f32 %v1782, %v1431
        %v1785 = vsub.f32 %v1777, %v1783
        %v1786 = vsub.f32 %v1778, %v1784
        %v1787 = vmul.f32 %v1785, %v1785
        %v1788 = vmul.f32 %v1786, %v1786
        %1789 = vadd.xlane.f32.xlu0 %v1787
        %v1790 = vpop.xlane.xlu0 %1789
        %1791 = vadd.xlane.f32.xlu0 %v1788
        %v1792 = vpop.xlane.xlu0 %1791
        %v1793 = vmul.f32 %v1790, %v1431
        %v1794 = vmul.f32 %v1792, %v1431
        %v1795 = vadd.f32 %v1793, 1e-05
        %v1796 = vadd.f32 %v1794, 1e-05
        %v1797 = vrsqrt.pop %v1795
        %v1798 = vmul.f32 %v1797, %v1795
        %v1799 = vmul.f32 %v1798, %v1797
        %v1800 = vmul.f32 0.5, %v1799
        %v1801 = vsub.f32 1.5, %v1800
        %v1802 = vmul.f32 %v1797, %v1801
        %vm1803 = vweird.f32 %v1795
        %vm1804 = vweird.f32 %v1797
        %vm1805 = vmor %vm1803, %vm1804
        %v1806 = vsel %vm1805, %v1797, %v1802
        %v1807 = vrsqrt.pop %v1796
        %v1808 = vmul.f32 %v1807, %v1796
        %v1809 = vmul.f32 %v1808, %v1807
        %v1810 = vmul.f32 0.5, %v1809
        %v1811 = vsub.f32 1.5, %v1810
        %v1812 = vmul.f32 %v1807, %v1811
        %vm1813 = vweird.f32 %v1796
        %vm1814 = vweird.f32 %v1807
        %vm1815 = vmor %vm1813, %vm1814
        %v1816 = vsel %vm1815, %v1807, %v1812
        %v1817 = vmul.f32 %v1785, %v1806
        %v1818 = vmul.f32 %v1786, %v1816
        %v1819 = vld [vmem:[%s11] sm:$0x1]
        %v1821 = vperm.slane %v1819, 0
        %v1823 = vmul.f32 %v1817, %v1821
        %v1824 = vmul.f32 %v1818, %v1821
        %v1825 = vld [vmem:[%s12] sm:$0x1]
        %v1827 = vperm.slane %v1825, 0
        %v1829 = vadd.f32 %v1823, %v1827
        %v1830 = vadd.f32 %v1824, %v1827
        %1831 = vst [vmem:[%s507] sm:$0xff] %v1829
        %1832 = vst [vmem:[%s507 + $0x8] sm:$0xff] %v1830
        %p1833 = scmp.lt.s32.totalorder %s27, 1
        %s1834 = scalar_select %p1833, %s27, 1
        %s1835 = smul.addr %s1834, 2
        %s1836 = smul.addr %s1835, 8
        %s1837 = scalar_lea.vmem %s13, %s1836
        // Predicated region
        $region89: #{encoder_kimcnn_forward.5} parent=71 // pred_check
          %p1838 = pneg %p323
        $region90: #{encoder_kimcnn_forward.5} parent=71 // pred_check_branch
          %1840 = sbr.rel (%p1838) target = $region92
        $region91: #{encoder_kimcnn_forward.5} parent=71 // pred_region
          _
        $region92: #{encoder_kimcnn_forward.5} parent=71 // pred_fallthru
          _
      $region72: #{encoder_kimcnn_forward.5} parent=5 // pred_fallthru
        _
      %p1841 = scmp.le.s32.totalorder 2, %s22
      // Predicated region
      $region93: #{encoder_kimcnn_forward.5} parent=5 // pred_check
        %p1842 = pneg %p1841
      $region94: #{encoder_kimcnn_forward.5} parent=5 // pred_check_branch
        %1844 = sbr.rel (%p1842) target = $region96
      $region95: #{encoder_kimcnn_forward.5} parent=5 // pred_region
        %s1845 = ssub.s32 %s22, 2
        // Predicated region
        $region97: #{encoder_kimcnn_forward.5} parent=95 // pred_check
          %p1846 = pneg %p329
        $region98: #{encoder_kimcnn_forward.5} parent=95 // pred_check_branch
          %1848 = sbr.rel (%p1846) target = $region100
        $region99: #{encoder_kimcnn_forward.5} parent=95 // pred_region
          %p1849 = scmp.lt.s32.totalorder %s28, 1
          %s1850 = scalar_select %p1849, %s28, 1
          %s1851 = smul.addr %s1850, 2
          %s1852 = smul.addr %s1851, 8
          %s1853 = scalar_lea.vmem %s13, %s1852
        $region100: #{encoder_kimcnn_forward.5} parent=95 // pred_fallthru
          _
      $region96: #{encoder_kimcnn_forward.5} parent=5 // pred_fallthru
        _
    $region6: #{encoder_kimcnn_forward.5} parent=1 // loop_footer
      %s26 = sadd.s32 1, %s22
    $region7: #{encoder_kimcnn_forward.5} parent=1 // loop_footer_branch
      %21 = sbr.rel target = $region3
    $region8: #{encoder_kimcnn_forward.5} parent=1 // loop_exit
      _
    %1854 = vsyncpa [#allocation3], 1
    %s1855 = scalar_lea.sflag [#allocation3], 1
    %1856 = vsyncpa %s1855, 1
    %1857 = vsyncpa [#allocation5], 1
    %1858 = vsyncpa [#allocation8], 1

// kernel: encoder_kimcnn_forward.7
$region0: #{encoder_kimcnn_forward.7}
  #allocation0 [shape = 'u32[]', space=smem, size = 0x4, offset = 0x4, fixed_abs, tag = 'smem constant byte address 0x4 - core index']
  #allocation1 [shape = 'u32[72,128]{1,0:T(1,128)}', space=vmem, size = 0x9000, scoped, tag = 'internal scratch']
  %s0 = inlined_call_operand.vmem [shape: f32[2,16,128], index: 0, kind: input, shape index: {}]
  %s1 = inlined_call_operand.hbm [shape: bf16[256,128], index: 1, kind: input, shape index: {}]
  %s2 = inlined_call_operand.hbm [shape: f32[1,128], index: 2, kind: input, shape index: {}]
  %s3 = inlined_call_operand.hbm [shape: bf16[384,128], index: 3, kind: input, shape index: {}]
  %s4 = inlined_call_operand.hbm [shape: f32[1,128], index: 4, kind: input, shape index: {}]
  %s5 = inlined_call_operand.hbm [shape: bf16[512,128], index: 5, kind: input, shape index: {}]
  %s6 = inlined_call_operand.hbm [shape: f32[1,128], index: 6, kind: input, shape index: {}]
  %s7 = inlined_call_operand.hbm [shape: bf16[640,128], index: 7, kind: input, shape index: {}]
  %s8 = inlined_call_operand.hbm [shape: f32[1,128], index: 8, kind: input, shape index: {}]
  %s9 = inlined_call_operand.hbm [shape: bf16[512,128], index: 9, kind: input, shape index: {}]
  %s10 = inlined_call_operand.hbm [shape: f32[1,128], index: 10, kind: input, shape index: {}]
  %s11 = inlined_call_operand.hbm [shape: f32[2,128], index: 11, kind: output, shape index: {}]
  %s12 = sld [smem:[#allocation0]]
  $region94: #{encoder_kimcnn_forward.7} parent=0
    _
  %s14 = ssub.s32 1, %s12
  %s15 = scalar_select 0, %s14, %s12
  $region1: #{encoder_kimcnn_forward.7} parent=0
    #allocation2 [shape = 'u8[65536]{0}', space=vmem, size = 0x10000, scoped, tag = 'input window, operand 1, single buffered']
    #allocation3 [shape = 's32[1]{0}', space=sflag, size = 0x4, scoped, tag = 'scoped memory for encoder_kimcnn_forward.7']
    #allocation4 [shape = 's32[1]{0}', space=sflag, size = 0x4, scoped, tag = 'scoped memory for encoder_kimcnn_forward.7']
    #allocation5 [shape = 'u8[512]{0}', space=vmem, size = 0x400, scoped, tag = 'input window, operand 2, single buffered']
    #allocation6 [shape = 's32[1]{0}', space=sflag, size = 0x4, scoped, tag = 'scoped memory for encoder_kimcnn_forward.7']
    #allocation7 [shape = 'u8[98304]{0}', space=vmem, size = 0x18000, scoped, tag = 'input window, operand 3, single buffered']
    #allocation8 [shape = 'u8[512]{0}', space=vmem, size = 0x400, scoped, tag = 'input window, operand 4, single buffered']
    #allocation9 [shape = 's32[1]{0}', space=sflag, size = 0x4, scoped, tag = 'scoped memory for encoder_kimcnn_forward.7']
    #allocation10 [shape = 'u8[131072]{0}', space=vmem, size = 0x20000, scoped, tag = 'input window, operand 5, single buffered']
    #allocation11 [shape = 'u8[512]{0}', space=vmem, size = 0x400, scoped, tag = 'input window, operand 6, single buffered']
    #allocation12 [shape = 's32[1]{0}', space=sflag, size = 0x4, scoped, tag = 'scoped memory for encoder_kimcnn_forward.7']
    #allocation13 [shape = 'u8[163840]{0}', space=vmem, size = 0x28000, scoped, tag = 'input window, operand 7, single buffered']
    #allocation14 [shape = 'u8[512]{0}', space=vmem, size = 0x400, scoped, tag = 'input window, operand 8, single buffered']
    #allocation15 [shape = 's32[1]{0}', space=sflag, size = 0x4, scoped, tag = 'scoped memory for encoder_kimcnn_forward.7']
    #allocation16 [shape = 'u8[131072]{0}', space=vmem, size = 0x20000, scoped, tag = 'input window, operand 9, single buffered']
    #allocation17 [shape = 'u8[512]{0}', space=vmem, size = 0x400, scoped, tag = 'input window, operand 10, single buffered']
    #allocation18 [shape = 's32[1]{0}', space=sflag, size = 0x4, scoped, tag = 'scoped memory for encoder_kimcnn_forward.7']
    #allocation19 [shape = 'u8[1024]{0}', space=vmem, size = 0x400, scoped, tag = 'output window, operand 0, single buffered']
    %16 = vsyncpa [#allocation3], 0
    %17 = vsyncpa [#allocation6], 0
    %18 = vsyncpa [#allocation9], 0
    %19 = vsyncpa [#allocation12], 0
    %20 = vsyncpa [#allocation15], 0
    %21 = vsyncpa [#allocation18], 0
    %22 = vsyncpa [#allocation4], 0
    // Predicated region
    $region2: #{encoder_kimcnn_forward.7} parent=1 // pred_check
      _
    $region3: #{encoder_kimcnn_forward.7} parent=1 // pred_check_branch
      %24 = sbr.rel (0) target = $region5
    $region4: #{encoder_kimcnn_forward.7} parent=1 // pred_region
      _
    $region5: #{encoder_kimcnn_forward.7} parent=1 // pred_fallthru
      _
    // Predicated region
    $region6: #{encoder_kimcnn_forward.7} parent=1 // pred_check
      _
    $region7: #{encoder_kimcnn_forward.7} parent=1 // pred_check_branch
      %26 = sbr.rel (0) target = $region9
    $region8: #{encoder_kimcnn_forward.7} parent=1 // pred_region
      %28 = vsyncadd [#allocation3], 0
      %s29 = sshll.u32 %s1, 4
      %s30 = int_to_ptr.hbm [resolvable:$true] %s29
      %s31 = sshll.u32 [#allocation2], 4
      %s32 = int_to_ptr.vmem [resolvable:$true] %s31
      %37 = dma.hbm_to_vmem [thread:$0]  %s30, 2048, %s32, [#allocation3], 64, 64, 4
    $region9: #{encoder_kimcnn_forward.7} parent=1 // pred_fallthru
      _
    // Predicated region
    $region10: #{encoder_kimcnn_forward.7} parent=1 // pred_check
      _
    $region11: #{encoder_kimcnn_forward.7} parent=1 // pred_check_branch
      %39 = sbr.rel (0) target = $region13
    $region12: #{encoder_kimcnn_forward.7} parent=1 // pred_region
      %41 = vsyncadd [#allocation6], 0
      %s43 = sshll.u32 %s2, 4
      %s44 = int_to_ptr.hbm [resolvable:$true] %s43
      %s45 = sshll.u32 [#allocation5], 4
      %s46 = int_to_ptr.vmem [resolvable:$true] %s45
      %48 = dma.hbm_to_vmem [thread:$0]  %s44, 16, %s46, [#allocation6]
    $region13: #{encoder_kimcnn_forward.7} parent=1 // pred_fallthru
      _
    // Predicated region
    $region14: #{encoder_kimcnn_forward.7} parent=1 // pred_check
      _
    $region15: #{encoder_kimcnn_forward.7} parent=1 // pred_check_branch
      %50 = sbr.rel (0) target = $region17
    $region16: #{encoder_kimcnn_forward.7} parent=1 // pred_region
      %52 = vsyncadd [#allocation6], 0
      %s53 = sshll.u32 %s3, 4
      %s54 = int_to_ptr.hbm [resolvable:$true] %s53
      %s55 = sshll.u32 [#allocation7], 4
      %s56 = int_to_ptr.vmem [resolvable:$true] %s55
      %61 = dma.hbm_to_vmem [thread:$0]  %s54, 3072, %s56, [#allocation6], 64, 64, 4
    $region17: #{encoder_kimcnn_forward.7} parent=1 // pred_fallthru
      _
    // Predicated region
    $region18: #{encoder_kimcnn_forward.7} parent=1 // pred_check
      _
    $region19: #{encoder_kimcnn_forward.7} parent=1 // pred_check_branch
      %63 = sbr.rel (0) target = $region21
    $region20: #{encoder_kimcnn_forward.7} parent=1 // pred_region
      %65 = vsyncadd [#allocation9], 0
      %s67 = sshll.u32 %s4, 4
      %s68 = int_to_ptr.hbm [resolvable:$true] %s67
      %s69 = sshll.u32 [#allocation8], 4
      %s70 = int_to_ptr.vmem [resolvable:$true] %s69
      %72 = dma.hbm_to_vmem [thread:$0]  %s68, 16, %s70, [#allocation9]
    $region21: #{encoder_kimcnn_forward.7} parent=1 // pred_fallthru
      _
    // Predicated region
    $region22: #{encoder_kimcnn_forward.7} parent=1 // pred_check
      _
    $region23: #{encoder_kimcnn_forward.7} parent=1 // pred_check_branch
      %74 = sbr.rel (0) target = $region25
    $region24: #{encoder_kimcnn_forward.7} parent=1 // pred_region
      %76 = vsyncadd [#allocation9], 0
      %s77 = sshll.u32 %s5, 4
      %s78 = int_to_ptr.hbm [resolvable:$true] %s77
      %s79 = sshll.u32 [#allocation10], 4
      %s80 = int_to_ptr.vmem [resolvable:$true] %s79
      %85 = dma.hbm_to_vmem [thread:$0]  %s78, 4096, %s80, [#allocation9], 64, 64, 4
    $region25: #{encoder_kimcnn_forward.7} parent=1 // pred_fallthru
      _
    // Predicated region
    $region26: #{encoder_kimcnn_forward.7} parent=1 // pred_check
      _
    $region27: #{encoder_kimcnn_forward.7} parent=1 // pred_check_branch
      %87 = sbr.rel (0) target = $region29
    $region28: #{encoder_kimcnn_forward.7} parent=1 // pred_region
      %89 = vsyncadd [#allocation12], 0
      %s91 = sshll.u32 %s6, 4
      %s92 = int_to_ptr.hbm [resolvable:$true] %s91
      %s93 = sshll.u32 [#allocation11], 4
      %s94 = int_to_ptr.vmem [resolvable:$true] %s93
      %96 = dma.hbm_to_vmem [thread:$0]  %s92, 16, %s94, [#allocation12]
    $region29: #{encoder_kimcnn_forward.7} parent=1 // pred_fallthru
      _
    // Predicated region
    $region30: #{encoder_kimcnn_forward.7} parent=1 // pred_check
      _
    $region31: #{encoder_kimcnn_forward.7} parent=1 // pred_check_branch
      %98 = sbr.rel (0) target = $region33
    $region32: #{encoder_kimcnn_forward.7} parent=1 // pred_region
      %100 = vsyncadd [#allocation12], 0
      %s101 = sshll.u32 %s7, 4
      %s102 = int_to_ptr.hbm [resolvable:$true] %s101
      %s103 = sshll.u32 [#allocation13], 4
      %s104 = int_to_ptr.vmem [resolvable:$true] %s103
      %109 = dma.hbm_to_vmem [thread:$0]  %s102, 5120, %s104, [#allocation12], 64, 64, 4
    $region33: #{encoder_kimcnn_forward.7} parent=1 // pred_fallthru
      _
    // Predicated region
    $region34: #{encoder_kimcnn_forward.7} parent=1 // pred_check
      _
    $region35: #{encoder_kimcnn_forward.7} parent=1 // pred_check_branch
      %111 = sbr.rel (0) target = $region37
    $region36: #{encoder_kimcnn_forward.7} parent=1 // pred_region
      %113 = vsyncadd [#allocation15], 0
      %s115 = sshll.u32 %s8, 4
      %s116 = int_to_ptr.hbm [resolvable:$true] %s115
      %s117 = sshll.u32 [#allocation14], 4
      %s118 = int_to_ptr.vmem [resolvable:$true] %s117
      %120 = dma.hbm_to_vmem [thread:$0]  %s116, 16, %s118, [#allocation15]
    $region37: #{encoder_kimcnn_forward.7} parent=1 // pred_fallthru
      _
    // Predicated region
    $region38: #{encoder_kimcnn_forward.7} parent=1 // pred_check
      _
    $region39: #{encoder_kimcnn_forward.7} parent=1 // pred_check_branch
      %122 = sbr.rel (0) target = $region41
    $region40: #{encoder_kimcnn_forward.7} parent=1 // pred_region
      %124 = vsyncadd [#allocation15], 0
      %s125 = sshll.u32 %s9, 4
      %s126 = int_to_ptr.hbm [resolvable:$true] %s125
      %s127 = sshll.u32 [#allocation16], 4
      %s128 = int_to_ptr.vmem [resolvable:$true] %s127
      %133 = dma.hbm_to_vmem [thread:$0]  %s126, 4096, %s128, [#allocation15], 64, 64, 4
    $region41: #{encoder_kimcnn_forward.7} parent=1 // pred_fallthru
      _
    // Predicated region
    $region42: #{encoder_kimcnn_forward.7} parent=1 // pred_check
      _
    $region43: #{encoder_kimcnn_forward.7} parent=1 // pred_check_branch
      %135 = sbr.rel (0) target = $region45
    $region44: #{encoder_kimcnn_forward.7} parent=1 // pred_region
      %137 = vsyncadd [#allocation18], 0
      %s139 = sshll.u32 %s10, 4
      %s140 = int_to_ptr.hbm [resolvable:$true] %s139
      %s141 = sshll.u32 [#allocation17], 4
      %s142 = int_to_ptr.vmem [resolvable:$true] %s141
      %144 = dma.hbm_to_vmem [thread:$0]  %s140, 16, %s142, [#allocation18]
    $region45: #{encoder_kimcnn_forward.7} parent=1 // pred_fallthru
      _
    // Predicated region
    $region46: #{encoder_kimcnn_forward.7} parent=1 // pred_check
      _
    $region47: #{encoder_kimcnn_forward.7} parent=1 // pred_check_branch
      %146 = sbr.rel (0) target = $region49
    $region48: #{encoder_kimcnn_forward.7} parent=1 // pred_region
      %148 = dma.done [#allocation3], 2048
    $region49: #{encoder_kimcnn_forward.7} parent=1 // pred_fallthru
      _
    // Predicated region
    $region50: #{encoder_kimcnn_forward.7} parent=1 // pred_check
      _
    $region51: #{encoder_kimcnn_forward.7} parent=1 // pred_check_branch
      %150 = sbr.rel (0) target = $region53
    $region52: #{encoder_kimcnn_forward.7} parent=1 // pred_region
      %152 = dma.done [#allocation6], 16
    $region53: #{encoder_kimcnn_forward.7} parent=1 // pred_fallthru
      _
    // Predicated region
    $region54: #{encoder_kimcnn_forward.7} parent=1 // pred_check
      _
    $region55: #{encoder_kimcnn_forward.7} parent=1 // pred_check_branch
      %154 = sbr.rel (0) target = $region57
    $region56: #{encoder_kimcnn_forward.7} parent=1 // pred_region
      %156 = dma.done [#allocation6], 3072
    $region57: #{encoder_kimcnn_forward.7} parent=1 // pred_fallthru
      _
    // Predicated region
    $region58: #{encoder_kimcnn_forward.7} parent=1 // pred_check
      _
    $region59: #{encoder_kimcnn_forward.7} parent=1 // pred_check_branch
      %158 = sbr.rel (0) target = $region61
    $region60: #{encoder_kimcnn_forward.7} parent=1 // pred_region
      %160 = dma.done [#allocation9], 16
    $region61: #{encoder_kimcnn_forward.7} parent=1 // pred_fallthru
      _
    // Predicated region
    $region62: #{encoder_kimcnn_forward.7} parent=1 // pred_check
      _
    $region63: #{encoder_kimcnn_forward.7} parent=1 // pred_check_branch
      %162 = sbr.rel (0) target = $region65
    $region64: #{encoder_kimcnn_forward.7} parent=1 // pred_region
      %164 = dma.done [#allocation9], 4096
    $region65: #{encoder_kimcnn_forward.7} parent=1 // pred_fallthru
      _
    // Predicated region
    $region66: #{encoder_kimcnn_forward.7} parent=1 // pred_check
      _
    $region67: #{encoder_kimcnn_forward.7} parent=1 // pred_check_branch
      %166 = sbr.rel (0) target = $region69
    $region68: #{encoder_kimcnn_forward.7} parent=1 // pred_region
      %168 = dma.done [#allocation12], 16
    $region69: #{encoder_kimcnn_forward.7} parent=1 // pred_fallthru
      _
    // Predicated region
    $region70: #{encoder_kimcnn_forward.7} parent=1 // pred_check
      _
    $region71: #{encoder_kimcnn_forward.7} parent=1 // pred_check_branch
      %170 = sbr.rel (0) target = $region73
    $region72: #{encoder_kimcnn_forward.7} parent=1 // pred_region
      %172 = dma.done [#allocation12], 5120
    $region73: #{encoder_kimcnn_forward.7} parent=1 // pred_fallthru
      _
    // Predicated region
    $region74: #{encoder_kimcnn_forward.7} parent=1 // pred_check
      _
    $region75: #{encoder_kimcnn_forward.7} parent=1 // pred_check_branch
      %174 = sbr.rel (0) target = $region77
    $region76: #{encoder_kimcnn_forward.7} parent=1 // pred_region
      %176 = dma.done [#allocation15], 16
    $region77: #{encoder_kimcnn_forward.7} parent=1 // pred_fallthru
      _
    // Predicated region
    $region78: #{encoder_kimcnn_forward.7} parent=1 // pred_check
      _
    $region79: #{encoder_kimcnn_forward.7} parent=1 // pred_check_branch
      %178 = sbr.rel (0) target = $region81
    $region80: #{encoder_kimcnn_forward.7} parent=1 // pred_region
      %180 = dma.done [#allocation15], 4096
    $region81: #{encoder_kimcnn_forward.7} parent=1 // pred_fallthru
      _
    // Predicated region
    $region82: #{encoder_kimcnn_forward.7} parent=1 // pred_check
      _
    $region83: #{encoder_kimcnn_forward.7} parent=1 // pred_check_branch
      %182 = sbr.rel (0) target = $region85
    $region84: #{encoder_kimcnn_forward.7} parent=1 // pred_region
      %184 = dma.done [#allocation18], 16
    $region85: #{encoder_kimcnn_forward.7} parent=1 // pred_fallthru
      _
    %v185 = vld [vmem:[%s0] sm:$0xff]
    %v186 = vld [vmem:[%s0 + $0x8] sm:$0xff]
    %v187 = vld [vmem:[%s0 + $0x10] sm:$0xff]
    %v188 = vld [vmem:[%s0 + $0x18] sm:$0xff]
    %v189 = vpack.c.bf16 %v186, %v185
    %v190 = vpack.c.bf16 %v188, %v187
    %v191 = vld [vmem:[#allocation2] sm:$0xf]
    %v192 = vld [vmem:[#allocation2 + $0x4] sm:$0xf]
    %v193 = vld [vmem:[#allocation2 + $0x8] sm:$0xf]
    %v194 = vld [vmem:[#allocation2 + $0xc] sm:$0xf]
    %v195 = vld [vmem:[#allocation2 + $0x10] sm:$0xf]
    %v196 = vld [vmem:[#allocation2 + $0x14] sm:$0xf]
    %v197 = vld [vmem:[#allocation2 + $0x18] sm:$0xf]
    %v198 = vld [vmem:[#allocation2 + $0x1c] sm:$0xf]
    %v199 = vld [vmem:[#allocation2 + $0x20] sm:$0xf]
    %v200 = vld [vmem:[#allocation2 + $0x24] sm:$0xf]
    %v201 = vld [vmem:[#allocation2 + $0x28] sm:$0xf]
    %v202 = vld [vmem:[#allocation2 + $0x2c] sm:$0xf]
    %v203 = vld [vmem:[#allocation2 + $0x30] sm:$0xf]
    %v204 = vld [vmem:[#allocation2 + $0x34] sm:$0xf]
    %v205 = vld [vmem:[#allocation2 + $0x38] sm:$0xf]
    %v206 = vld [vmem:[#allocation2 + $0x3c] sm:$0xf]
    %v223 = vunpack.c.l.b16 %v191
    %v224 = vunpack.c.l.b16 %v192
    %v225 = vunpack.c.l.b16 %v193
    %v226 = vunpack.c.l.b16 %v194
    %v227 = vunpack.c.l.b16 %v195
    %v228 = vunpack.c.l.b16 %v196
    %v229 = vunpack.c.l.b16 %v197
    %v230 = vunpack.c.l.b16 %v198
    %v231 = vunpack.c.l.b16 %v199
    %v232 = vunpack.c.l.b16 %v200
    %v233 = vunpack.c.l.b16 %v201
    %v234 = vunpack.c.l.b16 %v202
    %v235 = vunpack.c.l.b16 %v203
    %v236 = vunpack.c.l.b16 %v204
    %v237 = vunpack.c.l.b16 %v205
    %v238 = vunpack.c.l.b16 %v206
    %v239 = vpack.c.b16 %v224, %v223
    %v240 = vpack.c.b16 %v226, %v225
    %v241 = vpack.c.b16 %v228, %v227
    %v242 = vpack.c.b16 %v230, %v229
    %v243 = vpack.c.b16 %v232, %v231
    %v244 = vpack.c.b16 %v234, %v233
    %v245 = vpack.c.b16 %v236, %v235
    %v246 = vpack.c.b16 %v238, %v237
    %255 = vmatpush.bf16.msra.mxu0 %v246
    %256 = vmatpush.bf16.msra.mxu0 %v245
    %257 = vmatpush.bf16.msra.mxu0 %v244
    %258 = vmatpush.bf16.msra.mxu0 %v243
    %259 = vmatpush.bf16.msra.mxu0 %v242
    %260 = vmatpush.bf16.msra.mxu0 %v241
    %261 = vmatpush.bf16.msra.mxu0 %v240
    %262 = vmatpush.bf16.msra.mxu0 %v239
    %263 = vmatmul.bf16.gmra.mxu0 %v189
    %v264 = vpop.f32.mrf.mxu0
    %v265 = vadd.f32 0.0, %v264
    %v266 = vpop.f32.mrf.mxu0
    %v267 = vadd.f32 0.0, %v266
    %268 = vmatmul.bf16.gmra.mxu0 %v190
    %v269 = vpop.f32.mrf.mxu0
    %v270 = vadd.f32 0.0, %v269
    %v271 = vpop.f32.mrf.mxu0
    %v272 = vadd.f32 0.0, %v271
    %273 = vdwg.mxu0
    %v274 = vadd.f32 %v265, 0.0
    %v275 = vadd.f32 %v267, 0.0
    %v276 = vadd.f32 %v270, 0.0
    %v277 = vadd.f32 %v272, 0.0
    %v278 = vld [vmem:[#allocation2 + $0x40] sm:$0xf]
    %v279 = vld [vmem:[#allocation2 + $0x44] sm:$0xf]
    %v280 = vld [vmem:[#allocation2 + $0x48] sm:$0xf]
    %v281 = vld [vmem:[#allocation2 + $0x4c] sm:$0xf]
    %v282 = vld [vmem:[#allocation2 + $0x50] sm:$0xf]
    %v283 = vld [vmem:[#allocation2 + $0x54] sm:$0xf]
    %v284 = vld [vmem:[#allocation2 + $0x58] sm:$0xf]
    %v285 = vld [vmem:[#allocation2 + $0x5c] sm:$0xf]
    %v286 = vld [vmem:[#allocation2 + $0x60] sm:$0xf]
    %v287 = vld [vmem:[#allocation2 + $0x64] sm:$0xf]
    %v288 = vld [vmem:[#allocation2 + $0x68] sm:$0xf]
    %v289 = vld [vmem:[#allocation2 + $0x6c] sm:$0xf]
    %v290 = vld [vmem:[#allocation2 + $0x70] sm:$0xf]
    %v291 = vld [vmem:[#allocation2 + $0x74] sm:$0xf]
    %v292 = vld [vmem:[#allocation2 + $0x78] sm:$0xf]
    %v293 = vld [vmem:[#allocation2 + $0x7c] sm:$0xf]
    %v310 = vunpack.c.l.b16 %v278
    %v311 = vunpack.c.l.b16 %v279
    %v312 = vunpack.c.l.b16 %v280
    %v313 = vunpack.c.l.b16 %v281
    %v314 = vunpack.c.l.b16 %v282
    %v315 = vunpack.c.l.b16 %v283
    %v316 = vunpack.c.l.b16 %v284
    %v317 = vunpack.c.l.b16 %v285
    %v318 = vunpack.c.l.b16 %v286
    %v319 = vunpack.c.l.b16 %v287
    %v320 = vunpack.c.l.b16 %v288
    %v321 = vunpack.c.l.b16 %v289
    %v322 = vunpack.c.l.b16 %v290
    %v323 = vunpack.c.l.b16 %v291
    %v324 = vunpack.c.l.b16 %v292
    %v325 = vunpack.c.l.b16 %v293
    %v326 = vpack.c.b16 %v311, %v310
    %v327 = vpack.c.b16 %v313, %v312
    %v328 = vpack.c.b16 %v315, %v314
    %v329 = vpack.c.b16 %v317, %v316
    %v330 = vpack.c.b16 %v319, %v318
    %v331 = vpack.c.b16 %v321, %v320
    %v332 = vpack.c.b16 %v323, %v322
    %v333 = vpack.c.b16 %v325, %v324
    %342 = vmatpush.bf16.msra.mxu0 %v333
    %343 = vmatpush.bf16.msra.mxu0 %v332
    %344 = vmatpush.bf16.msra.mxu0 %v331
    %345 = vmatpush.bf16.msra.mxu0 %v330
    %346 = vmatpush.bf16.msra.mxu0 %v329
    %347 = vmatpush.bf16.msra.mxu0 %v328
    %348 = vmatpush.bf16.msra.mxu0 %v327
    %349 = vmatpush.bf16.msra.mxu0 %v326
    %350 = vmatmul.bf16.gmra.mxu0 %v189
    %v351 = vpop.f32.mrf.mxu0
    %v352 = vadd.f32 0.0, %v351
    %v353 = vpop.f32.mrf.mxu0
    %v354 = vadd.f32 0.0, %v353
    %355 = vmatmul.bf16.gmra.mxu0 %v190
    %v356 = vpop.f32.mrf.mxu0
    %v357 = vadd.f32 0.0, %v356
    %v358 = vpop.f32.mrf.mxu0
    %v359 = vadd.f32 0.0, %v358
    %360 = vdwg.mxu0
    %vm365 = vcmask 1046528
    %v366 = vrot.slane %v352, 1
    %v367 = vrot.slane %v354, 1
    %v368 = vsel %vm365, %v366, %v367
    %v369 = vrot.slane %v357, 1
    %v370 = vrot.slane %v359, 1
    %v371 = vsel %vm365, %v369, %v370
    %v376 = vadd.f32 %v274, %v368
    %v377 = vadd.f32 %v275, %v367
    %v378 = vadd.f32 %v276, %v371
    %v379 = vadd.f32 %v277, %v370
    %v380 = vld [vmem:[#allocation5] sm:$0x1]
    %v382 = vperm.slane %v380, 0
    %v384 = vadd.f32 %v376, %v382
    %v385 = vadd.f32 %v377, %v382
    %v386 = vadd.f32 %v378, %v382
    %v387 = vadd.f32 %v379, %v382
    %v388 = vmax.f32 %v384, 0.0
    %v389 = vmax.f32 %v385, 0.0
    %v390 = vmax.f32 %v386, 0.0
    %v391 = vmax.f32 %v387, 0.0
    %v392 = vsel %vm365, %v389, -inf
    %v393 = vmax.f32 %v388, %v392
    %v394 = vrot.slane %v393, 4
    %v395 = vmax.f32 %v393, %v394
    %v396 = vrot.slane %v395, 2
    %v397 = vmax.f32 %v395, %v396
    %v398 = vrot.slane %v397, 1
    %v399 = vmax.f32 %v397, %v398
    %v400 = vsel %vm365, %v391, -inf
    %v401 = vmax.f32 %v390, %v400
    %v402 = vrot.slane %v401, 4
    %v403 = vmax.f32 %v401, %v402
    %v404 = vrot.slane %v403, 2
    %v405 = vmax.f32 %v403, %v404
    %v406 = vrot.slane %v405, 1
    %v407 = vmax.f32 %v405, %v406
    %v408 = vld [vmem:[#allocation7] sm:$0xf]
    %v409 = vld [vmem:[#allocation7 + $0x4] sm:$0xf]
    %v410 = vld [vmem:[#allocation7 + $0x8] sm:$0xf]
    %v411 = vld [vmem:[#allocation7 + $0xc] sm:$0xf]
    %v412 = vld [vmem:[#allocation7 + $0x10] sm:$0xf]
    %v413 = vld [vmem:[#allocation7 + $0x14] sm:$0xf]
    %v414 = vld [vmem:[#allocation7 + $0x18] sm:$0xf]
    %v415 = vld [vmem:[#allocation7 + $0x1c] sm:$0xf]
    %v416 = vld [vmem:[#allocation7 + $0x20] sm:$0xf]
    %v417 = vld [vmem:[#allocation7 + $0x24] sm:$0xf]
    %v418 = vld [vmem:[#allocation7 + $0x28] sm:$0xf]
    %v419 = vld [vmem:[#allocation7 + $0x2c] sm:$0xf]
    %v420 = vld [vmem:[#allocation7 + $0x30] sm:$0xf]
    %v421 = vld [vmem:[#allocation7 + $0x34] sm:$0xf]
    %v422 = vld [vmem:[#allocation7 + $0x38] sm:$0xf]
    %v423 = vld [vmem:[#allocation7 + $0x3c] sm:$0xf]
    %v440 = vunpack.c.l.b16 %v408
    %v441 = vunpack.c.l.b16 %v409
    %v442 = vunpack.c.l.b16 %v410
    %v443 = vunpack.c.l.b16 %v411
    %v444 = vunpack.c.l.b16 %v412
    %v445 = vunpack.c.l.b16 %v413
    %v446 = vunpack.c.l.b16 %v414
    %v447 = vunpack.c.l.b16 %v415
    %v448 = vunpack.c.l.b16 %v416
    %v449 = vunpack.c.l.b16 %v417
    %v450 = vunpack.c.l.b16 %v418
    %v451 = vunpack.c.l.b16 %v419
    %v452 = vunpack.c.l.b16 %v420
    %v453 = vunpack.c.l.b16 %v421
    %v454 = vunpack.c.l.b16 %v422
    %v455 = vunpack.c.l.b16 %v423
    %v456 = vpack.c.b16 %v441, %v440
    %v457 = vpack.c.b16 %v443, %v442
    %v458 = vpack.c.b16 %v445, %v444
    %v459 = vpack.c.b16 %v447, %v446
    %v460 = vpack.c.b16 %v449, %v448
    %v461 = vpack.c.b16 %v451, %v450
    %v462 = vpack.c.b16 %v453, %v452
    %v463 = vpack.c.b16 %v455, %v454
    %472 = vmatpush.bf16.msra.mxu0 %v463
    %473 = vmatpush.bf16.msra.mxu0 %v462
    %474 = vmatpush.bf16.msra.mxu0 %v461
    %475 = vmatpush.bf16.msra.mxu0 %v460
    %476 = vmatpush.bf16.msra.mxu0 %v459
    %477 = vmatpush.bf16.msra.mxu0 %v458
    %478 = vmatpush.bf16.msra.mxu0 %v457
    %479 = vmatpush.bf16.msra.mxu0 %v456
    %480 = vmatmul.bf16.gmra.mxu0 %v189
    %v481 = vpop.f32.mrf.mxu0
    %v482 = vadd.f32 0.0, %v481
    %v483 = vpop.f32.mrf.mxu0
    %v484 = vadd.f32 0.0, %v483
    %485 = vmatmul.bf16.gmra.mxu0 %v190
    %v486 = vpop.f32.mrf.mxu0
    %v487 = vadd.f32 0.0, %v486
    %v488 = vpop.f32.mrf.mxu0
    %v489 = vadd.f32 0.0, %v488
    %490 = vdwg.mxu0
    %v491 = vadd.f32 %v482, 0.0
    %v492 = vadd.f32 %v484, 0.0
    %v493 = vadd.f32 %v487, 0.0
    %v494 = vadd.f32 %v489, 0.0
    %v495 = vld [vmem:[#allocation7 + $0x40] sm:$0xf]
    %v496 = vld [vmem:[#allocation7 + $0x44] sm:$0xf]
    %v497 = vld [vmem:[#allocation7 + $0x48] sm:$0xf]
    %v498 = vld [vmem:[#allocation7 + $0x4c] sm:$0xf]
    %v499 = vld [vmem:[#allocation7 + $0x50] sm:$0xf]
    %v500 = vld [vmem:[#allocation7 + $0x54] sm:$0xf]
    %v501 = vld [vmem:[#allocation7 + $0x58] sm:$0xf]
    %v502 = vld [vmem:[#allocation7 + $0x5c] sm:$0xf]
    %v503 = vld [vmem:[#allocation7 + $0x60] sm:$0xf]
    %v504 = vld [vmem:[#allocation7 + $0x64] sm:$0xf]
    %v505 = vld [vmem:[#allocation7 + $0x68] sm:$0xf]
    %v506 = vld [vmem:[#allocation7 + $0x6c] sm:$0xf]
    %v507 = vld [vmem:[#allocation7 + $0x70] sm:$0xf]
    %v508 = vld [vmem:[#allocation7 + $0x74] sm:$0xf]
    %v509 = vld [vmem:[#allocation7 + $0x78] sm:$0xf]
    %v510 = vld [vmem:[#allocation7 + $0x7c] sm:$0xf]
    %v527 = vunpack.c.l.b16 %v495
    %v528 = vunpack.c.l.b16 %v496
    %v529 = vunpack.c.l.b16 %v497
    %v530 = vunpack.c.l.b16 %v498
    %v531 = vunpack.c.l.b16 %v499
    %v532 = vunpack.c.l.b16 %v500
    %v533 = vunpack.c.l.b16 %v501
    %v534 = vunpack.c.l.b16 %v502
    %v535 = vunpack.c.l.b16 %v503
    %v536 = vunpack.c.l.b16 %v504
    %v537 = vunpack.c.l.b16 %v505
    %v538 = vunpack.c.l.b16 %v506
    %v539 = vunpack.c.l.b16 %v507
    %v540 = vunpack.c.l.b16 %v508
    %v541 = vunpack.c.l.b16 %v509
    %v542 = vunpack.c.l.b16 %v510
    %v543 = vpack.c.b16 %v528, %v527
    %v544 = vpack.c.b16 %v530, %v529
    %v545 = vpack.c.b16 %v532, %v531
    %v546 = vpack.c.b16 %v534, %v533
    %v547 = vpack.c.b16 %v536, %v535
    %v548 = vpack.c.b16 %v538, %v537
    %v549 = vpack.c.b16 %v540, %v539
    %v550 = vpack.c.b16 %v542, %v541
    %559 = vmatpush.bf16.msra.mxu0 %v550
    %560 = vmatpush.bf16.msra.mxu0 %v549
    %561 = vmatpush.bf16.msra.mxu0 %v548
    %562 = vmatpush.bf16.msra.mxu0 %v547
    %563 = vmatpush.bf16.msra.mxu0 %v546
    %564 = vmatpush.bf16.msra.mxu0 %v545
    %565 = vmatpush.bf16.msra.mxu0 %v544
    %566 = vmatpush.bf16.msra.mxu0 %v543
    %567 = vmatmul.bf16.gmra.mxu0 %v189
    %v568 = vpop.f32.mrf.mxu0
    %v569 = vadd.f32 0.0, %v568
    %v570 = vpop.f32.mrf.mxu0
    %v571 = vadd.f32 0.0, %v570
    %572 = vmatmul.bf16.gmra.mxu0 %v190
    %v573 = vpop.f32.mrf.mxu0
    %v574 = vadd.f32 0.0, %v573
    %v575 = vpop.f32.mrf.mxu0
    %v576 = vadd.f32 0.0, %v575
    %577 = vdwg.mxu0
    %v582 = vrot.slane %v569, 1
    %v583 = vrot.slane %v571, 1
    %v584 = vsel %vm365, %v582, %v583
    %v585 = vrot.slane %v574, 1
    %v586 = vrot.slane %v576, 1
    %v587 = vsel %vm365, %v585, %v586
    %v592 = vadd.f32 %v491, %v584
    %v593 = vadd.f32 %v492, %v583
    %v594 = vadd.f32 %v493, %v587
    %v595 = vadd.f32 %v494, %v586
    %v596 = vld [vmem:[#allocation7 + $0x80] sm:$0xf]
    %v597 = vld [vmem:[#allocation7 + $0x84] sm:$0xf]
    %v598 = vld [vmem:[#allocation7 + $0x88] sm:$0xf]
    %v599 = vld [vmem:[#allocation7 + $0x8c] sm:$0xf]
    %v600 = vld [vmem:[#allocation7 + $0x90] sm:$0xf]
    %v601 = vld [vmem:[#allocation7 + $0x94] sm:$0xf]
    %v602 = vld [vmem:[#allocation7 + $0x98] sm:$0xf]
    %v603 = vld [vmem:[#allocation7 + $0x9c] sm:$0xf]
    %v604 = vld [vmem:[#allocation7 + $0xa0] sm:$0xf]
    %v605 = vld [vmem:[#allocation7 + $0xa4] sm:$0xf]
    %v606 = vld [vmem:[#allocation7 + $0xa8] sm:$0xf]
    %v607 = vld [vmem:[#allocation7 + $0xac] sm:$0xf]
    %v608 = vld [vmem:[#allocation7 + $0xb0] sm:$0xf]
    %v609 = vld [vmem:[#allocation7 + $0xb4] sm:$0xf]
    %v610 = vld [vmem:[#allocation7 + $0xb8] sm:$0xf]
    %v611 = vld [vmem:[#allocation7 + $0xbc] sm:$0xf]
    %v628 = vunpack.c.l.b16 %v596
    %v629 = vunpack.c.l.b16 %v597
    %v630 = vunpack.c.l.b16 %v598
    %v631 = vunpack.c.l.b16 %v599
    %v632 = vunpack.c.l.b16 %v600
    %v633 = vunpack.c.l.b16 %v601
    %v634 = vunpack.c.l.b16 %v602
    %v635 = vunpack.c.l.b16 %v603
    %v636 = vunpack.c.l.b16 %v604
    %v637 = vunpack.c.l.b16 %v605
    %v638 = vunpack.c.l.b16 %v606
    %v639 = vunpack.c.l.b16 %v607
    %v640 = vunpack.c.l.b16 %v608
    %v641 = vunpack.c.l.b16 %v609
    %v642 = vunpack.c.l.b16 %v610
    %v643 = vunpack.c.l.b16 %v611
    %v644 = vpack.c.b16 %v629, %v628
    %v645 = vpack.c.b16 %v631, %v630
    %v646 = vpack.c.b16 %v633, %v632
    %v647 = vpack.c.b16 %v635, %v634
    %v648 = vpack.c.b16 %v637, %v636
    %v649 = vpack.c.b16 %v639, %v638
    %v650 = vpack.c.b16 %v641, %v640
    %v651 = vpack.c.b16 %v643, %v642
    %660 = vmatpush.bf16.msra.mxu0 %v651
    %661 = vmatpush.bf16.msra.mxu0 %v650
    %662 = vmatpush.bf16.msra.mxu0 %v649
    %663 = vmatpush.bf16.msra.mxu0 %v648
    %664 = vmatpush.bf16.msra.mxu0 %v647
    %665 = vmatpush.bf16.msra.mxu0 %v646
    %666 = vmatpush.bf16.msra.mxu0 %v645
    %667 = vmatpush.bf16.msra.mxu0 %v644
    %668 = vmatmul.bf16.gmra.mxu0 %v189
    %v669 = vpop.f32.mrf.mxu0
    %v670 = vadd.f32 0.0, %v669
    %v671 = vpop.f32.mrf.mxu0
    %v672 = vadd.f32 0.0, %v671
    %673 = vmatmul.bf16.gmra.mxu0 %v190
    %v674 = vpop.f32.mrf.mxu0
    %v675 = vadd.f32 0.0, %v674
    %v676 = vpop.f32.mrf.mxu0
    %v677 = vadd.f32 0.0, %v676
    %678 = vdwg.mxu0
    %vm683 = vcmask 1045504
    %v684 = vrot.slane %v670, 2
    %v685 = vrot.slane %v672, 2
    %v686 = vsel %vm683, %v684, %v685
    %v687 = vrot.slane %v675, 2
    %v688 = vrot.slane %v677, 2
    %v689 = vsel %vm683, %v687, %v688
    %v694 = vadd.f32 %v592, %v686
    %v695 = vadd.f32 %v593, %v685
    %v696 = vadd.f32 %v594, %v689
    %v697 = vadd.f32 %v595, %v688
    %v698 = vld [vmem:[#allocation8] sm:$0x1]
    %v700 = vperm.slane %v698, 0
    %v702 = vadd.f32 %v694, %v700
    %v703 = vadd.f32 %v695, %v700
    %v704 = vadd.f32 %v696, %v700
    %v705 = vadd.f32 %v697, %v700
    %v706 = vmax.f32 %v702, 0.0
    %v707 = vmax.f32 %v703, 0.0
    %v708 = vmax.f32 %v704, 0.0
    %v709 = vmax.f32 %v705, 0.0
    %v710 = vsel %vm683, %v707, -inf
    %v711 = vmax.f32 %v706, %v710
    %v712 = vrot.slane %v711, 4
    %v713 = vmax.f32 %v711, %v712
    %v714 = vrot.slane %v713, 2
    %v715 = vmax.f32 %v713, %v714
    %v716 = vrot.slane %v715, 1
    %v717 = vmax.f32 %v715, %v716
    %v718 = vsel %vm683, %v709, -inf
    %v719 = vmax.f32 %v708, %v718
    %v720 = vrot.slane %v719, 4
    %v721 = vmax.f32 %v719, %v720
    %v722 = vrot.slane %v721, 2
    %v723 = vmax.f32 %v721, %v722
    %v724 = vrot.slane %v723, 1
    %v725 = vmax.f32 %v723, %v724
    %v726 = vld [vmem:[#allocation10] sm:$0xf]
    %v727 = vld [vmem:[#allocation10 + $0x4] sm:$0xf]
    %v728 = vld [vmem:[#allocation10 + $0x8] sm:$0xf]
    %v729 = vld [vmem:[#allocation10 + $0xc] sm:$0xf]
    %v730 = vld [vmem:[#allocation10 + $0x10] sm:$0xf]
    %v731 = vld [vmem:[#allocation10 + $0x14] sm:$0xf]
    %v732 = vld [vmem:[#allocation10 + $0x18] sm:$0xf]
    %v733 = vld [vmem:[#allocation10 + $0x1c] sm:$0xf]
    %v734 = vld [vmem:[#allocation10 + $0x20] sm:$0xf]
    %v735 = vld [vmem:[#allocation10 + $0x24] sm:$0xf]
    %v736 = vld [vmem:[#allocation10 + $0x28] sm:$0xf]
    %v737 = vld [vmem:[#allocation10 + $0x2c] sm:$0xf]
    %v738 = vld [vmem:[#allocation10 + $0x30] sm:$0xf]
    %v739 = vld [vmem:[#allocation10 + $0x34] sm:$0xf]
    %v740 = vld [vmem:[#allocation10 + $0x38] sm:$0xf]
    %v741 = vld [vmem:[#allocation10 + $0x3c] sm:$0xf]
    %v758 = vunpack.c.l.b16 %v726
    %v759 = vunpack.c.l.b16 %v727
    %v760 = vunpack.c.l.b16 %v728
    %v761 = vunpack.c.l.b16 %v729
    %v762 = vunpack.c.l.b16 %v730
    %v763 = vunpack.c.l.b16 %v731
    %v764 = vunpack.c.l.b16 %v732
    %v765 = vunpack.c.l.b16 %v733
    %v766 = vunpack.c.l.b16 %v734
    %v767 = vunpack.c.l.b16 %v735
    %v768 = vunpack.c.l.b16 %v736
    %v769 = vunpack.c.l.b16 %v737
    %v770 = vunpack.c.l.b16 %v738
    %v771 = vunpack.c.l.b16 %v739
    %v772 = vunpack.c.l.b16 %v740
    %v773 = vunpack.c.l.b16 %v741
    %v774 = vpack.c.b16 %v759, %v758
    %v775 = vpack.c.b16 %v761, %v760
    %v776 = vpack.c.b16 %v763, %v762
    %v777 = vpack.c.b16 %v765, %v764
    %v778 = vpack.c.b16 %v767, %v766
    %v779 = vpack.c.b16 %v769, %v768
    %v780 = vpack.c.b16 %v771, %v770
    %v781 = vpack.c.b16 %v773, %v772
    %790 = vmatpush.bf16.msra.mxu0 %v781
    %791 = vmatpush.bf16.msra.mxu0 %v780
    %792 = vmatpush.bf16.msra.mxu0 %v779
    %793 = vmatpush.bf16.msra.mxu0 %v778
    %794 = vmatpush.bf16.msra.mxu0 %v777
    %795 = vmatpush.bf16.msra.mxu0 %v776
    %796 = vmatpush.bf16.msra.mxu0 %v775
    %797 = vmatpush.bf16.msra.mxu0 %v774
    %798 = vmatmul.bf16.gmra.mxu0 %v189
    %v799 = vpop.f32.mrf.mxu0
    %v800 = vadd.f32 0.0, %v799
    %v801 = vpop.f32.mrf.mxu0
    %v802 = vadd.f32 0.0, %v801
    %803 = vmatmul.bf16.gmra.mxu0 %v190
    %v804 = vpop.f32.mrf.mxu0
    %v805 = vadd.f32 0.0, %v804
    %v806 = vpop.f32.mrf.mxu0
    %v807 = vadd.f32 0.0, %v806
    %808 = vdwg.mxu0
    %v809 = vadd.f32 %v800, 0.0
    %v810 = vadd.f32 %v802, 0.0
    %v811 = vadd.f32 %v805, 0.0
    %v812 = vadd.f32 %v807, 0.0
    %v813 = vld [vmem:[#allocation10 + $0x40] sm:$0xf]
    %v814 = vld [vmem:[#allocation10 + $0x44] sm:$0xf]
    %v815 = vld [vmem:[#allocation10 + $0x48] sm:$0xf]
    %v816 = vld [vmem:[#allocation10 + $0x4c] sm:$0xf]
    %v817 = vld [vmem:[#allocation10 + $0x50] sm:$0xf]
    %v818 = vld [vmem:[#allocation10 + $0x54] sm:$0xf]
    %v819 = vld [vmem:[#allocation10 + $0x58] sm:$0xf]
    %v820 = vld [vmem:[#allocation10 + $0x5c] sm:$0xf]
    %v821 = vld [vmem:[#allocation10 + $0x60] sm:$0xf]
    %v822 = vld [vmem:[#allocation10 + $0x64] sm:$0xf]
    %v823 = vld [vmem:[#allocation10 + $0x68] sm:$0xf]
    %v824 = vld [vmem:[#allocation10 + $0x6c] sm:$0xf]
    %v825 = vld [vmem:[#allocation10 + $0x70] sm:$0xf]
    %v826 = vld [vmem:[#allocation10 + $0x74] sm:$0xf]
    %v827 = vld [vmem:[#allocation10 + $0x78] sm:$0xf]
    %v828 = vld [vmem:[#allocation10 + $0x7c] sm:$0xf]
    %v845 = vunpack.c.l.b16 %v813
    %v846 = vunpack.c.l.b16 %v814
    %v847 = vunpack.c.l.b16 %v815
    %v848 = vunpack.c.l.b16 %v816
    %v849 = vunpack.c.l.b16 %v817
    %v850 = vunpack.c.l.b16 %v818
    %v851 = vunpack.c.l.b16 %v819
    %v852 = vunpack.c.l.b16 %v820
    %v853 = vunpack.c.l.b16 %v821
    %v854 = vunpack.c.l.b16 %v822
    %v855 = vunpack.c.l.b16 %v823
    %v856 = vunpack.c.l.b16 %v824
    %v857 = vunpack.c.l.b16 %v825
    %v858 = vunpack.c.l.b16 %v826
    %v859 = vunpack.c.l.b16 %v827
    %v860 = vunpack.c.l.b16 %v828
    %v861 = vpack.c.b16 %v846, %v845
    %v862 = vpack.c.b16 %v848, %v847
    %v863 = vpack.c.b16 %v850, %v849
    %v864 = vpack.c.b16 %v852, %v851
    %v865 = vpack.c.b16 %v854, %v853
    %v866 = vpack.c.b16 %v856, %v855
    %v867 = vpack.c.b16 %v858, %v857
    %v868 = vpack.c.b16 %v860, %v859
    %877 = vmatpush.bf16.msra.mxu0 %v868
    %878 = vmatpush.bf16.msra.mxu0 %v867
    %879 = vmatpush.bf16.msra.mxu0 %v866
    %880 = vmatpush.bf16.msra.mxu0 %v865
    %881 = vmatpush.bf16.msra.mxu0 %v864
    %882 = vmatpush.bf16.msra.mxu0 %v863
    %883 = vmatpush.bf16.msra.mxu0 %v862
    %884 = vmatpush.bf16.msra.mxu0 %v861
    %885 = vmatmul.bf16.gmra.mxu0 %v189
    %v886 = vpop.f32.mrf.mxu0
    %v887 = vadd.f32 0.0, %v886
    %v888 = vpop.f32.mrf.mxu0
    %v889 = vadd.f32 0.0, %v888
    %890 = vmatmul.bf16.gmra.mxu0 %v190
    %v891 = vpop.f32.mrf.mxu0
    %v892 = vadd.f32 0.0, %v891
    %v893 = vpop.f32.mrf.mxu0
    %v894 = vadd.f32 0.0, %v893
    %895 = vdwg.mxu0
    %v900 = vrot.slane %v887, 1
    %v901 = vrot.slane %v889, 1
    %v902 = vsel %vm365, %v900, %v901
    %v903 = vrot.slane %v892, 1
    %v904 = vrot.slane %v894, 1
    %v905 = vsel %vm365, %v903, %v904
    %v910 = vadd.f32 %v809, %v902
    %v911 = vadd.f32 %v810, %v901
    %v912 = vadd.f32 %v811, %v905
    %v913 = vadd.f32 %v812, %v904
    %v914 = vld [vmem:[#allocation10 + $0x80] sm:$0xf]
    %v915 = vld [vmem:[#allocation10 + $0x84] sm:$0xf]
    %v916 = vld [vmem:[#allocation10 + $0x88] sm:$0xf]
    %v917 = vld [vmem:[#allocation10 + $0x8c] sm:$0xf]
    %v918 = vld [vmem:[#allocation10 + $0x90] sm:$0xf]
    %v919 = vld [vmem:[#allocation10 + $0x94] sm:$0xf]
    %v920 = vld [vmem:[#allocation10 + $0x98] sm:$0xf]
    %v921 = vld [vmem:[#allocation10 + $0x9c] sm:$0xf]
    %v922 = vld [vmem:[#allocation10 + $0xa0] sm:$0xf]
    %v923 = vld [vmem:[#allocation10 + $0xa4] sm:$0xf]
    %v924 = vld [vmem:[#allocation10 + $0xa8] sm:$0xf]
    %v925 = vld [vmem:[#allocation10 + $0xac] sm:$0xf]
    %v926 = vld [vmem:[#allocation10 + $0xb0] sm:$0xf]
    %v927 = vld [vmem:[#allocation10 + $0xb4] sm:$0xf]
    %v928 = vld [vmem:[#allocation10 + $0xb8] sm:$0xf]
    %v929 = vld [vmem:[#allocation10 + $0xbc] sm:$0xf]
    %v946 = vunpack.c.l.b16 %v914
    %v947 = vunpack.c.l.b16 %v915
    %v948 = vunpack.c.l.b16 %v916
    %v949 = vunpack.c.l.b16 %v917
    %v950 = vunpack.c.l.b16 %v918
    %v951 = vunpack.c.l.b16 %v919
    %v952 = vunpack.c.l.b16 %v920
    %v953 = vunpack.c.l.b16 %v921
    %v954 = vunpack.c.l.b16 %v922
    %v955 = vunpack.c.l.b16 %v923
    %v956 = vunpack.c.l.b16 %v924
    %v957 = vunpack.c.l.b16 %v925
    %v958 = vunpack.c.l.b16 %v926
    %v959 = vunpack.c.l.b16 %v927
    %v960 = vunpack.c.l.b16 %v928
    %v961 = vunpack.c.l.b16 %v929
    %v962 = vpack.c.b16 %v947, %v946
    %v963 = vpack.c.b16 %v949, %v948
    %v964 = vpack.c.b16 %v951, %v950
    %v965 = vpack.c.b16 %v953, %v952
    %v966 = vpack.c.b16 %v955, %v954
    %v967 = vpack.c.b16 %v957, %v956
    %v968 = vpack.c.b16 %v959, %v958
    %v969 = vpack.c.b16 %v961, %v960
    %978 = vmatpush.bf16.msra.mxu0 %v969
    %979 = vmatpush.bf16.msra.mxu0 %v968
    %980 = vmatpush.bf16.msra.mxu0 %v967
    %981 = vmatpush.bf16.msra.mxu0 %v966
    %982 = vmatpush.bf16.msra.mxu0 %v965
    %983 = vmatpush.bf16.msra.mxu0 %v964
    %984 = vmatpush.bf16.msra.mxu0 %v963
    %985 = vmatpush.bf16.msra.mxu0 %v962
    %986 = vmatmul.bf16.gmra.mxu0 %v189
    %v987 = vpop.f32.mrf.mxu0
    %v988 = vadd.f32 0.0, %v987
    %v989 = vpop.f32.mrf.mxu0
    %v990 = vadd.f32 0.0, %v989
    %991 = vmatmul.bf16.gmra.mxu0 %v190
    %v992 = vpop.f32.mrf.mxu0
    %v993 = vadd.f32 0.0, %v992
    %v994 = vpop.f32.mrf.mxu0
    %v995 = vadd.f32 0.0, %v994
    %996 = vdwg.mxu0
    %v1001 = vrot.slane %v988, 2
    %v1002 = vrot.slane %v990, 2
    %v1003 = vsel %vm683, %v1001, %v1002
    %v1004 = vrot.slane %v993, 2
    %v1005 = vrot.slane %v995, 2
    %v1006 = vsel %vm683, %v1004, %v1005
    %v1011 = vadd.f32 %v910, %v1003
    %v1012 = vadd.f32 %v911, %v1002
    %v1013 = vadd.f32 %v912, %v1006
    %v1014 = vadd.f32 %v913, %v1005
    %v1015 = vld [vmem:[#allocation10 + $0xc0] sm:$0xf]
    %v1016 = vld [vmem:[#allocation10 + $0xc4] sm:$0xf]
    %v1017 = vld [vmem:[#allocation10 + $0xc8] sm:$0xf]
    %v1018 = vld [vmem:[#allocation10 + $0xcc] sm:$0xf]
    %v1019 = vld [vmem:[#allocation10 + $0xd0] sm:$0xf]
    %v1020 = vld [vmem:[#allocation10 + $0xd4] sm:$0xf]
    %v1021 = vld [vmem:[#allocation10 + $0xd8] sm:$0xf]
    %v1022 = vld [vmem:[#allocation10 + $0xdc] sm:$0xf]
    %v1023 = vld [vmem:[#allocation10 + $0xe0] sm:$0xf]
    %v1024 = vld [vmem:[#allocation10 + $0xe4] sm:$0xf]
    %v1025 = vld [vmem:[#allocation10 + $0xe8] sm:$0xf]
    %v1026 = vld [vmem:[#allocation10 + $0xec] sm:$0xf]
    %v1027 = vld [vmem:[#allocation10 + $0xf0] sm:$0xf]
    %v1028 = vld [vmem:[#allocation10 + $0xf4] sm:$0xf]
    %v1029 = vld [vmem:[#allocation10 + $0xf8] sm:$0xf]
    %v1030 = vld [vmem:[#allocation10 + $0xfc] sm:$0xf]
    %v1047 = vunpack.c.l.b16 %v1015
    %v1048 = vunpack.c.l.b16 %v1016
    %v1049 = vunpack.c.l.b16 %v1017
    %v1050 = vunpack.c.l.b16 %v1018
    %v1051 = vunpack.c.l.b16 %v1019
    %v1052 = vunpack.c.l.b16 %v1020
    %v1053 = vunpack.c.l.b16 %v1021
    %v1054 = vunpack.c.l.b16 %v1022
    %v1055 = vunpack.c.l.b16 %v1023
    %v1056 = vunpack.c.l.b16 %v1024
    %v1057 = vunpack.c.l.b16 %v1025
    %v1058 = vunpack.c.l.b16 %v1026
    %v1059 = vunpack.c.l.b16 %v1027
    %v1060 = vunpack.c.l.b16 %v1028
    %v1061 = vunpack.c.l.b16 %v1029
    %v1062 = vunpack.c.l.b16 %v1030
    %v1063 = vpack.c.b16 %v1048, %v1047
    %v1064 = vpack.c.b16 %v1050, %v1049
    %v1065 = vpack.c.b16 %v1052, %v1051
    %v1066 = vpack.c.b16 %v1054, %v1053
    %v1067 = vpack.c.b16 %v1056, %v1055
    %v1068 = vpack.c.b16 %v1058, %v1057
    %v1069 = vpack.c.b16 %v1060, %v1059
    %v1070 = vpack.c.b16 %v1062, %v1061
    %1079 = vmatpush.bf16.msra.mxu0 %v1070
    %1080 = vmatpush.bf16.msra.mxu0 %v1069
    %1081 = vmatpush.bf16.msra.mxu0 %v1068
    %1082 = vmatpush.bf16.msra.mxu0 %v1067
    %1083 = vmatpush.bf16.msra.mxu0 %v1066
    %1084 = vmatpush.bf16.msra.mxu0 %v1065
    %1085 = vmatpush.bf16.msra.mxu0 %v1064
    %1086 = vmatpush.bf16.msra.mxu0 %v1063
    %1087 = vmatmul.bf16.gmra.mxu0 %v189
    %v1088 = vpop.f32.mrf.mxu0
    %v1089 = vadd.f32 0.0, %v1088
    %v1090 = vpop.f32.mrf.mxu0
    %v1091 = vadd.f32 0.0, %v1090
    %1092 = vmatmul.bf16.gmra.mxu0 %v190
    %v1093 = vpop.f32.mrf.mxu0
    %v1094 = vadd.f32 0.0, %v1093
    %v1095 = vpop.f32.mrf.mxu0
    %v1096 = vadd.f32 0.0, %v1095
    %1097 = vdwg.mxu0
    %vm1102 = vcmask 1044480
    %v1103 = vrot.slane %v1089, 3
    %v1104 = vrot.slane %v1091, 3
    %v1105 = vsel %vm1102, %v1103, %v1104
    %v1106 = vrot.slane %v1094, 3
    %v1107 = vrot.slane %v1096, 3
    %v1108 = vsel %vm1102, %v1106, %v1107
    %v1113 = vadd.f32 %v1011, %v1105
    %v1114 = vadd.f32 %v1012, %v1104
    %v1115 = vadd.f32 %v1013, %v1108
    %v1116 = vadd.f32 %v1014, %v1107
    %v1117 = vld [vmem:[#allocation11] sm:$0x1]
    %v1119 = vperm.slane %v1117, 0
    %v1121 = vadd.f32 %v1113, %v1119
    %v1122 = vadd.f32 %v1114, %v1119
    %v1123 = vadd.f32 %v1115, %v1119
    %v1124 = vadd.f32 %v1116, %v1119
    %v1125 = vmax.f32 %v1121, 0.0
    %v1126 = vmax.f32 %v1122, 0.0
    %v1127 = vmax.f32 %v1123, 0.0
    %v1128 = vmax.f32 %v1124, 0.0
    %v1129 = vsel %vm1102, %v1126, -inf
    %v1130 = vmax.f32 %v1125, %v1129
    %v1131 = vrot.slane %v1130, 4
    %v1132 = vmax.f32 %v1130, %v1131
    %v1133 = vrot.slane %v1132, 2
    %v1134 = vmax.f32 %v1132, %v1133
    %v1135 = vrot.slane %v1134, 1
    %v1136 = vmax.f32 %v1134, %v1135
    %v1137 = vsel %vm1102, %v1128, -inf
    %v1138 = vmax.f32 %v1127, %v1137
    %v1139 = vrot.slane %v1138, 4
    %v1140 = vmax.f32 %v1138, %v1139
    %v1141 = vrot.slane %v1140, 2
    %v1142 = vmax.f32 %v1140, %v1141
    %v1143 = vrot.slane %v1142, 1
    %v1144 = vmax.f32 %v1142, %v1143
    %v1145 = vld [vmem:[#allocation13] sm:$0xf]
    %v1146 = vld [vmem:[#allocation13 + $0x4] sm:$0xf]
    %v1147 = vld [vmem:[#allocation13 + $0x8] sm:$0xf]
    %v1148 = vld [vmem:[#allocation13 + $0xc] sm:$0xf]
    %v1149 = vld [vmem:[#allocation13 + $0x10] sm:$0xf]
    %v1150 = vld [vmem:[#allocation13 + $0x14] sm:$0xf]
    %v1151 = vld [vmem:[#allocation13 + $0x18] sm:$0xf]
    %v1152 = vld [vmem:[#allocation13 + $0x1c] sm:$0xf]
    %v1153 = vld [vmem:[#allocation13 + $0x20] sm:$0xf]
    %v1154 = vld [vmem:[#allocation13 + $0x24] sm:$0xf]
    %v1155 = vld [vmem:[#allocation13 + $0x28] sm:$0xf]
    %v1156 = vld [vmem:[#allocation13 + $0x2c] sm:$0xf]
    %v1157 = vld [vmem:[#allocation13 + $0x30] sm:$0xf]
    %v1158 = vld [vmem:[#allocation13 + $0x34] sm:$0xf]
    %v1159 = vld [vmem:[#allocation13 + $0x38] sm:$0xf]
    %v1160 = vld [vmem:[#allocation13 + $0x3c] sm:$0xf]
    %v1177 = vunpack.c.l.b16 %v1145
    %v1178 = vunpack.c.l.b16 %v1146
    %v1179 = vunpack.c.l.b16 %v1147
    %v1180 = vunpack.c.l.b16 %v1148
    %v1181 = vunpack.c.l.b16 %v1149
    %v1182 = vunpack.c.l.b16 %v1150
    %v1183 = vunpack.c.l.b16 %v1151
    %v1184 = vunpack.c.l.b16 %v1152
    %v1185 = vunpack.c.l.b16 %v1153
    %v1186 = vunpack.c.l.b16 %v1154
    %v1187 = vunpack.c.l.b16 %v1155
    %v1188 = vunpack.c.l.b16 %v1156
    %v1189 = vunpack.c.l.b16 %v1157
    %v1190 = vunpack.c.l.b16 %v1158
    %v1191 = vunpack.c.l.b16 %v1159
    %v1192 = vunpack.c.l.b16 %v1160
    %v1193 = vpack.c.b16 %v1178, %v1177
    %v1194 = vpack.c.b16 %v1180, %v1179
    %v1195 = vpack.c.b16 %v1182, %v1181
    %v1196 = vpack.c.b16 %v1184, %v1183
    %v1197 = vpack.c.b16 %v1186, %v1185
    %v1198 = vpack.c.b16 %v1188, %v1187
    %v1199 = vpack.c.b16 %v1190, %v1189
    %v1200 = vpack.c.b16 %v1192, %v1191
    %1209 = vmatpush.bf16.msra.mxu0 %v1200
    %1210 = vmatpush.bf16.msra.mxu0 %v1199
    %1211 = vmatpush.bf16.msra.mxu0 %v1198
    %1212 = vmatpush.bf16.msra.mxu0 %v1197
    %1213 = vmatpush.bf16.msra.mxu0 %v1196
    %1214 = vmatpush.bf16.msra.mxu0 %v1195
    %1215 = vmatpush.bf16.msra.mxu0 %v1194
    %1216 = vmatpush.bf16.msra.mxu0 %v1193
    %1217 = vmatmul.bf16.gmra.mxu0 %v189
    %v1218 = vpop.f32.mrf.mxu0
    %v1219 = vadd.f32 0.0, %v1218
    %v1220 = vpop.f32.mrf.mxu0
    %v1221 = vadd.f32 0.0, %v1220
    %1222 = vmatmul.bf16.gmra.mxu0 %v190
    %v1223 = vpop.f32.mrf.mxu0
    %v1224 = vadd.f32 0.0, %v1223
    %v1225 = vpop.f32.mrf.mxu0
    %v1226 = vadd.f32 0.0, %v1225
    %1227 = vdwg.mxu0
    %v1228 = vadd.f32 %v1219, 0.0
    %v1229 = vadd.f32 %v1221, 0.0
    %v1230 = vadd.f32 %v1224, 0.0
    %v1231 = vadd.f32 %v1226, 0.0
    %v1232 = vld [vmem:[#allocation13 + $0x40] sm:$0xf]
    %v1233 = vld [vmem:[#allocation13 + $0x44] sm:$0xf]
    %v1234 = vld [vmem:[#allocation13 + $0x48] sm:$0xf]
    %v1235 = vld [vmem:[#allocation13 + $0x4c] sm:$0xf]
    %v1236 = vld [vmem:[#allocation13 + $0x50] sm:$0xf]
    %v1237 = vld [vmem:[#allocation13 + $0x54] sm:$0xf]
    %v1238 = vld [vmem:[#allocation13 + $0x58] sm:$0xf]
    %v1239 = vld [vmem:[#allocation13 + $0x5c] sm:$0xf]
    %v1240 = vld [vmem:[#allocation13 + $0x60] sm:$0xf]
    %v1241 = vld [vmem:[#allocation13 + $0x64] sm:$0xf]
    %v1242 = vld [vmem:[#allocation13 + $0x68] sm:$0xf]
    %v1243 = vld [vmem:[#allocation13 + $0x6c] sm:$0xf]
    %v1244 = vld [vmem:[#allocation13 + $0x70] sm:$0xf]
    %v1245 = vld [vmem:[#allocation13 + $0x74] sm:$0xf]
    %v1246 = vld [vmem:[#allocation13 + $0x78] sm:$0xf]
    %v1247 = vld [vmem:[#allocation13 + $0x7c] sm:$0xf]
    %v1264 = vunpack.c.l.b16 %v1232
    %v1265 = vunpack.c.l.b16 %v1233
    %v1266 = vunpack.c.l.b16 %v1234
    %v1267 = vunpack.c.l.b16 %v1235
    %v1268 = vunpack.c.l.b16 %v1236
    %v1269 = vunpack.c.l.b16 %v1237
    %v1270 = vunpack.c.l.b16 %v1238
    %v1271 = vunpack.c.l.b16 %v1239
    %v1272 = vunpack.c.l.b16 %v1240
    %v1273 = vunpack.c.l.b16 %v1241
    %v1274 = vunpack.c.l.b16 %v1242
    %v1275 = vunpack.c.l.b16 %v1243
    %v1276 = vunpack.c.l.b16 %v1244
    %v1277 = vunpack.c.l.b16 %v1245
    %v1278 = vunpack.c.l.b16 %v1246
    %v1279 = vunpack.c.l.b16 %v1247
    %v1280 = vpack.c.b16 %v1265, %v1264
    %v1281 = vpack.c.b16 %v1267, %v1266
    %v1282 = vpack.c.b16 %v1269, %v1268
    %v1283 = vpack.c.b16 %v1271, %v1270
    %v1284 = vpack.c.b16 %v1273, %v1272
    %v1285 = vpack.c.b16 %v1275, %v1274
    %v1286 = vpack.c.b16 %v1277, %v1276
    %v1287 = vpack.c.b16 %v1279, %v1278
    %1296 = vmatpush.bf16.msra.mxu0 %v1287
    %1297 = vmatpush.bf16.msra.mxu0 %v1286
    %1298 = vmatpush.bf16.msra.mxu0 %v1285
    %1299 = vmatpush.bf16.msra.mxu0 %v1284
    %1300 = vmatpush.bf16.msra.mxu0 %v1283
    %1301 = vmatpush.bf16.msra.mxu0 %v1282
    %1302 = vmatpush.bf16.msra.mxu0 %v1281
    %1303 = vmatpush.bf16.msra.mxu0 %v1280
    %1304 = vmatmul.bf16.gmra.mxu0 %v189
    %v1305 = vpop.f32.mrf.mxu0
    %v1306 = vadd.f32 0.0, %v1305
    %v1307 = vpop.f32.mrf.mxu0
    %v1308 = vadd.f32 0.0, %v1307
    %1309 = vmatmul.bf16.gmra.mxu0 %v190
    %v1310 = vpop.f32.mrf.mxu0
    %v1311 = vadd.f32 0.0, %v1310
    %v1312 = vpop.f32.mrf.mxu0
    %v1313 = vadd.f32 0.0, %v1312
    %1314 = vdwg.mxu0
    %v1319 = vrot.slane %v1306, 1
    %v1320 = vrot.slane %v1308, 1
    %v1321 = vsel %vm365, %v1319, %v1320
    %v1322 = vrot.slane %v1311, 1
    %v1323 = vrot.slane %v1313, 1
    %v1324 = vsel %vm365, %v1322, %v1323
    %v1329 = vadd.f32 %v1228, %v1321
    %v1330 = vadd.f32 %v1229, %v1320
    %v1331 = vadd.f32 %v1230, %v1324
    %v1332 = vadd.f32 %v1231, %v1323
    %v1333 = vld [vmem:[#allocation13 + $0x80] sm:$0xf]
    %v1334 = vld [vmem:[#allocation13 + $0x84] sm:$0xf]
    %v1335 = vld [vmem:[#allocation13 + $0x88] sm:$0xf]
    %v1336 = vld [vmem:[#allocation13 + $0x8c] sm:$0xf]
    %v1337 = vld [vmem:[#allocation13 + $0x90] sm:$0xf]
    %v1338 = vld [vmem:[#allocation13 + $0x94] sm:$0xf]
    %v1339 = vld [vmem:[#allocation13 + $0x98] sm:$0xf]
    %v1340 = vld [vmem:[#allocation13 + $0x9c] sm:$0xf]
    %v1341 = vld [vmem:[#allocation13 + $0xa0] sm:$0xf]
    %v1342 = vld [vmem:[#allocation13 + $0xa4] sm:$0xf]
    %v1343 = vld [vmem:[#allocation13 + $0xa8] sm:$0xf]
    %v1344 = vld [vmem:[#allocation13 + $0xac] sm:$0xf]
    %v1345 = vld [vmem:[#allocation13 + $0xb0] sm:$0xf]
    %v1346 = vld [vmem:[#allocation13 + $0xb4] sm:$0xf]
    %v1347 = vld [vmem:[#allocation13 + $0xb8] sm:$0xf]
    %v1348 = vld [vmem:[#allocation13 + $0xbc] sm:$0xf]
    %v1365 = vunpack.c.l.b16 %v1333
    %v1366 = vunpack.c.l.b16 %v1334
    %v1367 = vunpack.c.l.b16 %v1335
    %v1368 = vunpack.c.l.b16 %v1336
    %v1369 = vunpack.c.l.b16 %v1337
    %v1370 = vunpack.c.l.b16 %v1338
    %v1371 = vunpack.c.l.b16 %v1339
    %v1372 = vunpack.c.l.b16 %v1340
    %v1373 = vunpack.c.l.b16 %v1341
    %v1374 = vunpack.c.l.b16 %v1342
    %v1375 = vunpack.c.l.b16 %v1343
    %v1376 = vunpack.c.l.b16 %v1344
    %v1377 = vunpack.c.l.b16 %v1345
    %v1378 = vunpack.c.l.b16 %v1346
    %v1379 = vunpack.c.l.b16 %v1347
    %v1380 = vunpack.c.l.b16 %v1348
    %v1381 = vpack.c.b16 %v1366, %v1365
    %v1382 = vpack.c.b16 %v1368, %v1367
    %v1383 = vpack.c.b16 %v1370, %v1369
    %v1384 = vpack.c.b16 %v1372, %v1371
    %v1385 = vpack.c.b16 %v1374, %v1373
    %v1386 = vpack.c.b16 %v1376, %v1375
    %v1387 = vpack.c.b16 %v1378, %v1377
    %v1388 = vpack.c.b16 %v1380, %v1379
    %1397 = vmatpush.bf16.msra.mxu0 %v1388
    %1398 = vmatpush.bf16.msra.mxu0 %v1387
    %1399 = vmatpush.bf16.msra.mxu0 %v1386
    %1400 = vmatpush.bf16.msra.mxu0 %v1385
    %1401 = vmatpush.bf16.msra.mxu0 %v1384
    %1402 = vmatpush.bf16.msra.mxu0 %v1383
    %1403 = vmatpush.bf16.msra.mxu0 %v1382
    %1404 = vmatpush.bf16.msra.mxu0 %v1381
    %1405 = vmatmul.bf16.gmra.mxu0 %v189
    %v1406 = vpop.f32.mrf.mxu0
    %v1407 = vadd.f32 0.0, %v1406
    %v1408 = vpop.f32.mrf.mxu0
    %v1409 = vadd.f32 0.0, %v1408
    %1410 = vmatmul.bf16.gmra.mxu0 %v190
    %v1411 = vpop.f32.mrf.mxu0
    %v1412 = vadd.f32 0.0, %v1411
    %v1413 = vpop.f32.mrf.mxu0
    %v1414 = vadd.f32 0.0, %v1413
    %1415 = vdwg.mxu0
    %v1420 = vrot.slane %v1407, 2
    %v1421 = vrot.slane %v1409, 2
    %v1422 = vsel %vm683, %v1420, %v1421
    %v1423 = vrot.slane %v1412, 2
    %v1424 = vrot.slane %v1414, 2
    %v1425 = vsel %vm683, %v1423, %v1424
    %v1430 = vadd.f32 %v1329, %v1422
    %v1431 = vadd.f32 %v1330, %v1421
    %v1432 = vadd.f32 %v1331, %v1425
    %v1433 = vadd.f32 %v1332, %v1424
    %v1434 = vld [vmem:[#allocation13 + $0xc0] sm:$0xf]
    %v1435 = vld [vmem:[#allocation13 + $0xc4] sm:$0xf]
    %v1436 = vld [vmem:[#allocation13 + $0xc8] sm:$0xf]
    %v1437 = vld [vmem:[#allocation13 + $0xcc] sm:$0xf]
    %v1438 = vld [vmem:[#allocation13 + $0xd0] sm:$0xf]
    %v1439 = vld [vmem:[#allocation13 + $0xd4] sm:$0xf]
    %v1440 = vld [vmem:[#allocation13 + $0xd8] sm:$0xf]
    %v1441 = vld [vmem:[#allocation13 + $0xdc] sm:$0xf]
    %v1442 = vld [vmem:[#allocation13 + $0xe0] sm:$0xf]
    %v1443 = vld [vmem:[#allocation13 + $0xe4] sm:$0xf]
    %v1444 = vld [vmem:[#allocation13 + $0xe8] sm:$0xf]
    %v1445 = vld [vmem:[#allocation13 + $0xec] sm:$0xf]
    %v1446 = vld [vmem:[#allocation13 + $0xf0] sm:$0xf]
    %v1447 = vld [vmem:[#allocation13 + $0xf4] sm:$0xf]
    %v1448 = vld [vmem:[#allocation13 + $0xf8] sm:$0xf]
    %v1449 = vld [vmem:[#allocation13 + $0xfc] sm:$0xf]
    %v1466 = vunpack.c.l.b16 %v1434
    %v1467 = vunpack.c.l.b16 %v1435
    %v1468 = vunpack.c.l.b16 %v1436
    %v1469 = vunpack.c.l.b16 %v1437
    %v1470 = vunpack.c.l.b16 %v1438
    %v1471 = vunpack.c.l.b16 %v1439
    %v1472 = vunpack.c.l.b16 %v1440
    %v1473 = vunpack.c.l.b16 %v1441
    %v1474 = vunpack.c.l.b16 %v1442
    %v1475 = vunpack.c.l.b16 %v1443
    %v1476 = vunpack.c.l.b16 %v1444
    %v1477 = vunpack.c.l.b16 %v1445
    %v1478 = vunpack.c.l.b16 %v1446
    %v1479 = vunpack.c.l.b16 %v1447
    %v1480 = vunpack.c.l.b16 %v1448
    %v1481 = vunpack.c.l.b16 %v1449
    %v1482 = vpack.c.b16 %v1467, %v1466
    %v1483 = vpack.c.b16 %v1469, %v1468
    %v1484 = vpack.c.b16 %v1471, %v1470
    %v1485 = vpack.c.b16 %v1473, %v1472
    %v1486 = vpack.c.b16 %v1475, %v1474
    %v1487 = vpack.c.b16 %v1477, %v1476
    %v1488 = vpack.c.b16 %v1479, %v1478
    %v1489 = vpack.c.b16 %v1481, %v1480
    %1498 = vmatpush.bf16.msra.mxu0 %v1489
    %1499 = vmatpush.bf16.msra.mxu0 %v1488
    %1500 = vmatpush.bf16.msra.mxu0 %v1487
    %1501 = vmatpush.bf16.msra.mxu0 %v1486
    %1502 = vmatpush.bf16.msra.mxu0 %v1485
    %1503 = vmatpush.bf16.msra.mxu0 %v1484
    %1504 = vmatpush.bf16.msra.mxu0 %v1483
    %1505 = vmatpush.bf16.msra.mxu0 %v1482
    %1506 = vmatmul.bf16.gmra.mxu0 %v189
    %v1507 = vpop.f32.mrf.mxu0
    %v1508 = vadd.f32 0.0, %v1507
    %v1509 = vpop.f32.mrf.mxu0
    %v1510 = vadd.f32 0.0, %v1509
    %1511 = vmatmul.bf16.gmra.mxu0 %v190
    %v1512 = vpop.f32.mrf.mxu0
    %v1513 = vadd.f32 0.0, %v1512
    %v1514 = vpop.f32.mrf.mxu0
    %v1515 = vadd.f32 0.0, %v1514
    %1516 = vdwg.mxu0
    %v1521 = vrot.slane %v1508, 3
    %v1522 = vrot.slane %v1510, 3
    %v1523 = vsel %vm1102, %v1521, %v1522
    %v1524 = vrot.slane %v1513, 3
    %v1525 = vrot.slane %v1515, 3
    %v1526 = vsel %vm1102, %v1524, %v1525
    %v1531 = vadd.f32 %v1430, %v1523
    %v1532 = vadd.f32 %v1431, %v1522
    %v1533 = vadd.f32 %v1432, %v1526
    %v1534 = vadd.f32 %v1433, %v1525
    %v1535 = vld [vmem:[#allocation13 + $0x100] sm:$0xf]
    %v1536 = vld [vmem:[#allocation13 + $0x104] sm:$0xf]
    %v1537 = vld [vmem:[#allocation13 + $0x108] sm:$0xf]
    %v1538 = vld [vmem:[#allocation13 + $0x10c] sm:$0xf]
    %v1539 = vld [vmem:[#allocation13 + $0x110] sm:$0xf]
    %v1540 = vld [vmem:[#allocation13 + $0x114] sm:$0xf]
    %v1541 = vld [vmem:[#allocation13 + $0x118] sm:$0xf]
    %v1542 = vld [vmem:[#allocation13 + $0x11c] sm:$0xf]
    %v1543 = vld [vmem:[#allocation13 + $0x120] sm:$0xf]
    %v1544 = vld [vmem:[#allocation13 + $0x124] sm:$0xf]
    %v1545 = vld [vmem:[#allocation13 + $0x128] sm:$0xf]
    %v1546 = vld [vmem:[#allocation13 + $0x12c] sm:$0xf]
    %v1547 = vld [vmem:[#allocation13 + $0x130] sm:$0xf]
    %v1548 = vld [vmem:[#allocation13 + $0x134] sm:$0xf]
    %v1549 = vld [vmem:[#allocation13 + $0x138] sm:$0xf]
    %v1550 = vld [vmem:[#allocation13 + $0x13c] sm:$0xf]
    %v1567 = vunpack.c.l.b16 %v1535
    %v1568 = vunpack.c.l.b16 %v1536
    %v1569 = vunpack.c.l.b16 %v1537
    %v1570 = vunpack.c.l.b16 %v1538
    %v1571 = vunpack.c.l.b16 %v1539
    %v1572 = vunpack.c.l.b16 %v1540
    %v1573 = vunpack.c.l.b16 %v1541
    %v1574 = vunpack.c.l.b16 %v1542
    %v1575 = vunpack.c.l.b16 %v1543
    %v1576 = vunpack.c.l.b16 %v1544
    %v1577 = vunpack.c.l.b16 %v1545
    %v1578 = vunpack.c.l.b16 %v1546
    %v1579 = vunpack.c.l.b16 %v1547
    %v1580 = vunpack.c.l.b16 %v1548
    %v1581 = vunpack.c.l.b16 %v1549
    %v1582 = vunpack.c.l.b16 %v1550
    %v1583 = vpack.c.b16 %v1568, %v1567
    %v1584 = vpack.c.b16 %v1570, %v1569
    %v1585 = vpack.c.b16 %v1572, %v1571
    %v1586 = vpack.c.b16 %v1574, %v1573
    %v1587 = vpack.c.b16 %v1576, %v1575
    %v1588 = vpack.c.b16 %v1578, %v1577
    %v1589 = vpack.c.b16 %v1580, %v1579
    %v1590 = vpack.c.b16 %v1582, %v1581
    %1599 = vmatpush.bf16.msra.mxu0 %v1590
    %1600 = vmatpush.bf16.msra.mxu0 %v1589
    %1601 = vmatpush.bf16.msra.mxu0 %v1588
    %1602 = vmatpush.bf16.msra.mxu0 %v1587
    %1603 = vmatpush.bf16.msra.mxu0 %v1586
    %1604 = vmatpush.bf16.msra.mxu0 %v1585
    %1605 = vmatpush.bf16.msra.mxu0 %v1584
    %1606 = vmatpush.bf16.msra.mxu0 %v1583
    %1607 = vmatmul.bf16.gmra.mxu0 %v189
    %v1608 = vpop.f32.mrf.mxu0
    %v1609 = vadd.f32 0.0, %v1608
    %v1610 = vpop.f32.mrf.mxu0
    %v1611 = vadd.f32 0.0, %v1610
    %1612 = vmatmul.bf16.gmra.mxu0 %v190
    %v1613 = vpop.f32.mrf.mxu0
    %v1614 = vadd.f32 0.0, %v1613
    %v1615 = vpop.f32.mrf.mxu0
    %v1616 = vadd.f32 0.0, %v1615
    %1617 = vdwg.mxu0
    %vm1622 = vcmask 1043456
    %v1623 = vrot.slane %v1609, 4
    %v1624 = vrot.slane %v1611, 4
    %v1625 = vsel %vm1622, %v1623, %v1624
    %v1626 = vrot.slane %v1614, 4
    %v1627 = vrot.slane %v1616, 4
    %v1628 = vsel %vm1622, %v1626, %v1627
    %v1633 = vadd.f32 %v1531, %v1625
    %v1634 = vadd.f32 %v1532, %v1624
    %v1635 = vadd.f32 %v1533, %v1628
    %v1636 = vadd.f32 %v1534, %v1627
    %v1637 = vld [vmem:[#allocation14] sm:$0x1]
    %v1639 = vperm.slane %v1637, 0
    %v1641 = vadd.f32 %v1633, %v1639
    %v1642 = vadd.f32 %v1634, %v1639
    %v1643 = vadd.f32 %v1635, %v1639
    %v1644 = vadd.f32 %v1636, %v1639
    %v1645 = vmax.f32 %v1641, 0.0
    %v1646 = vmax.f32 %v1642, 0.0
    %v1647 = vmax.f32 %v1643, 0.0
    %v1648 = vmax.f32 %v1644, 0.0
    %v1649 = vsel %vm1622, %v1646, -inf
    %v1650 = vmax.f32 %v1645, %v1649
    %v1651 = vrot.slane %v1650, 4
    %v1652 = vmax.f32 %v1650, %v1651
    %v1653 = vrot.slane %v1652, 2
    %v1654 = vmax.f32 %v1652, %v1653
    %v1655 = vrot.slane %v1654, 1
    %v1656 = vmax.f32 %v1654, %v1655
    %v1657 = vsel %vm1622, %v1648, -inf
    %v1658 = vmax.f32 %v1647, %v1657
    %v1659 = vrot.slane %v1658, 4
    %v1660 = vmax.f32 %v1658, %v1659
    %v1661 = vrot.slane %v1660, 2
    %v1662 = vmax.f32 %v1660, %v1661
    %v1663 = vrot.slane %v1662, 1
    %v1664 = vmax.f32 %v1662, %v1663
    %vm1667 = vcmask 1041409
    %v1668 = vsel %vm1667, %v407, %v399
    %v1672 = vsel %vm1667, %v725, %v717
    %v1676 = vsel %vm1667, %v1144, %v1136
    %v1680 = vsel %vm1667, %v1664, %v1656
    %v1682 = vpack.c.bf16 %v1668, %v1668
    %v1683 = vpack.c.bf16 %v1672, %v1672
    %v1684 = vpack.c.bf16 %v1676, %v1676
    %v1685 = vpack.c.bf16 %v1680, %v1680
    %v1686 = vld [vmem:[#allocation16] sm:$0xf]
    %v1687 = vld [vmem:[#allocation16 + $0x4] sm:$0xf]
    %v1688 = vld [vmem:[#allocation16 + $0x8] sm:$0xf]
    %v1689 = vld [vmem:[#allocation16 + $0xc] sm:$0xf]
    %v1690 = vld [vmem:[#allocation16 + $0x10] sm:$0xf]
    %v1691 = vld [vmem:[#allocation16 + $0x14] sm:$0xf]
    %v1692 = vld [vmem:[#allocation16 + $0x18] sm:$0xf]
    %v1693 = vld [vmem:[#allocation16 + $0x1c] sm:$0xf]
    %v1694 = vld [vmem:[#allocation16 + $0x20] sm:$0xf]
    %v1695 = vld [vmem:[#allocation16 + $0x24] sm:$0xf]
    %v1696 = vld [vmem:[#allocation16 + $0x28] sm:$0xf]
    %v1697 = vld [vmem:[#allocation16 + $0x2c] sm:$0xf]
    %v1698 = vld [vmem:[#allocation16 + $0x30] sm:$0xf]
    %v1699 = vld [vmem:[#allocation16 + $0x34] sm:$0xf]
    %v1700 = vld [vmem:[#allocation16 + $0x38] sm:$0xf]
    %v1701 = vld [vmem:[#allocation16 + $0x3c] sm:$0xf]
    %v1702 = vld [vmem:[#allocation16 + $0x40] sm:$0xf]
    %v1703 = vld [vmem:[#allocation16 + $0x44] sm:$0xf]
    %v1704 = vld [vmem:[#allocation16 + $0x48] sm:$0xf]
    %v1705 = vld [vmem:[#allocation16 + $0x4c] sm:$0xf]
    %v1706 = vld [vmem:[#allocation16 + $0x50] sm:$0xf]
    %v1707 = vld [vmem:[#allocation16 + $0x54] sm:$0xf]
    %v1708 = vld [vmem:[#allocation16 + $0x58] sm:$0xf]
    %v1709 = vld [vmem:[#allocation16 + $0x5c] sm:$0xf]
    %v1710 = vld [vmem:[#allocation16 + $0x60] sm:$0xf]
    %v1711 = vld [vmem:[#allocation16 + $0x64] sm:$0xf]
    %v1712 = vld [vmem:[#allocation16 + $0x68] sm:$0xf]
    %v1713 = vld [vmem:[#allocation16 + $0x6c] sm:$0xf]
    %v1714 = vld [vmem:[#allocation16 + $0x70] sm:$0xf]
    %v1715 = vld [vmem:[#allocation16 + $0x74] sm:$0xf]
    %v1716 = vld [vmem:[#allocation16 + $0x78] sm:$0xf]
    %v1717 = vld [vmem:[#allocation16 + $0x7c] sm:$0xf]
    %v1718 = vld [vmem:[#allocation16 + $0x80] sm:$0xf]
    %v1719 = vld [vmem:[#allocation16 + $0x84] sm:$0xf]
    %v1720 = vld [vmem:[#allocation16 + $0x88] sm:$0xf]
    %v1721 = vld [vmem:[#allocation16 + $0x8c] sm:$0xf]
    %v1722 = vld [vmem:[#allocation16 + $0x90] sm:$0xf]
    %v1723 = vld [vmem:[#allocation16 + $0x94] sm:$0xf]
    %v1724 = vld [vmem:[#allocation16 + $0x98] sm:$0xf]
    %v1725 = vld [vmem:[#allocation16 + $0x9c] sm:$0xf]
    %v1726 = vld [vmem:[#allocation16 + $0xa0] sm:$0xf]
    %v1727 = vld [vmem:[#allocation16 + $0xa4] sm:$0xf]
    %v1728 = vld [vmem:[#allocation16 + $0xa8] sm:$0xf]
    %v1729 = vld [vmem:[#allocation16 + $0xac] sm:$0xf]
    %v1730 = vld [vmem:[#allocation16 + $0xb0] sm:$0xf]
    %v1731 = vld [vmem:[#allocation16 + $0xb4] sm:$0xf]
    %v1732 = vld [vmem:[#allocation16 + $0xb8] sm:$0xf]
    %v1733 = vld [vmem:[#allocation16 + $0xbc] sm:$0xf]
    %v1734 = vld [vmem:[#allocation16 + $0xc0] sm:$0xf]
    %v1735 = vld [vmem:[#allocation16 + $0xc4] sm:$0xf]
    %v1736 = vld [vmem:[#allocation16 + $0xc8] sm:$0xf]
    %v1737 = vld [vmem:[#allocation16 + $0xcc] sm:$0xf]
    %v1738 = vld [vmem:[#allocation16 + $0xd0] sm:$0xf]
    %v1739 = vld [vmem:[#allocation16 + $0xd4] sm:$0xf]
    %v1740 = vld [vmem:[#allocation16 + $0xd8] sm:$0xf]
    %v1741 = vld [vmem:[#allocation16 + $0xdc] sm:$0xf]
    %v1742 = vld [vmem:[#allocation16 + $0xe0] sm:$0xf]
    %v1743 = vld [vmem:[#allocation16 + $0xe4] sm:$0xf]
    %v1744 = vld [vmem:[#allocation16 + $0xe8] sm:$0xf]
    %v1745 = vld [vmem:[#allocation16 + $0xec] sm:$0xf]
    %v1746 = vld [vmem:[#allocation16 + $0xf0] sm:$0xf]
    %v1747 = vld [vmem:[#allocation16 + $0xf4] sm:$0xf]
    %v1748 = vld [vmem:[#allocation16 + $0xf8] sm:$0xf]
    %v1749 = vld [vmem:[#allocation16 + $0xfc] sm:$0xf]
    %v1750 = vld [vmem:[#allocation17] sm:$0x1]
    %v1752 = vperm.slane %v1750, 0
    %v1818 = vunpack.c.l.b16 %v1686
    %v1819 = vunpack.c.l.b16 %v1687
    %v1820 = vunpack.c.l.b16 %v1688
    %v1821 = vunpack.c.l.b16 %v1689
    %v1822 = vunpack.c.l.b16 %v1690
    %v1823 = vunpack.c.l.b16 %v1691
    %v1824 = vunpack.c.l.b16 %v1692
    %v1825 = vunpack.c.l.b16 %v1693
    %v1826 = vunpack.c.l.b16 %v1694
    %v1827 = vunpack.c.l.b16 %v1695
    %v1828 = vunpack.c.l.b16 %v1696
    %v1829 = vunpack.c.l.b16 %v1697
    %v1830 = vunpack.c.l.b16 %v1698
    %v1831 = vunpack.c.l.b16 %v1699
    %v1832 = vunpack.c.l.b16 %v1700
    %v1833 = vunpack.c.l.b16 %v1701
    %v1834 = vunpack.c.l.b16 %v1702
    %v1835 = vunpack.c.l.b16 %v1703
    %v1836 = vunpack.c.l.b16 %v1704
    %v1837 = vunpack.c.l.b16 %v1705
    %v1838 = vunpack.c.l.b16 %v1706
    %v1839 = vunpack.c.l.b16 %v1707
    %v1840 = vunpack.c.l.b16 %v1708
    %v1841 = vunpack.c.l.b16 %v1709
    %v1842 = vunpack.c.l.b16 %v1710
    %v1843 = vunpack.c.l.b16 %v1711
    %v1844 = vunpack.c.l.b16 %v1712
    %v1845 = vunpack.c.l.b16 %v1713
    %v1846 = vunpack.c.l.b16 %v1714
    %v1847 = vunpack.c.l.b16 %v1715
    %v1848 = vunpack.c.l.b16 %v1716
    %v1849 = vunpack.c.l.b16 %v1717
    %v1850 = vunpack.c.l.b16 %v1718
    %v1851 = vunpack.c.l.b16 %v1719
    %v1852 = vunpack.c.l.b16 %v1720
    %v1853 = vunpack.c.l.b16 %v1721
    %v1854 = vunpack.c.l.b16 %v1722
    %v1855 = vunpack.c.l.b16 %v1723
    %v1856 = vunpack.c.l.b16 %v1724
    %v1857 = vunpack.c.l.b16 %v1725
    %v1858 = vunpack.c.l.b16 %v1726
    %v1859 = vunpack.c.l.b16 %v1727
    %v1860 = vunpack.c.l.b16 %v1728
    %v1861 = vunpack.c.l.b16 %v1729
    %v1862 = vunpack.c.l.b16 %v1730
    %v1863 = vunpack.c.l.b16 %v1731
    %v1864 = vunpack.c.l.b16 %v1732
    %v1865 = vunpack.c.l.b16 %v1733
    %v1866 = vunpack.c.l.b16 %v1734
    %v1867 = vunpack.c.l.b16 %v1735
    %v1868 = vunpack.c.l.b16 %v1736
    %v1869 = vunpack.c.l.b16 %v1737
    %v1870 = vunpack.c.l.b16 %v1738
    %v1871 = vunpack.c.l.b16 %v1739
    %v1872 = vunpack.c.l.b16 %v1740
    %v1873 = vunpack.c.l.b16 %v1741
    %v1874 = vunpack.c.l.b16 %v1742
    %v1875 = vunpack.c.l.b16 %v1743
    %v1876 = vunpack.c.l.b16 %v1744
    %v1877 = vunpack.c.l.b16 %v1745
    %v1878 = vunpack.c.l.b16 %v1746
    %v1879 = vunpack.c.l.b16 %v1747
    %v1880 = vunpack.c.l.b16 %v1748
    %v1881 = vunpack.c.l.b16 %v1749
    %v1882 = vpack.c.b16 %v1819, %v1818
    %v1883 = vpack.c.b16 %v1821, %v1820
    %v1884 = vpack.c.b16 %v1823, %v1822
    %v1885 = vpack.c.b16 %v1825, %v1824
    %v1886 = vpack.c.b16 %v1827, %v1826
    %v1887 = vpack.c.b16 %v1829, %v1828
    %v1888 = vpack.c.b16 %v1831, %v1830
    %v1889 = vpack.c.b16 %v1833, %v1832
    %v1890 = vpack.c.b16 %v1835, %v1834
    %v1891 = vpack.c.b16 %v1837, %v1836
    %v1892 = vpack.c.b16 %v1839, %v1838
    %v1893 = vpack.c.b16 %v1841, %v1840
    %v1894 = vpack.c.b16 %v1843, %v1842
    %v1895 = vpack.c.b16 %v1845, %v1844
    %v1896 = vpack.c.b16 %v1847, %v1846
    %v1897 = vpack.c.b16 %v1849, %v1848
    %v1898 = vpack.c.b16 %v1851, %v1850
    %v1899 = vpack.c.b16 %v1853, %v1852
    %v1900 = vpack.c.b16 %v1855, %v1854
    %v1901 = vpack.c.b16 %v1857, %v1856
    %v1902 = vpack.c.b16 %v1859, %v1858
    %v1903 = vpack.c.b16 %v1861, %v1860
    %v1904 = vpack.c.b16 %v1863, %v1862
    %v1905 = vpack.c.b16 %v1865, %v1864
    %v1906 = vpack.c.b16 %v1867, %v1866
    %v1907 = vpack.c.b16 %v1869, %v1868
    %v1908 = vpack.c.b16 %v1871, %v1870
    %v1909 = vpack.c.b16 %v1873, %v1872
    %v1910 = vpack.c.b16 %v1875, %v1874
    %v1911 = vpack.c.b16 %v1877, %v1876
    %v1912 = vpack.c.b16 %v1879, %v1878
    %v1913 = vpack.c.b16 %v1881, %v1880
    %1946 = vmatpush.bf16.msra.mxu0 %v1889
    %1947 = vmatpush.bf16.msra.mxu0 %v1888
    %1948 = vmatpush.bf16.msra.mxu0 %v1887
    %1949 = vmatpush.bf16.msra.mxu0 %v1886
    %1950 = vmatpush.bf16.msra.mxu0 %v1885
    %1951 = vmatpush.bf16.msra.mxu0 %v1884
    %1952 = vmatpush.bf16.msra.mxu0 %v1883
    %1953 = vmatpush.bf16.msra.mxu0 %v1882
    %1954 = vmatmul.bf16.gmra.mxu0 %v1682
    %v1955 = vpop.f32.mrf.mxu0
    %v1956 = vadd.f32 %v1752, %v1955
    %v1957 = vpop.f32.mrf.mxu0
    %1958 = vdwg.mxu0
    %1959 = vmatpush.bf16.msra.mxu0 %v1897
    %1960 = vmatpush.bf16.msra.mxu0 %v1896
    %1961 = vmatpush.bf16.msra.mxu0 %v1895
    %1962 = vmatpush.bf16.msra.mxu0 %v1894
    %1963 = vmatpush.bf16.msra.mxu0 %v1893
    %1964 = vmatpush.bf16.msra.mxu0 %v1892
    %1965 = vmatpush.bf16.msra.mxu0 %v1891
    %1966 = vmatpush.bf16.msra.mxu0 %v1890
    %1967 = vmatmul.bf16.gmra.mxu0 %v1683
    %v1968 = vpop.f32.mrf.mxu0
    %v1969 = vadd.f32 %v1956, %v1968
    %v1970 = vpop.f32.mrf.mxu0
    %1971 = vdwg.mxu0
    %1972 = vmatpush.bf16.msra.mxu0 %v1905
    %1973 = vmatpush.bf16.msra.mxu0 %v1904
    %1974 = vmatpush.bf16.msra.mxu0 %v1903
    %1975 = vmatpush.bf16.msra.mxu0 %v1902
    %1976 = vmatpush.bf16.msra.mxu0 %v1901
    %1977 = vmatpush.bf16.msra.mxu0 %v1900
    %1978 = vmatpush.bf16.msra.mxu0 %v1899
    %1979 = vmatpush.bf16.msra.mxu0 %v1898
    %1980 = vmatmul.bf16.gmra.mxu0 %v1684
    %v1981 = vpop.f32.mrf.mxu0
    %v1982 = vadd.f32 %v1969, %v1981
    %v1983 = vpop.f32.mrf.mxu0
    %1984 = vdwg.mxu0
    %1985 = vmatpush.bf16.msra.mxu0 %v1913
    %1986 = vmatpush.bf16.msra.mxu0 %v1912
    %1987 = vmatpush.bf16.msra.mxu0 %v1911
    %1988 = vmatpush.bf16.msra.mxu0 %v1910
    %1989 = vmatpush.bf16.msra.mxu0 %v1909
    %1990 = vmatpush.bf16.msra.mxu0 %v1908
    %1991 = vmatpush.bf16.msra.mxu0 %v1907
    %1992 = vmatpush.bf16.msra.mxu0 %v1906
    %1993 = vmatmul.bf16.gmra.mxu0 %v1685
    %v1994 = vpop.f32.mrf.mxu0
    %v1995 = vadd.f32 %v1982, %v1994
    %v1996 = vpop.f32.mrf.mxu0
    %1997 = vdwg.mxu0
    %1998 = vst [vmem:[#allocation19] sm:$0x3] %v1995
    // Predicated region
    $region86: #{encoder_kimcnn_forward.7} parent=1 // pred_check
      _
    $region87: #{encoder_kimcnn_forward.7} parent=1 // pred_check_branch
      %2000 = sbr.rel (0) target = $region89
    $region88: #{encoder_kimcnn_forward.7} parent=1 // pred_region
      %2002 = vsyncadd [#allocation4], 0
      %s2004 = sshll.u32 [#allocation19], 4
      %s2005 = int_to_ptr.vmem [resolvable:$true] %s2004
      %s2006 = sshll.u32 %s11, 4
      %s2007 = int_to_ptr.hbm [resolvable:$true] %s2006
      %2009 = dma.vmem_to_hbm [thread:$0]  %s2005, 32, %s2007, [#allocation4]
    $region89: #{encoder_kimcnn_forward.7} parent=1 // pred_fallthru
      _
    // Predicated region
    $region90: #{encoder_kimcnn_forward.7} parent=1 // pred_check
      _
    $region91: #{encoder_kimcnn_forward.7} parent=1 // pred_check_branch
      %2011 = sbr.rel (0) target = $region93
    $region92: #{encoder_kimcnn_forward.7} parent=1 // pred_region
      %2013 = dma.done [#allocation4], 32
    $region93: #{encoder_kimcnn_forward.7} parent=1 // pred_fallthru
      _
    %2014 = vsyncpa [#allocation3], 1
    %2015 = vsyncpa [#allocation6], 1
    %2016 = vsyncpa [#allocation9], 1
    %2017 = vsyncpa [#allocation12], 1
    %2018 = vsyncpa [#allocation15], 1
    %2019 = vsyncpa [#allocation18], 1
    %2020 = vsyncpa [#allocation4], 1

</llo_original>
